<compile_context>
chip_gen: v5e
topology: v5e:2x2
jax: 0.10.0
libtpu: 0.0.40
codegen_flags: <defaults>
</compile_context>

<pallas_src>
import functools

import jax
import jax.numpy as jnp
from jax import lax
from jax.experimental import pallas as pl
from jax.experimental.pallas import tpu as pltpu


CFG = dict(vocab=100, max_pos=32, dim=128, heads=4, ffn=256, layers=2)
LN_EPS = 1e-12


# --------------------------- fused tower kernel -----------------------------

def _tower_kernel(x_ref, eg_ref, eb_ref,
                  wqkv_ref, bqkv_ref, wo_ref, bo_ref, ln1g_ref, ln1b_ref,
                  w1_ref, b1_ref, w2_ref, b2_ref, ln2g_ref, ln2b_ref,
                  o_ref, *, n_heads, n_layers, eps):
    """One batch row: embedding LN + n_layers transformer blocks, all in VMEM."""
    S, dim = x_ref.shape[1], x_ref.shape[2]
    dh = dim // n_heads
    scale = 1.0 / float(dh) ** 0.5

    def ln(x, g, b):                                    # f32 LayerNorm
        mu = jnp.mean(x, axis=-1, keepdims=True)
        var = jnp.mean((x - mu) ** 2, axis=-1, keepdims=True)
        return (x - mu) * lax.rsqrt(var + eps) * g + b

    def mm(a, b):                                       # bf16 MXU, f32 accumulate
        return jnp.dot(a.astype(jnp.bfloat16), b,
                       preferred_element_type=jnp.float32)

    # embedding LayerNorm (no residual, no zero-array read)
    h = ln(x_ref[0].astype(jnp.float32), eg_ref[...], eb_ref[...])

    for l in range(n_layers):                           # static unrolled loop
        # ---- fused Q|K|V projection: one lane-dense (S, 3*dim) matmul ----
        qkv = mm(h, wqkv_ref[l]) + bqkv_ref[l]
        q = qkv[:, :dim]
        k = qkv[:, dim:2 * dim]
        v = qkv[:, 2 * dim:]

        # ---- multi-head attention (softmax in f32) ----
        ctx = []
        for hd in range(n_heads):
            lo, hi = hd * dh, (hd + 1) * dh
            qh = q[:, lo:hi].astype(jnp.bfloat16)
            kh = k[:, lo:hi].astype(jnp.bfloat16)
            vh = v[:, lo:hi].astype(jnp.bfloat16)
            # contract on the last dims of both operands (absorbs the k^T)
            s = lax.dot_general(qh, kh, (((1,), (1,)), ((), ())),
                                preferred_element_type=jnp.float32) * scale
            s = s - jnp.max(s, axis=-1, keepdims=True)
            p = jnp.exp(s)
            p = p / jnp.sum(p, axis=-1, keepdims=True)
            ctx.append(jnp.dot(p.astype(jnp.bfloat16), vh,
                               preferred_element_type=jnp.float32))
        ctx = jnp.concatenate(ctx, axis=-1)             # (S, dim) lane-dense

        # ---- attention output projection + residual + LN ----
        sa = mm(ctx, wo_ref[l]) + bo_ref[l]
        h = ln(sa + h, ln1g_ref[l], ln1b_ref[l])

        # ---- FFN: w1 -> exact GELU (erf, matches HF DistilBERT) -> w2 ----
        ff = mm(h, w1_ref[l]) + b1_ref[l]
        ff = 0.5 * ff * (1.0 + lax.erf(ff * 0.7071067811865476))
        ff = mm(ff, w2_ref[l]) + b2_ref[l]
        h = ln(ff + h, ln2g_ref[l], ln2b_ref[l])

    o_ref[0] = h.astype(o_ref.dtype)


# ------------------------------ tower wrapper --------------------------------

def distilbert_tower(params, ids, cfg=CFG):
    """ids: (B, S) int32 -> CLS embedding (B, dim)  (== bert(x)[0][:, 0, :])."""
    B, S = ids.shape
    dim, ffn, L, H = cfg["dim"], cfg["ffn"], cfg["layers"], cfg["heads"]

    # TODO(synk): embedding gather is data-dependent; it stays in plain JAX.
    #             Dropout is identity (inference semantics).
    emb = (params["word_emb"][ids]
           + params["pos_emb"][jnp.arange(S)][None, :, :]).astype(jnp.float32)

    rep3 = lambda b: (0, 0, 0)   # weights: same block for every grid step
    rep2 = lambda b: (0, 0)

    out = pl.pallas_call(
        functools.partial(_tower_kernel, n_heads=H, n_layers=L, eps=LN_EPS),
        out_shape=jax.ShapeDtypeStruct((B, S, dim), jnp.float32),
        grid=(B,),
        in_specs=[
            pl.BlockSpec((1, S, dim), lambda b: (b, 0, 0)),   # embeddings
            pl.BlockSpec((1, dim), rep2),                     # emb LN gamma
            pl.BlockSpec((1, dim), rep2),                     # emb LN beta
            pl.BlockSpec((L, dim, 3 * dim), rep3),            # wqkv (bf16)
            pl.BlockSpec((L, 1, 3 * dim), rep3),              # bqkv
            pl.BlockSpec((L, dim, dim), rep3),                # wo   (bf16)
            pl.BlockSpec((L, 1, dim), rep3),                  # bo
            pl.BlockSpec((L, 1, dim), rep3),                  # ln1 gamma
            pl.BlockSpec((L, 1, dim), rep3),                  # ln1 beta
            pl.BlockSpec((L, dim, ffn), rep3),                # w1   (bf16)
            pl.BlockSpec((L, 1, ffn), rep3),                  # b1
            pl.BlockSpec((L, ffn, dim), rep3),                # w2   (bf16)
            pl.BlockSpec((L, 1, dim), rep3),                  # b2
            pl.BlockSpec((L, 1, dim), rep3),                  # ln2 gamma
            pl.BlockSpec((L, 1, dim), rep3),                  # ln2 beta
        ],
        out_specs=pl.BlockSpec((1, S, dim), lambda b: (b, 0, 0)),
        compiler_params=pltpu.CompilerParams(
            dimension_semantics=("parallel",)),  # batch rows -> 2 TCs on v7x
    )(emb, params["emb_ln_g"], params["emb_ln_b"],
      params["wqkv"], params["bqkv"], params["wo"], params["bo"],
      params["ln1_g"], params["ln1_b"],
      params["w1"], params["b1"], params["w2"], params["b2"],
      params["ln2_g"], params["ln2_b"])

    cls = out[:, 0, :]                    # [:, 0, :] pooling
    return cls.reshape(-1, dim)           # .view(-1, dim)


def distilbert_qa_forward(params_q, params_p, x_q, x_p):
    out_q = distilbert_tower(params_q, x_q) if x_q is not None else None
    out_p = distilbert_tower(params_p, x_p) if x_p is not None else None
    return out_q, out_p


# ------------------------------ parameters -----------------------------------

def init_distilbert_params(key, cfg=CFG):
    """Random-init DistilBERT-style params, pre-packed for the fused kernel:
    per-layer weights stacked on a leading L axis; QKV fused into (dim,3*dim);
    matmul weights stored bf16, biases/LN params f32."""
    dim, ffn, L = cfg["dim"], cfg["ffn"], cfg["layers"]
    std = 0.02
    ks = jax.random.split(key, 6)

    def w(k, shape):
        return std * jax.random.normal(k, shape, jnp.float32)

    return {
        "word_emb": w(ks[0], (cfg["vocab"], dim)),
        "pos_emb": w(ks[1], (cfg["max_pos"], dim)),
        "emb_ln_g": jnp.ones((1, dim), jnp.float32),
        "emb_ln_b": jnp.zeros((1, dim), jnp.float32),
        "wqkv": w(ks[2], (L, dim, 3 * dim)).astype(jnp.bfloat16),
        "bqkv": jnp.zeros((L, 1, 3 * dim), jnp.float32),
        "wo": w(ks[3], (L, dim, dim)).astype(jnp.bfloat16),
        "bo": jnp.zeros((L, 1, dim), jnp.float32),
        "ln1_g": jnp.ones((L, 1, dim), jnp.float32),
        "ln1_b": jnp.zeros((L, 1, dim), jnp.float32),
        "w1": w(ks[4], (L, dim, ffn)).astype(jnp.bfloat16),
        "b1": jnp.zeros((L, 1, ffn), jnp.float32),
        "w2": w(ks[5], (L, ffn, dim)).astype(jnp.bfloat16),
        "b2": jnp.zeros((L, 1, dim), jnp.float32),
        "ln2_g": jnp.ones((L, 1, dim), jnp.float32),
        "ln2_b": jnp.zeros((L, 1, dim), jnp.float32),
    }


# --------------------------------- main ---------------------------------------

if __name__ == "__main__":
    key = jax.random.PRNGKey(0)
    kq, kp, kxq, kxp = jax.random.split(key, 4)

    params_q = init_distilbert_params(kq)   # bert_q weights
    params_p = init_distilbert_params(kp)   # bert_p weights

    B, S = 2, 8
    x_q = jax.random.randint(kxq, (B, S), 0, CFG["vocab"], dtype=jnp.int32)
    x_p = jax.random.randint(kxp, (B, S), 0, CFG["vocab"], dtype=jnp.int32)

    fwd = jax.jit(distilbert_qa_forward)
    out_q, out_p = fwd(params_q, params_p, x_q, x_p)
    jax.block_until_ready((out_q, out_p))

    assert out_q.shape == (B, CFG["dim"]) and out_p.shape == (B, CFG["dim"])
    assert out_q.dtype == jnp.float32 and out_p.dtype == jnp.float32
    assert bool(jnp.all(jnp.isfinite(out_q))) and bool(jnp.all(jnp.isfinite(out_p)))
    print("KERNEL_OK")
</pallas_src>

<mosaic_0001>
module attributes {stable_mosaic.version = 11 : i64} {
  func.func @_tower_kernel(%arg0: i32, %arg1: memref<1x8x128xf32, #tpu.memory_space<vmem>>, %arg2: memref<1x128xf32, #tpu.memory_space<vmem>>, %arg3: memref<1x128xf32, #tpu.memory_space<vmem>>, %arg4: memref<2x128x384xbf16, #tpu.memory_space<vmem>>, %arg5: memref<2x1x384xf32, #tpu.memory_space<vmem>>, %arg6: memref<2x128x128xbf16, #tpu.memory_space<vmem>>, %arg7: memref<2x1x128xf32, #tpu.memory_space<vmem>>, %arg8: memref<2x1x128xf32, #tpu.memory_space<vmem>>, %arg9: memref<2x1x128xf32, #tpu.memory_space<vmem>>, %arg10: memref<2x128x256xbf16, #tpu.memory_space<vmem>>, %arg11: memref<2x1x256xf32, #tpu.memory_space<vmem>>, %arg12: memref<2x256x128xbf16, #tpu.memory_space<vmem>>, %arg13: memref<2x1x128xf32, #tpu.memory_space<vmem>>, %arg14: memref<2x1x128xf32, #tpu.memory_space<vmem>>, %arg15: memref<2x1x128xf32, #tpu.memory_space<vmem>>, %arg16: memref<1x8x128xf32, #tpu.memory_space<vmem>>) attributes {dimension_semantics = [#tpu.dimension_semantics<parallel>], iteration_bounds = array<i64: 2>, scalar_prefetch = 0 : i64, scratch_operands = 0 : i64, tpu.core_type = #tpu.core_type<tc>, window_params = [{transform_indices = @transform_0, window_bounds = array<i64: 1, 8, 128>}, {pipeline_mode = #tpu.pipeline_mode<synchronous>, transform_indices = @transform_1, window_bounds = array<i64: 1, 128>}, {pipeline_mode = #tpu.pipeline_mode<synchronous>, transform_indices = @transform_2, window_bounds = array<i64: 1, 128>}, {pipeline_mode = #tpu.pipeline_mode<synchronous>, transform_indices = @transform_3, window_bounds = array<i64: 2, 128, 384>}, {pipeline_mode = #tpu.pipeline_mode<synchronous>, transform_indices = @transform_4, window_bounds = array<i64: 2, 1, 384>}, {pipeline_mode = #tpu.pipeline_mode<synchronous>, transform_indices = @transform_5, window_bounds = array<i64: 2, 128, 128>}, {pipeline_mode = #tpu.pipeline_mode<synchronous>, transform_indices = @transform_6, window_bounds = array<i64: 2, 1, 128>}, {pipeline_mode = #tpu.pipeline_mode<synchronous>, transform_indices = @transform_7, window_bounds = array<i64: 2, 1, 128>}, {pipeline_mode = #tpu.pipeline_mode<synchronous>, transform_indices = @transform_8, window_bounds = array<i64: 2, 1, 128>}, {pipeline_mode = #tpu.pipeline_mode<synchronous>, transform_indices = @transform_9, window_bounds = array<i64: 2, 128, 256>}, {pipeline_mode = #tpu.pipeline_mode<synchronous>, transform_indices = @transform_10, window_bounds = array<i64: 2, 1, 256>}, {pipeline_mode = #tpu.pipeline_mode<synchronous>, transform_indices = @transform_11, window_bounds = array<i64: 2, 256, 128>}, {pipeline_mode = #tpu.pipeline_mode<synchronous>, transform_indices = @transform_12, window_bounds = array<i64: 2, 1, 128>}, {pipeline_mode = #tpu.pipeline_mode<synchronous>, transform_indices = @transform_13, window_bounds = array<i64: 2, 1, 128>}, {pipeline_mode = #tpu.pipeline_mode<synchronous>, transform_indices = @transform_14, window_bounds = array<i64: 2, 1, 128>}, {transform_indices = @transform_15, window_bounds = array<i64: 1, 8, 128>}]} {
    %c0 = arith.constant 0 : index
    %c0_0 = arith.constant 0 : index
    %c0_1 = arith.constant 0 : index
    %0 = vector.load %arg1[%c0, %c0_0, %c0_1] : memref<1x8x128xf32, #tpu.memory_space<vmem>>, vector<1x8x128xf32>
    %1 = vector.shape_cast %0 : vector<1x8x128xf32> to vector<8x128xf32>
    %c0_2 = arith.constant 0 : index
    %c0_3 = arith.constant 0 : index
    %2 = vector.load %arg2[%c0_2, %c0_3] : memref<1x128xf32, #tpu.memory_space<vmem>>, vector<1x128xf32>
    %c0_4 = arith.constant 0 : index
    %c0_5 = arith.constant 0 : index
    %3 = vector.load %arg3[%c0_4, %c0_5] : memref<1x128xf32, #tpu.memory_space<vmem>>, vector<1x128xf32>
    %cst = arith.constant dense<0.000000e+00> : vector<8xf32>
    %4 = vector.multi_reduction <add>, %1, %cst [1] : vector<8x128xf32> to vector<8xf32>
    %5 = vector.shape_cast %4 : vector<8xf32> to vector<8x1xf32>
    %cst_6 = arith.constant 1.280000e+02 : f32
    %6 = vector.broadcast %cst_6 : f32 to vector<8x1xf32>
    %7 = arith.divf %5, %6 : vector<8x1xf32>
    %8 = vector.broadcast %7 : vector<8x1xf32> to vector<8x128xf32>
    %9 = arith.subf %1, %8 : vector<8x128xf32>
    %10 = arith.mulf %9, %9 : vector<8x128xf32>
    %cst_7 = arith.constant dense<0.000000e+00> : vector<8xf32>
    %11 = vector.multi_reduction <add>, %10, %cst_7 [1] : vector<8x128xf32> to vector<8xf32>
    %12 = vector.shape_cast %11 : vector<8xf32> to vector<8x1xf32>
    %cst_8 = arith.constant 1.280000e+02 : f32
    %13 = vector.broadcast %cst_8 : f32 to vector<8x1xf32>
    %14 = arith.divf %12, %13 : vector<8x1xf32>
    %15 = vector.broadcast %7 : vector<8x1xf32> to vector<8x128xf32>
    %16 = arith.subf %1, %15 : vector<8x128xf32>
    %cst_9 = arith.constant 9.99999996E-13 : f32
    %17 = vector.broadcast %cst_9 : f32 to vector<8x1xf32>
    %18 = arith.addf %14, %17 : vector<8x1xf32>
    %19 = math.rsqrt %18 : vector<8x1xf32>
    %20 = vector.broadcast %19 : vector<8x1xf32> to vector<8x128xf32>
    %21 = arith.mulf %16, %20 : vector<8x128xf32>
    %22 = vector.broadcast %2 : vector<1x128xf32> to vector<8x128xf32>
    %23 = arith.mulf %21, %22 : vector<8x128xf32>
    %24 = vector.broadcast %3 : vector<1x128xf32> to vector<8x128xf32>
    %25 = arith.addf %23, %24 : vector<8x128xf32>
    %c0_10 = arith.constant 0 : index
    %c0_11 = arith.constant 0 : index
    %c0_12 = arith.constant 0 : index
    %26 = vector.load %arg4[%c0_10, %c0_11, %c0_12] : memref<2x128x384xbf16, #tpu.memory_space<vmem>>, vector<1x128x384xbf16>
    %27 = vector.shape_cast %26 : vector<1x128x384xbf16> to vector<128x384xbf16>
    %28 = arith.truncf %25 : vector<8x128xf32> to vector<8x128xbf16>
    %cst_13 = arith.constant dense<0.000000e+00> : vector<8x384xf32>
    %29 = tpu.matmul %28, %27, %cst_13 {dimension_numbers = #tpu.dot_dimension_numbers<[1], [0], [0], [1], [0, 0, 1, 1], [], []>} : vector<8x128xbf16>, vector<128x384xbf16>, vector<8x384xf32> -> vector<8x384xf32>
    %c0_14 = arith.constant 0 : index
    %c0_15 = arith.constant 0 : index
    %c0_16 = arith.constant 0 : index
    %30 = vector.load %arg5[%c0_14, %c0_15, %c0_16] : memref<2x1x384xf32, #tpu.memory_space<vmem>>, vector<1x1x384xf32>
    %31 = vector.shape_cast %30 : vector<1x1x384xf32> to vector<1x384xf32>
    %32 = vector.broadcast %31 : vector<1x384xf32> to vector<8x384xf32>
    %33 = arith.addf %29, %32 : vector<8x384xf32>
    %34 = vector.extract_strided_slice %33 {offsets = [0, 0], sizes = [8, 128], strides = [1, 1]} : vector<8x384xf32> to vector<8x128xf32>
    %35 = vector.extract_strided_slice %33 {offsets = [0, 128], sizes = [8, 128], strides = [1, 1]} : vector<8x384xf32> to vector<8x128xf32>
    %36 = vector.extract_strided_slice %33 {offsets = [0, 256], sizes = [8, 128], strides = [1, 1]} : vector<8x384xf32> to vector<8x128xf32>
    %37 = vector.extract_strided_slice %34 {offsets = [0, 0], sizes = [8, 32], strides = [1, 1]} : vector<8x128xf32> to vector<8x32xf32>
    %38 = arith.truncf %37 : vector<8x32xf32> to vector<8x32xbf16>
    %39 = vector.extract_strided_slice %35 {offsets = [0, 0], sizes = [8, 32], strides = [1, 1]} : vector<8x128xf32> to vector<8x32xf32>
    %40 = arith.truncf %39 : vector<8x32xf32> to vector<8x32xbf16>
    %41 = vector.extract_strided_slice %36 {offsets = [0, 0], sizes = [8, 32], strides = [1, 1]} : vector<8x128xf32> to vector<8x32xf32>
    %42 = arith.truncf %41 : vector<8x32xf32> to vector<8x32xbf16>
    %cst_17 = arith.constant dense<0.000000e+00> : vector<8x8xf32>
    %43 = tpu.matmul %38, %40, %cst_17 {dimension_numbers = #tpu.dot_dimension_numbers<[1], [1], [0], [0], [0, 0, 1, 0], [], []>} : vector<8x32xbf16>, vector<8x32xbf16>, vector<8x8xf32> -> vector<8x8xf32>
    %cst_18 = arith.constant 0.176776692 : f32
    %44 = vector.broadcast %cst_18 : f32 to vector<8x8xf32>
    %45 = arith.mulf %43, %44 : vector<8x8xf32>
    %cst_19 = arith.constant dense<0xFF800000> : vector<8xf32>
    %46 = vector.multi_reduction <maximumf>, %45, %cst_19 [1] : vector<8x8xf32> to vector<8xf32>
    %47 = vector.shape_cast %46 : vector<8xf32> to vector<8x1xf32>
    %48 = vector.broadcast %47 : vector<8x1xf32> to vector<8x8xf32>
    %49 = arith.subf %45, %48 : vector<8x8xf32>
    %50 = math.exp %49 : vector<8x8xf32>
    %cst_20 = arith.constant dense<0.000000e+00> : vector<8xf32>
    %51 = vector.multi_reduction <add>, %50, %cst_20 [1] : vector<8x8xf32> to vector<8xf32>
    %52 = vector.shape_cast %51 : vector<8xf32> to vector<8x1xf32>
    %53 = vector.broadcast %52 : vector<8x1xf32> to vector<8x8xf32>
    %54 = arith.divf %50, %53 : vector<8x8xf32>
    %55 = arith.truncf %54 : vector<8x8xf32> to vector<8x8xbf16>
    %cst_21 = arith.constant dense<0.000000e+00> : vector<8x32xf32>
    %56 = tpu.matmul %55, %42, %cst_21 {dimension_numbers = #tpu.dot_dimension_numbers<[1], [0], [0], [1], [0, 0, 1, 1], [], []>} : vector<8x8xbf16>, vector<8x32xbf16>, vector<8x32xf32> -> vector<8x32xf32>
    %57 = vector.extract_strided_slice %34 {offsets = [0, 32], sizes = [8, 32], strides = [1, 1]} : vector<8x128xf32> to vector<8x32xf32>
    %58 = arith.truncf %57 : vector<8x32xf32> to vector<8x32xbf16>
    %59 = vector.extract_strided_slice %35 {offsets = [0, 32], sizes = [8, 32], strides = [1, 1]} : vector<8x128xf32> to vector<8x32xf32>
    %60 = arith.truncf %59 : vector<8x32xf32> to vector<8x32xbf16>
    %61 = vector.extract_strided_slice %36 {offsets = [0, 32], sizes = [8, 32], strides = [1, 1]} : vector<8x128xf32> to vector<8x32xf32>
    %62 = arith.truncf %61 : vector<8x32xf32> to vector<8x32xbf16>
    %cst_22 = arith.constant dense<0.000000e+00> : vector<8x8xf32>
    %63 = tpu.matmul %58, %60, %cst_22 {dimension_numbers = #tpu.dot_dimension_numbers<[1], [1], [0], [0], [0, 0, 1, 0], [], []>} : vector<8x32xbf16>, vector<8x32xbf16>, vector<8x8xf32> -> vector<8x8xf32>
    %cst_23 = arith.constant 0.176776692 : f32
    %64 = vector.broadcast %cst_23 : f32 to vector<8x8xf32>
    %65 = arith.mulf %63, %64 : vector<8x8xf32>
    %cst_24 = arith.constant dense<0xFF800000> : vector<8xf32>
    %66 = vector.multi_reduction <maximumf>, %65, %cst_24 [1] : vector<8x8xf32> to vector<8xf32>
    %67 = vector.shape_cast %66 : vector<8xf32> to vector<8x1xf32>
    %68 = vector.broadcast %67 : vector<8x1xf32> to vector<8x8xf32>
    %69 = arith.subf %65, %68 : vector<8x8xf32>
    %70 = math.exp %69 : vector<8x8xf32>
    %cst_25 = arith.constant dense<0.000000e+00> : vector<8xf32>
    %71 = vector.multi_reduction <add>, %70, %cst_25 [1] : vector<8x8xf32> to vector<8xf32>
    %72 = vector.shape_cast %71 : vector<8xf32> to vector<8x1xf32>
    %73 = vector.broadcast %72 : vector<8x1xf32> to vector<8x8xf32>
    %74 = arith.divf %70, %73 : vector<8x8xf32>
    %75 = arith.truncf %74 : vector<8x8xf32> to vector<8x8xbf16>
    %cst_26 = arith.constant dense<0.000000e+00> : vector<8x32xf32>
    %76 = tpu.matmul %75, %62, %cst_26 {dimension_numbers = #tpu.dot_dimension_numbers<[1], [0], [0], [1], [0, 0, 1, 1], [], []>} : vector<8x8xbf16>, vector<8x32xbf16>, vector<8x32xf32> -> vector<8x32xf32>
    %77 = vector.extract_strided_slice %34 {offsets = [0, 64], sizes = [8, 32], strides = [1, 1]} : vector<8x128xf32> to vector<8x32xf32>
    %78 = arith.truncf %77 : vector<8x32xf32> to vector<8x32xbf16>
    %79 = vector.extract_strided_slice %35 {offsets = [0, 64], sizes = [8, 32], strides = [1, 1]} : vector<8x128xf32> to vector<8x32xf32>
    %80 = arith.truncf %79 : vector<8x32xf32> to vector<8x32xbf16>
    %81 = vector.extract_strided_slice %36 {offsets = [0, 64], sizes = [8, 32], strides = [1, 1]} : vector<8x128xf32> to vector<8x32xf32>
    %82 = arith.truncf %81 : vector<8x32xf32> to vector<8x32xbf16>
    %cst_27 = arith.constant dense<0.000000e+00> : vector<8x8xf32>
    %83 = tpu.matmul %78, %80, %cst_27 {dimension_numbers = #tpu.dot_dimension_numbers<[1], [1], [0], [0], [0, 0, 1, 0], [], []>} : vector<8x32xbf16>, vector<8x32xbf16>, vector<8x8xf32> -> vector<8x8xf32>
    %cst_28 = arith.constant 0.176776692 : f32
    %84 = vector.broadcast %cst_28 : f32 to vector<8x8xf32>
    %85 = arith.mulf %83, %84 : vector<8x8xf32>
    %cst_29 = arith.constant dense<0xFF800000> : vector<8xf32>
    %86 = vector.multi_reduction <maximumf>, %85, %cst_29 [1] : vector<8x8xf32> to vector<8xf32>
    %87 = vector.shape_cast %86 : vector<8xf32> to vector<8x1xf32>
    %88 = vector.broadcast %87 : vector<8x1xf32> to vector<8x8xf32>
    %89 = arith.subf %85, %88 : vector<8x8xf32>
    %90 = math.exp %89 : vector<8x8xf32>
    %cst_30 = arith.constant dense<0.000000e+00> : vector<8xf32>
    %91 = vector.multi_reduction <add>, %90, %cst_30 [1] : vector<8x8xf32> to vector<8xf32>
    %92 = vector.shape_cast %91 : vector<8xf32> to vector<8x1xf32>
    %93 = vector.broadcast %92 : vector<8x1xf32> to vector<8x8xf32>
    %94 = arith.divf %90, %93 : vector<8x8xf32>
    %95 = arith.truncf %94 : vector<8x8xf32> to vector<8x8xbf16>
    %cst_31 = arith.constant dense<0.000000e+00> : vector<8x32xf32>
    %96 = tpu.matmul %95, %82, %cst_31 {dimension_numbers = #tpu.dot_dimension_numbers<[1], [0], [0], [1], [0, 0, 1, 1], [], []>} : vector<8x8xbf16>, vector<8x32xbf16>, vector<8x32xf32> -> vector<8x32xf32>
    %97 = vector.extract_strided_slice %34 {offsets = [0, 96], sizes = [8, 32], strides = [1, 1]} : vector<8x128xf32> to vector<8x32xf32>
    %98 = arith.truncf %97 : vector<8x32xf32> to vector<8x32xbf16>
    %99 = vector.extract_strided_slice %35 {offsets = [0, 96], sizes = [8, 32], strides = [1, 1]} : vector<8x128xf32> to vector<8x32xf32>
    %100 = arith.truncf %99 : vector<8x32xf32> to vector<8x32xbf16>
    %101 = vector.extract_strided_slice %36 {offsets = [0, 96], sizes = [8, 32], strides = [1, 1]} : vector<8x128xf32> to vector<8x32xf32>
    %102 = arith.truncf %101 : vector<8x32xf32> to vector<8x32xbf16>
    %cst_32 = arith.constant dense<0.000000e+00> : vector<8x8xf32>
    %103 = tpu.matmul %98, %100, %cst_32 {dimension_numbers = #tpu.dot_dimension_numbers<[1], [1], [0], [0], [0, 0, 1, 0], [], []>} : vector<8x32xbf16>, vector<8x32xbf16>, vector<8x8xf32> -> vector<8x8xf32>
    %cst_33 = arith.constant 0.176776692 : f32
    %104 = vector.broadcast %cst_33 : f32 to vector<8x8xf32>
    %105 = arith.mulf %103, %104 : vector<8x8xf32>
    %cst_34 = arith.constant dense<0xFF800000> : vector<8xf32>
    %106 = vector.multi_reduction <maximumf>, %105, %cst_34 [1] : vector<8x8xf32> to vector<8xf32>
    %107 = vector.shape_cast %106 : vector<8xf32> to vector<8x1xf32>
    %108 = vector.broadcast %107 : vector<8x1xf32> to vector<8x8xf32>
    %109 = arith.subf %105, %108 : vector<8x8xf32>
    %110 = math.exp %109 : vector<8x8xf32>
    %cst_35 = arith.constant dense<0.000000e+00> : vector<8xf32>
    %111 = vector.multi_reduction <add>, %110, %cst_35 [1] : vector<8x8xf32> to vector<8xf32>
    %112 = vector.shape_cast %111 : vector<8xf32> to vector<8x1xf32>
    %113 = vector.broadcast %112 : vector<8x1xf32> to vector<8x8xf32>
    %114 = arith.divf %110, %113 : vector<8x8xf32>
    %115 = arith.truncf %114 : vector<8x8xf32> to vector<8x8xbf16>
    %cst_36 = arith.constant dense<0.000000e+00> : vector<8x32xf32>
    %116 = tpu.matmul %115, %102, %cst_36 {dimension_numbers = #tpu.dot_dimension_numbers<[1], [0], [0], [1], [0, 0, 1, 1], [], []>} : vector<8x8xbf16>, vector<8x32xbf16>, vector<8x32xf32> -> vector<8x32xf32>
    %117 = tpu.concatenate %56, %76, %96, %116 in 1 : vector<8x32xf32>, vector<8x32xf32>, vector<8x32xf32>, vector<8x32xf32> -> vector<8x128xf32>
    %c0_37 = arith.constant 0 : index
    %c0_38 = arith.constant 0 : index
    %c0_39 = arith.constant 0 : index
    %118 = vector.load %arg6[%c0_37, %c0_38, %c0_39] : memref<2x128x128xbf16, #tpu.memory_space<vmem>>, vector<1x128x128xbf16>
    %119 = vector.shape_cast %118 : vector<1x128x128xbf16> to vector<128x128xbf16>
    %120 = arith.truncf %117 : vector<8x128xf32> to vector<8x128xbf16>
    %cst_40 = arith.constant dense<0.000000e+00> : vector<8x128xf32>
    %121 = tpu.matmul %120, %119, %cst_40 {dimension_numbers = #tpu.dot_dimension_numbers<[1], [0], [0], [1], [0, 0, 1, 1], [], []>} : vector<8x128xbf16>, vector<128x128xbf16>, vector<8x128xf32> -> vector<8x128xf32>
    %c0_41 = arith.constant 0 : index
    %c0_42 = arith.constant 0 : index
    %c0_43 = arith.constant 0 : index
    %122 = vector.load %arg7[%c0_41, %c0_42, %c0_43] : memref<2x1x128xf32, #tpu.memory_space<vmem>>, vector<1x1x128xf32>
    %123 = vector.shape_cast %122 : vector<1x1x128xf32> to vector<1x128xf32>
    %124 = vector.broadcast %123 : vector<1x128xf32> to vector<8x128xf32>
    %125 = arith.addf %121, %124 : vector<8x128xf32>
    %126 = arith.addf %125, %25 : vector<8x128xf32>
    %c0_44 = arith.constant 0 : index
    %c0_45 = arith.constant 0 : index
    %c0_46 = arith.constant 0 : index
    %127 = vector.load %arg8[%c0_44, %c0_45, %c0_46] : memref<2x1x128xf32, #tpu.memory_space<vmem>>, vector<1x1x128xf32>
    %128 = vector.shape_cast %127 : vector<1x1x128xf32> to vector<1x128xf32>
    %c0_47 = arith.constant 0 : index
    %c0_48 = arith.constant 0 : index
    %c0_49 = arith.constant 0 : index
    %129 = vector.load %arg9[%c0_47, %c0_48, %c0_49] : memref<2x1x128xf32, #tpu.memory_space<vmem>>, vector<1x1x128xf32>
    %130 = vector.shape_cast %129 : vector<1x1x128xf32> to vector<1x128xf32>
    %cst_50 = arith.constant dense<0.000000e+00> : vector<8xf32>
    %131 = vector.multi_reduction <add>, %126, %cst_50 [1] : vector<8x128xf32> to vector<8xf32>
    %132 = vector.shape_cast %131 : vector<8xf32> to vector<8x1xf32>
    %cst_51 = arith.constant 1.280000e+02 : f32
    %133 = vector.broadcast %cst_51 : f32 to vector<8x1xf32>
    %134 = arith.divf %132, %133 : vector<8x1xf32>
    %135 = vector.broadcast %134 : vector<8x1xf32> to vector<8x128xf32>
    %136 = arith.subf %126, %135 : vector<8x128xf32>
    %137 = arith.mulf %136, %136 : vector<8x128xf32>
    %cst_52 = arith.constant dense<0.000000e+00> : vector<8xf32>
    %138 = vector.multi_reduction <add>, %137, %cst_52 [1] : vector<8x128xf32> to vector<8xf32>
    %139 = vector.shape_cast %138 : vector<8xf32> to vector<8x1xf32>
    %cst_53 = arith.constant 1.280000e+02 : f32
    %140 = vector.broadcast %cst_53 : f32 to vector<8x1xf32>
    %141 = arith.divf %139, %140 : vector<8x1xf32>
    %142 = vector.broadcast %134 : vector<8x1xf32> to vector<8x128xf32>
    %143 = arith.subf %126, %142 : vector<8x128xf32>
    %cst_54 = arith.constant 9.99999996E-13 : f32
    %144 = vector.broadcast %cst_54 : f32 to vector<8x1xf32>
    %145 = arith.addf %141, %144 : vector<8x1xf32>
    %146 = math.rsqrt %145 : vector<8x1xf32>
    %147 = vector.broadcast %146 : vector<8x1xf32> to vector<8x128xf32>
    %148 = arith.mulf %143, %147 : vector<8x128xf32>
    %149 = vector.broadcast %128 : vector<1x128xf32> to vector<8x128xf32>
    %150 = arith.mulf %148, %149 : vector<8x128xf32>
    %151 = vector.broadcast %130 : vector<1x128xf32> to vector<8x128xf32>
    %152 = arith.addf %150, %151 : vector<8x128xf32>
    %c0_55 = arith.constant 0 : index
    %c0_56 = arith.constant 0 : index
    %c0_57 = arith.constant 0 : index
    %153 = vector.load %arg10[%c0_55, %c0_56, %c0_57] : memref<2x128x256xbf16, #tpu.memory_space<vmem>>, vector<1x128x256xbf16>
    %154 = vector.shape_cast %153 : vector<1x128x256xbf16> to vector<128x256xbf16>
    %155 = arith.truncf %152 : vector<8x128xf32> to vector<8x128xbf16>
    %cst_58 = arith.constant dense<0.000000e+00> : vector<8x256xf32>
    %156 = tpu.matmul %155, %154, %cst_58 {dimension_numbers = #tpu.dot_dimension_numbers<[1], [0], [0], [1], [0, 0, 1, 1], [], []>} : vector<8x128xbf16>, vector<128x256xbf16>, vector<8x256xf32> -> vector<8x256xf32>
    %c0_59 = arith.constant 0 : index
    %c0_60 = arith.constant 0 : index
    %c0_61 = arith.constant 0 : index
    %157 = vector.load %arg11[%c0_59, %c0_60, %c0_61] : memref<2x1x256xf32, #tpu.memory_space<vmem>>, vector<1x1x256xf32>
    %158 = vector.shape_cast %157 : vector<1x1x256xf32> to vector<1x256xf32>
    %159 = vector.broadcast %158 : vector<1x256xf32> to vector<8x256xf32>
    %160 = arith.addf %156, %159 : vector<8x256xf32>
    %cst_62 = arith.constant 5.000000e-01 : f32
    %161 = vector.broadcast %cst_62 : f32 to vector<8x256xf32>
    %162 = arith.mulf %161, %160 : vector<8x256xf32>
    %cst_63 = arith.constant 0.707106769 : f32
    %163 = vector.broadcast %cst_63 : f32 to vector<8x256xf32>
    %164 = arith.mulf %160, %163 : vector<8x256xf32>
    %165 = math.erf %164 : vector<8x256xf32>
    %cst_64 = arith.constant 1.000000e+00 : f32
    %166 = vector.broadcast %cst_64 : f32 to vector<8x256xf32>
    %167 = arith.addf %166, %165 : vector<8x256xf32>
    %168 = arith.mulf %162, %167 : vector<8x256xf32>
    %c0_65 = arith.constant 0 : index
    %c0_66 = arith.constant 0 : index
    %c0_67 = arith.constant 0 : index
    %169 = vector.load %arg12[%c0_65, %c0_66, %c0_67] : memref<2x256x128xbf16, #tpu.memory_space<vmem>>, vector<1x256x128xbf16>
    %170 = vector.shape_cast %169 : vector<1x256x128xbf16> to vector<256x128xbf16>
    %171 = arith.truncf %168 : vector<8x256xf32> to vector<8x256xbf16>
    %cst_68 = arith.constant dense<0.000000e+00> : vector<8x128xf32>
    %172 = tpu.matmul %171, %170, %cst_68 {dimension_numbers = #tpu.dot_dimension_numbers<[1], [0], [0], [1], [0, 0, 1, 1], [], []>} : vector<8x256xbf16>, vector<256x128xbf16>, vector<8x128xf32> -> vector<8x128xf32>
    %c0_69 = arith.constant 0 : index
    %c0_70 = arith.constant 0 : index
    %c0_71 = arith.constant 0 : index
    %173 = vector.load %arg13[%c0_69, %c0_70, %c0_71] : memref<2x1x128xf32, #tpu.memory_space<vmem>>, vector<1x1x128xf32>
    %174 = vector.shape_cast %173 : vector<1x1x128xf32> to vector<1x128xf32>
    %175 = vector.broadcast %174 : vector<1x128xf32> to vector<8x128xf32>
    %176 = arith.addf %172, %175 : vector<8x128xf32>
    %177 = arith.addf %176, %152 : vector<8x128xf32>
    %c0_72 = arith.constant 0 : index
    %c0_73 = arith.constant 0 : index
    %c0_74 = arith.constant 0 : index
    %178 = vector.load %arg14[%c0_72, %c0_73, %c0_74] : memref<2x1x128xf32, #tpu.memory_space<vmem>>, vector<1x1x128xf32>
    %179 = vector.shape_cast %178 : vector<1x1x128xf32> to vector<1x128xf32>
    %c0_75 = arith.constant 0 : index
    %c0_76 = arith.constant 0 : index
    %c0_77 = arith.constant 0 : index
    %180 = vector.load %arg15[%c0_75, %c0_76, %c0_77] : memref<2x1x128xf32, #tpu.memory_space<vmem>>, vector<1x1x128xf32>
    %181 = vector.shape_cast %180 : vector<1x1x128xf32> to vector<1x128xf32>
    %cst_78 = arith.constant dense<0.000000e+00> : vector<8xf32>
    %182 = vector.multi_reduction <add>, %177, %cst_78 [1] : vector<8x128xf32> to vector<8xf32>
    %183 = vector.shape_cast %182 : vector<8xf32> to vector<8x1xf32>
    %cst_79 = arith.constant 1.280000e+02 : f32
    %184 = vector.broadcast %cst_79 : f32 to vector<8x1xf32>
    %185 = arith.divf %183, %184 : vector<8x1xf32>
    %186 = vector.broadcast %185 : vector<8x1xf32> to vector<8x128xf32>
    %187 = arith.subf %177, %186 : vector<8x128xf32>
    %188 = arith.mulf %187, %187 : vector<8x128xf32>
    %cst_80 = arith.constant dense<0.000000e+00> : vector<8xf32>
    %189 = vector.multi_reduction <add>, %188, %cst_80 [1] : vector<8x128xf32> to vector<8xf32>
    %190 = vector.shape_cast %189 : vector<8xf32> to vector<8x1xf32>
    %cst_81 = arith.constant 1.280000e+02 : f32
    %191 = vector.broadcast %cst_81 : f32 to vector<8x1xf32>
    %192 = arith.divf %190, %191 : vector<8x1xf32>
    %193 = vector.broadcast %185 : vector<8x1xf32> to vector<8x128xf32>
    %194 = arith.subf %177, %193 : vector<8x128xf32>
    %cst_82 = arith.constant 9.99999996E-13 : f32
    %195 = vector.broadcast %cst_82 : f32 to vector<8x1xf32>
    %196 = arith.addf %192, %195 : vector<8x1xf32>
    %197 = math.rsqrt %196 : vector<8x1xf32>
    %198 = vector.broadcast %197 : vector<8x1xf32> to vector<8x128xf32>
    %199 = arith.mulf %194, %198 : vector<8x128xf32>
    %200 = vector.broadcast %179 : vector<1x128xf32> to vector<8x128xf32>
    %201 = arith.mulf %199, %200 : vector<8x128xf32>
    %202 = vector.broadcast %181 : vector<1x128xf32> to vector<8x128xf32>
    %203 = arith.addf %201, %202 : vector<8x128xf32>
    %c1 = arith.constant 1 : index
    %c0_83 = arith.constant 0 : index
    %c0_84 = arith.constant 0 : index
    %204 = vector.load %arg4[%c1, %c0_83, %c0_84] : memref<2x128x384xbf16, #tpu.memory_space<vmem>>, vector<1x128x384xbf16>
    %205 = vector.shape_cast %204 : vector<1x128x384xbf16> to vector<128x384xbf16>
    %206 = arith.truncf %203 : vector<8x128xf32> to vector<8x128xbf16>
    %cst_85 = arith.constant dense<0.000000e+00> : vector<8x384xf32>
    %207 = tpu.matmul %206, %205, %cst_85 {dimension_numbers = #tpu.dot_dimension_numbers<[1], [0], [0], [1], [0, 0, 1, 1], [], []>} : vector<8x128xbf16>, vector<128x384xbf16>, vector<8x384xf32> -> vector<8x384xf32>
    %c1_86 = arith.constant 1 : index
    %c0_87 = arith.constant 0 : index
    %c0_88 = arith.constant 0 : index
    %208 = vector.load %arg5[%c1_86, %c0_87, %c0_88] : memref<2x1x384xf32, #tpu.memory_space<vmem>>, vector<1x1x384xf32>
    %209 = vector.shape_cast %208 : vector<1x1x384xf32> to vector<1x384xf32>
    %210 = vector.broadcast %209 : vector<1x384xf32> to vector<8x384xf32>
    %211 = arith.addf %207, %210 : vector<8x384xf32>
    %212 = vector.extract_strided_slice %211 {offsets = [0, 0], sizes = [8, 128], strides = [1, 1]} : vector<8x384xf32> to vector<8x128xf32>
    %213 = vector.extract_strided_slice %211 {offsets = [0, 128], sizes = [8, 128], strides = [1, 1]} : vector<8x384xf32> to vector<8x128xf32>
    %214 = vector.extract_strided_slice %211 {offsets = [0, 256], sizes = [8, 128], strides = [1, 1]} : vector<8x384xf32> to vector<8x128xf32>
    %215 = vector.extract_strided_slice %212 {offsets = [0, 0], sizes = [8, 32], strides = [1, 1]} : vector<8x128xf32> to vector<8x32xf32>
    %216 = arith.truncf %215 : vector<8x32xf32> to vector<8x32xbf16>
    %217 = vector.extract_strided_slice %213 {offsets = [0, 0], sizes = [8, 32], strides = [1, 1]} : vector<8x128xf32> to vector<8x32xf32>
    %218 = arith.truncf %217 : vector<8x32xf32> to vector<8x32xbf16>
    %219 = vector.extract_strided_slice %214 {offsets = [0, 0], sizes = [8, 32], strides = [1, 1]} : vector<8x128xf32> to vector<8x32xf32>
    %220 = arith.truncf %219 : vector<8x32xf32> to vector<8x32xbf16>
    %cst_89 = arith.constant dense<0.000000e+00> : vector<8x8xf32>
    %221 = tpu.matmul %216, %218, %cst_89 {dimension_numbers = #tpu.dot_dimension_numbers<[1], [1], [0], [0], [0, 0, 1, 0], [], []>} : vector<8x32xbf16>, vector<8x32xbf16>, vector<8x8xf32> -> vector<8x8xf32>
    %cst_90 = arith.constant 0.176776692 : f32
    %222 = vector.broadcast %cst_90 : f32 to vector<8x8xf32>
    %223 = arith.mulf %221, %222 : vector<8x8xf32>
    %cst_91 = arith.constant dense<0xFF800000> : vector<8xf32>
    %224 = vector.multi_reduction <maximumf>, %223, %cst_91 [1] : vector<8x8xf32> to vector<8xf32>
    %225 = vector.shape_cast %224 : vector<8xf32> to vector<8x1xf32>
    %226 = vector.broadcast %225 : vector<8x1xf32> to vector<8x8xf32>
    %227 = arith.subf %223, %226 : vector<8x8xf32>
    %228 = math.exp %227 : vector<8x8xf32>
    %cst_92 = arith.constant dense<0.000000e+00> : vector<8xf32>
    %229 = vector.multi_reduction <add>, %228, %cst_92 [1] : vector<8x8xf32> to vector<8xf32>
    %230 = vector.shape_cast %229 : vector<8xf32> to vector<8x1xf32>
    %231 = vector.broadcast %230 : vector<8x1xf32> to vector<8x8xf32>
    %232 = arith.divf %228, %231 : vector<8x8xf32>
    %233 = arith.truncf %232 : vector<8x8xf32> to vector<8x8xbf16>
    %cst_93 = arith.constant dense<0.000000e+00> : vector<8x32xf32>
    %234 = tpu.matmul %233, %220, %cst_93 {dimension_numbers = #tpu.dot_dimension_numbers<[1], [0], [0], [1], [0, 0, 1, 1], [], []>} : vector<8x8xbf16>, vector<8x32xbf16>, vector<8x32xf32> -> vector<8x32xf32>
    %235 = vector.extract_strided_slice %212 {offsets = [0, 32], sizes = [8, 32], strides = [1, 1]} : vector<8x128xf32> to vector<8x32xf32>
    %236 = arith.truncf %235 : vector<8x32xf32> to vector<8x32xbf16>
    %237 = vector.extract_strided_slice %213 {offsets = [0, 32], sizes = [8, 32], strides = [1, 1]} : vector<8x128xf32> to vector<8x32xf32>
    %238 = arith.truncf %237 : vector<8x32xf32> to vector<8x32xbf16>
    %239 = vector.extract_strided_slice %214 {offsets = [0, 32], sizes = [8, 32], strides = [1, 1]} : vector<8x128xf32> to vector<8x32xf32>
    %240 = arith.truncf %239 : vector<8x32xf32> to vector<8x32xbf16>
    %cst_94 = arith.constant dense<0.000000e+00> : vector<8x8xf32>
    %241 = tpu.matmul %236, %238, %cst_94 {dimension_numbers = #tpu.dot_dimension_numbers<[1], [1], [0], [0], [0, 0, 1, 0], [], []>} : vector<8x32xbf16>, vector<8x32xbf16>, vector<8x8xf32> -> vector<8x8xf32>
    %cst_95 = arith.constant 0.176776692 : f32
    %242 = vector.broadcast %cst_95 : f32 to vector<8x8xf32>
    %243 = arith.mulf %241, %242 : vector<8x8xf32>
    %cst_96 = arith.constant dense<0xFF800000> : vector<8xf32>
    %244 = vector.multi_reduction <maximumf>, %243, %cst_96 [1] : vector<8x8xf32> to vector<8xf32>
    %245 = vector.shape_cast %244 : vector<8xf32> to vector<8x1xf32>
    %246 = vector.broadcast %245 : vector<8x1xf32> to vector<8x8xf32>
    %247 = arith.subf %243, %246 : vector<8x8xf32>
    %248 = math.exp %247 : vector<8x8xf32>
    %cst_97 = arith.constant dense<0.000000e+00> : vector<8xf32>
    %249 = vector.multi_reduction <add>, %248, %cst_97 [1] : vector<8x8xf32> to vector<8xf32>
    %250 = vector.shape_cast %249 : vector<8xf32> to vector<8x1xf32>
    %251 = vector.broadcast %250 : vector<8x1xf32> to vector<8x8xf32>
    %252 = arith.divf %248, %251 : vector<8x8xf32>
    %253 = arith.truncf %252 : vector<8x8xf32> to vector<8x8xbf16>
    %cst_98 = arith.constant dense<0.000000e+00> : vector<8x32xf32>
    %254 = tpu.matmul %253, %240, %cst_98 {dimension_numbers = #tpu.dot_dimension_numbers<[1], [0], [0], [1], [0, 0, 1, 1], [], []>} : vector<8x8xbf16>, vector<8x32xbf16>, vector<8x32xf32> -> vector<8x32xf32>
    %255 = vector.extract_strided_slice %212 {offsets = [0, 64], sizes = [8, 32], strides = [1, 1]} : vector<8x128xf32> to vector<8x32xf32>
    %256 = arith.truncf %255 : vector<8x32xf32> to vector<8x32xbf16>
    %257 = vector.extract_strided_slice %213 {offsets = [0, 64], sizes = [8, 32], strides = [1, 1]} : vector<8x128xf32> to vector<8x32xf32>
    %258 = arith.truncf %257 : vector<8x32xf32> to vector<8x32xbf16>
    %259 = vector.extract_strided_slice %214 {offsets = [0, 64], sizes = [8, 32], strides = [1, 1]} : vector<8x128xf32> to vector<8x32xf32>
    %260 = arith.truncf %259 : vector<8x32xf32> to vector<8x32xbf16>
    %cst_99 = arith.constant dense<0.000000e+00> : vector<8x8xf32>
    %261 = tpu.matmul %256, %258, %cst_99 {dimension_numbers = #tpu.dot_dimension_numbers<[1], [1], [0], [0], [0, 0, 1, 0], [], []>} : vector<8x32xbf16>, vector<8x32xbf16>, vector<8x8xf32> -> vector<8x8xf32>
    %cst_100 = arith.constant 0.176776692 : f32
    %262 = vector.broadcast %cst_100 : f32 to vector<8x8xf32>
    %263 = arith.mulf %261, %262 : vector<8x8xf32>
    %cst_101 = arith.constant dense<0xFF800000> : vector<8xf32>
    %264 = vector.multi_reduction <maximumf>, %263, %cst_101 [1] : vector<8x8xf32> to vector<8xf32>
    %265 = vector.shape_cast %264 : vector<8xf32> to vector<8x1xf32>
    %266 = vector.broadcast %265 : vector<8x1xf32> to vector<8x8xf32>
    %267 = arith.subf %263, %266 : vector<8x8xf32>
    %268 = math.exp %267 : vector<8x8xf32>
    %cst_102 = arith.constant dense<0.000000e+00> : vector<8xf32>
    %269 = vector.multi_reduction <add>, %268, %cst_102 [1] : vector<8x8xf32> to vector<8xf32>
    %270 = vector.shape_cast %269 : vector<8xf32> to vector<8x1xf32>
    %271 = vector.broadcast %270 : vector<8x1xf32> to vector<8x8xf32>
    %272 = arith.divf %268, %271 : vector<8x8xf32>
    %273 = arith.truncf %272 : vector<8x8xf32> to vector<8x8xbf16>
    %cst_103 = arith.constant dense<0.000000e+00> : vector<8x32xf32>
    %274 = tpu.matmul %273, %260, %cst_103 {dimension_numbers = #tpu.dot_dimension_numbers<[1], [0], [0], [1], [0, 0, 1, 1], [], []>} : vector<8x8xbf16>, vector<8x32xbf16>, vector<8x32xf32> -> vector<8x32xf32>
    %275 = vector.extract_strided_slice %212 {offsets = [0, 96], sizes = [8, 32], strides = [1, 1]} : vector<8x128xf32> to vector<8x32xf32>
    %276 = arith.truncf %275 : vector<8x32xf32> to vector<8x32xbf16>
    %277 = vector.extract_strided_slice %213 {offsets = [0, 96], sizes = [8, 32], strides = [1, 1]} : vector<8x128xf32> to vector<8x32xf32>
    %278 = arith.truncf %277 : vector<8x32xf32> to vector<8x32xbf16>
    %279 = vector.extract_strided_slice %214 {offsets = [0, 96], sizes = [8, 32], strides = [1, 1]} : vector<8x128xf32> to vector<8x32xf32>
    %280 = arith.truncf %279 : vector<8x32xf32> to vector<8x32xbf16>
    %cst_104 = arith.constant dense<0.000000e+00> : vector<8x8xf32>
    %281 = tpu.matmul %276, %278, %cst_104 {dimension_numbers = #tpu.dot_dimension_numbers<[1], [1], [0], [0], [0, 0, 1, 0], [], []>} : vector<8x32xbf16>, vector<8x32xbf16>, vector<8x8xf32> -> vector<8x8xf32>
    %cst_105 = arith.constant 0.176776692 : f32
    %282 = vector.broadcast %cst_105 : f32 to vector<8x8xf32>
    %283 = arith.mulf %281, %282 : vector<8x8xf32>
    %cst_106 = arith.constant dense<0xFF800000> : vector<8xf32>
    %284 = vector.multi_reduction <maximumf>, %283, %cst_106 [1] : vector<8x8xf32> to vector<8xf32>
    %285 = vector.shape_cast %284 : vector<8xf32> to vector<8x1xf32>
    %286 = vector.broadcast %285 : vector<8x1xf32> to vector<8x8xf32>
    %287 = arith.subf %283, %286 : vector<8x8xf32>
    %288 = math.exp %287 : vector<8x8xf32>
    %cst_107 = arith.constant dense<0.000000e+00> : vector<8xf32>
    %289 = vector.multi_reduction <add>, %288, %cst_107 [1] : vector<8x8xf32> to vector<8xf32>
    %290 = vector.shape_cast %289 : vector<8xf32> to vector<8x1xf32>
    %291 = vector.broadcast %290 : vector<8x1xf32> to vector<8x8xf32>
    %292 = arith.divf %288, %291 : vector<8x8xf32>
    %293 = arith.truncf %292 : vector<8x8xf32> to vector<8x8xbf16>
    %cst_108 = arith.constant dense<0.000000e+00> : vector<8x32xf32>
    %294 = tpu.matmul %293, %280, %cst_108 {dimension_numbers = #tpu.dot_dimension_numbers<[1], [0], [0], [1], [0, 0, 1, 1], [], []>} : vector<8x8xbf16>, vector<8x32xbf16>, vector<8x32xf32> -> vector<8x32xf32>
    %295 = tpu.concatenate %234, %254, %274, %294 in 1 : vector<8x32xf32>, vector<8x32xf32>, vector<8x32xf32>, vector<8x32xf32> -> vector<8x128xf32>
    %c1_109 = arith.constant 1 : index
    %c0_110 = arith.constant 0 : index
    %c0_111 = arith.constant 0 : index
    %296 = vector.load %arg6[%c1_109, %c0_110, %c0_111] : memref<2x128x128xbf16, #tpu.memory_space<vmem>>, vector<1x128x128xbf16>
    %297 = vector.shape_cast %296 : vector<1x128x128xbf16> to vector<128x128xbf16>
    %298 = arith.truncf %295 : vector<8x128xf32> to vector<8x128xbf16>
    %cst_112 = arith.constant dense<0.000000e+00> : vector<8x128xf32>
    %299 = tpu.matmul %298, %297, %cst_112 {dimension_numbers = #tpu.dot_dimension_numbers<[1], [0], [0], [1], [0, 0, 1, 1], [], []>} : vector<8x128xbf16>, vector<128x128xbf16>, vector<8x128xf32> -> vector<8x128xf32>
    %c1_113 = arith.constant 1 : index
    %c0_114 = arith.constant 0 : index
    %c0_115 = arith.constant 0 : index
    %300 = vector.load %arg7[%c1_113, %c0_114, %c0_115] : memref<2x1x128xf32, #tpu.memory_space<vmem>>, vector<1x1x128xf32>
    %301 = vector.shape_cast %300 : vector<1x1x128xf32> to vector<1x128xf32>
    %302 = vector.broadcast %301 : vector<1x128xf32> to vector<8x128xf32>
    %303 = arith.addf %299, %302 : vector<8x128xf32>
    %304 = arith.addf %303, %203 : vector<8x128xf32>
    %c1_116 = arith.constant 1 : index
    %c0_117 = arith.constant 0 : index
    %c0_118 = arith.constant 0 : index
    %305 = vector.load %arg8[%c1_116, %c0_117, %c0_118] : memref<2x1x128xf32, #tpu.memory_space<vmem>>, vector<1x1x128xf32>
    %306 = vector.shape_cast %305 : vector<1x1x128xf32> to vector<1x128xf32>
    %c1_119 = arith.constant 1 : index
    %c0_120 = arith.constant 0 : index
    %c0_121 = arith.constant 0 : index
    %307 = vector.load %arg9[%c1_119, %c0_120, %c0_121] : memref<2x1x128xf32, #tpu.memory_space<vmem>>, vector<1x1x128xf32>
    %308 = vector.shape_cast %307 : vector<1x1x128xf32> to vector<1x128xf32>
    %cst_122 = arith.constant dense<0.000000e+00> : vector<8xf32>
    %309 = vector.multi_reduction <add>, %304, %cst_122 [1] : vector<8x128xf32> to vector<8xf32>
    %310 = vector.shape_cast %309 : vector<8xf32> to vector<8x1xf32>
    %cst_123 = arith.constant 1.280000e+02 : f32
    %311 = vector.broadcast %cst_123 : f32 to vector<8x1xf32>
    %312 = arith.divf %310, %311 : vector<8x1xf32>
    %313 = vector.broadcast %312 : vector<8x1xf32> to vector<8x128xf32>
    %314 = arith.subf %304, %313 : vector<8x128xf32>
    %315 = arith.mulf %314, %314 : vector<8x128xf32>
    %cst_124 = arith.constant dense<0.000000e+00> : vector<8xf32>
    %316 = vector.multi_reduction <add>, %315, %cst_124 [1] : vector<8x128xf32> to vector<8xf32>
    %317 = vector.shape_cast %316 : vector<8xf32> to vector<8x1xf32>
    %cst_125 = arith.constant 1.280000e+02 : f32
    %318 = vector.broadcast %cst_125 : f32 to vector<8x1xf32>
    %319 = arith.divf %317, %318 : vector<8x1xf32>
    %320 = vector.broadcast %312 : vector<8x1xf32> to vector<8x128xf32>
    %321 = arith.subf %304, %320 : vector<8x128xf32>
    %cst_126 = arith.constant 9.99999996E-13 : f32
    %322 = vector.broadcast %cst_126 : f32 to vector<8x1xf32>
    %323 = arith.addf %319, %322 : vector<8x1xf32>
    %324 = math.rsqrt %323 : vector<8x1xf32>
    %325 = vector.broadcast %324 : vector<8x1xf32> to vector<8x128xf32>
    %326 = arith.mulf %321, %325 : vector<8x128xf32>
    %327 = vector.broadcast %306 : vector<1x128xf32> to vector<8x128xf32>
    %328 = arith.mulf %326, %327 : vector<8x128xf32>
    %329 = vector.broadcast %308 : vector<1x128xf32> to vector<8x128xf32>
    %330 = arith.addf %328, %329 : vector<8x128xf32>
    %c1_127 = arith.constant 1 : index
    %c0_128 = arith.constant 0 : index
    %c0_129 = arith.constant 0 : index
    %331 = vector.load %arg10[%c1_127, %c0_128, %c0_129] : memref<2x128x256xbf16, #tpu.memory_space<vmem>>, vector<1x128x256xbf16>
    %332 = vector.shape_cast %331 : vector<1x128x256xbf16> to vector<128x256xbf16>
    %333 = arith.truncf %330 : vector<8x128xf32> to vector<8x128xbf16>
    %cst_130 = arith.constant dense<0.000000e+00> : vector<8x256xf32>
    %334 = tpu.matmul %333, %332, %cst_130 {dimension_numbers = #tpu.dot_dimension_numbers<[1], [0], [0], [1], [0, 0, 1, 1], [], []>} : vector<8x128xbf16>, vector<128x256xbf16>, vector<8x256xf32> -> vector<8x256xf32>
    %c1_131 = arith.constant 1 : index
    %c0_132 = arith.constant 0 : index
    %c0_133 = arith.constant 0 : index
    %335 = vector.load %arg11[%c1_131, %c0_132, %c0_133] : memref<2x1x256xf32, #tpu.memory_space<vmem>>, vector<1x1x256xf32>
    %336 = vector.shape_cast %335 : vector<1x1x256xf32> to vector<1x256xf32>
    %337 = vector.broadcast %336 : vector<1x256xf32> to vector<8x256xf32>
    %338 = arith.addf %334, %337 : vector<8x256xf32>
    %cst_134 = arith.constant 5.000000e-01 : f32
    %339 = vector.broadcast %cst_134 : f32 to vector<8x256xf32>
    %340 = arith.mulf %339, %338 : vector<8x256xf32>
    %cst_135 = arith.constant 0.707106769 : f32
    %341 = vector.broadcast %cst_135 : f32 to vector<8x256xf32>
    %342 = arith.mulf %338, %341 : vector<8x256xf32>
    %343 = math.erf %342 : vector<8x256xf32>
    %cst_136 = arith.constant 1.000000e+00 : f32
    %344 = vector.broadcast %cst_136 : f32 to vector<8x256xf32>
    %345 = arith.addf %344, %343 : vector<8x256xf32>
    %346 = arith.mulf %340, %345 : vector<8x256xf32>
    %c1_137 = arith.constant 1 : index
    %c0_138 = arith.constant 0 : index
    %c0_139 = arith.constant 0 : index
    %347 = vector.load %arg12[%c1_137, %c0_138, %c0_139] : memref<2x256x128xbf16, #tpu.memory_space<vmem>>, vector<1x256x128xbf16>
    %348 = vector.shape_cast %347 : vector<1x256x128xbf16> to vector<256x128xbf16>
    %349 = arith.truncf %346 : vector<8x256xf32> to vector<8x256xbf16>
    %cst_140 = arith.constant dense<0.000000e+00> : vector<8x128xf32>
    %350 = tpu.matmul %349, %348, %cst_140 {dimension_numbers = #tpu.dot_dimension_numbers<[1], [0], [0], [1], [0, 0, 1, 1], [], []>} : vector<8x256xbf16>, vector<256x128xbf16>, vector<8x128xf32> -> vector<8x128xf32>
    %c1_141 = arith.constant 1 : index
    %c0_142 = arith.constant 0 : index
    %c0_143 = arith.constant 0 : index
    %351 = vector.load %arg13[%c1_141, %c0_142, %c0_143] : memref<2x1x128xf32, #tpu.memory_space<vmem>>, vector<1x1x128xf32>
    %352 = vector.shape_cast %351 : vector<1x1x128xf32> to vector<1x128xf32>
    %353 = vector.broadcast %352 : vector<1x128xf32> to vector<8x128xf32>
    %354 = arith.addf %350, %353 : vector<8x128xf32>
    %355 = arith.addf %354, %330 : vector<8x128xf32>
    %c1_144 = arith.constant 1 : index
    %c0_145 = arith.constant 0 : index
    %c0_146 = arith.constant 0 : index
    %356 = vector.load %arg14[%c1_144, %c0_145, %c0_146] : memref<2x1x128xf32, #tpu.memory_space<vmem>>, vector<1x1x128xf32>
    %357 = vector.shape_cast %356 : vector<1x1x128xf32> to vector<1x128xf32>
    %c1_147 = arith.constant 1 : index
    %c0_148 = arith.constant 0 : index
    %c0_149 = arith.constant 0 : index
    %358 = vector.load %arg15[%c1_147, %c0_148, %c0_149] : memref<2x1x128xf32, #tpu.memory_space<vmem>>, vector<1x1x128xf32>
    %359 = vector.shape_cast %358 : vector<1x1x128xf32> to vector<1x128xf32>
    %cst_150 = arith.constant dense<0.000000e+00> : vector<8xf32>
    %360 = vector.multi_reduction <add>, %355, %cst_150 [1] : vector<8x128xf32> to vector<8xf32>
    %361 = vector.shape_cast %360 : vector<8xf32> to vector<8x1xf32>
    %cst_151 = arith.constant 1.280000e+02 : f32
    %362 = vector.broadcast %cst_151 : f32 to vector<8x1xf32>
    %363 = arith.divf %361, %362 : vector<8x1xf32>
    %364 = vector.broadcast %363 : vector<8x1xf32> to vector<8x128xf32>
    %365 = arith.subf %355, %364 : vector<8x128xf32>
    %366 = arith.mulf %365, %365 : vector<8x128xf32>
    %cst_152 = arith.constant dense<0.000000e+00> : vector<8xf32>
    %367 = vector.multi_reduction <add>, %366, %cst_152 [1] : vector<8x128xf32> to vector<8xf32>
    %368 = vector.shape_cast %367 : vector<8xf32> to vector<8x1xf32>
    %cst_153 = arith.constant 1.280000e+02 : f32
    %369 = vector.broadcast %cst_153 : f32 to vector<8x1xf32>
    %370 = arith.divf %368, %369 : vector<8x1xf32>
    %371 = vector.broadcast %363 : vector<8x1xf32> to vector<8x128xf32>
    %372 = arith.subf %355, %371 : vector<8x128xf32>
    %cst_154 = arith.constant 9.99999996E-13 : f32
    %373 = vector.broadcast %cst_154 : f32 to vector<8x1xf32>
    %374 = arith.addf %370, %373 : vector<8x1xf32>
    %375 = math.rsqrt %374 : vector<8x1xf32>
    %376 = vector.broadcast %375 : vector<8x1xf32> to vector<8x128xf32>
    %377 = arith.mulf %372, %376 : vector<8x128xf32>
    %378 = vector.broadcast %357 : vector<1x128xf32> to vector<8x128xf32>
    %379 = arith.mulf %377, %378 : vector<8x128xf32>
    %380 = vector.broadcast %359 : vector<1x128xf32> to vector<8x128xf32>
    %381 = arith.addf %379, %380 : vector<8x128xf32>
    %c0_155 = arith.constant 0 : index
    %c0_156 = arith.constant 0 : index
    %c0_157 = arith.constant 0 : index
    %382 = vector.load %arg16[%c0_155, %c0_156, %c0_157] : memref<1x8x128xf32, #tpu.memory_space<vmem>>, vector<1x8x128xf32>
    %383 = vector.shape_cast %382 : vector<1x8x128xf32> to vector<8x128xf32>
    %384 = vector.shape_cast %381 : vector<8x128xf32> to vector<1x8x128xf32>
    tpu.vector_store %arg16[%c0_155, %c0_156, %c0_157], %384 {strides = array<i32>} : memref<1x8x128xf32, #tpu.memory_space<vmem>>, vector<1x8x128xf32>,
    return
  }
  func.func @transform_0(%arg0: i32) -> (i32, i32, i32) {
    %c0_i32 = arith.constant 0 : i32
    %c0_i32_0 = arith.constant 0 : i32
    %c0_i32_1 = arith.constant 0 : i32
    return %arg0, %c0_i32, %c0_i32_0 : i32, i32, i32
  }
  func.func @transform_1(%arg0: i32) -> (i32, i32) {
    %c0_i32 = arith.constant 0 : i32
    %c0_i32_0 = arith.constant 0 : i32
    %c0_i32_1 = arith.constant 0 : i32
    return %c0_i32, %c0_i32_0 : i32, i32
  }
  func.func @transform_2(%arg0: i32) -> (i32, i32) {
    %c0_i32 = arith.constant 0 : i32
    %c0_i32_0 = arith.constant 0 : i32
    %c0_i32_1 = arith.constant 0 : i32
    return %c0_i32, %c0_i32_0 : i32, i32
  }
  func.func @transform_3(%arg0: i32) -> (i32, i32, i32) {
    %c0_i32 = arith.constant 0 : i32
    %c0_i32_0 = arith.constant 0 : i32
    %c0_i32_1 = arith.constant 0 : i32
    %c0_i32_2 = arith.constant 0 : i32
    return %c0_i32, %c0_i32_0, %c0_i32_1 : i32, i32, i32
  }
  func.func @transform_4(%arg0: i32) -> (i32, i32, i32) {
    %c0_i32 = arith.constant 0 : i32
    %c0_i32_0 = arith.constant 0 : i32
    %c0_i32_1 = arith.constant 0 : i32
    %c0_i32_2 = arith.constant 0 : i32
    return %c0_i32, %c0_i32_0, %c0_i32_1 : i32, i32, i32
  }
  func.func @transform_5(%arg0: i32) -> (i32, i32, i32) {
    %c0_i32 = arith.constant 0 : i32
    %c0_i32_0 = arith.constant 0 : i32
    %c0_i32_1 = arith.constant 0 : i32
    %c0_i32_2 = arith.constant 0 : i32
    return %c0_i32, %c0_i32_0, %c0_i32_1 : i32, i32, i32
  }
  func.func @transform_6(%arg0: i32) -> (i32, i32, i32) {
    %c0_i32 = arith.constant 0 : i32
    %c0_i32_0 = arith.constant 0 : i32
    %c0_i32_1 = arith.constant 0 : i32
    %c0_i32_2 = arith.constant 0 : i32
    return %c0_i32, %c0_i32_0, %c0_i32_1 : i32, i32, i32
  }
  func.func @transform_7(%arg0: i32) -> (i32, i32, i32) {
    %c0_i32 = arith.constant 0 : i32
    %c0_i32_0 = arith.constant 0 : i32
    %c0_i32_1 = arith.constant 0 : i32
    %c0_i32_2 = arith.constant 0 : i32
    return %c0_i32, %c0_i32_0, %c0_i32_1 : i32, i32, i32
  }
  func.func @transform_8(%arg0: i32) -> (i32, i32, i32) {
    %c0_i32 = arith.constant 0 : i32
    %c0_i32_0 = arith.constant 0 : i32
    %c0_i32_1 = arith.constant 0 : i32
    %c0_i32_2 = arith.constant 0 : i32
    return %c0_i32, %c0_i32_0, %c0_i32_1 : i32, i32, i32
  }
  func.func @transform_9(%arg0: i32) -> (i32, i32, i32) {
    %c0_i32 = arith.constant 0 : i32
    %c0_i32_0 = arith.constant 0 : i32
    %c0_i32_1 = arith.constant 0 : i32
    %c0_i32_2 = arith.constant 0 : i32
    return %c0_i32, %c0_i32_0, %c0_i32_1 : i32, i32, i32
  }
  func.func @transform_10(%arg0: i32) -> (i32, i32, i32) {
    %c0_i32 = arith.constant 0 : i32
    %c0_i32_0 = arith.constant 0 : i32
    %c0_i32_1 = arith.constant 0 : i32
    %c0_i32_2 = arith.constant 0 : i32
    return %c0_i32, %c0_i32_0, %c0_i32_1 : i32, i32, i32
  }
  func.func @transform_11(%arg0: i32) -> (i32, i32, i32) {
    %c0_i32 = arith.constant 0 : i32
    %c0_i32_0 = arith.constant 0 : i32
    %c0_i32_1 = arith.constant 0 : i32
    %c0_i32_2 = arith.constant 0 : i32
    return %c0_i32, %c0_i32_0, %c0_i32_1 : i32, i32, i32
  }
  func.func @transform_12(%arg0: i32) -> (i32, i32, i32) {
    %c0_i32 = arith.constant 0 : i32
    %c0_i32_0 = arith.constant 0 : i32
    %c0_i32_1 = arith.constant 0 : i32
    %c0_i32_2 = arith.constant 0 : i32
    return %c0_i32, %c0_i32_0, %c0_i32_1 : i32, i32, i32
  }
  func.func @transform_13(%arg0: i32) -> (i32, i32, i32) {
    %c0_i32 = arith.constant 0 : i32
    %c0_i32_0 = arith.constant 0 : i32
    %c0_i32_1 = arith.constant 0 : i32
    %c0_i32_2 = arith.constant 0 : i32
    return %c0_i32, %c0_i32_0, %c0_i32_1 : i32, i32, i32
  }
  func.func @transform_14(%arg0: i32) -> (i32, i32, i32) {
    %c0_i32 = arith.constant 0 : i32
    %c0_i32_0 = arith.constant 0 : i32
    %c0_i32_1 = arith.constant 0 : i32
    %c0_i32_2 = arith.constant 0 : i32
    return %c0_i32, %c0_i32_0, %c0_i32_1 : i32, i32, i32
  }
  func.func @transform_15(%arg0: i32) -> (i32, i32, i32) {
    %c0_i32 = arith.constant 0 : i32
    %c0_i32_0 = arith.constant 0 : i32
    %c0_i32_1 = arith.constant 0 : i32
    return %arg0, %c0_i32, %c0_i32_0 : i32, i32, i32
  }
}

module attributes {stable_mosaic.version = 11 : i64} {
  func.func @_tower_kernel(%arg0: i32, %arg1: memref<1x8x128xf32, #tpu.memory_space<vmem>>, %arg2: memref<1x128xf32, #tpu.memory_space<vmem>>, %arg3: memref<1x128xf32, #tpu.memory_space<vmem>>, %arg4: memref<2x128x384xbf16, #tpu.memory_space<vmem>>, %arg5: memref<2x1x384xf32, #tpu.memory_space<vmem>>, %arg6: memref<2x128x128xbf16, #tpu.memory_space<vmem>>, %arg7: memref<2x1x128xf32, #tpu.memory_space<vmem>>, %arg8: memref<2x1x128xf32, #tpu.memory_space<vmem>>, %arg9: memref<2x1x128xf32, #tpu.memory_space<vmem>>, %arg10: memref<2x128x256xbf16, #tpu.memory_space<vmem>>, %arg11: memref<2x1x256xf32, #tpu.memory_space<vmem>>, %arg12: memref<2x256x128xbf16, #tpu.memory_space<vmem>>, %arg13: memref<2x1x128xf32, #tpu.memory_space<vmem>>, %arg14: memref<2x1x128xf32, #tpu.memory_space<vmem>>, %arg15: memref<2x1x128xf32, #tpu.memory_space<vmem>>, %arg16: memref<1x8x128xf32, #tpu.memory_space<vmem>>) attributes {dimension_semantics = [#tpu.dimension_semantics<parallel>], iteration_bounds = array<i64: 2>, scalar_prefetch = 0 : i64, scratch_operands = 0 : i64, tpu.core_type = #tpu.core_type<tc>, window_params = [{transform_indices = @transform_0, window_bounds = array<i64: 1, 8, 128>}, {pipeline_mode = #tpu.pipeline_mode<synchronous>, transform_indices = @transform_1, window_bounds = array<i64: 1, 128>}, {pipeline_mode = #tpu.pipeline_mode<synchronous>, transform_indices = @transform_2, window_bounds = array<i64: 1, 128>}, {pipeline_mode = #tpu.pipeline_mode<synchronous>, transform_indices = @transform_3, window_bounds = array<i64: 2, 128, 384>}, {pipeline_mode = #tpu.pipeline_mode<synchronous>, transform_indices = @transform_4, window_bounds = array<i64: 2, 1, 384>}, {pipeline_mode = #tpu.pipeline_mode<synchronous>, transform_indices = @transform_5, window_bounds = array<i64: 2, 128, 128>}, {pipeline_mode = #tpu.pipeline_mode<synchronous>, transform_indices = @transform_6, window_bounds = array<i64: 2, 1, 128>}, {pipeline_mode = #tpu.pipeline_mode<synchronous>, transform_indices = @transform_7, window_bounds = array<i64: 2, 1, 128>}, {pipeline_mode = #tpu.pipeline_mode<synchronous>, transform_indices = @transform_8, window_bounds = array<i64: 2, 1, 128>}, {pipeline_mode = #tpu.pipeline_mode<synchronous>, transform_indices = @transform_9, window_bounds = array<i64: 2, 128, 256>}, {pipeline_mode = #tpu.pipeline_mode<synchronous>, transform_indices = @transform_10, window_bounds = array<i64: 2, 1, 256>}, {pipeline_mode = #tpu.pipeline_mode<synchronous>, transform_indices = @transform_11, window_bounds = array<i64: 2, 256, 128>}, {pipeline_mode = #tpu.pipeline_mode<synchronous>, transform_indices = @transform_12, window_bounds = array<i64: 2, 1, 128>}, {pipeline_mode = #tpu.pipeline_mode<synchronous>, transform_indices = @transform_13, window_bounds = array<i64: 2, 1, 128>}, {pipeline_mode = #tpu.pipeline_mode<synchronous>, transform_indices = @transform_14, window_bounds = array<i64: 2, 1, 128>}, {transform_indices = @transform_15, window_bounds = array<i64: 1, 8, 128>}]} {
    %c0 = arith.constant 0 : index
    %c0_0 = arith.constant 0 : index
    %c0_1 = arith.constant 0 : index
    %0 = vector.load %arg1[%c0, %c0_0, %c0_1] : memref<1x8x128xf32, #tpu.memory_space<vmem>>, vector<1x8x128xf32>
    %1 = vector.shape_cast %0 : vector<1x8x128xf32> to vector<8x128xf32>
    %c0_2 = arith.constant 0 : index
    %c0_3 = arith.constant 0 : index
    %2 = vector.load %arg2[%c0_2, %c0_3] : memref<1x128xf32, #tpu.memory_space<vmem>>, vector<1x128xf32>
    %c0_4 = arith.constant 0 : index
    %c0_5 = arith.constant 0 : index
    %3 = vector.load %arg3[%c0_4, %c0_5] : memref<1x128xf32, #tpu.memory_space<vmem>>, vector<1x128xf32>
    %cst = arith.constant dense<0.000000e+00> : vector<8xf32>
    %4 = vector.multi_reduction <add>, %1, %cst [1] : vector<8x128xf32> to vector<8xf32>
    %5 = vector.shape_cast %4 : vector<8xf32> to vector<8x1xf32>
    %cst_6 = arith.constant 1.280000e+02 : f32
    %6 = vector.broadcast %cst_6 : f32 to vector<8x1xf32>
    %7 = arith.divf %5, %6 : vector<8x1xf32>
    %8 = vector.broadcast %7 : vector<8x1xf32> to vector<8x128xf32>
    %9 = arith.subf %1, %8 : vector<8x128xf32>
    %10 = arith.mulf %9, %9 : vector<8x128xf32>
    %cst_7 = arith.constant dense<0.000000e+00> : vector<8xf32>
    %11 = vector.multi_reduction <add>, %10, %cst_7 [1] : vector<8x128xf32> to vector<8xf32>
    %12 = vector.shape_cast %11 : vector<8xf32> to vector<8x1xf32>
    %cst_8 = arith.constant 1.280000e+02 : f32
    %13 = vector.broadcast %cst_8 : f32 to vector<8x1xf32>
    %14 = arith.divf %12, %13 : vector<8x1xf32>
    %15 = vector.broadcast %7 : vector<8x1xf32> to vector<8x128xf32>
    %16 = arith.subf %1, %15 : vector<8x128xf32>
    %cst_9 = arith.constant 9.99999996E-13 : f32
    %17 = vector.broadcast %cst_9 : f32 to vector<8x1xf32>
    %18 = arith.addf %14, %17 : vector<8x1xf32>
    %19 = math.rsqrt %18 : vector<8x1xf32>
    %20 = vector.broadcast %19 : vector<8x1xf32> to vector<8x128xf32>
    %21 = arith.mulf %16, %20 : vector<8x128xf32>
    %22 = vector.broadcast %2 : vector<1x128xf32> to vector<8x128xf32>
    %23 = arith.mulf %21, %22 : vector<8x128xf32>
    %24 = vector.broadcast %3 : vector<1x128xf32> to vector<8x128xf32>
    %25 = arith.addf %23, %24 : vector<8x128xf32>
    %c0_10 = arith.constant 0 : index
    %c0_11 = arith.constant 0 : index
    %c0_12 = arith.constant 0 : index
    %26 = vector.load %arg4[%c0_10, %c0_11, %c0_12] : memref<2x128x384xbf16, #tpu.memory_space<vmem>>, vector<1x128x384xbf16>
    %27 = vector.shape_cast %26 : vector<1x128x384xbf16> to vector<128x384xbf16>
    %28 = arith.truncf %25 : vector<8x128xf32> to vector<8x128xbf16>
    %cst_13 = arith.constant dense<0.000000e+00> : vector<8x384xf32>
    %29 = tpu.matmul %28, %27, %cst_13 {dimension_numbers = #tpu.dot_dimension_numbers<[1], [0], [0], [1], [0, 0, 1, 1], [], []>} : vector<8x128xbf16>, vector<128x384xbf16>, vector<8x384xf32> -> vector<8x384xf32>
    %c0_14 = arith.constant 0 : index
    %c0_15 = arith.constant 0 : index
    %c0_16 = arith.constant 0 : index
    %30 = vector.load %arg5[%c0_14, %c0_15, %c0_16] : memref<2x1x384xf32, #tpu.memory_space<vmem>>, vector<1x1x384xf32>
    %31 = vector.shape_cast %30 : vector<1x1x384xf32> to vector<1x384xf32>
    %32 = vector.broadcast %31 : vector<1x384xf32> to vector<8x384xf32>
    %33 = arith.addf %29, %32 : vector<8x384xf32>
    %34 = vector.extract_strided_slice %33 {offsets = [0, 0], sizes = [8, 128], strides = [1, 1]} : vector<8x384xf32> to vector<8x128xf32>
    %35 = vector.extract_strided_slice %33 {offsets = [0, 128], sizes = [8, 128], strides = [1, 1]} : vector<8x384xf32> to vector<8x128xf32>
    %36 = vector.extract_strided_slice %33 {offsets = [0, 256], sizes = [8, 128], strides = [1, 1]} : vector<8x384xf32> to vector<8x128xf32>
    %37 = vector.extract_strided_slice %34 {offsets = [0, 0], sizes = [8, 32], strides = [1, 1]} : vector<8x128xf32> to vector<8x32xf32>
    %38 = arith.truncf %37 : vector<8x32xf32> to vector<8x32xbf16>
    %39 = vector.extract_strided_slice %35 {offsets = [0, 0], sizes = [8, 32], strides = [1, 1]} : vector<8x128xf32> to vector<8x32xf32>
    %40 = arith.truncf %39 : vector<8x32xf32> to vector<8x32xbf16>
    %41 = vector.extract_strided_slice %36 {offsets = [0, 0], sizes = [8, 32], strides = [1, 1]} : vector<8x128xf32> to vector<8x32xf32>
    %42 = arith.truncf %41 : vector<8x32xf32> to vector<8x32xbf16>
    %cst_17 = arith.constant dense<0.000000e+00> : vector<8x8xf32>
    %43 = tpu.matmul %38, %40, %cst_17 {dimension_numbers = #tpu.dot_dimension_numbers<[1], [1], [0], [0], [0, 0, 1, 0], [], []>} : vector<8x32xbf16>, vector<8x32xbf16>, vector<8x8xf32> -> vector<8x8xf32>
    %cst_18 = arith.constant 0.176776692 : f32
    %44 = vector.broadcast %cst_18 : f32 to vector<8x8xf32>
    %45 = arith.mulf %43, %44 : vector<8x8xf32>
    %cst_19 = arith.constant dense<0xFF800000> : vector<8xf32>
    %46 = vector.multi_reduction <maximumf>, %45, %cst_19 [1] : vector<8x8xf32> to vector<8xf32>
    %47 = vector.shape_cast %46 : vector<8xf32> to vector<8x1xf32>
    %48 = vector.broadcast %47 : vector<8x1xf32> to vector<8x8xf32>
    %49 = arith.subf %45, %48 : vector<8x8xf32>
    %50 = math.exp %49 : vector<8x8xf32>
    %cst_20 = arith.constant dense<0.000000e+00> : vector<8xf32>
    %51 = vector.multi_reduction <add>, %50, %cst_20 [1] : vector<8x8xf32> to vector<8xf32>
    %52 = vector.shape_cast %51 : vector<8xf32> to vector<8x1xf32>
    %53 = vector.broadcast %52 : vector<8x1xf32> to vector<8x8xf32>
    %54 = arith.divf %50, %53 : vector<8x8xf32>
    %55 = arith.truncf %54 : vector<8x8xf32> to vector<8x8xbf16>
    %cst_21 = arith.constant dense<0.000000e+00> : vector<8x32xf32>
    %56 = tpu.matmul %55, %42, %cst_21 {dimension_numbers = #tpu.dot_dimension_numbers<[1], [0], [0], [1], [0, 0, 1, 1], [], []>} : vector<8x8xbf16>, vector<8x32xbf16>, vector<8x32xf32> -> vector<8x32xf32>
    %57 = vector.extract_strided_slice %34 {offsets = [0, 32], sizes = [8, 32], strides = [1, 1]} : vector<8x128xf32> to vector<8x32xf32>
    %58 = arith.truncf %57 : vector<8x32xf32> to vector<8x32xbf16>
    %59 = vector.extract_strided_slice %35 {offsets = [0, 32], sizes = [8, 32], strides = [1, 1]} : vector<8x128xf32> to vector<8x32xf32>
    %60 = arith.truncf %59 : vector<8x32xf32> to vector<8x32xbf16>
    %61 = vector.extract_strided_slice %36 {offsets = [0, 32], sizes = [8, 32], strides = [1, 1]} : vector<8x128xf32> to vector<8x32xf32>
    %62 = arith.truncf %61 : vector<8x32xf32> to vector<8x32xbf16>
    %cst_22 = arith.constant dense<0.000000e+00> : vector<8x8xf32>
    %63 = tpu.matmul %58, %60, %cst_22 {dimension_numbers = #tpu.dot_dimension_numbers<[1], [1], [0], [0], [0, 0, 1, 0], [], []>} : vector<8x32xbf16>, vector<8x32xbf16>, vector<8x8xf32> -> vector<8x8xf32>
    %cst_23 = arith.constant 0.176776692 : f32
    %64 = vector.broadcast %cst_23 : f32 to vector<8x8xf32>
    %65 = arith.mulf %63, %64 : vector<8x8xf32>
    %cst_24 = arith.constant dense<0xFF800000> : vector<8xf32>
    %66 = vector.multi_reduction <maximumf>, %65, %cst_24 [1] : vector<8x8xf32> to vector<8xf32>
    %67 = vector.shape_cast %66 : vector<8xf32> to vector<8x1xf32>
    %68 = vector.broadcast %67 : vector<8x1xf32> to vector<8x8xf32>
    %69 = arith.subf %65, %68 : vector<8x8xf32>
    %70 = math.exp %69 : vector<8x8xf32>
    %cst_25 = arith.constant dense<0.000000e+00> : vector<8xf32>
    %71 = vector.multi_reduction <add>, %70, %cst_25 [1] : vector<8x8xf32> to vector<8xf32>
    %72 = vector.shape_cast %71 : vector<8xf32> to vector<8x1xf32>
    %73 = vector.broadcast %72 : vector<8x1xf32> to vector<8x8xf32>
    %74 = arith.divf %70, %73 : vector<8x8xf32>
    %75 = arith.truncf %74 : vector<8x8xf32> to vector<8x8xbf16>
    %cst_26 = arith.constant dense<0.000000e+00> : vector<8x32xf32>
    %76 = tpu.matmul %75, %62, %cst_26 {dimension_numbers = #tpu.dot_dimension_numbers<[1], [0], [0], [1], [0, 0, 1, 1], [], []>} : vector<8x8xbf16>, vector<8x32xbf16>, vector<8x32xf32> -> vector<8x32xf32>
    %77 = vector.extract_strided_slice %34 {offsets = [0, 64], sizes = [8, 32], strides = [1, 1]} : vector<8x128xf32> to vector<8x32xf32>
    %78 = arith.truncf %77 : vector<8x32xf32> to vector<8x32xbf16>
    %79 = vector.extract_strided_slice %35 {offsets = [0, 64], sizes = [8, 32], strides = [1, 1]} : vector<8x128xf32> to vector<8x32xf32>
    %80 = arith.truncf %79 : vector<8x32xf32> to vector<8x32xbf16>
    %81 = vector.extract_strided_slice %36 {offsets = [0, 64], sizes = [8, 32], strides = [1, 1]} : vector<8x128xf32> to vector<8x32xf32>
    %82 = arith.truncf %81 : vector<8x32xf32> to vector<8x32xbf16>
    %cst_27 = arith.constant dense<0.000000e+00> : vector<8x8xf32>
    %83 = tpu.matmul %78, %80, %cst_27 {dimension_numbers = #tpu.dot_dimension_numbers<[1], [1], [0], [0], [0, 0, 1, 0], [], []>} : vector<8x32xbf16>, vector<8x32xbf16>, vector<8x8xf32> -> vector<8x8xf32>
    %cst_28 = arith.constant 0.176776692 : f32
    %84 = vector.broadcast %cst_28 : f32 to vector<8x8xf32>
    %85 = arith.mulf %83, %84 : vector<8x8xf32>
    %cst_29 = arith.constant dense<0xFF800000> : vector<8xf32>
    %86 = vector.multi_reduction <maximumf>, %85, %cst_29 [1] : vector<8x8xf32> to vector<8xf32>
    %87 = vector.shape_cast %86 : vector<8xf32> to vector<8x1xf32>
    %88 = vector.broadcast %87 : vector<8x1xf32> to vector<8x8xf32>
    %89 = arith.subf %85, %88 : vector<8x8xf32>
    %90 = math.exp %89 : vector<8x8xf32>
    %cst_30 = arith.constant dense<0.000000e+00> : vector<8xf32>
    %91 = vector.multi_reduction <add>, %90, %cst_30 [1] : vector<8x8xf32> to vector<8xf32>
    %92 = vector.shape_cast %91 : vector<8xf32> to vector<8x1xf32>
    %93 = vector.broadcast %92 : vector<8x1xf32> to vector<8x8xf32>
    %94 = arith.divf %90, %93 : vector<8x8xf32>
    %95 = arith.truncf %94 : vector<8x8xf32> to vector<8x8xbf16>
    %cst_31 = arith.constant dense<0.000000e+00> : vector<8x32xf32>
    %96 = tpu.matmul %95, %82, %cst_31 {dimension_numbers = #tpu.dot_dimension_numbers<[1], [0], [0], [1], [0, 0, 1, 1], [], []>} : vector<8x8xbf16>, vector<8x32xbf16>, vector<8x32xf32> -> vector<8x32xf32>
    %97 = vector.extract_strided_slice %34 {offsets = [0, 96], sizes = [8, 32], strides = [1, 1]} : vector<8x128xf32> to vector<8x32xf32>
    %98 = arith.truncf %97 : vector<8x32xf32> to vector<8x32xbf16>
    %99 = vector.extract_strided_slice %35 {offsets = [0, 96], sizes = [8, 32], strides = [1, 1]} : vector<8x128xf32> to vector<8x32xf32>
    %100 = arith.truncf %99 : vector<8x32xf32> to vector<8x32xbf16>
    %101 = vector.extract_strided_slice %36 {offsets = [0, 96], sizes = [8, 32], strides = [1, 1]} : vector<8x128xf32> to vector<8x32xf32>
    %102 = arith.truncf %101 : vector<8x32xf32> to vector<8x32xbf16>
    %cst_32 = arith.constant dense<0.000000e+00> : vector<8x8xf32>
    %103 = tpu.matmul %98, %100, %cst_32 {dimension_numbers = #tpu.dot_dimension_numbers<[1], [1], [0], [0], [0, 0, 1, 0], [], []>} : vector<8x32xbf16>, vector<8x32xbf16>, vector<8x8xf32> -> vector<8x8xf32>
    %cst_33 = arith.constant 0.176776692 : f32
    %104 = vector.broadcast %cst_33 : f32 to vector<8x8xf32>
    %105 = arith.mulf %103, %104 : vector<8x8xf32>
    %cst_34 = arith.constant dense<0xFF800000> : vector<8xf32>
    %106 = vector.multi_reduction <maximumf>, %105, %cst_34 [1] : vector<8x8xf32> to vector<8xf32>
    %107 = vector.shape_cast %106 : vector<8xf32> to vector<8x1xf32>
    %108 = vector.broadcast %107 : vector<8x1xf32> to vector<8x8xf32>
    %109 = arith.subf %105, %108 : vector<8x8xf32>
    %110 = math.exp %109 : vector<8x8xf32>
    %cst_35 = arith.constant dense<0.000000e+00> : vector<8xf32>
    %111 = vector.multi_reduction <add>, %110, %cst_35 [1] : vector<8x8xf32> to vector<8xf32>
    %112 = vector.shape_cast %111 : vector<8xf32> to vector<8x1xf32>
    %113 = vector.broadcast %112 : vector<8x1xf32> to vector<8x8xf32>
    %114 = arith.divf %110, %113 : vector<8x8xf32>
    %115 = arith.truncf %114 : vector<8x8xf32> to vector<8x8xbf16>
    %cst_36 = arith.constant dense<0.000000e+00> : vector<8x32xf32>
    %116 = tpu.matmul %115, %102, %cst_36 {dimension_numbers = #tpu.dot_dimension_numbers<[1], [0], [0], [1], [0, 0, 1, 1], [], []>} : vector<8x8xbf16>, vector<8x32xbf16>, vector<8x32xf32> -> vector<8x32xf32>
    %117 = tpu.concatenate %56, %76, %96, %116 in 1 : vector<8x32xf32>, vector<8x32xf32>, vector<8x32xf32>, vector<8x32xf32> -> vector<8x128xf32>
    %c0_37 = arith.constant 0 : index
    %c0_38 = arith.constant 0 : index
    %c0_39 = arith.constant 0 : index
    %118 = vector.load %arg6[%c0_37, %c0_38, %c0_39] : memref<2x128x128xbf16, #tpu.memory_space<vmem>>, vector<1x128x128xbf16>
    %119 = vector.shape_cast %118 : vector<1x128x128xbf16> to vector<128x128xbf16>
    %120 = arith.truncf %117 : vector<8x128xf32> to vector<8x128xbf16>
    %cst_40 = arith.constant dense<0.000000e+00> : vector<8x128xf32>
    %121 = tpu.matmul %120, %119, %cst_40 {dimension_numbers = #tpu.dot_dimension_numbers<[1], [0], [0], [1], [0, 0, 1, 1], [], []>} : vector<8x128xbf16>, vector<128x128xbf16>, vector<8x128xf32> -> vector<8x128xf32>
    %c0_41 = arith.constant 0 : index
    %c0_42 = arith.constant 0 : index
    %c0_43 = arith.constant 0 : index
    %122 = vector.load %arg7[%c0_41, %c0_42, %c0_43] : memref<2x1x128xf32, #tpu.memory_space<vmem>>, vector<1x1x128xf32>
    %123 = vector.shape_cast %122 : vector<1x1x128xf32> to vector<1x128xf32>
    %124 = vector.broadcast %123 : vector<1x128xf32> to vector<8x128xf32>
    %125 = arith.addf %121, %124 : vector<8x128xf32>
    %126 = arith.addf %125, %25 : vector<8x128xf32>
    %c0_44 = arith.constant 0 : index
    %c0_45 = arith.constant 0 : index
    %c0_46 = arith.constant 0 : index
    %127 = vector.load %arg8[%c0_44, %c0_45, %c0_46] : memref<2x1x128xf32, #tpu.memory_space<vmem>>, vector<1x1x128xf32>
    %128 = vector.shape_cast %127 : vector<1x1x128xf32> to vector<1x128xf32>
    %c0_47 = arith.constant 0 : index
    %c0_48 = arith.constant 0 : index
    %c0_49 = arith.constant 0 : index
    %129 = vector.load %arg9[%c0_47, %c0_48, %c0_49] : memref<2x1x128xf32, #tpu.memory_space<vmem>>, vector<1x1x128xf32>
    %130 = vector.shape_cast %129 : vector<1x1x128xf32> to vector<1x128xf32>
    %cst_50 = arith.constant dense<0.000000e+00> : vector<8xf32>
    %131 = vector.multi_reduction <add>, %126, %cst_50 [1] : vector<8x128xf32> to vector<8xf32>
    %132 = vector.shape_cast %131 : vector<8xf32> to vector<8x1xf32>
    %cst_51 = arith.constant 1.280000e+02 : f32
    %133 = vector.broadcast %cst_51 : f32 to vector<8x1xf32>
    %134 = arith.divf %132, %133 : vector<8x1xf32>
    %135 = vector.broadcast %134 : vector<8x1xf32> to vector<8x128xf32>
    %136 = arith.subf %126, %135 : vector<8x128xf32>
    %137 = arith.mulf %136, %136 : vector<8x128xf32>
    %cst_52 = arith.constant dense<0.000000e+00> : vector<8xf32>
    %138 = vector.multi_reduction <add>, %137, %cst_52 [1] : vector<8x128xf32> to vector<8xf32>
    %139 = vector.shape_cast %138 : vector<8xf32> to vector<8x1xf32>
    %cst_53 = arith.constant 1.280000e+02 : f32
    %140 = vector.broadcast %cst_53 : f32 to vector<8x1xf32>
    %141 = arith.divf %139, %140 : vector<8x1xf32>
    %142 = vector.broadcast %134 : vector<8x1xf32> to vector<8x128xf32>
    %143 = arith.subf %126, %142 : vector<8x128xf32>
    %cst_54 = arith.constant 9.99999996E-13 : f32
    %144 = vector.broadcast %cst_54 : f32 to vector<8x1xf32>
    %145 = arith.addf %141, %144 : vector<8x1xf32>
    %146 = math.rsqrt %145 : vector<8x1xf32>
    %147 = vector.broadcast %146 : vector<8x1xf32> to vector<8x128xf32>
    %148 = arith.mulf %143, %147 : vector<8x128xf32>
    %149 = vector.broadcast %128 : vector<1x128xf32> to vector<8x128xf32>
    %150 = arith.mulf %148, %149 : vector<8x128xf32>
    %151 = vector.broadcast %130 : vector<1x128xf32> to vector<8x128xf32>
    %152 = arith.addf %150, %151 : vector<8x128xf32>
    %c0_55 = arith.constant 0 : index
    %c0_56 = arith.constant 0 : index
    %c0_57 = arith.constant 0 : index
    %153 = vector.load %arg10[%c0_55, %c0_56, %c0_57] : memref<2x128x256xbf16, #tpu.memory_space<vmem>>, vector<1x128x256xbf16>
    %154 = vector.shape_cast %153 : vector<1x128x256xbf16> to vector<128x256xbf16>
    %155 = arith.truncf %152 : vector<8x128xf32> to vector<8x128xbf16>
    %cst_58 = arith.constant dense<0.000000e+00> : vector<8x256xf32>
    %156 = tpu.matmul %155, %154, %cst_58 {dimension_numbers = #tpu.dot_dimension_numbers<[1], [0], [0], [1], [0, 0, 1, 1], [], []>} : vector<8x128xbf16>, vector<128x256xbf16>, vector<8x256xf32> -> vector<8x256xf32>
    %c0_59 = arith.constant 0 : index
    %c0_60 = arith.constant 0 : index
    %c0_61 = arith.constant 0 : index
    %157 = vector.load %arg11[%c0_59, %c0_60, %c0_61] : memref<2x1x256xf32, #tpu.memory_space<vmem>>, vector<1x1x256xf32>
    %158 = vector.shape_cast %157 : vector<1x1x256xf32> to vector<1x256xf32>
    %159 = vector.broadcast %158 : vector<1x256xf32> to vector<8x256xf32>
    %160 = arith.addf %156, %159 : vector<8x256xf32>
    %cst_62 = arith.constant 5.000000e-01 : f32
    %161 = vector.broadcast %cst_62 : f32 to vector<8x256xf32>
    %162 = arith.mulf %161, %160 : vector<8x256xf32>
    %cst_63 = arith.constant 0.707106769 : f32
    %163 = vector.broadcast %cst_63 : f32 to vector<8x256xf32>
    %164 = arith.mulf %160, %163 : vector<8x256xf32>
    %165 = math.erf %164 : vector<8x256xf32>
    %cst_64 = arith.constant 1.000000e+00 : f32
    %166 = vector.broadcast %cst_64 : f32 to vector<8x256xf32>
    %167 = arith.addf %166, %165 : vector<8x256xf32>
    %168 = arith.mulf %162, %167 : vector<8x256xf32>
    %c0_65 = arith.constant 0 : index
    %c0_66 = arith.constant 0 : index
    %c0_67 = arith.constant 0 : index
    %169 = vector.load %arg12[%c0_65, %c0_66, %c0_67] : memref<2x256x128xbf16, #tpu.memory_space<vmem>>, vector<1x256x128xbf16>
    %170 = vector.shape_cast %169 : vector<1x256x128xbf16> to vector<256x128xbf16>
    %171 = arith.truncf %168 : vector<8x256xf32> to vector<8x256xbf16>
    %cst_68 = arith.constant dense<0.000000e+00> : vector<8x128xf32>
    %172 = tpu.matmul %171, %170, %cst_68 {dimension_numbers = #tpu.dot_dimension_numbers<[1], [0], [0], [1], [0, 0, 1, 1], [], []>} : vector<8x256xbf16>, vector<256x128xbf16>, vector<8x128xf32> -> vector<8x128xf32>
    %c0_69 = arith.constant 0 : index
    %c0_70 = arith.constant 0 : index
    %c0_71 = arith.constant 0 : index
    %173 = vector.load %arg13[%c0_69, %c0_70, %c0_71] : memref<2x1x128xf32, #tpu.memory_space<vmem>>, vector<1x1x128xf32>
    %174 = vector.shape_cast %173 : vector<1x1x128xf32> to vector<1x128xf32>
    %175 = vector.broadcast %174 : vector<1x128xf32> to vector<8x128xf32>
    %176 = arith.addf %172, %175 : vector<8x128xf32>
    %177 = arith.addf %176, %152 : vector<8x128xf32>
    %c0_72 = arith.constant 0 : index
    %c0_73 = arith.constant 0 : index
    %c0_74 = arith.constant 0 : index
    %178 = vector.load %arg14[%c0_72, %c0_73, %c0_74] : memref<2x1x128xf32, #tpu.memory_space<vmem>>, vector<1x1x128xf32>
    %179 = vector.shape_cast %178 : vector<1x1x128xf32> to vector<1x128xf32>
    %c0_75 = arith.constant 0 : index
    %c0_76 = arith.constant 0 : index
    %c0_77 = arith.constant 0 : index
    %180 = vector.load %arg15[%c0_75, %c0_76, %c0_77] : memref<2x1x128xf32, #tpu.memory_space<vmem>>, vector<1x1x128xf32>
    %181 = vector.shape_cast %180 : vector<1x1x128xf32> to vector<1x128xf32>
    %cst_78 = arith.constant dense<0.000000e+00> : vector<8xf32>
    %182 = vector.multi_reduction <add>, %177, %cst_78 [1] : vector<8x128xf32> to vector<8xf32>
    %183 = vector.shape_cast %182 : vector<8xf32> to vector<8x1xf32>
    %cst_79 = arith.constant 1.280000e+02 : f32
    %184 = vector.broadcast %cst_79 : f32 to vector<8x1xf32>
    %185 = arith.divf %183, %184 : vector<8x1xf32>
    %186 = vector.broadcast %185 : vector<8x1xf32> to vector<8x128xf32>
    %187 = arith.subf %177, %186 : vector<8x128xf32>
    %188 = arith.mulf %187, %187 : vector<8x128xf32>
    %cst_80 = arith.constant dense<0.000000e+00> : vector<8xf32>
    %189 = vector.multi_reduction <add>, %188, %cst_80 [1] : vector<8x128xf32> to vector<8xf32>
    %190 = vector.shape_cast %189 : vector<8xf32> to vector<8x1xf32>
    %cst_81 = arith.constant 1.280000e+02 : f32
    %191 = vector.broadcast %cst_81 : f32 to vector<8x1xf32>
    %192 = arith.divf %190, %191 : vector<8x1xf32>
    %193 = vector.broadcast %185 : vector<8x1xf32> to vector<8x128xf32>
    %194 = arith.subf %177, %193 : vector<8x128xf32>
    %cst_82 = arith.constant 9.99999996E-13 : f32
    %195 = vector.broadcast %cst_82 : f32 to vector<8x1xf32>
    %196 = arith.addf %192, %195 : vector<8x1xf32>
    %197 = math.rsqrt %196 : vector<8x1xf32>
    %198 = vector.broadcast %197 : vector<8x1xf32> to vector<8x128xf32>
    %199 = arith.mulf %194, %198 : vector<8x128xf32>
    %200 = vector.broadcast %179 : vector<1x128xf32> to vector<8x128xf32>
    %201 = arith.mulf %199, %200 : vector<8x128xf32>
    %202 = vector.broadcast %181 : vector<1x128xf32> to vector<8x128xf32>
    %203 = arith.addf %201, %202 : vector<8x128xf32>
    %c1 = arith.constant 1 : index
    %c0_83 = arith.constant 0 : index
    %c0_84 = arith.constant 0 : index
    %204 = vector.load %arg4[%c1, %c0_83, %c0_84] : memref<2x128x384xbf16, #tpu.memory_space<vmem>>, vector<1x128x384xbf16>
    %205 = vector.shape_cast %204 : vector<1x128x384xbf16> to vector<128x384xbf16>
    %206 = arith.truncf %203 : vector<8x128xf32> to vector<8x128xbf16>
    %cst_85 = arith.constant dense<0.000000e+00> : vector<8x384xf32>
    %207 = tpu.matmul %206, %205, %cst_85 {dimension_numbers = #tpu.dot_dimension_numbers<[1], [0], [0], [1], [0, 0, 1, 1], [], []>} : vector<8x128xbf16>, vector<128x384xbf16>, vector<8x384xf32> -> vector<8x384xf32>
    %c1_86 = arith.constant 1 : index
    %c0_87 = arith.constant 0 : index
    %c0_88 = arith.constant 0 : index
    %208 = vector.load %arg5[%c1_86, %c0_87, %c0_88] : memref<2x1x384xf32, #tpu.memory_space<vmem>>, vector<1x1x384xf32>
    %209 = vector.shape_cast %208 : vector<1x1x384xf32> to vector<1x384xf32>
    %210 = vector.broadcast %209 : vector<1x384xf32> to vector<8x384xf32>
    %211 = arith.addf %207, %210 : vector<8x384xf32>
    %212 = vector.extract_strided_slice %211 {offsets = [0, 0], sizes = [8, 128], strides = [1, 1]} : vector<8x384xf32> to vector<8x128xf32>
    %213 = vector.extract_strided_slice %211 {offsets = [0, 128], sizes = [8, 128], strides = [1, 1]} : vector<8x384xf32> to vector<8x128xf32>
    %214 = vector.extract_strided_slice %211 {offsets = [0, 256], sizes = [8, 128], strides = [1, 1]} : vector<8x384xf32> to vector<8x128xf32>
    %215 = vector.extract_strided_slice %212 {offsets = [0, 0], sizes = [8, 32], strides = [1, 1]} : vector<8x128xf32> to vector<8x32xf32>
    %216 = arith.truncf %215 : vector<8x32xf32> to vector<8x32xbf16>
    %217 = vector.extract_strided_slice %213 {offsets = [0, 0], sizes = [8, 32], strides = [1, 1]} : vector<8x128xf32> to vector<8x32xf32>
    %218 = arith.truncf %217 : vector<8x32xf32> to vector<8x32xbf16>
    %219 = vector.extract_strided_slice %214 {offsets = [0, 0], sizes = [8, 32], strides = [1, 1]} : vector<8x128xf32> to vector<8x32xf32>
    %220 = arith.truncf %219 : vector<8x32xf32> to vector<8x32xbf16>
    %cst_89 = arith.constant dense<0.000000e+00> : vector<8x8xf32>
    %221 = tpu.matmul %216, %218, %cst_89 {dimension_numbers = #tpu.dot_dimension_numbers<[1], [1], [0], [0], [0, 0, 1, 0], [], []>} : vector<8x32xbf16>, vector<8x32xbf16>, vector<8x8xf32> -> vector<8x8xf32>
    %cst_90 = arith.constant 0.176776692 : f32
    %222 = vector.broadcast %cst_90 : f32 to vector<8x8xf32>
    %223 = arith.mulf %221, %222 : vector<8x8xf32>
    %cst_91 = arith.constant dense<0xFF800000> : vector<8xf32>
    %224 = vector.multi_reduction <maximumf>, %223, %cst_91 [1] : vector<8x8xf32> to vector<8xf32>
    %225 = vector.shape_cast %224 : vector<8xf32> to vector<8x1xf32>
    %226 = vector.broadcast %225 : vector<8x1xf32> to vector<8x8xf32>
    %227 = arith.subf %223, %226 : vector<8x8xf32>
    %228 = math.exp %227 : vector<8x8xf32>
    %cst_92 = arith.constant dense<0.000000e+00> : vector<8xf32>
    %229 = vector.multi_reduction <add>, %228, %cst_92 [1] : vector<8x8xf32> to vector<8xf32>
    %230 = vector.shape_cast %229 : vector<8xf32> to vector<8x1xf32>
    %231 = vector.broadcast %230 : vector<8x1xf32> to vector<8x8xf32>
    %232 = arith.divf %228, %231 : vector<8x8xf32>
    %233 = arith.truncf %232 : vector<8x8xf32> to vector<8x8xbf16>
    %cst_93 = arith.constant dense<0.000000e+00> : vector<8x32xf32>
    %234 = tpu.matmul %233, %220, %cst_93 {dimension_numbers = #tpu.dot_dimension_numbers<[1], [0], [0], [1], [0, 0, 1, 1], [], []>} : vector<8x8xbf16>, vector<8x32xbf16>, vector<8x32xf32> -> vector<8x32xf32>
    %235 = vector.extract_strided_slice %212 {offsets = [0, 32], sizes = [8, 32], strides = [1, 1]} : vector<8x128xf32> to vector<8x32xf32>
    %236 = arith.truncf %235 : vector<8x32xf32> to vector<8x32xbf16>
    %237 = vector.extract_strided_slice %213 {offsets = [0, 32], sizes = [8, 32], strides = [1, 1]} : vector<8x128xf32> to vector<8x32xf32>
    %238 = arith.truncf %237 : vector<8x32xf32> to vector<8x32xbf16>
    %239 = vector.extract_strided_slice %214 {offsets = [0, 32], sizes = [8, 32], strides = [1, 1]} : vector<8x128xf32> to vector<8x32xf32>
    %240 = arith.truncf %239 : vector<8x32xf32> to vector<8x32xbf16>
    %cst_94 = arith.constant dense<0.000000e+00> : vector<8x8xf32>
    %241 = tpu.matmul %236, %238, %cst_94 {dimension_numbers = #tpu.dot_dimension_numbers<[1], [1], [0], [0], [0, 0, 1, 0], [], []>} : vector<8x32xbf16>, vector<8x32xbf16>, vector<8x8xf32> -> vector<8x8xf32>
    %cst_95 = arith.constant 0.176776692 : f32
    %242 = vector.broadcast %cst_95 : f32 to vector<8x8xf32>
    %243 = arith.mulf %241, %242 : vector<8x8xf32>
    %cst_96 = arith.constant dense<0xFF800000> : vector<8xf32>
    %244 = vector.multi_reduction <maximumf>, %243, %cst_96 [1] : vector<8x8xf32> to vector<8xf32>
    %245 = vector.shape_cast %244 : vector<8xf32> to vector<8x1xf32>
    %246 = vector.broadcast %245 : vector<8x1xf32> to vector<8x8xf32>
    %247 = arith.subf %243, %246 : vector<8x8xf32>
    %248 = math.exp %247 : vector<8x8xf32>
    %cst_97 = arith.constant dense<0.000000e+00> : vector<8xf32>
    %249 = vector.multi_reduction <add>, %248, %cst_97 [1] : vector<8x8xf32> to vector<8xf32>
    %250 = vector.shape_cast %249 : vector<8xf32> to vector<8x1xf32>
    %251 = vector.broadcast %250 : vector<8x1xf32> to vector<8x8xf32>
    %252 = arith.divf %248, %251 : vector<8x8xf32>
    %253 = arith.truncf %252 : vector<8x8xf32> to vector<8x8xbf16>
    %cst_98 = arith.constant dense<0.000000e+00> : vector<8x32xf32>
    %254 = tpu.matmul %253, %240, %cst_98 {dimension_numbers = #tpu.dot_dimension_numbers<[1], [0], [0], [1], [0, 0, 1, 1], [], []>} : vector<8x8xbf16>, vector<8x32xbf16>, vector<8x32xf32> -> vector<8x32xf32>
    %255 = vector.extract_strided_slice %212 {offsets = [0, 64], sizes = [8, 32], strides = [1, 1]} : vector<8x128xf32> to vector<8x32xf32>
    %256 = arith.truncf %255 : vector<8x32xf32> to vector<8x32xbf16>
    %257 = vector.extract_strided_slice %213 {offsets = [0, 64], sizes = [8, 32], strides = [1, 1]} : vector<8x128xf32> to vector<8x32xf32>
    %258 = arith.truncf %257 : vector<8x32xf32> to vector<8x32xbf16>
    %259 = vector.extract_strided_slice %214 {offsets = [0, 64], sizes = [8, 32], strides = [1, 1]} : vector<8x128xf32> to vector<8x32xf32>
    %260 = arith.truncf %259 : vector<8x32xf32> to vector<8x32xbf16>
    %cst_99 = arith.constant dense<0.000000e+00> : vector<8x8xf32>
    %261 = tpu.matmul %256, %258, %cst_99 {dimension_numbers = #tpu.dot_dimension_numbers<[1], [1], [0], [0], [0, 0, 1, 0], [], []>} : vector<8x32xbf16>, vector<8x32xbf16>, vector<8x8xf32> -> vector<8x8xf32>
    %cst_100 = arith.constant 0.176776692 : f32
    %262 = vector.broadcast %cst_100 : f32 to vector<8x8xf32>
    %263 = arith.mulf %261, %262 : vector<8x8xf32>
    %cst_101 = arith.constant dense<0xFF800000> : vector<8xf32>
    %264 = vector.multi_reduction <maximumf>, %263, %cst_101 [1] : vector<8x8xf32> to vector<8xf32>
    %265 = vector.shape_cast %264 : vector<8xf32> to vector<8x1xf32>
    %266 = vector.broadcast %265 : vector<8x1xf32> to vector<8x8xf32>
    %267 = arith.subf %263, %266 : vector<8x8xf32>
    %268 = math.exp %267 : vector<8x8xf32>
    %cst_102 = arith.constant dense<0.000000e+00> : vector<8xf32>
    %269 = vector.multi_reduction <add>, %268, %cst_102 [1] : vector<8x8xf32> to vector<8xf32>
    %270 = vector.shape_cast %269 : vector<8xf32> to vector<8x1xf32>
    %271 = vector.broadcast %270 : vector<8x1xf32> to vector<8x8xf32>
    %272 = arith.divf %268, %271 : vector<8x8xf32>
    %273 = arith.truncf %272 : vector<8x8xf32> to vector<8x8xbf16>
    %cst_103 = arith.constant dense<0.000000e+00> : vector<8x32xf32>
    %274 = tpu.matmul %273, %260, %cst_103 {dimension_numbers = #tpu.dot_dimension_numbers<[1], [0], [0], [1], [0, 0, 1, 1], [], []>} : vector<8x8xbf16>, vector<8x32xbf16>, vector<8x32xf32> -> vector<8x32xf32>
    %275 = vector.extract_strided_slice %212 {offsets = [0, 96], sizes = [8, 32], strides = [1, 1]} : vector<8x128xf32> to vector<8x32xf32>
    %276 = arith.truncf %275 : vector<8x32xf32> to vector<8x32xbf16>
    %277 = vector.extract_strided_slice %213 {offsets = [0, 96], sizes = [8, 32], strides = [1, 1]} : vector<8x128xf32> to vector<8x32xf32>
    %278 = arith.truncf %277 : vector<8x32xf32> to vector<8x32xbf16>
    %279 = vector.extract_strided_slice %214 {offsets = [0, 96], sizes = [8, 32], strides = [1, 1]} : vector<8x128xf32> to vector<8x32xf32>
    %280 = arith.truncf %279 : vector<8x32xf32> to vector<8x32xbf16>
    %cst_104 = arith.constant dense<0.000000e+00> : vector<8x8xf32>
    %281 = tpu.matmul %276, %278, %cst_104 {dimension_numbers = #tpu.dot_dimension_numbers<[1], [1], [0], [0], [0, 0, 1, 0], [], []>} : vector<8x32xbf16>, vector<8x32xbf16>, vector<8x8xf32> -> vector<8x8xf32>
    %cst_105 = arith.constant 0.176776692 : f32
    %282 = vector.broadcast %cst_105 : f32 to vector<8x8xf32>
    %283 = arith.mulf %281, %282 : vector<8x8xf32>
    %cst_106 = arith.constant dense<0xFF800000> : vector<8xf32>
    %284 = vector.multi_reduction <maximumf>, %283, %cst_106 [1] : vector<8x8xf32> to vector<8xf32>
    %285 = vector.shape_cast %284 : vector<8xf32> to vector<8x1xf32>
    %286 = vector.broadcast %285 : vector<8x1xf32> to vector<8x8xf32>
    %287 = arith.subf %283, %286 : vector<8x8xf32>
    %288 = math.exp %287 : vector<8x8xf32>
    %cst_107 = arith.constant dense<0.000000e+00> : vector<8xf32>
    %289 = vector.multi_reduction <add>, %288, %cst_107 [1] : vector<8x8xf32> to vector<8xf32>
    %290 = vector.shape_cast %289 : vector<8xf32> to vector<8x1xf32>
    %291 = vector.broadcast %290 : vector<8x1xf32> to vector<8x8xf32>
    %292 = arith.divf %288, %291 : vector<8x8xf32>
    %293 = arith.truncf %292 : vector<8x8xf32> to vector<8x8xbf16>
    %cst_108 = arith.constant dense<0.000000e+00> : vector<8x32xf32>
    %294 = tpu.matmul %293, %280, %cst_108 {dimension_numbers = #tpu.dot_dimension_numbers<[1], [0], [0], [1], [0, 0, 1, 1], [], []>} : vector<8x8xbf16>, vector<8x32xbf16>, vector<8x32xf32> -> vector<8x32xf32>
    %295 = tpu.concatenate %234, %254, %274, %294 in 1 : vector<8x32xf32>, vector<8x32xf32>, vector<8x32xf32>, vector<8x32xf32> -> vector<8x128xf32>
    %c1_109 = arith.constant 1 : index
    %c0_110 = arith.constant 0 : index
    %c0_111 = arith.constant 0 : index
    %296 = vector.load %arg6[%c1_109, %c0_110, %c0_111] : memref<2x128x128xbf16, #tpu.memory_space<vmem>>, vector<1x128x128xbf16>
    %297 = vector.shape_cast %296 : vector<1x128x128xbf16> to vector<128x128xbf16>
    %298 = arith.truncf %295 : vector<8x128xf32> to vector<8x128xbf16>
    %cst_112 = arith.constant dense<0.000000e+00> : vector<8x128xf32>
    %299 = tpu.matmul %298, %297, %cst_112 {dimension_numbers = #tpu.dot_dimension_numbers<[1], [0], [0], [1], [0, 0, 1, 1], [], []>} : vector<8x128xbf16>, vector<128x128xbf16>, vector<8x128xf32> -> vector<8x128xf32>
    %c1_113 = arith.constant 1 : index
    %c0_114 = arith.constant 0 : index
    %c0_115 = arith.constant 0 : index
    %300 = vector.load %arg7[%c1_113, %c0_114, %c0_115] : memref<2x1x128xf32, #tpu.memory_space<vmem>>, vector<1x1x128xf32>
    %301 = vector.shape_cast %300 : vector<1x1x128xf32> to vector<1x128xf32>
    %302 = vector.broadcast %301 : vector<1x128xf32> to vector<8x128xf32>
    %303 = arith.addf %299, %302 : vector<8x128xf32>
    %304 = arith.addf %303, %203 : vector<8x128xf32>
    %c1_116 = arith.constant 1 : index
    %c0_117 = arith.constant 0 : index
    %c0_118 = arith.constant 0 : index
    %305 = vector.load %arg8[%c1_116, %c0_117, %c0_118] : memref<2x1x128xf32, #tpu.memory_space<vmem>>, vector<1x1x128xf32>
    %306 = vector.shape_cast %305 : vector<1x1x128xf32> to vector<1x128xf32>
    %c1_119 = arith.constant 1 : index
    %c0_120 = arith.constant 0 : index
    %c0_121 = arith.constant 0 : index
    %307 = vector.load %arg9[%c1_119, %c0_120, %c0_121] : memref<2x1x128xf32, #tpu.memory_space<vmem>>, vector<1x1x128xf32>
    %308 = vector.shape_cast %307 : vector<1x1x128xf32> to vector<1x128xf32>
    %cst_122 = arith.constant dense<0.000000e+00> : vector<8xf32>
    %309 = vector.multi_reduction <add>, %304, %cst_122 [1] : vector<8x128xf32> to vector<8xf32>
    %310 = vector.shape_cast %309 : vector<8xf32> to vector<8x1xf32>
    %cst_123 = arith.constant 1.280000e+02 : f32
    %311 = vector.broadcast %cst_123 : f32 to vector<8x1xf32>
    %312 = arith.divf %310, %311 : vector<8x1xf32>
    %313 = vector.broadcast %312 : vector<8x1xf32> to vector<8x128xf32>
    %314 = arith.subf %304, %313 : vector<8x128xf32>
    %315 = arith.mulf %314, %314 : vector<8x128xf32>
    %cst_124 = arith.constant dense<0.000000e+00> : vector<8xf32>
    %316 = vector.multi_reduction <add>, %315, %cst_124 [1] : vector<8x128xf32> to vector<8xf32>
    %317 = vector.shape_cast %316 : vector<8xf32> to vector<8x1xf32>
    %cst_125 = arith.constant 1.280000e+02 : f32
    %318 = vector.broadcast %cst_125 : f32 to vector<8x1xf32>
    %319 = arith.divf %317, %318 : vector<8x1xf32>
    %320 = vector.broadcast %312 : vector<8x1xf32> to vector<8x128xf32>
    %321 = arith.subf %304, %320 : vector<8x128xf32>
    %cst_126 = arith.constant 9.99999996E-13 : f32
    %322 = vector.broadcast %cst_126 : f32 to vector<8x1xf32>
    %323 = arith.addf %319, %322 : vector<8x1xf32>
    %324 = math.rsqrt %323 : vector<8x1xf32>
    %325 = vector.broadcast %324 : vector<8x1xf32> to vector<8x128xf32>
    %326 = arith.mulf %321, %325 : vector<8x128xf32>
    %327 = vector.broadcast %306 : vector<1x128xf32> to vector<8x128xf32>
    %328 = arith.mulf %326, %327 : vector<8x128xf32>
    %329 = vector.broadcast %308 : vector<1x128xf32> to vector<8x128xf32>
    %330 = arith.addf %328, %329 : vector<8x128xf32>
    %c1_127 = arith.constant 1 : index
    %c0_128 = arith.constant 0 : index
    %c0_129 = arith.constant 0 : index
    %331 = vector.load %arg10[%c1_127, %c0_128, %c0_129] : memref<2x128x256xbf16, #tpu.memory_space<vmem>>, vector<1x128x256xbf16>
    %332 = vector.shape_cast %331 : vector<1x128x256xbf16> to vector<128x256xbf16>
    %333 = arith.truncf %330 : vector<8x128xf32> to vector<8x128xbf16>
    %cst_130 = arith.constant dense<0.000000e+00> : vector<8x256xf32>
    %334 = tpu.matmul %333, %332, %cst_130 {dimension_numbers = #tpu.dot_dimension_numbers<[1], [0], [0], [1], [0, 0, 1, 1], [], []>} : vector<8x128xbf16>, vector<128x256xbf16>, vector<8x256xf32> -> vector<8x256xf32>
    %c1_131 = arith.constant 1 : index
    %c0_132 = arith.constant 0 : index
    %c0_133 = arith.constant 0 : index
    %335 = vector.load %arg11[%c1_131, %c0_132, %c0_133] : memref<2x1x256xf32, #tpu.memory_space<vmem>>, vector<1x1x256xf32>
    %336 = vector.shape_cast %335 : vector<1x1x256xf32> to vector<1x256xf32>
    %337 = vector.broadcast %336 : vector<1x256xf32> to vector<8x256xf32>
    %338 = arith.addf %334, %337 : vector<8x256xf32>
    %cst_134 = arith.constant 5.000000e-01 : f32
    %339 = vector.broadcast %cst_134 : f32 to vector<8x256xf32>
    %340 = arith.mulf %339, %338 : vector<8x256xf32>
    %cst_135 = arith.constant 0.707106769 : f32
    %341 = vector.broadcast %cst_135 : f32 to vector<8x256xf32>
    %342 = arith.mulf %338, %341 : vector<8x256xf32>
    %343 = math.erf %342 : vector<8x256xf32>
    %cst_136 = arith.constant 1.000000e+00 : f32
    %344 = vector.broadcast %cst_136 : f32 to vector<8x256xf32>
    %345 = arith.addf %344, %343 : vector<8x256xf32>
    %346 = arith.mulf %340, %345 : vector<8x256xf32>
    %c1_137 = arith.constant 1 : index
    %c0_138 = arith.constant 0 : index
    %c0_139 = arith.constant 0 : index
    %347 = vector.load %arg12[%c1_137, %c0_138, %c0_139] : memref<2x256x128xbf16, #tpu.memory_space<vmem>>, vector<1x256x128xbf16>
    %348 = vector.shape_cast %347 : vector<1x256x128xbf16> to vector<256x128xbf16>
    %349 = arith.truncf %346 : vector<8x256xf32> to vector<8x256xbf16>
    %cst_140 = arith.constant dense<0.000000e+00> : vector<8x128xf32>
    %350 = tpu.matmul %349, %348, %cst_140 {dimension_numbers = #tpu.dot_dimension_numbers<[1], [0], [0], [1], [0, 0, 1, 1], [], []>} : vector<8x256xbf16>, vector<256x128xbf16>, vector<8x128xf32> -> vector<8x128xf32>
    %c1_141 = arith.constant 1 : index
    %c0_142 = arith.constant 0 : index
    %c0_143 = arith.constant 0 : index
    %351 = vector.load %arg13[%c1_141, %c0_142, %c0_143] : memref<2x1x128xf32, #tpu.memory_space<vmem>>, vector<1x1x128xf32>
    %352 = vector.shape_cast %351 : vector<1x1x128xf32> to vector<1x128xf32>
    %353 = vector.broadcast %352 : vector<1x128xf32> to vector<8x128xf32>
    %354 = arith.addf %350, %353 : vector<8x128xf32>
    %355 = arith.addf %354, %330 : vector<8x128xf32>
    %c1_144 = arith.constant 1 : index
    %c0_145 = arith.constant 0 : index
    %c0_146 = arith.constant 0 : index
    %356 = vector.load %arg14[%c1_144, %c0_145, %c0_146] : memref<2x1x128xf32, #tpu.memory_space<vmem>>, vector<1x1x128xf32>
    %357 = vector.shape_cast %356 : vector<1x1x128xf32> to vector<1x128xf32>
    %c1_147 = arith.constant 1 : index
    %c0_148 = arith.constant 0 : index
    %c0_149 = arith.constant 0 : index
    %358 = vector.load %arg15[%c1_147, %c0_148, %c0_149] : memref<2x1x128xf32, #tpu.memory_space<vmem>>, vector<1x1x128xf32>
    %359 = vector.shape_cast %358 : vector<1x1x128xf32> to vector<1x128xf32>
    %cst_150 = arith.constant dense<0.000000e+00> : vector<8xf32>
    %360 = vector.multi_reduction <add>, %355, %cst_150 [1] : vector<8x128xf32> to vector<8xf32>
    %361 = vector.shape_cast %360 : vector<8xf32> to vector<8x1xf32>
    %cst_151 = arith.constant 1.280000e+02 : f32
    %362 = vector.broadcast %cst_151 : f32 to vector<8x1xf32>
    %363 = arith.divf %361, %362 : vector<8x1xf32>
    %364 = vector.broadcast %363 : vector<8x1xf32> to vector<8x128xf32>
    %365 = arith.subf %355, %364 : vector<8x128xf32>
    %366 = arith.mulf %365, %365 : vector<8x128xf32>
    %cst_152 = arith.constant dense<0.000000e+00> : vector<8xf32>
    %367 = vector.multi_reduction <add>, %366, %cst_152 [1] : vector<8x128xf32> to vector<8xf32>
    %368 = vector.shape_cast %367 : vector<8xf32> to vector<8x1xf32>
    %cst_153 = arith.constant 1.280000e+02 : f32
    %369 = vector.broadcast %cst_153 : f32 to vector<8x1xf32>
    %370 = arith.divf %368, %369 : vector<8x1xf32>
    %371 = vector.broadcast %363 : vector<8x1xf32> to vector<8x128xf32>
    %372 = arith.subf %355, %371 : vector<8x128xf32>
    %cst_154 = arith.constant 9.99999996E-13 : f32
    %373 = vector.broadcast %cst_154 : f32 to vector<8x1xf32>
    %374 = arith.addf %370, %373 : vector<8x1xf32>
    %375 = math.rsqrt %374 : vector<8x1xf32>
    %376 = vector.broadcast %375 : vector<8x1xf32> to vector<8x128xf32>
    %377 = arith.mulf %372, %376 : vector<8x128xf32>
    %378 = vector.broadcast %357 : vector<1x128xf32> to vector<8x128xf32>
    %379 = arith.mulf %377, %378 : vector<8x128xf32>
    %380 = vector.broadcast %359 : vector<1x128xf32> to vector<8x128xf32>
    %381 = arith.addf %379, %380 : vector<8x128xf32>
    %c0_155 = arith.constant 0 : index
    %c0_156 = arith.constant 0 : index
    %c0_157 = arith.constant 0 : index
    %382 = vector.load %arg16[%c0_155, %c0_156, %c0_157] : memref<1x8x128xf32, #tpu.memory_space<vmem>>, vector<1x8x128xf32>
    %383 = vector.shape_cast %382 : vector<1x8x128xf32> to vector<8x128xf32>
    %384 = vector.shape_cast %381 : vector<8x128xf32> to vector<1x8x128xf32>
    tpu.vector_store %arg16[%c0_155, %c0_156, %c0_157], %384 {strides = array<i32>} : memref<1x8x128xf32, #tpu.memory_space<vmem>>, vector<1x8x128xf32>,
    return
  }
  func.func @transform_0(%arg0: i32) -> (i32, i32, i32) {
    %c0_i32 = arith.constant 0 : i32
    %c0_i32_0 = arith.constant 0 : i32
    %c0_i32_1 = arith.constant 0 : i32
    return %arg0, %c0_i32, %c0_i32_0 : i32, i32, i32
  }
  func.func @transform_1(%arg0: i32) -> (i32, i32) {
    %c0_i32 = arith.constant 0 : i32
    %c0_i32_0 = arith.constant 0 : i32
    %c0_i32_1 = arith.constant 0 : i32
    return %c0_i32, %c0_i32_0 : i32, i32
  }
  func.func @transform_2(%arg0: i32) -> (i32, i32) {
    %c0_i32 = arith.constant 0 : i32
    %c0_i32_0 = arith.constant 0 : i32
    %c0_i32_1 = arith.constant 0 : i32
    return %c0_i32, %c0_i32_0 : i32, i32
  }
  func.func @transform_3(%arg0: i32) -> (i32, i32, i32) {
    %c0_i32 = arith.constant 0 : i32
    %c0_i32_0 = arith.constant 0 : i32
    %c0_i32_1 = arith.constant 0 : i32
    %c0_i32_2 = arith.constant 0 : i32
    return %c0_i32, %c0_i32_0, %c0_i32_1 : i32, i32, i32
  }
  func.func @transform_4(%arg0: i32) -> (i32, i32, i32) {
    %c0_i32 = arith.constant 0 : i32
    %c0_i32_0 = arith.constant 0 : i32
    %c0_i32_1 = arith.constant 0 : i32
    %c0_i32_2 = arith.constant 0 : i32
    return %c0_i32, %c0_i32_0, %c0_i32_1 : i32, i32, i32
  }
  func.func @transform_5(%arg0: i32) -> (i32, i32, i32) {
    %c0_i32 = arith.constant 0 : i32
    %c0_i32_0 = arith.constant 0 : i32
    %c0_i32_1 = arith.constant 0 : i32
    %c0_i32_2 = arith.constant 0 : i32
    return %c0_i32, %c0_i32_0, %c0_i32_1 : i32, i32, i32
  }
  func.func @transform_6(%arg0: i32) -> (i32, i32, i32) {
    %c0_i32 = arith.constant 0 : i32
    %c0_i32_0 = arith.constant 0 : i32
    %c0_i32_1 = arith.constant 0 : i32
    %c0_i32_2 = arith.constant 0 : i32
    return %c0_i32, %c0_i32_0, %c0_i32_1 : i32, i32, i32
  }
  func.func @transform_7(%arg0: i32) -> (i32, i32, i32) {
    %c0_i32 = arith.constant 0 : i32
    %c0_i32_0 = arith.constant 0 : i32
    %c0_i32_1 = arith.constant 0 : i32
    %c0_i32_2 = arith.constant 0 : i32
    return %c0_i32, %c0_i32_0, %c0_i32_1 : i32, i32, i32
  }
  func.func @transform_8(%arg0: i32) -> (i32, i32, i32) {
    %c0_i32 = arith.constant 0 : i32
    %c0_i32_0 = arith.constant 0 : i32
    %c0_i32_1 = arith.constant 0 : i32
    %c0_i32_2 = arith.constant 0 : i32
    return %c0_i32, %c0_i32_0, %c0_i32_1 : i32, i32, i32
  }
  func.func @transform_9(%arg0: i32) -> (i32, i32, i32) {
    %c0_i32 = arith.constant 0 : i32
    %c0_i32_0 = arith.constant 0 : i32
    %c0_i32_1 = arith.constant 0 : i32
    %c0_i32_2 = arith.constant 0 : i32
    return %c0_i32, %c0_i32_0, %c0_i32_1 : i32, i32, i32
  }
  func.func @transform_10(%arg0: i32) -> (i32, i32, i32) {
    %c0_i32 = arith.constant 0 : i32
    %c0_i32_0 = arith.constant 0 : i32
    %c0_i32_1 = arith.constant 0 : i32
    %c0_i32_2 = arith.constant 0 : i32
    return %c0_i32, %c0_i32_0, %c0_i32_1 : i32, i32, i32
  }
  func.func @transform_11(%arg0: i32) -> (i32, i32, i32) {
    %c0_i32 = arith.constant 0 : i32
    %c0_i32_0 = arith.constant 0 : i32
    %c0_i32_1 = arith.constant 0 : i32
    %c0_i32_2 = arith.constant 0 : i32
    return %c0_i32, %c0_i32_0, %c0_i32_1 : i32, i32, i32
  }
  func.func @transform_12(%arg0: i32) -> (i32, i32, i32) {
    %c0_i32 = arith.constant 0 : i32
    %c0_i32_0 = arith.constant 0 : i32
    %c0_i32_1 = arith.constant 0 : i32
    %c0_i32_2 = arith.constant 0 : i32
    return %c0_i32, %c0_i32_0, %c0_i32_1 : i32, i32, i32
  }
  func.func @transform_13(%arg0: i32) -> (i32, i32, i32) {
    %c0_i32 = arith.constant 0 : i32
    %c0_i32_0 = arith.constant 0 : i32
    %c0_i32_1 = arith.constant 0 : i32
    %c0_i32_2 = arith.constant 0 : i32
    return %c0_i32, %c0_i32_0, %c0_i32_1 : i32, i32, i32
  }
  func.func @transform_14(%arg0: i32) -> (i32, i32, i32) {
    %c0_i32 = arith.constant 0 : i32
    %c0_i32_0 = arith.constant 0 : i32
    %c0_i32_1 = arith.constant 0 : i32
    %c0_i32_2 = arith.constant 0 : i32
    return %c0_i32, %c0_i32_0, %c0_i32_1 : i32, i32, i32
  }
  func.func @transform_15(%arg0: i32) -> (i32, i32, i32) {
    %c0_i32 = arith.constant 0 : i32
    %c0_i32_0 = arith.constant 0 : i32
    %c0_i32_1 = arith.constant 0 : i32
    return %arg0, %c0_i32, %c0_i32_0 : i32, i32, i32
  }
}

</mosaic_0001>

<llo_original>
// kernel: distilbert_qa_forward.2
$region0: #{distilbert_qa_forward.2}
  #allocation0 [shape = 'u32[]', space=smem, size = 0x4, offset = 0x4, fixed_abs, tag = 'smem constant byte address 0x4 - core index']
  #allocation1 [shape = 'u32[72,128]{1,0:T(1,128)}', space=vmem, size = 0x9000, scoped, tag = 'internal scratch']
  %s0 = inlined_call_operand.vmem [shape: f32[2,8,128], index: 0, kind: input, shape index: {}]
  %s1 = inlined_call_operand.hbm [shape: f32[1,128], index: 1, kind: input, shape index: {}]
  %s2 = inlined_call_operand.hbm [shape: f32[1,128], index: 2, kind: input, shape index: {}]
  %s3 = inlined_call_operand.hbm [shape: bf16[2,128,384], index: 3, kind: input, shape index: {}]
  %s4 = inlined_call_operand.vmem [shape: f32[2,1,384], index: 4, kind: input, shape index: {}]
  %s5 = inlined_call_operand.vmem [shape: bf16[2,128,128], index: 5, kind: input, shape index: {}]
  %s6 = inlined_call_operand.vmem [shape: f32[2,1,128], index: 6, kind: input, shape index: {}]
  %s7 = inlined_call_operand.vmem [shape: f32[2,1,128], index: 7, kind: input, shape index: {}]
  %s8 = inlined_call_operand.vmem [shape: f32[2,1,128], index: 8, kind: input, shape index: {}]
  %s9 = inlined_call_operand.hbm [shape: bf16[2,128,256], index: 9, kind: input, shape index: {}]
  %s10 = inlined_call_operand.vmem [shape: f32[2,1,256], index: 10, kind: input, shape index: {}]
  %s11 = inlined_call_operand.hbm [shape: bf16[2,256,128], index: 11, kind: input, shape index: {}]
  %s12 = inlined_call_operand.vmem [shape: f32[2,1,128], index: 12, kind: input, shape index: {}]
  %s13 = inlined_call_operand.hbm [shape: f32[2,1,128], index: 13, kind: input, shape index: {}]
  %s14 = inlined_call_operand.hbm [shape: f32[2,1,128], index: 14, kind: input, shape index: {}]
  %s15 = inlined_call_operand.vmem [shape: f32[2,8,128], index: 15, kind: output, shape index: {}]
  %s16 = sld [smem:[#allocation0]]
  $region121: #{distilbert_qa_forward.2} parent=0
    _
  %s18 = ssub.s32 1, %s16
  %s19 = scalar_select 0, %s18, %s16
  $region1: #{distilbert_qa_forward.2} parent=0
    #allocation2 [shape = 'u8[512]{0}', space=vmem, size = 0x400, scoped, tag = 'input window, operand 1, single buffered']
    #allocation3 [shape = 's32[2]{0}', space=sflag, size = 0x8, scoped, tag = 'scoped memory for distilbert_qa_forward.2']
    #allocation4 [shape = 'u8[512]{0}', space=vmem, size = 0x400, scoped, tag = 'input window, operand 2, single buffered']
    #allocation5 [shape = 's32[1]{0}', space=sflag, size = 0x4, scoped, tag = 'scoped memory for distilbert_qa_forward.2']
    #allocation6 [shape = 'u8[196608]{0}', space=vmem, size = 0x30000, scoped, tag = 'input window, operand 3, single buffered']
    #allocation7 [shape = 'u8[131072]{0}', space=vmem, size = 0x20000, scoped, tag = 'input window, operand 9, single buffered']
    #allocation8 [shape = 's32[1]{0}', space=sflag, size = 0x4, scoped, tag = 'scoped memory for distilbert_qa_forward.2']
    #allocation9 [shape = 'u8[131072]{0}', space=vmem, size = 0x20000, scoped, tag = 'input window, operand 11, single buffered']
    #allocation10 [shape = 'u8[1024]{0}', space=vmem, size = 0x400, scoped, tag = 'input window, operand 13, single buffered']
    #allocation11 [shape = 's32[1]{0}', space=sflag, size = 0x4, scoped, tag = 'scoped memory for distilbert_qa_forward.2']
    #allocation12 [shape = 'u8[1024]{0}', space=vmem, size = 0x400, scoped, tag = 'input window, operand 14, single buffered']
    %20 = vsyncpa [#allocation3], 0
    %21 = vsyncpa [#allocation5], 0
    %22 = vsyncpa [#allocation8], 0
    %23 = vsyncpa [#allocation11], 0
    loop: start=0, step=1, limit=4
    $region2: #{distilbert_qa_forward.2} parent=1 // loop_pre_header
      _
    $region3: #{distilbert_qa_forward.2} parent=1 // loop_header
      %s25 = sphi 0, %s29
      %p26 = scmp.ge.s32.totalorder %s25, 4
      %s35 = sphi 0, %s37
      %s38 = sphi 0, %s35
      %s39 = sphi 0, %s38
      %s55 = sphi 0, %s39
      %s59 = sphi 0, %s59
      %s61 = sphi 0, %s59
      %s62 = sphi 0, %s61
      %s76 = sphi 0, %s62
      %s80 = sphi 0, %s80
      %s82 = sphi 0, %s80
      %s83 = sphi 0, %s82
      %s97 = sphi 0, %s83
      %s101 = sphi 0, %s101
      %s103 = sphi 0, %s101
      %s104 = sphi 0, %s103
      %s118 = sphi 0, %s104
      %s122 = sphi 0, %s122
      %s124 = sphi 0, %s122
      %s125 = sphi 0, %s124
      %s139 = sphi 0, %s125
      %s143 = sphi 0, %s143
      %s145 = sphi 0, %s143
      %s146 = sphi 0, %s145
      %s160 = sphi 0, %s146
      %s164 = sphi 0, %s164
      %s166 = sphi 0, %s164
      %s167 = sphi 0, %s166
      %s181 = sphi 0, %s167
      %s185 = sphi 0, %s185
      %s187 = sphi 0, %s185
      %s188 = sphi 0, %s187
      %s202 = sphi 0, %s188
      %s206 = sphi 0, %s206
      %s208 = sphi 0, %s206
      %s209 = sphi 0, %s208
      %s223 = sphi 0, %s209
      %s227 = sphi 0, %s227
      %s229 = sphi 0, %s227
      %s230 = sphi 0, %s229
      %s244 = sphi 0, %s230
      %s248 = sphi 0, %s248
      %s250 = sphi 0, %s248
      %s251 = sphi 0, %s250
      %s265 = sphi 0, %s251
      %s269 = sphi 0, %s269
      %s271 = sphi 0, %s269
      %s272 = sphi 0, %s271
      %s286 = sphi 0, %s272
      %s290 = sphi 0, %s290
      %s292 = sphi 0, %s290
      %s293 = sphi 0, %s292
      %s307 = sphi 0, %s293
      %s311 = sphi 0, %s311
      %s313 = sphi 0, %s311
      %s314 = sphi 0, %s313
      %s328 = sphi 0, %s314
      %s332 = sphi 0, %s332
      %s334 = sphi 0, %s332
      %s335 = sphi 0, %s334
      %s349 = sphi 0, %s335
      %s355 = sphi 0, %s357
      %s358 = sphi 0, %s355
      %s359 = sphi 0, %s358
      %s375 = sphi 0, %s359
    $region4: #{distilbert_qa_forward.2} parent=1 // loop_header_branch
      %28 = sbr.rel (%p26) target = $region8
    $region5: #{distilbert_qa_forward.2} parent=1 // loop_body
      %s30 = ssub.s32 %s25, 1
      %s31 = ssub.s32 %s25, 2
      %s32 = sadd.s32 %s25, 1
      %s33 = ssub.s32 %s25, %s32
      %p34 = scmp.eq.s32.totalorder %s33, 0
      %s36 = sadd.s32 %s35, 1
      %s37 = scalar_select %p34, %s35, %s36
      %p40 = pneg %p34
      %p41 = scmp.eq.s32.totalorder %s25, 1
      %p42 = por %p40, %p41
      %p43 = scmp.ne.s32.totalorder %s35, %s38
      %p44 = scmp.eq.s32.totalorder %s25, 0
      %p45 = por %p43, %p44
      %p46 = scmp.ne.s32.totalorder %s35, %s38
      %p47 = scmp.eq.s32.totalorder %s30, 1
      %p48 = por %p46, %p47
      %p49 = scmp.ne.s32.totalorder %s38, %s39
      %p50 = scmp.eq.s32.totalorder %s30, 0
      %p51 = por %p49, %p50
      %p52 = scmp.ne.s32.totalorder %s38, %s39
      %p53 = scmp.eq.s32.totalorder %s31, 1
      %p54 = por %p52, %p53
      %p56 = scmp.ne.s32.totalorder %s39, %s55
      %p57 = scmp.eq.s32.totalorder %s31, 0
      %p58 = por %p56, %p57
      %s60 = sadd.s32 %s59, 1
      %p63 = scmp.eq.s32.totalorder %s25, 1
      %p64 = scmp.ne.s32.totalorder %s59, %s61
      %p65 = scmp.eq.s32.totalorder %s25, 0
      %p66 = por %p64, %p65
      %p67 = scmp.ne.s32.totalorder %s59, %s61
      %p68 = scmp.eq.s32.totalorder %s30, 1
      %p69 = por %p67, %p68
      %p70 = scmp.ne.s32.totalorder %s61, %s62
      %p71 = scmp.eq.s32.totalorder %s30, 0
      %p72 = por %p70, %p71
      %p73 = scmp.ne.s32.totalorder %s61, %s62
      %p74 = scmp.eq.s32.totalorder %s31, 1
      %p75 = por %p73, %p74
      %p77 = scmp.ne.s32.totalorder %s62, %s76
      %p78 = scmp.eq.s32.totalorder %s31, 0
      %p79 = por %p77, %p78
      %s81 = sadd.s32 %s80, 1
      %p84 = scmp.eq.s32.totalorder %s25, 1
      %p85 = scmp.ne.s32.totalorder %s80, %s82
      %p86 = scmp.eq.s32.totalorder %s25, 0
      %p87 = por %p85, %p86
      %p88 = scmp.ne.s32.totalorder %s80, %s82
      %p89 = scmp.eq.s32.totalorder %s30, 1
      %p90 = por %p88, %p89
      %p91 = scmp.ne.s32.totalorder %s82, %s83
      %p92 = scmp.eq.s32.totalorder %s30, 0
      %p93 = por %p91, %p92
      %p94 = scmp.ne.s32.totalorder %s82, %s83
      %p95 = scmp.eq.s32.totalorder %s31, 1
      %p96 = por %p94, %p95
      %p98 = scmp.ne.s32.totalorder %s83, %s97
      %p99 = scmp.eq.s32.totalorder %s31, 0
      %p100 = por %p98, %p99
      %s102 = sadd.s32 %s101, 1
      %p105 = scmp.eq.s32.totalorder %s25, 1
      %p106 = scmp.ne.s32.totalorder %s101, %s103
      %p107 = scmp.eq.s32.totalorder %s25, 0
      %p108 = por %p106, %p107
      %p109 = scmp.ne.s32.totalorder %s101, %s103
      %p110 = scmp.eq.s32.totalorder %s30, 1
      %p111 = por %p109, %p110
      %p112 = scmp.ne.s32.totalorder %s103, %s104
      %p113 = scmp.eq.s32.totalorder %s30, 0
      %p114 = por %p112, %p113
      %p115 = scmp.ne.s32.totalorder %s103, %s104
      %p116 = scmp.eq.s32.totalorder %s31, 1
      %p117 = por %p115, %p116
      %p119 = scmp.ne.s32.totalorder %s104, %s118
      %p120 = scmp.eq.s32.totalorder %s31, 0
      %p121 = por %p119, %p120
      %s123 = sadd.s32 %s122, 1
      %p126 = scmp.eq.s32.totalorder %s25, 1
      %p127 = scmp.ne.s32.totalorder %s122, %s124
      %p128 = scmp.eq.s32.totalorder %s25, 0
      %p129 = por %p127, %p128
      %p130 = scmp.ne.s32.totalorder %s122, %s124
      %p131 = scmp.eq.s32.totalorder %s30, 1
      %p132 = por %p130, %p131
      %p133 = scmp.ne.s32.totalorder %s124, %s125
      %p134 = scmp.eq.s32.totalorder %s30, 0
      %p135 = por %p133, %p134
      %p136 = scmp.ne.s32.totalorder %s124, %s125
      %p137 = scmp.eq.s32.totalorder %s31, 1
      %p138 = por %p136, %p137
      %p140 = scmp.ne.s32.totalorder %s125, %s139
      %p141 = scmp.eq.s32.totalorder %s31, 0
      %p142 = por %p140, %p141
      %s144 = sadd.s32 %s143, 1
      %p147 = scmp.eq.s32.totalorder %s25, 1
      %p148 = scmp.ne.s32.totalorder %s143, %s145
      %p149 = scmp.eq.s32.totalorder %s25, 0
      %p150 = por %p148, %p149
      %p151 = scmp.ne.s32.totalorder %s143, %s145
      %p152 = scmp.eq.s32.totalorder %s30, 1
      %p153 = por %p151, %p152
      %p154 = scmp.ne.s32.totalorder %s145, %s146
      %p155 = scmp.eq.s32.totalorder %s30, 0
      %p156 = por %p154, %p155
      %p157 = scmp.ne.s32.totalorder %s145, %s146
      %p158 = scmp.eq.s32.totalorder %s31, 1
      %p159 = por %p157, %p158
      %p161 = scmp.ne.s32.totalorder %s146, %s160
      %p162 = scmp.eq.s32.totalorder %s31, 0
      %p163 = por %p161, %p162
      %s165 = sadd.s32 %s164, 1
      %p168 = scmp.eq.s32.totalorder %s25, 1
      %p169 = scmp.ne.s32.totalorder %s164, %s166
      %p170 = scmp.eq.s32.totalorder %s25, 0
      %p171 = por %p169, %p170
      %p172 = scmp.ne.s32.totalorder %s164, %s166
      %p173 = scmp.eq.s32.totalorder %s30, 1
      %p174 = por %p172, %p173
      %p175 = scmp.ne.s32.totalorder %s166, %s167
      %p176 = scmp.eq.s32.totalorder %s30, 0
      %p177 = por %p175, %p176
      %p178 = scmp.ne.s32.totalorder %s166, %s167
      %p179 = scmp.eq.s32.totalorder %s31, 1
      %p180 = por %p178, %p179
      %p182 = scmp.ne.s32.totalorder %s167, %s181
      %p183 = scmp.eq.s32.totalorder %s31, 0
      %p184 = por %p182, %p183
      %s186 = sadd.s32 %s185, 1
      %p189 = scmp.eq.s32.totalorder %s25, 1
      %p190 = scmp.ne.s32.totalorder %s185, %s187
      %p191 = scmp.eq.s32.totalorder %s25, 0
      %p192 = por %p190, %p191
      %p193 = scmp.ne.s32.totalorder %s185, %s187
      %p194 = scmp.eq.s32.totalorder %s30, 1
      %p195 = por %p193, %p194
      %p196 = scmp.ne.s32.totalorder %s187, %s188
      %p197 = scmp.eq.s32.totalorder %s30, 0
      %p198 = por %p196, %p197
      %p199 = scmp.ne.s32.totalorder %s187, %s188
      %p200 = scmp.eq.s32.totalorder %s31, 1
      %p201 = por %p199, %p200
      %p203 = scmp.ne.s32.totalorder %s188, %s202
      %p204 = scmp.eq.s32.totalorder %s31, 0
      %p205 = por %p203, %p204
      %s207 = sadd.s32 %s206, 1
      %p210 = scmp.eq.s32.totalorder %s25, 1
      %p211 = scmp.ne.s32.totalorder %s206, %s208
      %p212 = scmp.eq.s32.totalorder %s25, 0
      %p213 = por %p211, %p212
      %p214 = scmp.ne.s32.totalorder %s206, %s208
      %p215 = scmp.eq.s32.totalorder %s30, 1
      %p216 = por %p214, %p215
      %p217 = scmp.ne.s32.totalorder %s208, %s209
      %p218 = scmp.eq.s32.totalorder %s30, 0
      %p219 = por %p217, %p218
      %p220 = scmp.ne.s32.totalorder %s208, %s209
      %p221 = scmp.eq.s32.totalorder %s31, 1
      %p222 = por %p220, %p221
      %p224 = scmp.ne.s32.totalorder %s209, %s223
      %p225 = scmp.eq.s32.totalorder %s31, 0
      %p226 = por %p224, %p225
      %s228 = sadd.s32 %s227, 1
      %p231 = scmp.eq.s32.totalorder %s25, 1
      %p232 = scmp.ne.s32.totalorder %s227, %s229
      %p233 = scmp.eq.s32.totalorder %s25, 0
      %p234 = por %p232, %p233
      %p235 = scmp.ne.s32.totalorder %s227, %s229
      %p236 = scmp.eq.s32.totalorder %s30, 1
      %p237 = por %p235, %p236
      %p238 = scmp.ne.s32.totalorder %s229, %s230
      %p239 = scmp.eq.s32.totalorder %s30, 0
      %p240 = por %p238, %p239
      %p241 = scmp.ne.s32.totalorder %s229, %s230
      %p242 = scmp.eq.s32.totalorder %s31, 1
      %p243 = por %p241, %p242
      %p245 = scmp.ne.s32.totalorder %s230, %s244
      %p246 = scmp.eq.s32.totalorder %s31, 0
      %p247 = por %p245, %p246
      %s249 = sadd.s32 %s248, 1
      %p252 = scmp.eq.s32.totalorder %s25, 1
      %p253 = scmp.ne.s32.totalorder %s248, %s250
      %p254 = scmp.eq.s32.totalorder %s25, 0
      %p255 = por %p253, %p254
      %p256 = scmp.ne.s32.totalorder %s248, %s250
      %p257 = scmp.eq.s32.totalorder %s30, 1
      %p258 = por %p256, %p257
      %p259 = scmp.ne.s32.totalorder %s250, %s251
      %p260 = scmp.eq.s32.totalorder %s30, 0
      %p261 = por %p259, %p260
      %p262 = scmp.ne.s32.totalorder %s250, %s251
      %p263 = scmp.eq.s32.totalorder %s31, 1
      %p264 = por %p262, %p263
      %p266 = scmp.ne.s32.totalorder %s251, %s265
      %p267 = scmp.eq.s32.totalorder %s31, 0
      %p268 = por %p266, %p267
      %s270 = sadd.s32 %s269, 1
      %p273 = scmp.eq.s32.totalorder %s25, 1
      %p274 = scmp.ne.s32.totalorder %s269, %s271
      %p275 = scmp.eq.s32.totalorder %s25, 0
      %p276 = por %p274, %p275
      %p277 = scmp.ne.s32.totalorder %s269, %s271
      %p278 = scmp.eq.s32.totalorder %s30, 1
      %p279 = por %p277, %p278
      %p280 = scmp.ne.s32.totalorder %s271, %s272
      %p281 = scmp.eq.s32.totalorder %s30, 0
      %p282 = por %p280, %p281
      %p283 = scmp.ne.s32.totalorder %s271, %s272
      %p284 = scmp.eq.s32.totalorder %s31, 1
      %p285 = por %p283, %p284
      %p287 = scmp.ne.s32.totalorder %s272, %s286
      %p288 = scmp.eq.s32.totalorder %s31, 0
      %p289 = por %p287, %p288
      %s291 = sadd.s32 %s290, 1
      %p294 = scmp.eq.s32.totalorder %s25, 1
      %p295 = scmp.ne.s32.totalorder %s290, %s292
      %p296 = scmp.eq.s32.totalorder %s25, 0
      %p297 = por %p295, %p296
      %p298 = scmp.ne.s32.totalorder %s290, %s292
      %p299 = scmp.eq.s32.totalorder %s30, 1
      %p300 = por %p298, %p299
      %p301 = scmp.ne.s32.totalorder %s292, %s293
      %p302 = scmp.eq.s32.totalorder %s30, 0
      %p303 = por %p301, %p302
      %p304 = scmp.ne.s32.totalorder %s292, %s293
      %p305 = scmp.eq.s32.totalorder %s31, 1
      %p306 = por %p304, %p305
      %p308 = scmp.ne.s32.totalorder %s293, %s307
      %p309 = scmp.eq.s32.totalorder %s31, 0
      %p310 = por %p308, %p309
      %s312 = sadd.s32 %s311, 1
      %p315 = scmp.eq.s32.totalorder %s25, 1
      %p316 = scmp.ne.s32.totalorder %s311, %s313
      %p317 = scmp.eq.s32.totalorder %s25, 0
      %p318 = por %p316, %p317
      %p319 = scmp.ne.s32.totalorder %s311, %s313
      %p320 = scmp.eq.s32.totalorder %s30, 1
      %p321 = por %p319, %p320
      %p322 = scmp.ne.s32.totalorder %s313, %s314
      %p323 = scmp.eq.s32.totalorder %s30, 0
      %p324 = por %p322, %p323
      %p325 = scmp.ne.s32.totalorder %s313, %s314
      %p326 = scmp.eq.s32.totalorder %s31, 1
      %p327 = por %p325, %p326
      %p329 = scmp.ne.s32.totalorder %s314, %s328
      %p330 = scmp.eq.s32.totalorder %s31, 0
      %p331 = por %p329, %p330
      %s333 = sadd.s32 %s332, 1
      %p336 = scmp.eq.s32.totalorder %s25, 1
      %p337 = scmp.ne.s32.totalorder %s332, %s334
      %p338 = scmp.eq.s32.totalorder %s25, 0
      %p339 = por %p337, %p338
      %p340 = scmp.ne.s32.totalorder %s332, %s334
      %p341 = scmp.eq.s32.totalorder %s30, 1
      %p342 = por %p340, %p341
      %p343 = scmp.ne.s32.totalorder %s334, %s335
      %p344 = scmp.eq.s32.totalorder %s30, 0
      %p345 = por %p343, %p344
      %p346 = scmp.ne.s32.totalorder %s334, %s335
      %p347 = scmp.eq.s32.totalorder %s31, 1
      %p348 = por %p346, %p347
      %p350 = scmp.ne.s32.totalorder %s335, %s349
      %p351 = scmp.eq.s32.totalorder %s31, 0
      %p352 = por %p350, %p351
      %s353 = ssub.s32 %s25, %s32
      %p354 = scmp.eq.s32.totalorder %s353, 0
      %s356 = sadd.s32 %s355, 1
      %s357 = scalar_select %p354, %s355, %s356
      %p360 = pneg %p354
      %p361 = scmp.eq.s32.totalorder %s25, 1
      %p362 = por %p360, %p361
      %p363 = scmp.ne.s32.totalorder %s355, %s358
      %p364 = scmp.eq.s32.totalorder %s25, 0
      %p365 = por %p363, %p364
      %p366 = scmp.ne.s32.totalorder %s355, %s358
      %p367 = scmp.eq.s32.totalorder %s30, 1
      %p368 = por %p366, %p367
      %p369 = scmp.ne.s32.totalorder %s358, %s359
      %p370 = scmp.eq.s32.totalorder %s30, 0
      %p371 = por %p369, %p370
      %p372 = scmp.ne.s32.totalorder %s358, %s359
      %p373 = scmp.eq.s32.totalorder %s31, 1
      %p374 = por %p372, %p373
      %p376 = scmp.ne.s32.totalorder %s359, %s375
      %p377 = scmp.eq.s32.totalorder %s31, 0
      %p378 = por %p376, %p377
      %p379 = scmp.le.s32.totalorder 1, %s25
      %p380 = scmp.lt.s32.totalorder %s25, 3
      %p381 = pnand %p379, %p380
      %p382 = pneg %p381
      // Predicated region
      $region9: #{distilbert_qa_forward.2} parent=5 // pred_check
        _
      $region10: #{distilbert_qa_forward.2} parent=5 // pred_check_branch
        %384 = sbr.rel (%p381) target = $region12
      $region11: #{distilbert_qa_forward.2} parent=5 // pred_region
        %s385 = ssub.s32 %s25, 1
        // Predicated region
        $region13: #{distilbert_qa_forward.2} parent=11 // pred_check
          %p386 = pneg %p72
        $region14: #{distilbert_qa_forward.2} parent=11 // pred_check_branch
          %388 = sbr.rel (%p386) target = $region16
        $region15: #{distilbert_qa_forward.2} parent=11 // pred_region
          %390 = vsyncadd [#allocation3], 0
          %s392 = sshll.u32 %s1, 4
          %s393 = int_to_ptr.hbm [resolvable:$true] %s392
          %s394 = sshll.u32 [#allocation2], 4
          %s395 = int_to_ptr.vmem [resolvable:$true] %s394
          %397 = dma.hbm_to_vmem [thread:$0]  %s393, 16, %s395, [#allocation3]
        $region16: #{distilbert_qa_forward.2} parent=11 // pred_fallthru
          _
        // Predicated region
        $region17: #{distilbert_qa_forward.2} parent=11 // pred_check
          %p398 = pneg %p93
        $region18: #{distilbert_qa_forward.2} parent=11 // pred_check_branch
          %400 = sbr.rel (%p398) target = $region20
        $region19: #{distilbert_qa_forward.2} parent=11 // pred_region
          %402 = vsyncadd [#allocation5], 0
          %s404 = sshll.u32 %s2, 4
          %s405 = int_to_ptr.hbm [resolvable:$true] %s404
          %s406 = sshll.u32 [#allocation4], 4
          %s407 = int_to_ptr.vmem [resolvable:$true] %s406
          %409 = dma.hbm_to_vmem [thread:$0]  %s405, 16, %s407, [#allocation5]
        $region20: #{distilbert_qa_forward.2} parent=11 // pred_fallthru
          _
        // Predicated region
        $region21: #{distilbert_qa_forward.2} parent=11 // pred_check
          %p410 = pneg %p114
        $region22: #{distilbert_qa_forward.2} parent=11 // pred_check_branch
          %412 = sbr.rel (%p410) target = $region24
        $region23: #{distilbert_qa_forward.2} parent=11 // pred_region
          %414 = vsyncadd [#allocation5], 0
          %s415 = sshll.u32 %s3, 4
          %s416 = int_to_ptr.hbm [resolvable:$true] %s415
          %s417 = sshll.u32 [#allocation6], 4
          %s418 = int_to_ptr.vmem [resolvable:$true] %s417
          %423 = dma.hbm_to_vmem [thread:$0]  %s416, 6144, %s418, [#allocation5], 192, 192, 12
        $region24: #{distilbert_qa_forward.2} parent=11 // pred_fallthru
          _
        // Predicated region
        $region25: #{distilbert_qa_forward.2} parent=11 // pred_check
          %p424 = pneg %p135
        $region26: #{distilbert_qa_forward.2} parent=11 // pred_check_branch
          %426 = sbr.rel (%p424) target = $region28
        $region27: #{distilbert_qa_forward.2} parent=11 // pred_region
          _
        $region28: #{distilbert_qa_forward.2} parent=11 // pred_fallthru
          _
        // Predicated region
        $region29: #{distilbert_qa_forward.2} parent=11 // pred_check
          %p427 = pneg %p156
        $region30: #{distilbert_qa_forward.2} parent=11 // pred_check_branch
          %429 = sbr.rel (%p427) target = $region32
        $region31: #{distilbert_qa_forward.2} parent=11 // pred_region
          _
        $region32: #{distilbert_qa_forward.2} parent=11 // pred_fallthru
          _
        // Predicated region
        $region33: #{distilbert_qa_forward.2} parent=11 // pred_check
          %p430 = pneg %p177
        $region34: #{distilbert_qa_forward.2} parent=11 // pred_check_branch
          %432 = sbr.rel (%p430) target = $region36
        $region35: #{distilbert_qa_forward.2} parent=11 // pred_region
          _
        $region36: #{distilbert_qa_forward.2} parent=11 // pred_fallthru
          _
        // Predicated region
        $region37: #{distilbert_qa_forward.2} parent=11 // pred_check
          %p433 = pneg %p198
        $region38: #{distilbert_qa_forward.2} parent=11 // pred_check_branch
          %435 = sbr.rel (%p433) target = $region40
        $region39: #{distilbert_qa_forward.2} parent=11 // pred_region
          _
        $region40: #{distilbert_qa_forward.2} parent=11 // pred_fallthru
          _
        // Predicated region
        $region41: #{distilbert_qa_forward.2} parent=11 // pred_check
          %p436 = pneg %p219
        $region42: #{distilbert_qa_forward.2} parent=11 // pred_check_branch
          %438 = sbr.rel (%p436) target = $region44
        $region43: #{distilbert_qa_forward.2} parent=11 // pred_region
          _
        $region44: #{distilbert_qa_forward.2} parent=11 // pred_fallthru
          _
        // Predicated region
        $region45: #{distilbert_qa_forward.2} parent=11 // pred_check
          %p439 = pneg %p240
        $region46: #{distilbert_qa_forward.2} parent=11 // pred_check_branch
          %441 = sbr.rel (%p439) target = $region48
        $region47: #{distilbert_qa_forward.2} parent=11 // pred_region
          %443 = vsyncadd [#allocation8], 0
          %s444 = sshll.u32 %s9, 4
          %s445 = int_to_ptr.hbm [resolvable:$true] %s444
          %s446 = sshll.u32 [#allocation7], 4
          %s447 = int_to_ptr.vmem [resolvable:$true] %s446
          %452 = dma.hbm_to_vmem [thread:$0]  %s445, 4096, %s447, [#allocation8], 128, 128, 8
        $region48: #{distilbert_qa_forward.2} parent=11 // pred_fallthru
          _
        // Predicated region
        $region49: #{distilbert_qa_forward.2} parent=11 // pred_check
          %p453 = pneg %p261
        $region50: #{distilbert_qa_forward.2} parent=11 // pred_check_branch
          %455 = sbr.rel (%p453) target = $region52
        $region51: #{distilbert_qa_forward.2} parent=11 // pred_region
          _
        $region52: #{distilbert_qa_forward.2} parent=11 // pred_fallthru
          _
        // Predicated region
        $region53: #{distilbert_qa_forward.2} parent=11 // pred_check
          %p456 = pneg %p282
        $region54: #{distilbert_qa_forward.2} parent=11 // pred_check_branch
          %458 = sbr.rel (%p456) target = $region56
        $region55: #{distilbert_qa_forward.2} parent=11 // pred_region
          %460 = vsyncadd [#allocation8], 0
          %s461 = sshll.u32 %s11, 4
          %s462 = int_to_ptr.hbm [resolvable:$true] %s461
          %s463 = sshll.u32 [#allocation9], 4
          %s464 = int_to_ptr.vmem [resolvable:$true] %s463
          %469 = dma.hbm_to_vmem [thread:$0]  %s462, 4096, %s464, [#allocation8], 64, 64, 4
        $region56: #{distilbert_qa_forward.2} parent=11 // pred_fallthru
          _
        // Predicated region
        $region57: #{distilbert_qa_forward.2} parent=11 // pred_check
          %p470 = pneg %p303
        $region58: #{distilbert_qa_forward.2} parent=11 // pred_check_branch
          %472 = sbr.rel (%p470) target = $region60
        $region59: #{distilbert_qa_forward.2} parent=11 // pred_region
          _
        $region60: #{distilbert_qa_forward.2} parent=11 // pred_fallthru
          _
        // Predicated region
        $region61: #{distilbert_qa_forward.2} parent=11 // pred_check
          %p473 = pneg %p324
        $region62: #{distilbert_qa_forward.2} parent=11 // pred_check_branch
          %475 = sbr.rel (%p473) target = $region64
        $region63: #{distilbert_qa_forward.2} parent=11 // pred_region
          %477 = vsyncadd [#allocation11], 0
          %s478 = sshll.u32 %s13, 4
          %s479 = int_to_ptr.hbm [resolvable:$true] %s478
          %s480 = sshll.u32 [#allocation10], 4
          %s481 = int_to_ptr.vmem [resolvable:$true] %s480
          %486 = dma.hbm_to_vmem [thread:$0]  %s479, 32, %s481, [#allocation11], 16, 16, 1
        $region64: #{distilbert_qa_forward.2} parent=11 // pred_fallthru
          _
        // Predicated region
        $region65: #{distilbert_qa_forward.2} parent=11 // pred_check
          %p487 = pneg %p345
        $region66: #{distilbert_qa_forward.2} parent=11 // pred_check_branch
          %489 = sbr.rel (%p487) target = $region68
        $region67: #{distilbert_qa_forward.2} parent=11 // pred_region
          %491 = vsyncadd [#allocation11], 0
          %s492 = sshll.u32 %s14, 4
          %s493 = int_to_ptr.hbm [resolvable:$true] %s492
          %s494 = sshll.u32 [#allocation12], 4
          %s495 = int_to_ptr.vmem [resolvable:$true] %s494
          %500 = dma.hbm_to_vmem [thread:$0]  %s493, 32, %s495, [#allocation11], 16, 16, 1
        $region68: #{distilbert_qa_forward.2} parent=11 // pred_fallthru
          _
      $region12: #{distilbert_qa_forward.2} parent=5 // pred_fallthru
        _
      %p501 = scmp.lt.s32.totalorder %s25, 2
      // Predicated region
      $region69: #{distilbert_qa_forward.2} parent=5 // pred_check
        %p502 = pneg %p501
      $region70: #{distilbert_qa_forward.2} parent=5 // pred_check_branch
        %504 = sbr.rel (%p502) target = $region72
      $region71: #{distilbert_qa_forward.2} parent=5 // pred_region
        // Predicated region
        $region73: #{distilbert_qa_forward.2} parent=71 // pred_check
          %p505 = pneg %p45
        $region74: #{distilbert_qa_forward.2} parent=71 // pred_check_branch
          %507 = sbr.rel (%p505) target = $region76
        $region75: #{distilbert_qa_forward.2} parent=71 // pred_region
          %p508 = scmp.lt.s32.totalorder %s25, 1
          %s509 = scalar_select %p508, %s25, 1
          %s510 = smul.addr %s509, 8
          %s511 = scalar_lea.vmem %s0, %s510
        $region76: #{distilbert_qa_forward.2} parent=71 // pred_fallthru
          _
      $region72: #{distilbert_qa_forward.2} parent=5 // pred_fallthru
        _
      %p512 = scmp.le.s32.totalorder 1, %s25
      %p513 = scmp.lt.s32.totalorder %s25, 3
      %p514 = pnand %p512, %p513
      %p515 = pneg %p514
      // Predicated region
      $region77: #{distilbert_qa_forward.2} parent=5 // pred_check
        _
      $region78: #{distilbert_qa_forward.2} parent=5 // pred_check_branch
        %517 = sbr.rel (%p514) target = $region80
      $region79: #{distilbert_qa_forward.2} parent=5 // pred_region
        %s518 = ssub.s32 %s25, 1
        // Predicated region
        $region81: #{distilbert_qa_forward.2} parent=79 // pred_check
          %p519 = pneg %p72
        $region82: #{distilbert_qa_forward.2} parent=79 // pred_check_branch
          %521 = sbr.rel (%p519) target = $region84
        $region83: #{distilbert_qa_forward.2} parent=79 // pred_region
          %523 = dma.done [#allocation3], 16
        $region84: #{distilbert_qa_forward.2} parent=79 // pred_fallthru
          _
        // Predicated region
        $region85: #{distilbert_qa_forward.2} parent=79 // pred_check
          %p524 = pneg %p93
        $region86: #{distilbert_qa_forward.2} parent=79 // pred_check_branch
          %526 = sbr.rel (%p524) target = $region88
        $region87: #{distilbert_qa_forward.2} parent=79 // pred_region
          %528 = dma.done [#allocation5], 16
        $region88: #{distilbert_qa_forward.2} parent=79 // pred_fallthru
          _
        // Predicated region
        $region89: #{distilbert_qa_forward.2} parent=79 // pred_check
          %p529 = pneg %p114
        $region90: #{distilbert_qa_forward.2} parent=79 // pred_check_branch
          %531 = sbr.rel (%p529) target = $region92
        $region91: #{distilbert_qa_forward.2} parent=79 // pred_region
          %533 = dma.done [#allocation5], 6144
        $region92: #{distilbert_qa_forward.2} parent=79 // pred_fallthru
          _
        // Predicated region
        $region93: #{distilbert_qa_forward.2} parent=79 // pred_check
          %p534 = pneg %p240
        $region94: #{distilbert_qa_forward.2} parent=79 // pred_check_branch
          %536 = sbr.rel (%p534) target = $region96
        $region95: #{distilbert_qa_forward.2} parent=79 // pred_region
          %538 = dma.done [#allocation8], 4096
        $region96: #{distilbert_qa_forward.2} parent=79 // pred_fallthru
          _
        // Predicated region
        $region97: #{distilbert_qa_forward.2} parent=79 // pred_check
          %p539 = pneg %p282
        $region98: #{distilbert_qa_forward.2} parent=79 // pred_check_branch
          %541 = sbr.rel (%p539) target = $region100
        $region99: #{distilbert_qa_forward.2} parent=79 // pred_region
          %543 = dma.done [#allocation8], 4096
        $region100: #{distilbert_qa_forward.2} parent=79 // pred_fallthru
          _
        // Predicated region
        $region101: #{distilbert_qa_forward.2} parent=79 // pred_check
          %p544 = pneg %p324
        $region102: #{distilbert_qa_forward.2} parent=79 // pred_check_branch
          %546 = sbr.rel (%p544) target = $region104
        $region103: #{distilbert_qa_forward.2} parent=79 // pred_region
          %548 = dma.done [#allocation11], 32
        $region104: #{distilbert_qa_forward.2} parent=79 // pred_fallthru
          _
        // Predicated region
        $region105: #{distilbert_qa_forward.2} parent=79 // pred_check
          %p549 = pneg %p345
        $region106: #{distilbert_qa_forward.2} parent=79 // pred_check_branch
          %551 = sbr.rel (%p549) target = $region108
        $region107: #{distilbert_qa_forward.2} parent=79 // pred_region
          %553 = dma.done [#allocation11], 32
        $region108: #{distilbert_qa_forward.2} parent=79 // pred_fallthru
          _
        %p554 = scmp.lt.s32.totalorder %s30, 1
        %s555 = scalar_select %p554, %s30, 1
        %s556 = smul.addr %s555, 8
        %s557 = scalar_lea.vmem %s0, %s556
        %p558 = pneg %p51
        %p559 = pneg %p48
        %p560 = pneg %p72
        %p561 = pneg %p69
        %p562 = pneg %p93
        %p563 = pneg %p90
        %p564 = pneg %p114
        %p565 = pneg %p111
        %p566 = pneg %p135
        %p567 = pneg %p132
        %p568 = pneg %p156
        %p569 = pneg %p153
        %p570 = pneg %p177
        %p571 = pneg %p174
        %p572 = pneg %p198
        %p573 = pneg %p195
        %p574 = pneg %p219
        %p575 = pneg %p216
        %p576 = pneg %p240
        %p577 = pneg %p237
        %p578 = pneg %p261
        %p579 = pneg %p258
        %p580 = pneg %p282
        %p581 = pneg %p279
        %p582 = pneg %p303
        %p583 = pneg %p300
        %p584 = pneg %p324
        %p585 = pneg %p321
        %p586 = pneg %p345
        %p587 = pneg %p342
        %p588 = pneg %p371
        %p589 = pneg %p368
        %p590 = scmp.lt.s32.totalorder %s30, 1
        %s591 = scalar_select %p590, %s30, 1
        %s592 = smul.addr %s591, 8
        %s593 = scalar_lea.vmem %s15, %s592
        %p594 = scmp.lt.s32.totalorder %s30, 1
        %s595 = scalar_select %p594, %s30, 1
        %s596 = smul.addr %s595, 8
        %s597 = scalar_lea.vmem %s0, %s596
        %p598 = scmp.lt.s32.totalorder %s30, 1
        %s599 = scalar_select %p598, %s30, 1
        %s600 = smul.addr %s599, 8
        %s601 = scalar_lea.vmem %s15, %s600
        %v603 = vld [vmem:[%s597] sm:$0xff]
        %v604 = vld [vmem:[#allocation2] sm:$0x1]
        %v605 = vld [vmem:[#allocation4] sm:$0x1]
        %606 = vadd.xlane.f32.xlu0 %v603
        %v607 = vpop.xlane.xlu0 %606
        %v608 = vrcp.pop 128.0
        %v609 = vmul.f32 128.0, %v608
        %v610 = vsub.f32 1.0, %v609
        %v611 = vmul.f32 %v608, %v610
        %v612 = vadd.f32 %v608, %v611
        %vm613 = vweird.f32 %v608
        %v614 = vsel %vm613, %v608, %v612
        %v615 = vmul.f32 %v607, %v614
        %v616 = vsub.f32 %v603, %v615
        %v617 = vmul.f32 %v616, %v616
        %618 = vadd.xlane.f32.xlu0 %v617
        %v619 = vpop.xlane.xlu0 %618
        %v620 = vmul.f32 %v619, %v614
        %v621 = vadd.f32 %v620, 1e-12
        %v622 = vrsqrt.pop %v621
        %v623 = vmul.f32 %v622, %v621
        %v624 = vmul.f32 %v623, %v622
        %v625 = vmul.f32 0.5, %v624
        %v626 = vsub.f32 1.5, %v625
        %v627 = vmul.f32 %v622, %v626
        %vm628 = vweird.f32 %v621
        %vm629 = vweird.f32 %v622
        %vm630 = vmor %vm628, %vm629
        %v631 = vsel %vm630, %v622, %v627
        %v632 = vmul.f32 %v616, %v631
        %v634 = vperm.slane %v604, 0
        %v636 = vmul.f32 %v632, %v634
        %v638 = vperm.slane %v605, 0
        %v640 = vadd.f32 %v636, %v638
        %v641 = vld [vmem:[#allocation6] sm:$0xff]
        %v642 = vld [vmem:[#allocation6 + $0x8] sm:$0xf]
        %v643 = vld [vmem:[#allocation6 + $0xc] sm:$0xff]
        %v644 = vld [vmem:[#allocation6 + $0x14] sm:$0xf]
        %v645 = vld [vmem:[#allocation6 + $0x18] sm:$0xff]
        %v646 = vld [vmem:[#allocation6 + $0x20] sm:$0xf]
        %v647 = vld [vmem:[#allocation6 + $0x24] sm:$0xff]
        %v648 = vld [vmem:[#allocation6 + $0x2c] sm:$0xf]
        %v649 = vld [vmem:[#allocation6 + $0x30] sm:$0xff]
        %v650 = vld [vmem:[#allocation6 + $0x38] sm:$0xf]
        %v651 = vld [vmem:[#allocation6 + $0x3c] sm:$0xff]
        %v652 = vld [vmem:[#allocation6 + $0x44] sm:$0xf]
        %v653 = vld [vmem:[#allocation6 + $0x48] sm:$0xff]
        %v654 = vld [vmem:[#allocation6 + $0x50] sm:$0xf]
        %v655 = vld [vmem:[#allocation6 + $0x54] sm:$0xff]
        %v656 = vld [vmem:[#allocation6 + $0x5c] sm:$0xf]
        %v657 = vld [vmem:[#allocation6 + $0x60] sm:$0xff]
        %v658 = vld [vmem:[#allocation6 + $0x68] sm:$0xf]
        %v659 = vld [vmem:[#allocation6 + $0x6c] sm:$0xff]
        %v660 = vld [vmem:[#allocation6 + $0x74] sm:$0xf]
        %v661 = vld [vmem:[#allocation6 + $0x78] sm:$0xff]
        %v662 = vld [vmem:[#allocation6 + $0x80] sm:$0xf]
        %v663 = vld [vmem:[#allocation6 + $0x84] sm:$0xff]
        %v664 = vld [vmem:[#allocation6 + $0x8c] sm:$0xf]
        %v665 = vld [vmem:[#allocation6 + $0x90] sm:$0xff]
        %v666 = vld [vmem:[#allocation6 + $0x98] sm:$0xf]
        %v667 = vld [vmem:[#allocation6 + $0x9c] sm:$0xff]
        %v668 = vld [vmem:[#allocation6 + $0xa4] sm:$0xf]
        %v669 = vld [vmem:[#allocation6 + $0xa8] sm:$0xff]
        %v670 = vld [vmem:[#allocation6 + $0xb0] sm:$0xf]
        %v671 = vld [vmem:[#allocation6 + $0xb4] sm:$0xff]
        %v672 = vld [vmem:[#allocation6 + $0xbc] sm:$0xf]
        %v673 = vpack.c.bf16 %v640, %v640
        %v674 = vld [vmem:[%s4] sm:$0x7]
        %v676 = vperm.slane %v674, 0
        %v677 = vperm.slane %v674, 1
        %v678 = vperm.slane %v674, 2
        %v714 = vunpack.c.l.b16 %v641
        %v715 = vunpack.c.h.b16 %v641
        %v716 = vunpack.c.l.b16 %v642
        %v717 = vunpack.c.l.b16 %v643
        %v718 = vunpack.c.h.b16 %v643
        %v719 = vunpack.c.l.b16 %v644
        %v720 = vunpack.c.l.b16 %v645
        %v721 = vunpack.c.h.b16 %v645
        %v722 = vunpack.c.l.b16 %v646
        %v723 = vunpack.c.l.b16 %v647
        %v724 = vunpack.c.h.b16 %v647
        %v725 = vunpack.c.l.b16 %v648
        %v726 = vunpack.c.l.b16 %v649
        %v727 = vunpack.c.h.b16 %v649
        %v728 = vunpack.c.l.b16 %v650
        %v729 = vunpack.c.l.b16 %v651
        %v730 = vunpack.c.h.b16 %v651
        %v731 = vunpack.c.l.b16 %v652
        %v732 = vunpack.c.l.b16 %v653
        %v733 = vunpack.c.h.b16 %v653
        %v734 = vunpack.c.l.b16 %v654
        %v735 = vunpack.c.l.b16 %v655
        %v736 = vunpack.c.h.b16 %v655
        %v737 = vunpack.c.l.b16 %v656
        %v738 = vunpack.c.l.b16 %v657
        %v739 = vunpack.c.h.b16 %v657
        %v740 = vunpack.c.l.b16 %v658
        %v741 = vunpack.c.l.b16 %v659
        %v742 = vunpack.c.h.b16 %v659
        %v743 = vunpack.c.l.b16 %v660
        %v744 = vunpack.c.l.b16 %v661
        %v745 = vunpack.c.h.b16 %v661
        %v746 = vunpack.c.l.b16 %v662
        %v747 = vunpack.c.l.b16 %v663
        %v748 = vunpack.c.h.b16 %v663
        %v749 = vunpack.c.l.b16 %v664
        %v750 = vunpack.c.l.b16 %v665
        %v751 = vunpack.c.h.b16 %v665
        %v752 = vunpack.c.l.b16 %v666
        %v753 = vunpack.c.l.b16 %v667
        %v754 = vunpack.c.h.b16 %v667
        %v755 = vunpack.c.l.b16 %v668
        %v756 = vunpack.c.l.b16 %v669
        %v757 = vunpack.c.h.b16 %v669
        %v758 = vunpack.c.l.b16 %v670
        %v759 = vunpack.c.l.b16 %v671
        %v760 = vunpack.c.h.b16 %v671
        %v761 = vunpack.c.l.b16 %v672
        %v762 = vpack.c.b16 %v717, %v714
        %v763 = vpack.c.b16 %v718, %v715
        %v764 = vpack.c.b16 %v719, %v716
        %v765 = vpack.c.b16 %v723, %v720
        %v766 = vpack.c.b16 %v724, %v721
        %v767 = vpack.c.b16 %v725, %v722
        %v768 = vpack.c.b16 %v729, %v726
        %v769 = vpack.c.b16 %v730, %v727
        %v770 = vpack.c.b16 %v731, %v728
        %v771 = vpack.c.b16 %v735, %v732
        %v772 = vpack.c.b16 %v736, %v733
        %v773 = vpack.c.b16 %v737, %v734
        %v774 = vpack.c.b16 %v741, %v738
        %v775 = vpack.c.b16 %v742, %v739
        %v776 = vpack.c.b16 %v743, %v740
        %v777 = vpack.c.b16 %v747, %v744
        %v778 = vpack.c.b16 %v748, %v745
        %v779 = vpack.c.b16 %v749, %v746
        %v780 = vpack.c.b16 %v753, %v750
        %v781 = vpack.c.b16 %v754, %v751
        %v782 = vpack.c.b16 %v755, %v752
        %v783 = vpack.c.b16 %v759, %v756
        %v784 = vpack.c.b16 %v760, %v757
        %v785 = vpack.c.b16 %v761, %v758
        %810 = vmatpush.bf16.msra.mxu0 %v783
        %811 = vmatpush.bf16.msra.mxu0 %v780
        %812 = vmatpush.bf16.msra.mxu0 %v777
        %813 = vmatpush.bf16.msra.mxu0 %v774
        %814 = vmatpush.bf16.msra.mxu0 %v771
        %815 = vmatpush.bf16.msra.mxu0 %v768
        %816 = vmatpush.bf16.msra.mxu0 %v765
        %817 = vmatpush.bf16.msra.mxu0 %v762
        %818 = vmatmul.bf16.gmra.mxu0 %v673
        %v819 = vpop.f32.mrf.mxu0
        %v820 = vadd.f32 %v676, %v819
        %v821 = vpop.f32.mrf.mxu0
        %822 = vdwg.mxu0
        %823 = vmatpush.bf16.msra.mxu0 %v784
        %824 = vmatpush.bf16.msra.mxu0 %v781
        %825 = vmatpush.bf16.msra.mxu0 %v778
        %826 = vmatpush.bf16.msra.mxu0 %v775
        %827 = vmatpush.bf16.msra.mxu0 %v772
        %828 = vmatpush.bf16.msra.mxu0 %v769
        %829 = vmatpush.bf16.msra.mxu0 %v766
        %830 = vmatpush.bf16.msra.mxu0 %v763
        %831 = vmatmul.bf16.gmra.mxu0 %v673
        %v832 = vpop.f32.mrf.mxu0
        %v833 = vadd.f32 %v677, %v832
        %v834 = vpop.f32.mrf.mxu0
        %835 = vdwg.mxu0
        %836 = vmatpush.bf16.msra.mxu0 %v785
        %837 = vmatpush.bf16.msra.mxu0 %v782
        %838 = vmatpush.bf16.msra.mxu0 %v779
        %839 = vmatpush.bf16.msra.mxu0 %v776
        %840 = vmatpush.bf16.msra.mxu0 %v773
        %841 = vmatpush.bf16.msra.mxu0 %v770
        %842 = vmatpush.bf16.msra.mxu0 %v767
        %843 = vmatpush.bf16.msra.mxu0 %v764
        %844 = vmatmul.bf16.gmra.mxu0 %v673
        %v845 = vpop.f32.mrf.mxu0
        %v846 = vadd.f32 %v678, %v845
        %v847 = vpop.f32.mrf.mxu0
        %848 = vdwg.mxu0
        %v849 = vpack.c.bf16 %v820, %v820
        %v850 = vpack.c.bf16 %v833, %v833
        %v851 = vpack.c.bf16 %v846, %v846
        %vm852 = vcmask 261120
        %v854 = vsel %vm852, %v849, 0
        %v857 = vsel %vm852, %v850, 0
        %859 = vmatpush.bf16.xpose.msra.mxu0 0
        %860 = vmatpush.bf16.xpose.msra.mxu0 0
        %861 = vmatpush.bf16.xpose.msra.mxu0 0
        %862 = vmatpush.bf16.xpose.msra.mxu0 0
        %863 = vmatpush.bf16.xpose.msra.mxu0 0
        %864 = vmatpush.bf16.xpose.msra.mxu0 0
        %865 = vmatpush.bf16.xpose.msra.mxu0 0
        %866 = vmatpush.bf16.xpose.msra.mxu0 %v857
        %867 = vmatmul.bf16.gmra.mxu0 %v854
        %v868 = vpop.f32.mrf.mxu0
        %v869 = vadd.f32 0.0, %v868
        %v870 = vpop.f32.mrf.mxu0
        %871 = vdwg.mxu0
        %v872 = vmul.f32 %v869, 0.17677669
        %vm873 = vcmask 64512
        %v874 = vsel %vm873, %v872, -inf
        %875 = vmax.xlane.f32.xlu0 %v874
        %v876 = vpop.xlane.xlu0 %875
        %v877 = vsub.f32 %v872, %v876
        %v878 = vmul.f32 %v877, 1.442695
        %v879 = vpow.pop %v878
        %v880 = vsel %vm873, %v879, 0.0
        %881 = vadd.xlane.f32.xlu0 %v880
        %v882 = vpop.xlane.xlu0 %881
        %v883 = vrcp.pop %v882
        %v884 = vmul.f32 %v882, %v883
        %v885 = vsub.f32 1.0, %v884
        %v886 = vmul.f32 %v883, %v885
        %v887 = vadd.f32 %v883, %v886
        %vm888 = vweird.f32 %v882
        %vm889 = vweird.f32 %v883
        %vm890 = vmor %vm888, %vm889
        %v891 = vsel %vm890, %v883, %v887
        %v892 = vand.u32 2147483647, %v882
        %vm893 = vcmp.eq.f32.partialorder %v892, 8.507059e+37
        %v894 = vand.u32 %v882, 2147483648
        %v895 = vor.u32 1.1754944e-38, %v894
        %v896 = vsel %vm893, %v895, %v891
        %v897 = vmul.f32 %v879, %v896
        %v898 = vpack.c.bf16 %v897, %v897
        %v900 = vsel %vm873, %v898, 0
        %vm902 = vcmask 1043456
        %v904 = vsel %vm902, %v851, 0
        %906 = vmatpush.bf16.msra.mxu0 0
        %907 = vmatpush.bf16.msra.mxu0 0
        %908 = vmatpush.bf16.msra.mxu0 0
        %909 = vmatpush.bf16.msra.mxu0 0
        %910 = vmatpush.bf16.msra.mxu0 0
        %911 = vmatpush.bf16.msra.mxu0 0
        %912 = vmatpush.bf16.msra.mxu0 0
        %913 = vmatpush.bf16.msra.mxu0 %v904
        %914 = vmatmul.bf16.gmra.mxu0 %v900
        %v915 = vpop.f32.mrf.mxu0
        %v916 = vadd.f32 0.0, %v915
        %v917 = vpop.f32.mrf.mxu0
        %918 = vdwg.mxu0
        %920 = vrot.lane.b32.xlu0 %v849, 96
        %v921 = vpop.permute.xlu0 %920
        %923 = vrot.lane.b32.xlu0 %v850, 96
        %v924 = vpop.permute.xlu0 %923
        %v926 = vsel %vm852, %v921, 0
        %v929 = vsel %vm852, %v924, 0
        %931 = vmatpush.bf16.xpose.msra.mxu0 0
        %932 = vmatpush.bf16.xpose.msra.mxu0 0
        %933 = vmatpush.bf16.xpose.msra.mxu0 0
        %934 = vmatpush.bf16.xpose.msra.mxu0 0
        %935 = vmatpush.bf16.xpose.msra.mxu0 0
        %936 = vmatpush.bf16.xpose.msra.mxu0 0
        %937 = vmatpush.bf16.xpose.msra.mxu0 0
        %938 = vmatpush.bf16.xpose.msra.mxu0 %v929
        %939 = vmatmul.bf16.gmra.mxu0 %v926
        %v940 = vpop.f32.mrf.mxu0
        %v941 = vadd.f32 0.0, %v940
        %v942 = vpop.f32.mrf.mxu0
        %943 = vdwg.mxu0
        %v944 = vmul.f32 %v941, 0.17677669
        %v945 = vsel %vm873, %v944, -inf
        %946 = vmax.xlane.f32.xlu0 %v945
        %v947 = vpop.xlane.xlu0 %946
        %v948 = vsub.f32 %v944, %v947
        %v949 = vmul.f32 %v948, 1.442695
        %v950 = vpow.pop %v949
        %v951 = vsel %vm873, %v950, 0.0
        %952 = vadd.xlane.f32.xlu0 %v951
        %v953 = vpop.xlane.xlu0 %952
        %v954 = vrcp.pop %v953
        %v955 = vmul.f32 %v953, %v954
        %v956 = vsub.f32 1.0, %v955
        %v957 = vmul.f32 %v954, %v956
        %v958 = vadd.f32 %v954, %v957
        %vm959 = vweird.f32 %v953
        %vm960 = vweird.f32 %v954
        %vm961 = vmor %vm959, %vm960
        %v962 = vsel %vm961, %v954, %v958
        %v963 = vand.u32 2147483647, %v953
        %vm964 = vcmp.eq.f32.partialorder %v963, 8.507059e+37
        %v965 = vand.u32 %v953, 2147483648
        %v966 = vor.u32 1.1754944e-38, %v965
        %v967 = vsel %vm964, %v966, %v962
        %v968 = vmul.f32 %v950, %v967
        %v969 = vpack.c.bf16 %v968, %v968
        %971 = vrot.lane.b32.xlu0 %v851, 96
        %v972 = vpop.permute.xlu0 %971
        %v974 = vsel %vm873, %v969, 0
        %v977 = vsel %vm902, %v972, 0
        %979 = vmatpush.bf16.msra.mxu0 0
        %980 = vmatpush.bf16.msra.mxu0 0
        %981 = vmatpush.bf16.msra.mxu0 0
        %982 = vmatpush.bf16.msra.mxu0 0
        %983 = vmatpush.bf16.msra.mxu0 0
        %984 = vmatpush.bf16.msra.mxu0 0
        %985 = vmatpush.bf16.msra.mxu0 0
        %986 = vmatpush.bf16.msra.mxu0 %v977
        %987 = vmatmul.bf16.gmra.mxu0 %v974
        %v988 = vpop.f32.mrf.mxu0
        %v989 = vadd.f32 0.0, %v988
        %v990 = vpop.f32.mrf.mxu0
        %991 = vdwg.mxu0
        %992 = vrot.lane.b32.xlu0 %v849, 64
        %v993 = vpop.permute.xlu0 %992
        %994 = vrot.lane.b32.xlu0 %v850, 64
        %v995 = vpop.permute.xlu0 %994
        %v997 = vsel %vm852, %v993, 0
        %v1000 = vsel %vm852, %v995, 0
        %1002 = vmatpush.bf16.xpose.msra.mxu0 0
        %1003 = vmatpush.bf16.xpose.msra.mxu0 0
        %1004 = vmatpush.bf16.xpose.msra.mxu0 0
        %1005 = vmatpush.bf16.xpose.msra.mxu0 0
        %1006 = vmatpush.bf16.xpose.msra.mxu0 0
        %1007 = vmatpush.bf16.xpose.msra.mxu0 0
        %1008 = vmatpush.bf16.xpose.msra.mxu0 0
        %1009 = vmatpush.bf16.xpose.msra.mxu0 %v1000
        %1010 = vmatmul.bf16.gmra.mxu0 %v997
        %v1011 = vpop.f32.mrf.mxu0
        %v1012 = vadd.f32 0.0, %v1011
        %v1013 = vpop.f32.mrf.mxu0
        %1014 = vdwg.mxu0
        %v1015 = vmul.f32 %v1012, 0.17677669
        %v1016 = vsel %vm873, %v1015, -inf
        %1017 = vmax.xlane.f32.xlu0 %v1016
        %v1018 = vpop.xlane.xlu0 %1017
        %v1019 = vsub.f32 %v1015, %v1018
        %v1020 = vmul.f32 %v1019, 1.442695
        %v1021 = vpow.pop %v1020
        %v1022 = vsel %vm873, %v1021, 0.0
        %1023 = vadd.xlane.f32.xlu0 %v1022
        %v1024 = vpop.xlane.xlu0 %1023
        %v1025 = vrcp.pop %v1024
        %v1026 = vmul.f32 %v1024, %v1025
        %v1027 = vsub.f32 1.0, %v1026
        %v1028 = vmul.f32 %v1025, %v1027
        %v1029 = vadd.f32 %v1025, %v1028
        %vm1030 = vweird.f32 %v1024
        %vm1031 = vweird.f32 %v1025
        %vm1032 = vmor %vm1030, %vm1031
        %v1033 = vsel %vm1032, %v1025, %v1029
        %v1034 = vand.u32 2147483647, %v1024
        %vm1035 = vcmp.eq.f32.partialorder %v1034, 8.507059e+37
        %v1036 = vand.u32 %v1024, 2147483648
        %v1037 = vor.u32 1.1754944e-38, %v1036
        %v1038 = vsel %vm1035, %v1037, %v1033
        %v1039 = vmul.f32 %v1021, %v1038
        %v1040 = vpack.c.bf16 %v1039, %v1039
        %1041 = vrot.lane.b32.xlu0 %v851, 64
        %v1042 = vpop.permute.xlu0 %1041
        %v1044 = vsel %vm873, %v1040, 0
        %v1047 = vsel %vm902, %v1042, 0
        %1049 = vmatpush.bf16.msra.mxu0 0
        %1050 = vmatpush.bf16.msra.mxu0 0
        %1051 = vmatpush.bf16.msra.mxu0 0
        %1052 = vmatpush.bf16.msra.mxu0 0
        %1053 = vmatpush.bf16.msra.mxu0 0
        %1054 = vmatpush.bf16.msra.mxu0 0
        %1055 = vmatpush.bf16.msra.mxu0 0
        %1056 = vmatpush.bf16.msra.mxu0 %v1047
        %1057 = vmatmul.bf16.gmra.mxu0 %v1044
        %v1058 = vpop.f32.mrf.mxu0
        %v1059 = vadd.f32 0.0, %v1058
        %v1060 = vpop.f32.mrf.mxu0
        %1061 = vdwg.mxu0
        %1062 = vrot.lane.b32.xlu0 %v849, 32
        %v1063 = vpop.permute.xlu0 %1062
        %1064 = vrot.lane.b32.xlu0 %v850, 32
        %v1065 = vpop.permute.xlu0 %1064
        %v1067 = vsel %vm852, %v1063, 0
        %v1070 = vsel %vm852, %v1065, 0
        %1072 = vmatpush.bf16.xpose.msra.mxu0 0
        %1073 = vmatpush.bf16.xpose.msra.mxu0 0
        %1074 = vmatpush.bf16.xpose.msra.mxu0 0
        %1075 = vmatpush.bf16.xpose.msra.mxu0 0
        %1076 = vmatpush.bf16.xpose.msra.mxu0 0
        %1077 = vmatpush.bf16.xpose.msra.mxu0 0
        %1078 = vmatpush.bf16.xpose.msra.mxu0 0
        %1079 = vmatpush.bf16.xpose.msra.mxu0 %v1070
        %1080 = vmatmul.bf16.gmra.mxu0 %v1067
        %v1081 = vpop.f32.mrf.mxu0
        %v1082 = vadd.f32 0.0, %v1081
        %v1083 = vpop.f32.mrf.mxu0
        %1084 = vdwg.mxu0
        %v1085 = vmul.f32 %v1082, 0.17677669
        %v1086 = vsel %vm873, %v1085, -inf
        %1087 = vmax.xlane.f32.xlu0 %v1086
        %v1088 = vpop.xlane.xlu0 %1087
        %v1089 = vsub.f32 %v1085, %v1088
        %v1090 = vmul.f32 %v1089, 1.442695
        %v1091 = vpow.pop %v1090
        %v1092 = vsel %vm873, %v1091, 0.0
        %1093 = vadd.xlane.f32.xlu0 %v1092
        %v1094 = vpop.xlane.xlu0 %1093
        %v1095 = vrcp.pop %v1094
        %v1096 = vmul.f32 %v1094, %v1095
        %v1097 = vsub.f32 1.0, %v1096
        %v1098 = vmul.f32 %v1095, %v1097
        %v1099 = vadd.f32 %v1095, %v1098
        %vm1100 = vweird.f32 %v1094
        %vm1101 = vweird.f32 %v1095
        %vm1102 = vmor %vm1100, %vm1101
        %v1103 = vsel %vm1102, %v1095, %v1099
        %v1104 = vand.u32 2147483647, %v1094
        %vm1105 = vcmp.eq.f32.partialorder %v1104, 8.507059e+37
        %v1106 = vand.u32 %v1094, 2147483648
        %v1107 = vor.u32 1.1754944e-38, %v1106
        %v1108 = vsel %vm1105, %v1107, %v1103
        %v1109 = vmul.f32 %v1091, %v1108
        %v1110 = vpack.c.bf16 %v1109, %v1109
        %1111 = vrot.lane.b32.xlu0 %v851, 32
        %v1112 = vpop.permute.xlu0 %1111
        %v1114 = vsel %vm873, %v1110, 0
        %v1117 = vsel %vm902, %v1112, 0
        %1119 = vmatpush.bf16.msra.mxu0 0
        %1120 = vmatpush.bf16.msra.mxu0 0
        %1121 = vmatpush.bf16.msra.mxu0 0
        %1122 = vmatpush.bf16.msra.mxu0 0
        %1123 = vmatpush.bf16.msra.mxu0 0
        %1124 = vmatpush.bf16.msra.mxu0 0
        %1125 = vmatpush.bf16.msra.mxu0 0
        %1126 = vmatpush.bf16.msra.mxu0 %v1117
        %1127 = vmatmul.bf16.gmra.mxu0 %v1114
        %v1128 = vpop.f32.mrf.mxu0
        %v1129 = vadd.f32 0.0, %v1128
        %v1130 = vpop.f32.mrf.mxu0
        %1131 = vdwg.mxu0
        %1133 = vrot.lane.b32.xlu0 %v989, 32
        %v1134 = vpop.permute.xlu0 %1133
        %1137 = vrot.lane.b32.xlu0 %v1059, 64
        %v1138 = vpop.permute.xlu0 %1137
        %1141 = vrot.lane.b32.xlu0 %v1129, 96
        %v1142 = vpop.permute.xlu0 %1141
        %v1144 = vsel %vm852, %v916, %v1134
        %vm1145 = vcmask 523264
        %v1146 = vsel %vm1145, %v1144, %v1138
        %vm1147 = vcmask 785408
        %v1148 = vsel %vm1147, %v1146, %v1142
        %v1149 = vld [vmem:[%s5] sm:$0xf]
        %v1150 = vld [vmem:[%s5 + $0x4] sm:$0xf]
        %v1151 = vld [vmem:[%s5 + $0x8] sm:$0xf]
        %v1152 = vld [vmem:[%s5 + $0xc] sm:$0xf]
        %v1153 = vld [vmem:[%s5 + $0x10] sm:$0xf]
        %v1154 = vld [vmem:[%s5 + $0x14] sm:$0xf]
        %v1155 = vld [vmem:[%s5 + $0x18] sm:$0xf]
        %v1156 = vld [vmem:[%s5 + $0x1c] sm:$0xf]
        %v1157 = vld [vmem:[%s5 + $0x20] sm:$0xf]
        %v1158 = vld [vmem:[%s5 + $0x24] sm:$0xf]
        %v1159 = vld [vmem:[%s5 + $0x28] sm:$0xf]
        %v1160 = vld [vmem:[%s5 + $0x2c] sm:$0xf]
        %v1161 = vld [vmem:[%s5 + $0x30] sm:$0xf]
        %v1162 = vld [vmem:[%s5 + $0x34] sm:$0xf]
        %v1163 = vld [vmem:[%s5 + $0x38] sm:$0xf]
        %v1164 = vld [vmem:[%s5 + $0x3c] sm:$0xf]
        %v1165 = vpack.c.bf16 %v1148, %v1148
        %v1166 = vld [vmem:[%s6] sm:$0x1]
        %v1168 = vperm.slane %v1166, 0
        %v1186 = vunpack.c.l.b16 %v1149
        %v1187 = vunpack.c.l.b16 %v1150
        %v1188 = vunpack.c.l.b16 %v1151
        %v1189 = vunpack.c.l.b16 %v1152
        %v1190 = vunpack.c.l.b16 %v1153
        %v1191 = vunpack.c.l.b16 %v1154
        %v1192 = vunpack.c.l.b16 %v1155
        %v1193 = vunpack.c.l.b16 %v1156
        %v1194 = vunpack.c.l.b16 %v1157
        %v1195 = vunpack.c.l.b16 %v1158
        %v1196 = vunpack.c.l.b16 %v1159
        %v1197 = vunpack.c.l.b16 %v1160
        %v1198 = vunpack.c.l.b16 %v1161
        %v1199 = vunpack.c.l.b16 %v1162
        %v1200 = vunpack.c.l.b16 %v1163
        %v1201 = vunpack.c.l.b16 %v1164
        %v1202 = vpack.c.b16 %v1187, %v1186
        %v1203 = vpack.c.b16 %v1189, %v1188
        %v1204 = vpack.c.b16 %v1191, %v1190
        %v1205 = vpack.c.b16 %v1193, %v1192
        %v1206 = vpack.c.b16 %v1195, %v1194
        %v1207 = vpack.c.b16 %v1197, %v1196
        %v1208 = vpack.c.b16 %v1199, %v1198
        %v1209 = vpack.c.b16 %v1201, %v1200
        %1218 = vmatpush.bf16.msra.mxu0 %v1209
        %1219 = vmatpush.bf16.msra.mxu0 %v1208
        %1220 = vmatpush.bf16.msra.mxu0 %v1207
        %1221 = vmatpush.bf16.msra.mxu0 %v1206
        %1222 = vmatpush.bf16.msra.mxu0 %v1205
        %1223 = vmatpush.bf16.msra.mxu0 %v1204
        %1224 = vmatpush.bf16.msra.mxu0 %v1203
        %1225 = vmatpush.bf16.msra.mxu0 %v1202
        %1226 = vmatmul.bf16.gmra.mxu0 %v1165
        %v1227 = vpop.f32.mrf.mxu0
        %v1228 = vadd.f32 %v1168, %v1227
        %v1229 = vpop.f32.mrf.mxu0
        %1230 = vdwg.mxu0
        %v1231 = vadd.f32 %v1228, %v640
        %v1232 = vld [vmem:[%s7] sm:$0x1]
        %v1233 = vld [vmem:[%s8] sm:$0x1]
        %1234 = vadd.xlane.f32.xlu0 %v1231
        %v1235 = vpop.xlane.xlu0 %1234
        %v1236 = vmul.f32 %v1235, %v614
        %v1237 = vsub.f32 %v1231, %v1236
        %v1238 = vmul.f32 %v1237, %v1237
        %1239 = vadd.xlane.f32.xlu0 %v1238
        %v1240 = vpop.xlane.xlu0 %1239
        %v1241 = vmul.f32 %v1240, %v614
        %v1242 = vadd.f32 %v1241, 1e-12
        %v1243 = vrsqrt.pop %v1242
        %v1244 = vmul.f32 %v1243, %v1242
        %v1245 = vmul.f32 %v1244, %v1243
        %v1246 = vmul.f32 0.5, %v1245
        %v1247 = vsub.f32 1.5, %v1246
        %v1248 = vmul.f32 %v1243, %v1247
        %vm1249 = vweird.f32 %v1242
        %vm1250 = vweird.f32 %v1243
        %vm1251 = vmor %vm1249, %vm1250
        %v1252 = vsel %vm1251, %v1243, %v1248
        %v1253 = vmul.f32 %v1237, %v1252
        %v1255 = vperm.slane %v1232, 0
        %v1257 = vmul.f32 %v1253, %v1255
        %v1259 = vperm.slane %v1233, 0
        %v1261 = vadd.f32 %v1257, %v1259
        %v1262 = vld [vmem:[#allocation7] sm:$0xff]
        %v1263 = vld [vmem:[#allocation7 + $0x8] sm:$0xff]
        %v1264 = vld [vmem:[#allocation7 + $0x10] sm:$0xff]
        %v1265 = vld [vmem:[#allocation7 + $0x18] sm:$0xff]
        %v1266 = vld [vmem:[#allocation7 + $0x20] sm:$0xff]
        %v1267 = vld [vmem:[#allocation7 + $0x28] sm:$0xff]
        %v1268 = vld [vmem:[#allocation7 + $0x30] sm:$0xff]
        %v1269 = vld [vmem:[#allocation7 + $0x38] sm:$0xff]
        %v1270 = vld [vmem:[#allocation7 + $0x40] sm:$0xff]
        %v1271 = vld [vmem:[#allocation7 + $0x48] sm:$0xff]
        %v1272 = vld [vmem:[#allocation7 + $0x50] sm:$0xff]
        %v1273 = vld [vmem:[#allocation7 + $0x58] sm:$0xff]
        %v1274 = vld [vmem:[#allocation7 + $0x60] sm:$0xff]
        %v1275 = vld [vmem:[#allocation7 + $0x68] sm:$0xff]
        %v1276 = vld [vmem:[#allocation7 + $0x70] sm:$0xff]
        %v1277 = vld [vmem:[#allocation7 + $0x78] sm:$0xff]
        %v1278 = vpack.c.bf16 %v1261, %v1261
        %v1279 = vld [vmem:[%s10] sm:$0x3]
        %v1281 = vperm.slane %v1279, 0
        %v1282 = vperm.slane %v1279, 1
        %v1301 = vunpack.c.l.b16 %v1262
        %v1302 = vunpack.c.h.b16 %v1262
        %v1303 = vunpack.c.l.b16 %v1263
        %v1304 = vunpack.c.h.b16 %v1263
        %v1305 = vunpack.c.l.b16 %v1264
        %v1306 = vunpack.c.h.b16 %v1264
        %v1307 = vunpack.c.l.b16 %v1265
        %v1308 = vunpack.c.h.b16 %v1265
        %v1309 = vunpack.c.l.b16 %v1266
        %v1310 = vunpack.c.h.b16 %v1266
        %v1311 = vunpack.c.l.b16 %v1267
        %v1312 = vunpack.c.h.b16 %v1267
        %v1313 = vunpack.c.l.b16 %v1268
        %v1314 = vunpack.c.h.b16 %v1268
        %v1315 = vunpack.c.l.b16 %v1269
        %v1316 = vunpack.c.h.b16 %v1269
        %v1317 = vunpack.c.l.b16 %v1270
        %v1318 = vunpack.c.h.b16 %v1270
        %v1319 = vunpack.c.l.b16 %v1271
        %v1320 = vunpack.c.h.b16 %v1271
        %v1321 = vunpack.c.l.b16 %v1272
        %v1322 = vunpack.c.h.b16 %v1272
        %v1323 = vunpack.c.l.b16 %v1273
        %v1324 = vunpack.c.h.b16 %v1273
        %v1325 = vunpack.c.l.b16 %v1274
        %v1326 = vunpack.c.h.b16 %v1274
        %v1327 = vunpack.c.l.b16 %v1275
        %v1328 = vunpack.c.h.b16 %v1275
        %v1329 = vunpack.c.l.b16 %v1276
        %v1330 = vunpack.c.h.b16 %v1276
        %v1331 = vunpack.c.l.b16 %v1277
        %v1332 = vunpack.c.h.b16 %v1277
        %v1333 = vpack.c.b16 %v1303, %v1301
        %v1334 = vpack.c.b16 %v1304, %v1302
        %v1335 = vpack.c.b16 %v1307, %v1305
        %v1336 = vpack.c.b16 %v1308, %v1306
        %v1337 = vpack.c.b16 %v1311, %v1309
        %v1338 = vpack.c.b16 %v1312, %v1310
        %v1339 = vpack.c.b16 %v1315, %v1313
        %v1340 = vpack.c.b16 %v1316, %v1314
        %v1341 = vpack.c.b16 %v1319, %v1317
        %v1342 = vpack.c.b16 %v1320, %v1318
        %v1343 = vpack.c.b16 %v1323, %v1321
        %v1344 = vpack.c.b16 %v1324, %v1322
        %v1345 = vpack.c.b16 %v1327, %v1325
        %v1346 = vpack.c.b16 %v1328, %v1326
        %v1347 = vpack.c.b16 %v1331, %v1329
        %v1348 = vpack.c.b16 %v1332, %v1330
        %1365 = vmatpush.bf16.msra.mxu0 %v1347
        %1366 = vmatpush.bf16.msra.mxu0 %v1345
        %1367 = vmatpush.bf16.msra.mxu0 %v1343
        %1368 = vmatpush.bf16.msra.mxu0 %v1341
        %1369 = vmatpush.bf16.msra.mxu0 %v1339
        %1370 = vmatpush.bf16.msra.mxu0 %v1337
        %1371 = vmatpush.bf16.msra.mxu0 %v1335
        %1372 = vmatpush.bf16.msra.mxu0 %v1333
        %1373 = vmatmul.bf16.gmra.mxu0 %v1278
        %v1374 = vpop.f32.mrf.mxu0
        %v1375 = vadd.f32 %v1281, %v1374
        %v1376 = vpop.f32.mrf.mxu0
        %1377 = vdwg.mxu0
        %1378 = vmatpush.bf16.msra.mxu0 %v1348
        %1379 = vmatpush.bf16.msra.mxu0 %v1346
        %1380 = vmatpush.bf16.msra.mxu0 %v1344
        %1381 = vmatpush.bf16.msra.mxu0 %v1342
        %1382 = vmatpush.bf16.msra.mxu0 %v1340
        %1383 = vmatpush.bf16.msra.mxu0 %v1338
        %1384 = vmatpush.bf16.msra.mxu0 %v1336
        %1385 = vmatpush.bf16.msra.mxu0 %v1334
        %1386 = vmatmul.bf16.gmra.mxu0 %v1278
        %v1387 = vpop.f32.mrf.mxu0
        %v1388 = vadd.f32 %v1282, %v1387
        %v1389 = vpop.f32.mrf.mxu0
        %1390 = vdwg.mxu0
        %v1391 = vmul.f32 %v1375, 0.5
        %v1392 = vmul.f32 %v1388, 0.5
        %v1393 = vmul.f32 %v1375, 0.70710677
        %v1394 = vmul.f32 %v1388, 0.70710677
        %v1395 = vmul.f32 %v1393, %v1393
        %v1396 = vmin.f32 16.0, %v1395
        %v1397 = vmul.f32 %v1396, 2.1237322e-06
        %v1398 = vadd.f32 %v1397, 0.00028619796
        %v1399 = vmul.f32 %v1396, %v1398
        %v1400 = vadd.f32 %v1399, 0.0036580483
        %v1401 = vmul.f32 %v1396, %v1400
        %v1402 = vadd.f32 %v1401, 0.05243302
        %v1403 = vmul.f32 %v1396, %v1402
        %v1404 = vadd.f32 %v1403, 0.18741608
        %v1405 = vmul.f32 %v1396, %v1404
        %v1406 = vadd.f32 %v1405, 1.1283791
        %v1407 = vmul.f32 %v1393, %v1406
        %v1408 = vmul.f32 %v1396, 3.8918573e-05
        %v1409 = vadd.f32 %v1408, 0.001143296
        %v1410 = vmul.f32 %v1396, %v1409
        %v1411 = vadd.f32 %v1410, 0.014752088
        %v1412 = vmul.f32 %v1396, %v1411
        %v1413 = vadd.f32 %v1412, 0.112945676
        %v1414 = vmul.f32 %v1396, %v1413
        %v1415 = vadd.f32 %v1414, 0.4994258
        %v1416 = vmul.f32 %v1396, %v1415
        %v1417 = vadd.f32 %v1416, 1.0
        %v1418 = vrcp.pop %v1417
        %v1419 = vmul.f32 %v1417, %v1418
        %v1420 = vsub.f32 1.0, %v1419
        %v1421 = vmul.f32 %v1418, %v1420
        %v1422 = vadd.f32 %v1418, %v1421
        %vm1423 = vweird.f32 %v1417
        %vm1424 = vweird.f32 %v1418
        %vm1425 = vmor %vm1423, %vm1424
        %v1426 = vsel %vm1425, %v1418, %v1422
        %v1427 = vand.u32 2147483647, %v1417
        %vm1428 = vcmp.eq.f32.partialorder %v1427, 8.507059e+37
        %v1429 = vand.u32 %v1417, 2147483648
        %v1430 = vor.u32 1.1754944e-38, %v1429
        %v1431 = vsel %vm1428, %v1430, %v1426
        %v1432 = vmul.f32 %v1407, %v1431
        %v1433 = vmin.f32 %v1432, 1.0
        %v1434 = vmax.f32 %v1433, -1.0
        %v1435 = vmul.f32 %v1394, %v1394
        %v1436 = vmin.f32 16.0, %v1435
        %v1437 = vmul.f32 %v1436, 2.1237322e-06
        %v1438 = vadd.f32 %v1437, 0.00028619796
        %v1439 = vmul.f32 %v1436, %v1438
        %v1440 = vadd.f32 %v1439, 0.0036580483
        %v1441 = vmul.f32 %v1436, %v1440
        %v1442 = vadd.f32 %v1441, 0.05243302
        %v1443 = vmul.f32 %v1436, %v1442
        %v1444 = vadd.f32 %v1443, 0.18741608
        %v1445 = vmul.f32 %v1436, %v1444
        %v1446 = vadd.f32 %v1445, 1.1283791
        %v1447 = vmul.f32 %v1394, %v1446
        %v1448 = vmul.f32 %v1436, 3.8918573e-05
        %v1449 = vadd.f32 %v1448, 0.001143296
        %v1450 = vmul.f32 %v1436, %v1449
        %v1451 = vadd.f32 %v1450, 0.014752088
        %v1452 = vmul.f32 %v1436, %v1451
        %v1453 = vadd.f32 %v1452, 0.112945676
        %v1454 = vmul.f32 %v1436, %v1453
        %v1455 = vadd.f32 %v1454, 0.4994258
        %v1456 = vmul.f32 %v1436, %v1455
        %v1457 = vadd.f32 %v1456, 1.0
        %v1458 = vrcp.pop %v1457
        %v1459 = vmul.f32 %v1457, %v1458
        %v1460 = vsub.f32 1.0, %v1459
        %v1461 = vmul.f32 %v1458, %v1460
        %v1462 = vadd.f32 %v1458, %v1461
        %vm1463 = vweird.f32 %v1457
        %vm1464 = vweird.f32 %v1458
        %vm1465 = vmor %vm1463, %vm1464
        %v1466 = vsel %vm1465, %v1458, %v1462
        %v1467 = vand.u32 2147483647, %v1457
        %vm1468 = vcmp.eq.f32.partialorder %v1467, 8.507059e+37
        %v1469 = vand.u32 %v1457, 2147483648
        %v1470 = vor.u32 1.1754944e-38, %v1469
        %v1471 = vsel %vm1468, %v1470, %v1466
        %v1472 = vmul.f32 %v1447, %v1471
        %v1473 = vmin.f32 %v1472, 1.0
        %v1474 = vmax.f32 %v1473, -1.0
        %v1475 = vadd.f32 %v1434, 1.0
        %v1476 = vadd.f32 %v1474, 1.0
        %v1477 = vmul.f32 %v1391, %v1475
        %v1478 = vmul.f32 %v1392, %v1476
        %v1479 = vld [vmem:[#allocation9] sm:$0xf]
        %v1480 = vld [vmem:[#allocation9 + $0x4] sm:$0xf]
        %v1481 = vld [vmem:[#allocation9 + $0x8] sm:$0xf]
        %v1482 = vld [vmem:[#allocation9 + $0xc] sm:$0xf]
        %v1483 = vld [vmem:[#allocation9 + $0x10] sm:$0xf]
        %v1484 = vld [vmem:[#allocation9 + $0x14] sm:$0xf]
        %v1485 = vld [vmem:[#allocation9 + $0x18] sm:$0xf]
        %v1486 = vld [vmem:[#allocation9 + $0x1c] sm:$0xf]
        %v1487 = vld [vmem:[#allocation9 + $0x20] sm:$0xf]
        %v1488 = vld [vmem:[#allocation9 + $0x24] sm:$0xf]
        %v1489 = vld [vmem:[#allocation9 + $0x28] sm:$0xf]
        %v1490 = vld [vmem:[#allocation9 + $0x2c] sm:$0xf]
        %v1491 = vld [vmem:[#allocation9 + $0x30] sm:$0xf]
        %v1492 = vld [vmem:[#allocation9 + $0x34] sm:$0xf]
        %v1493 = vld [vmem:[#allocation9 + $0x38] sm:$0xf]
        %v1494 = vld [vmem:[#allocation9 + $0x3c] sm:$0xf]
        %v1495 = vld [vmem:[#allocation9 + $0x40] sm:$0xf]
        %v1496 = vld [vmem:[#allocation9 + $0x44] sm:$0xf]
        %v1497 = vld [vmem:[#allocation9 + $0x48] sm:$0xf]
        %v1498 = vld [vmem:[#allocation9 + $0x4c] sm:$0xf]
        %v1499 = vld [vmem:[#allocation9 + $0x50] sm:$0xf]
        %v1500 = vld [vmem:[#allocation9 + $0x54] sm:$0xf]
        %v1501 = vld [vmem:[#allocation9 + $0x58] sm:$0xf]
        %v1502 = vld [vmem:[#allocation9 + $0x5c] sm:$0xf]
        %v1503 = vld [vmem:[#allocation9 + $0x60] sm:$0xf]
        %v1504 = vld [vmem:[#allocation9 + $0x64] sm:$0xf]
        %v1505 = vld [vmem:[#allocation9 + $0x68] sm:$0xf]
        %v1506 = vld [vmem:[#allocation9 + $0x6c] sm:$0xf]
        %v1507 = vld [vmem:[#allocation9 + $0x70] sm:$0xf]
        %v1508 = vld [vmem:[#allocation9 + $0x74] sm:$0xf]
        %v1509 = vld [vmem:[#allocation9 + $0x78] sm:$0xf]
        %v1510 = vld [vmem:[#allocation9 + $0x7c] sm:$0xf]
        %v1511 = vpack.c.bf16 %v1477, %v1477
        %v1512 = vpack.c.bf16 %v1478, %v1478
        %v1513 = vld [vmem:[%s12] sm:$0x1]
        %v1515 = vperm.slane %v1513, 0
        %v1549 = vunpack.c.l.b16 %v1479
        %v1550 = vunpack.c.l.b16 %v1480
        %v1551 = vunpack.c.l.b16 %v1481
        %v1552 = vunpack.c.l.b16 %v1482
        %v1553 = vunpack.c.l.b16 %v1483
        %v1554 = vunpack.c.l.b16 %v1484
        %v1555 = vunpack.c.l.b16 %v1485
        %v1556 = vunpack.c.l.b16 %v1486
        %v1557 = vunpack.c.l.b16 %v1487
        %v1558 = vunpack.c.l.b16 %v1488
        %v1559 = vunpack.c.l.b16 %v1489
        %v1560 = vunpack.c.l.b16 %v1490
        %v1561 = vunpack.c.l.b16 %v1491
        %v1562 = vunpack.c.l.b16 %v1492
        %v1563 = vunpack.c.l.b16 %v1493
        %v1564 = vunpack.c.l.b16 %v1494
        %v1565 = vunpack.c.l.b16 %v1495
        %v1566 = vunpack.c.l.b16 %v1496
        %v1567 = vunpack.c.l.b16 %v1497
        %v1568 = vunpack.c.l.b16 %v1498
        %v1569 = vunpack.c.l.b16 %v1499
        %v1570 = vunpack.c.l.b16 %v1500
        %v1571 = vunpack.c.l.b16 %v1501
        %v1572 = vunpack.c.l.b16 %v1502
        %v1573 = vunpack.c.l.b16 %v1503
        %v1574 = vunpack.c.l.b16 %v1504
        %v1575 = vunpack.c.l.b16 %v1505
        %v1576 = vunpack.c.l.b16 %v1506
        %v1577 = vunpack.c.l.b16 %v1507
        %v1578 = vunpack.c.l.b16 %v1508
        %v1579 = vunpack.c.l.b16 %v1509
        %v1580 = vunpack.c.l.b16 %v1510
        %v1581 = vpack.c.b16 %v1550, %v1549
        %v1582 = vpack.c.b16 %v1552, %v1551
        %v1583 = vpack.c.b16 %v1554, %v1553
        %v1584 = vpack.c.b16 %v1556, %v1555
        %v1585 = vpack.c.b16 %v1558, %v1557
        %v1586 = vpack.c.b16 %v1560, %v1559
        %v1587 = vpack.c.b16 %v1562, %v1561
        %v1588 = vpack.c.b16 %v1564, %v1563
        %v1589 = vpack.c.b16 %v1566, %v1565
        %v1590 = vpack.c.b16 %v1568, %v1567
        %v1591 = vpack.c.b16 %v1570, %v1569
        %v1592 = vpack.c.b16 %v1572, %v1571
        %v1593 = vpack.c.b16 %v1574, %v1573
        %v1594 = vpack.c.b16 %v1576, %v1575
        %v1595 = vpack.c.b16 %v1578, %v1577
        %v1596 = vpack.c.b16 %v1580, %v1579
        %1613 = vmatpush.bf16.msra.mxu0 %v1588
        %1614 = vmatpush.bf16.msra.mxu0 %v1587
        %1615 = vmatpush.bf16.msra.mxu0 %v1586
        %1616 = vmatpush.bf16.msra.mxu0 %v1585
        %1617 = vmatpush.bf16.msra.mxu0 %v1584
        %1618 = vmatpush.bf16.msra.mxu0 %v1583
        %1619 = vmatpush.bf16.msra.mxu0 %v1582
        %1620 = vmatpush.bf16.msra.mxu0 %v1581
        %1621 = vmatmul.bf16.gmra.mxu0 %v1511
        %v1622 = vpop.f32.mrf.mxu0
        %v1623 = vadd.f32 %v1515, %v1622
        %v1624 = vpop.f32.mrf.mxu0
        %1625 = vdwg.mxu0
        %1626 = vmatpush.bf16.msra.mxu0 %v1596
        %1627 = vmatpush.bf16.msra.mxu0 %v1595
        %1628 = vmatpush.bf16.msra.mxu0 %v1594
        %1629 = vmatpush.bf16.msra.mxu0 %v1593
        %1630 = vmatpush.bf16.msra.mxu0 %v1592
        %1631 = vmatpush.bf16.msra.mxu0 %v1591
        %1632 = vmatpush.bf16.msra.mxu0 %v1590
        %1633 = vmatpush.bf16.msra.mxu0 %v1589
        %1634 = vmatmul.bf16.gmra.mxu0 %v1512
        %v1635 = vpop.f32.mrf.mxu0
        %v1636 = vadd.f32 %v1623, %v1635
        %v1637 = vpop.f32.mrf.mxu0
        %1638 = vdwg.mxu0
        %v1639 = vadd.f32 %v1636, %v1261
        %v1640 = vld [vmem:[#allocation10] sm:$0x1]
        %v1641 = vld [vmem:[#allocation12] sm:$0x1]
        %1642 = vadd.xlane.f32.xlu0 %v1639
        %v1643 = vpop.xlane.xlu0 %1642
        %v1644 = vmul.f32 %v1643, %v614
        %v1645 = vsub.f32 %v1639, %v1644
        %v1646 = vmul.f32 %v1645, %v1645
        %1647 = vadd.xlane.f32.xlu0 %v1646
        %v1648 = vpop.xlane.xlu0 %1647
        %v1649 = vmul.f32 %v1648, %v614
        %v1650 = vadd.f32 %v1649, 1e-12
        %v1651 = vrsqrt.pop %v1650
        %v1652 = vmul.f32 %v1651, %v1650
        %v1653 = vmul.f32 %v1652, %v1651
        %v1654 = vmul.f32 0.5, %v1653
        %v1655 = vsub.f32 1.5, %v1654
        %v1656 = vmul.f32 %v1651, %v1655
        %vm1657 = vweird.f32 %v1650
        %vm1658 = vweird.f32 %v1651
        %vm1659 = vmor %vm1657, %vm1658
        %v1660 = vsel %vm1659, %v1651, %v1656
        %v1661 = vmul.f32 %v1645, %v1660
        %v1663 = vperm.slane %v1640, 0
        %v1665 = vmul.f32 %v1661, %v1663
        %v1667 = vperm.slane %v1641, 0
        %v1669 = vadd.f32 %v1665, %v1667
        %s1670 = scalar_lea.vmem [#allocation6], 192
        %v1671 = vld [vmem:[%s1670] sm:$0xff]
        %v1672 = vld [vmem:[%s1670 + $0x8] sm:$0xf]
        %v1673 = vld [vmem:[%s1670 + $0xc] sm:$0xff]
        %v1674 = vld [vmem:[%s1670 + $0x14] sm:$0xf]
        %v1675 = vld [vmem:[%s1670 + $0x18] sm:$0xff]
        %v1676 = vld [vmem:[%s1670 + $0x20] sm:$0xf]
        %v1677 = vld [vmem:[%s1670 + $0x24] sm:$0xff]
        %v1678 = vld [vmem:[%s1670 + $0x2c] sm:$0xf]
        %v1679 = vld [vmem:[%s1670 + $0x30] sm:$0xff]
        %v1680 = vld [vmem:[%s1670 + $0x38] sm:$0xf]
        %v1681 = vld [vmem:[%s1670 + $0x3c] sm:$0xff]
        %v1682 = vld [vmem:[%s1670 + $0x44] sm:$0xf]
        %v1683 = vld [vmem:[%s1670 + $0x48] sm:$0xff]
        %v1684 = vld [vmem:[%s1670 + $0x50] sm:$0xf]
        %v1685 = vld [vmem:[%s1670 + $0x54] sm:$0xff]
        %v1686 = vld [vmem:[%s1670 + $0x5c] sm:$0xf]
        %v1687 = vld [vmem:[%s1670 + $0x60] sm:$0xff]
        %v1688 = vld [vmem:[%s1670 + $0x68] sm:$0xf]
        %v1689 = vld [vmem:[%s1670 + $0x6c] sm:$0xff]
        %v1690 = vld [vmem:[%s1670 + $0x74] sm:$0xf]
        %v1691 = vld [vmem:[%s1670 + $0x78] sm:$0xff]
        %v1692 = vld [vmem:[%s1670 + $0x80] sm:$0xf]
        %v1693 = vld [vmem:[%s1670 + $0x84] sm:$0xff]
        %v1694 = vld [vmem:[%s1670 + $0x8c] sm:$0xf]
        %v1695 = vld [vmem:[%s1670 + $0x90] sm:$0xff]
        %v1696 = vld [vmem:[%s1670 + $0x98] sm:$0xf]
        %v1697 = vld [vmem:[%s1670 + $0x9c] sm:$0xff]
        %v1698 = vld [vmem:[%s1670 + $0xa4] sm:$0xf]
        %v1699 = vld [vmem:[%s1670 + $0xa8] sm:$0xff]
        %v1700 = vld [vmem:[%s1670 + $0xb0] sm:$0xf]
        %v1701 = vld [vmem:[%s1670 + $0xb4] sm:$0xff]
        %v1702 = vld [vmem:[%s1670 + $0xbc] sm:$0xf]
        %v1703 = vpack.c.bf16 %v1669, %v1669
        %s1704 = scalar_lea.vmem %s4, 3
        %v1705 = vld [vmem:[%s1704] sm:$0x7]
        %v1707 = vperm.slane %v1705, 0
        %v1708 = vperm.slane %v1705, 1
        %v1709 = vperm.slane %v1705, 2
        %v1745 = vunpack.c.l.b16 %v1671
        %v1746 = vunpack.c.h.b16 %v1671
        %v1747 = vunpack.c.l.b16 %v1672
        %v1748 = vunpack.c.l.b16 %v1673
        %v1749 = vunpack.c.h.b16 %v1673
        %v1750 = vunpack.c.l.b16 %v1674
        %v1751 = vunpack.c.l.b16 %v1675
        %v1752 = vunpack.c.h.b16 %v1675
        %v1753 = vunpack.c.l.b16 %v1676
        %v1754 = vunpack.c.l.b16 %v1677
        %v1755 = vunpack.c.h.b16 %v1677
        %v1756 = vunpack.c.l.b16 %v1678
        %v1757 = vunpack.c.l.b16 %v1679
        %v1758 = vunpack.c.h.b16 %v1679
        %v1759 = vunpack.c.l.b16 %v1680
        %v1760 = vunpack.c.l.b16 %v1681
        %v1761 = vunpack.c.h.b16 %v1681
        %v1762 = vunpack.c.l.b16 %v1682
        %v1763 = vunpack.c.l.b16 %v1683
        %v1764 = vunpack.c.h.b16 %v1683
        %v1765 = vunpack.c.l.b16 %v1684
        %v1766 = vunpack.c.l.b16 %v1685
        %v1767 = vunpack.c.h.b16 %v1685
        %v1768 = vunpack.c.l.b16 %v1686
        %v1769 = vunpack.c.l.b16 %v1687
        %v1770 = vunpack.c.h.b16 %v1687
        %v1771 = vunpack.c.l.b16 %v1688
        %v1772 = vunpack.c.l.b16 %v1689
        %v1773 = vunpack.c.h.b16 %v1689
        %v1774 = vunpack.c.l.b16 %v1690
        %v1775 = vunpack.c.l.b16 %v1691
        %v1776 = vunpack.c.h.b16 %v1691
        %v1777 = vunpack.c.l.b16 %v1692
        %v1778 = vunpack.c.l.b16 %v1693
        %v1779 = vunpack.c.h.b16 %v1693
        %v1780 = vunpack.c.l.b16 %v1694
        %v1781 = vunpack.c.l.b16 %v1695
        %v1782 = vunpack.c.h.b16 %v1695
        %v1783 = vunpack.c.l.b16 %v1696
        %v1784 = vunpack.c.l.b16 %v1697
        %v1785 = vunpack.c.h.b16 %v1697
        %v1786 = vunpack.c.l.b16 %v1698
        %v1787 = vunpack.c.l.b16 %v1699
        %v1788 = vunpack.c.h.b16 %v1699
        %v1789 = vunpack.c.l.b16 %v1700
        %v1790 = vunpack.c.l.b16 %v1701
        %v1791 = vunpack.c.h.b16 %v1701
        %v1792 = vunpack.c.l.b16 %v1702
        %v1793 = vpack.c.b16 %v1748, %v1745
        %v1794 = vpack.c.b16 %v1749, %v1746
        %v1795 = vpack.c.b16 %v1750, %v1747
        %v1796 = vpack.c.b16 %v1754, %v1751
        %v1797 = vpack.c.b16 %v1755, %v1752
        %v1798 = vpack.c.b16 %v1756, %v1753
        %v1799 = vpack.c.b16 %v1760, %v1757
        %v1800 = vpack.c.b16 %v1761, %v1758
        %v1801 = vpack.c.b16 %v1762, %v1759
        %v1802 = vpack.c.b16 %v1766, %v1763
        %v1803 = vpack.c.b16 %v1767, %v1764
        %v1804 = vpack.c.b16 %v1768, %v1765
        %v1805 = vpack.c.b16 %v1772, %v1769
        %v1806 = vpack.c.b16 %v1773, %v1770
        %v1807 = vpack.c.b16 %v1774, %v1771
        %v1808 = vpack.c.b16 %v1778, %v1775
        %v1809 = vpack.c.b16 %v1779, %v1776
        %v1810 = vpack.c.b16 %v1780, %v1777
        %v1811 = vpack.c.b16 %v1784, %v1781
        %v1812 = vpack.c.b16 %v1785, %v1782
        %v1813 = vpack.c.b16 %v1786, %v1783
        %v1814 = vpack.c.b16 %v1790, %v1787
        %v1815 = vpack.c.b16 %v1791, %v1788
        %v1816 = vpack.c.b16 %v1792, %v1789
        %1841 = vmatpush.bf16.msra.mxu0 %v1814
        %1842 = vmatpush.bf16.msra.mxu0 %v1811
        %1843 = vmatpush.bf16.msra.mxu0 %v1808
        %1844 = vmatpush.bf16.msra.mxu0 %v1805
        %1845 = vmatpush.bf16.msra.mxu0 %v1802
        %1846 = vmatpush.bf16.msra.mxu0 %v1799
        %1847 = vmatpush.bf16.msra.mxu0 %v1796
        %1848 = vmatpush.bf16.msra.mxu0 %v1793
        %1849 = vmatmul.bf16.gmra.mxu0 %v1703
        %v1850 = vpop.f32.mrf.mxu0
        %v1851 = vadd.f32 %v1707, %v1850
        %v1852 = vpop.f32.mrf.mxu0
        %1853 = vdwg.mxu0
        %1854 = vmatpush.bf16.msra.mxu0 %v1815
        %1855 = vmatpush.bf16.msra.mxu0 %v1812
        %1856 = vmatpush.bf16.msra.mxu0 %v1809
        %1857 = vmatpush.bf16.msra.mxu0 %v1806
        %1858 = vmatpush.bf16.msra.mxu0 %v1803
        %1859 = vmatpush.bf16.msra.mxu0 %v1800
        %1860 = vmatpush.bf16.msra.mxu0 %v1797
        %1861 = vmatpush.bf16.msra.mxu0 %v1794
        %1862 = vmatmul.bf16.gmra.mxu0 %v1703
        %v1863 = vpop.f32.mrf.mxu0
        %v1864 = vadd.f32 %v1708, %v1863
        %v1865 = vpop.f32.mrf.mxu0
        %1866 = vdwg.mxu0
        %1867 = vmatpush.bf16.msra.mxu0 %v1816
        %1868 = vmatpush.bf16.msra.mxu0 %v1813
        %1869 = vmatpush.bf16.msra.mxu0 %v1810
        %1870 = vmatpush.bf16.msra.mxu0 %v1807
        %1871 = vmatpush.bf16.msra.mxu0 %v1804
        %1872 = vmatpush.bf16.msra.mxu0 %v1801
        %1873 = vmatpush.bf16.msra.mxu0 %v1798
        %1874 = vmatpush.bf16.msra.mxu0 %v1795
        %1875 = vmatmul.bf16.gmra.mxu0 %v1703
        %v1876 = vpop.f32.mrf.mxu0
        %v1877 = vadd.f32 %v1709, %v1876
        %v1878 = vpop.f32.mrf.mxu0
        %1879 = vdwg.mxu0
        %v1880 = vpack.c.bf16 %v1851, %v1851
        %v1881 = vpack.c.bf16 %v1864, %v1864
        %v1882 = vpack.c.bf16 %v1877, %v1877
        %v1884 = vsel %vm852, %v1880, 0
        %v1887 = vsel %vm852, %v1881, 0
        %1889 = vmatpush.bf16.xpose.msra.mxu0 0
        %1890 = vmatpush.bf16.xpose.msra.mxu0 0
        %1891 = vmatpush.bf16.xpose.msra.mxu0 0
        %1892 = vmatpush.bf16.xpose.msra.mxu0 0
        %1893 = vmatpush.bf16.xpose.msra.mxu0 0
        %1894 = vmatpush.bf16.xpose.msra.mxu0 0
        %1895 = vmatpush.bf16.xpose.msra.mxu0 0
        %1896 = vmatpush.bf16.xpose.msra.mxu0 %v1887
        %1897 = vmatmul.bf16.gmra.mxu0 %v1884
        %v1898 = vpop.f32.mrf.mxu0
        %v1899 = vadd.f32 0.0, %v1898
        %v1900 = vpop.f32.mrf.mxu0
        %1901 = vdwg.mxu0
        %v1902 = vmul.f32 %v1899, 0.17677669
        %v1903 = vsel %vm873, %v1902, -inf
        %1904 = vmax.xlane.f32.xlu0 %v1903
        %v1905 = vpop.xlane.xlu0 %1904
        %v1906 = vsub.f32 %v1902, %v1905
        %v1907 = vmul.f32 %v1906, 1.442695
        %v1908 = vpow.pop %v1907
        %v1909 = vsel %vm873, %v1908, 0.0
        %1910 = vadd.xlane.f32.xlu0 %v1909
        %v1911 = vpop.xlane.xlu0 %1910
        %v1912 = vrcp.pop %v1911
        %v1913 = vmul.f32 %v1911, %v1912
        %v1914 = vsub.f32 1.0, %v1913
        %v1915 = vmul.f32 %v1912, %v1914
        %v1916 = vadd.f32 %v1912, %v1915
        %vm1917 = vweird.f32 %v1911
        %vm1918 = vweird.f32 %v1912
        %vm1919 = vmor %vm1917, %vm1918
        %v1920 = vsel %vm1919, %v1912, %v1916
        %v1921 = vand.u32 2147483647, %v1911
        %vm1922 = vcmp.eq.f32.partialorder %v1921, 8.507059e+37
        %v1923 = vand.u32 %v1911, 2147483648
        %v1924 = vor.u32 1.1754944e-38, %v1923
        %v1925 = vsel %vm1922, %v1924, %v1920
        %v1926 = vmul.f32 %v1908, %v1925
        %v1927 = vpack.c.bf16 %v1926, %v1926
        %v1929 = vsel %vm873, %v1927, 0
        %v1932 = vsel %vm902, %v1882, 0
        %1934 = vmatpush.bf16.msra.mxu0 0
        %1935 = vmatpush.bf16.msra.mxu0 0
        %1936 = vmatpush.bf16.msra.mxu0 0
        %1937 = vmatpush.bf16.msra.mxu0 0
        %1938 = vmatpush.bf16.msra.mxu0 0
        %1939 = vmatpush.bf16.msra.mxu0 0
        %1940 = vmatpush.bf16.msra.mxu0 0
        %1941 = vmatpush.bf16.msra.mxu0 %v1932
        %1942 = vmatmul.bf16.gmra.mxu0 %v1929
        %v1943 = vpop.f32.mrf.mxu0
        %v1944 = vadd.f32 0.0, %v1943
        %v1945 = vpop.f32.mrf.mxu0
        %1946 = vdwg.mxu0
        %1948 = vrot.lane.b32.xlu0 %v1880, 96
        %v1949 = vpop.permute.xlu0 %1948
        %1951 = vrot.lane.b32.xlu0 %v1881, 96
        %v1952 = vpop.permute.xlu0 %1951
        %v1954 = vsel %vm852, %v1949, 0
        %v1957 = vsel %vm852, %v1952, 0
        %1959 = vmatpush.bf16.xpose.msra.mxu0 0
        %1960 = vmatpush.bf16.xpose.msra.mxu0 0
        %1961 = vmatpush.bf16.xpose.msra.mxu0 0
        %1962 = vmatpush.bf16.xpose.msra.mxu0 0
        %1963 = vmatpush.bf16.xpose.msra.mxu0 0
        %1964 = vmatpush.bf16.xpose.msra.mxu0 0
        %1965 = vmatpush.bf16.xpose.msra.mxu0 0
        %1966 = vmatpush.bf16.xpose.msra.mxu0 %v1957
        %1967 = vmatmul.bf16.gmra.mxu0 %v1954
        %v1968 = vpop.f32.mrf.mxu0
        %v1969 = vadd.f32 0.0, %v1968
        %v1970 = vpop.f32.mrf.mxu0
        %1971 = vdwg.mxu0
        %v1972 = vmul.f32 %v1969, 0.17677669
        %v1973 = vsel %vm873, %v1972, -inf
        %1974 = vmax.xlane.f32.xlu0 %v1973
        %v1975 = vpop.xlane.xlu0 %1974
        %v1976 = vsub.f32 %v1972, %v1975
        %v1977 = vmul.f32 %v1976, 1.442695
        %v1978 = vpow.pop %v1977
        %v1979 = vsel %vm873, %v1978, 0.0
        %1980 = vadd.xlane.f32.xlu0 %v1979
        %v1981 = vpop.xlane.xlu0 %1980
        %v1982 = vrcp.pop %v1981
        %v1983 = vmul.f32 %v1981, %v1982
        %v1984 = vsub.f32 1.0, %v1983
        %v1985 = vmul.f32 %v1982, %v1984
        %v1986 = vadd.f32 %v1982, %v1985
        %vm1987 = vweird.f32 %v1981
        %vm1988 = vweird.f32 %v1982
        %vm1989 = vmor %vm1987, %vm1988
        %v1990 = vsel %vm1989, %v1982, %v1986
        %v1991 = vand.u32 2147483647, %v1981
        %vm1992 = vcmp.eq.f32.partialorder %v1991, 8.507059e+37
        %v1993 = vand.u32 %v1981, 2147483648
        %v1994 = vor.u32 1.1754944e-38, %v1993
        %v1995 = vsel %vm1992, %v1994, %v1990
        %v1996 = vmul.f32 %v1978, %v1995
        %v1997 = vpack.c.bf16 %v1996, %v1996
        %1999 = vrot.lane.b32.xlu0 %v1882, 96
        %v2000 = vpop.permute.xlu0 %1999
        %v2002 = vsel %vm873, %v1997, 0
        %v2005 = vsel %vm902, %v2000, 0
        %2007 = vmatpush.bf16.msra.mxu0 0
        %2008 = vmatpush.bf16.msra.mxu0 0
        %2009 = vmatpush.bf16.msra.mxu0 0
        %2010 = vmatpush.bf16.msra.mxu0 0
        %2011 = vmatpush.bf16.msra.mxu0 0
        %2012 = vmatpush.bf16.msra.mxu0 0
        %2013 = vmatpush.bf16.msra.mxu0 0
        %2014 = vmatpush.bf16.msra.mxu0 %v2005
        %2015 = vmatmul.bf16.gmra.mxu0 %v2002
        %v2016 = vpop.f32.mrf.mxu0
        %v2017 = vadd.f32 0.0, %v2016
        %v2018 = vpop.f32.mrf.mxu0
        %2019 = vdwg.mxu0
        %2020 = vrot.lane.b32.xlu0 %v1880, 64
        %v2021 = vpop.permute.xlu0 %2020
        %2022 = vrot.lane.b32.xlu0 %v1881, 64
        %v2023 = vpop.permute.xlu0 %2022
        %v2025 = vsel %vm852, %v2021, 0
        %v2028 = vsel %vm852, %v2023, 0
        %2030 = vmatpush.bf16.xpose.msra.mxu0 0
        %2031 = vmatpush.bf16.xpose.msra.mxu0 0
        %2032 = vmatpush.bf16.xpose.msra.mxu0 0
        %2033 = vmatpush.bf16.xpose.msra.mxu0 0
        %2034 = vmatpush.bf16.xpose.msra.mxu0 0
        %2035 = vmatpush.bf16.xpose.msra.mxu0 0
        %2036 = vmatpush.bf16.xpose.msra.mxu0 0
        %2037 = vmatpush.bf16.xpose.msra.mxu0 %v2028
        %2038 = vmatmul.bf16.gmra.mxu0 %v2025
        %v2039 = vpop.f32.mrf.mxu0
        %v2040 = vadd.f32 0.0, %v2039
        %v2041 = vpop.f32.mrf.mxu0
        %2042 = vdwg.mxu0
        %v2043 = vmul.f32 %v2040, 0.17677669
        %v2044 = vsel %vm873, %v2043, -inf
        %2045 = vmax.xlane.f32.xlu0 %v2044
        %v2046 = vpop.xlane.xlu0 %2045
        %v2047 = vsub.f32 %v2043, %v2046
        %v2048 = vmul.f32 %v2047, 1.442695
        %v2049 = vpow.pop %v2048
        %v2050 = vsel %vm873, %v2049, 0.0
        %2051 = vadd.xlane.f32.xlu0 %v2050
        %v2052 = vpop.xlane.xlu0 %2051
        %v2053 = vrcp.pop %v2052
        %v2054 = vmul.f32 %v2052, %v2053
        %v2055 = vsub.f32 1.0, %v2054
        %v2056 = vmul.f32 %v2053, %v2055
        %v2057 = vadd.f32 %v2053, %v2056
        %vm2058 = vweird.f32 %v2052
        %vm2059 = vweird.f32 %v2053
        %vm2060 = vmor %vm2058, %vm2059
        %v2061 = vsel %vm2060, %v2053, %v2057
        %v2062 = vand.u32 2147483647, %v2052
        %vm2063 = vcmp.eq.f32.partialorder %v2062, 8.507059e+37
        %v2064 = vand.u32 %v2052, 2147483648
        %v2065 = vor.u32 1.1754944e-38, %v2064
        %v2066 = vsel %vm2063, %v2065, %v2061
        %v2067 = vmul.f32 %v2049, %v2066
        %v2068 = vpack.c.bf16 %v2067, %v2067
        %2069 = vrot.lane.b32.xlu0 %v1882, 64
        %v2070 = vpop.permute.xlu0 %2069
        %v2072 = vsel %vm873, %v2068, 0
        %v2075 = vsel %vm902, %v2070, 0
        %2077 = vmatpush.bf16.msra.mxu0 0
        %2078 = vmatpush.bf16.msra.mxu0 0
        %2079 = vmatpush.bf16.msra.mxu0 0
        %2080 = vmatpush.bf16.msra.mxu0 0
        %2081 = vmatpush.bf16.msra.mxu0 0
        %2082 = vmatpush.bf16.msra.mxu0 0
        %2083 = vmatpush.bf16.msra.mxu0 0
        %2084 = vmatpush.bf16.msra.mxu0 %v2075
        %2085 = vmatmul.bf16.gmra.mxu0 %v2072
        %v2086 = vpop.f32.mrf.mxu0
        %v2087 = vadd.f32 0.0, %v2086
        %v2088 = vpop.f32.mrf.mxu0
        %2089 = vdwg.mxu0
        %2090 = vrot.lane.b32.xlu0 %v1880, 32
        %v2091 = vpop.permute.xlu0 %2090
        %2092 = vrot.lane.b32.xlu0 %v1881, 32
        %v2093 = vpop.permute.xlu0 %2092
        %v2095 = vsel %vm852, %v2091, 0
        %v2098 = vsel %vm852, %v2093, 0
        %2100 = vmatpush.bf16.xpose.msra.mxu0 0
        %2101 = vmatpush.bf16.xpose.msra.mxu0 0
        %2102 = vmatpush.bf16.xpose.msra.mxu0 0
        %2103 = vmatpush.bf16.xpose.msra.mxu0 0
        %2104 = vmatpush.bf16.xpose.msra.mxu0 0
        %2105 = vmatpush.bf16.xpose.msra.mxu0 0
        %2106 = vmatpush.bf16.xpose.msra.mxu0 0
        %2107 = vmatpush.bf16.xpose.msra.mxu0 %v2098
        %2108 = vmatmul.bf16.gmra.mxu0 %v2095
        %v2109 = vpop.f32.mrf.mxu0
        %v2110 = vadd.f32 0.0, %v2109
        %v2111 = vpop.f32.mrf.mxu0
        %2112 = vdwg.mxu0
        %v2113 = vmul.f32 %v2110, 0.17677669
        %v2114 = vsel %vm873, %v2113, -inf
        %2115 = vmax.xlane.f32.xlu0 %v2114
        %v2116 = vpop.xlane.xlu0 %2115
        %v2117 = vsub.f32 %v2113, %v2116
        %v2118 = vmul.f32 %v2117, 1.442695
        %v2119 = vpow.pop %v2118
        %v2120 = vsel %vm873, %v2119, 0.0
        %2121 = vadd.xlane.f32.xlu0 %v2120
        %v2122 = vpop.xlane.xlu0 %2121
        %v2123 = vrcp.pop %v2122
        %v2124 = vmul.f32 %v2122, %v2123
        %v2125 = vsub.f32 1.0, %v2124
        %v2126 = vmul.f32 %v2123, %v2125
        %v2127 = vadd.f32 %v2123, %v2126
        %vm2128 = vweird.f32 %v2122
        %vm2129 = vweird.f32 %v2123
        %vm2130 = vmor %vm2128, %vm2129
        %v2131 = vsel %vm2130, %v2123, %v2127
        %v2132 = vand.u32 2147483647, %v2122
        %vm2133 = vcmp.eq.f32.partialorder %v2132, 8.507059e+37
        %v2134 = vand.u32 %v2122, 2147483648
        %v2135 = vor.u32 1.1754944e-38, %v2134
        %v2136 = vsel %vm2133, %v2135, %v2131
        %v2137 = vmul.f32 %v2119, %v2136
        %v2138 = vpack.c.bf16 %v2137, %v2137
        %2139 = vrot.lane.b32.xlu0 %v1882, 32
        %v2140 = vpop.permute.xlu0 %2139
        %v2142 = vsel %vm873, %v2138, 0
        %v2145 = vsel %vm902, %v2140, 0
        %2147 = vmatpush.bf16.msra.mxu0 0
        %2148 = vmatpush.bf16.msra.mxu0 0
        %2149 = vmatpush.bf16.msra.mxu0 0
        %2150 = vmatpush.bf16.msra.mxu0 0
        %2151 = vmatpush.bf16.msra.mxu0 0
        %2152 = vmatpush.bf16.msra.mxu0 0
        %2153 = vmatpush.bf16.msra.mxu0 0
        %2154 = vmatpush.bf16.msra.mxu0 %v2145
        %2155 = vmatmul.bf16.gmra.mxu0 %v2142
        %v2156 = vpop.f32.mrf.mxu0
        %v2157 = vadd.f32 0.0, %v2156
        %v2158 = vpop.f32.mrf.mxu0
        %2159 = vdwg.mxu0
        %2161 = vrot.lane.b32.xlu0 %v2017, 32
        %v2162 = vpop.permute.xlu0 %2161
        %2165 = vrot.lane.b32.xlu0 %v2087, 64
        %v2166 = vpop.permute.xlu0 %2165
        %2169 = vrot.lane.b32.xlu0 %v2157, 96
        %v2170 = vpop.permute.xlu0 %2169
        %v2172 = vsel %vm852, %v1944, %v2162
        %v2173 = vsel %vm1145, %v2172, %v2166
        %v2174 = vsel %vm1147, %v2173, %v2170
        %s2175 = scalar_lea.vmem %s5, 64
        %v2176 = vld [vmem:[%s2175] sm:$0xf]
        %v2177 = vld [vmem:[%s2175 + $0x4] sm:$0xf]
        %v2178 = vld [vmem:[%s2175 + $0x8] sm:$0xf]
        %v2179 = vld [vmem:[%s2175 + $0xc] sm:$0xf]
        %v2180 = vld [vmem:[%s2175 + $0x10] sm:$0xf]
        %v2181 = vld [vmem:[%s2175 + $0x14] sm:$0xf]
        %v2182 = vld [vmem:[%s2175 + $0x18] sm:$0xf]
        %v2183 = vld [vmem:[%s2175 + $0x1c] sm:$0xf]
        %v2184 = vld [vmem:[%s2175 + $0x20] sm:$0xf]
        %v2185 = vld [vmem:[%s2175 + $0x24] sm:$0xf]
        %v2186 = vld [vmem:[%s2175 + $0x28] sm:$0xf]
        %v2187 = vld [vmem:[%s2175 + $0x2c] sm:$0xf]
        %v2188 = vld [vmem:[%s2175 + $0x30] sm:$0xf]
        %v2189 = vld [vmem:[%s2175 + $0x34] sm:$0xf]
        %v2190 = vld [vmem:[%s2175 + $0x38] sm:$0xf]
        %v2191 = vld [vmem:[%s2175 + $0x3c] sm:$0xf]
        %v2192 = vpack.c.bf16 %v2174, %v2174
        %s2193 = scalar_lea.vmem %s6, 1
        %v2194 = vld [vmem:[%s2193] sm:$0x1]
        %v2196 = vperm.slane %v2194, 0
        %v2214 = vunpack.c.l.b16 %v2176
        %v2215 = vunpack.c.l.b16 %v2177
        %v2216 = vunpack.c.l.b16 %v2178
        %v2217 = vunpack.c.l.b16 %v2179
        %v2218 = vunpack.c.l.b16 %v2180
        %v2219 = vunpack.c.l.b16 %v2181
        %v2220 = vunpack.c.l.b16 %v2182
        %v2221 = vunpack.c.l.b16 %v2183
        %v2222 = vunpack.c.l.b16 %v2184
        %v2223 = vunpack.c.l.b16 %v2185
        %v2224 = vunpack.c.l.b16 %v2186
        %v2225 = vunpack.c.l.b16 %v2187
        %v2226 = vunpack.c.l.b16 %v2188
        %v2227 = vunpack.c.l.b16 %v2189
        %v2228 = vunpack.c.l.b16 %v2190
        %v2229 = vunpack.c.l.b16 %v2191
        %v2230 = vpack.c.b16 %v2215, %v2214
        %v2231 = vpack.c.b16 %v2217, %v2216
        %v2232 = vpack.c.b16 %v2219, %v2218
        %v2233 = vpack.c.b16 %v2221, %v2220
        %v2234 = vpack.c.b16 %v2223, %v2222
        %v2235 = vpack.c.b16 %v2225, %v2224
        %v2236 = vpack.c.b16 %v2227, %v2226
        %v2237 = vpack.c.b16 %v2229, %v2228
        %2246 = vmatpush.bf16.msra.mxu0 %v2237
        %2247 = vmatpush.bf16.msra.mxu0 %v2236
        %2248 = vmatpush.bf16.msra.mxu0 %v2235
        %2249 = vmatpush.bf16.msra.mxu0 %v2234
        %2250 = vmatpush.bf16.msra.mxu0 %v2233
        %2251 = vmatpush.bf16.msra.mxu0 %v2232
        %2252 = vmatpush.bf16.msra.mxu0 %v2231
        %2253 = vmatpush.bf16.msra.mxu0 %v2230
        %2254 = vmatmul.bf16.gmra.mxu0 %v2192
        %v2255 = vpop.f32.mrf.mxu0
        %v2256 = vadd.f32 %v2196, %v2255
        %v2257 = vpop.f32.mrf.mxu0
        %2258 = vdwg.mxu0
        %v2259 = vadd.f32 %v2256, %v1669
        %s2260 = scalar_lea.vmem %s7, 1
        %v2261 = vld [vmem:[%s2260] sm:$0x1]
        %s2262 = scalar_lea.vmem %s8, 1
        %v2263 = vld [vmem:[%s2262] sm:$0x1]
        %2264 = vadd.xlane.f32.xlu0 %v2259
        %v2265 = vpop.xlane.xlu0 %2264
        %v2266 = vmul.f32 %v2265, %v614
        %v2267 = vsub.f32 %v2259, %v2266
        %v2268 = vmul.f32 %v2267, %v2267
        %2269 = vadd.xlane.f32.xlu0 %v2268
        %v2270 = vpop.xlane.xlu0 %2269
        %v2271 = vmul.f32 %v2270, %v614
        %v2272 = vadd.f32 %v2271, 1e-12
        %v2273 = vrsqrt.pop %v2272
        %v2274 = vmul.f32 %v2273, %v2272
        %v2275 = vmul.f32 %v2274, %v2273
        %v2276 = vmul.f32 0.5, %v2275
        %v2277 = vsub.f32 1.5, %v2276
        %v2278 = vmul.f32 %v2273, %v2277
        %vm2279 = vweird.f32 %v2272
        %vm2280 = vweird.f32 %v2273
        %vm2281 = vmor %vm2279, %vm2280
        %v2282 = vsel %vm2281, %v2273, %v2278
        %v2283 = vmul.f32 %v2267, %v2282
        %v2285 = vperm.slane %v2261, 0
        %v2287 = vmul.f32 %v2283, %v2285
        %v2289 = vperm.slane %v2263, 0
        %v2291 = vadd.f32 %v2287, %v2289
        %s2292 = scalar_lea.vmem [#allocation7], 128
        %v2293 = vld [vmem:[%s2292] sm:$0xff]
        %v2294 = vld [vmem:[%s2292 + $0x8] sm:$0xff]
        %v2295 = vld [vmem:[%s2292 + $0x10] sm:$0xff]
        %v2296 = vld [vmem:[%s2292 + $0x18] sm:$0xff]
        %v2297 = vld [vmem:[%s2292 + $0x20] sm:$0xff]
        %v2298 = vld [vmem:[%s2292 + $0x28] sm:$0xff]
        %v2299 = vld [vmem:[%s2292 + $0x30] sm:$0xff]
        %v2300 = vld [vmem:[%s2292 + $0x38] sm:$0xff]
        %v2301 = vld [vmem:[%s2292 + $0x40] sm:$0xff]
        %v2302 = vld [vmem:[%s2292 + $0x48] sm:$0xff]
        %v2303 = vld [vmem:[%s2292 + $0x50] sm:$0xff]
        %v2304 = vld [vmem:[%s2292 + $0x58] sm:$0xff]
        %v2305 = vld [vmem:[%s2292 + $0x60] sm:$0xff]
        %v2306 = vld [vmem:[%s2292 + $0x68] sm:$0xff]
        %v2307 = vld [vmem:[%s2292 + $0x70] sm:$0xff]
        %v2308 = vld [vmem:[%s2292 + $0x78] sm:$0xff]
        %v2309 = vpack.c.bf16 %v2291, %v2291
        %s2310 = scalar_lea.vmem %s10, 2
        %v2311 = vld [vmem:[%s2310] sm:$0x3]
        %v2313 = vperm.slane %v2311, 0
        %v2314 = vperm.slane %v2311, 1
        %v2333 = vunpack.c.l.b16 %v2293
        %v2334 = vunpack.c.h.b16 %v2293
        %v2335 = vunpack.c.l.b16 %v2294
        %v2336 = vunpack.c.h.b16 %v2294
        %v2337 = vunpack.c.l.b16 %v2295
        %v2338 = vunpack.c.h.b16 %v2295
        %v2339 = vunpack.c.l.b16 %v2296
        %v2340 = vunpack.c.h.b16 %v2296
        %v2341 = vunpack.c.l.b16 %v2297
        %v2342 = vunpack.c.h.b16 %v2297
        %v2343 = vunpack.c.l.b16 %v2298
        %v2344 = vunpack.c.h.b16 %v2298
        %v2345 = vunpack.c.l.b16 %v2299
        %v2346 = vunpack.c.h.b16 %v2299
        %v2347 = vunpack.c.l.b16 %v2300
        %v2348 = vunpack.c.h.b16 %v2300
        %v2349 = vunpack.c.l.b16 %v2301
        %v2350 = vunpack.c.h.b16 %v2301
        %v2351 = vunpack.c.l.b16 %v2302
        %v2352 = vunpack.c.h.b16 %v2302
        %v2353 = vunpack.c.l.b16 %v2303
        %v2354 = vunpack.c.h.b16 %v2303
        %v2355 = vunpack.c.l.b16 %v2304
        %v2356 = vunpack.c.h.b16 %v2304
        %v2357 = vunpack.c.l.b16 %v2305
        %v2358 = vunpack.c.h.b16 %v2305
        %v2359 = vunpack.c.l.b16 %v2306
        %v2360 = vunpack.c.h.b16 %v2306
        %v2361 = vunpack.c.l.b16 %v2307
        %v2362 = vunpack.c.h.b16 %v2307
        %v2363 = vunpack.c.l.b16 %v2308
        %v2364 = vunpack.c.h.b16 %v2308
        %v2365 = vpack.c.b16 %v2335, %v2333
        %v2366 = vpack.c.b16 %v2336, %v2334
        %v2367 = vpack.c.b16 %v2339, %v2337
        %v2368 = vpack.c.b16 %v2340, %v2338
        %v2369 = vpack.c.b16 %v2343, %v2341
        %v2370 = vpack.c.b16 %v2344, %v2342
        %v2371 = vpack.c.b16 %v2347, %v2345
        %v2372 = vpack.c.b16 %v2348, %v2346
        %v2373 = vpack.c.b16 %v2351, %v2349
        %v2374 = vpack.c.b16 %v2352, %v2350
        %v2375 = vpack.c.b16 %v2355, %v2353
        %v2376 = vpack.c.b16 %v2356, %v2354
        %v2377 = vpack.c.b16 %v2359, %v2357
        %v2378 = vpack.c.b16 %v2360, %v2358
        %v2379 = vpack.c.b16 %v2363, %v2361
        %v2380 = vpack.c.b16 %v2364, %v2362
        %2397 = vmatpush.bf16.msra.mxu0 %v2379
        %2398 = vmatpush.bf16.msra.mxu0 %v2377
        %2399 = vmatpush.bf16.msra.mxu0 %v2375
        %2400 = vmatpush.bf16.msra.mxu0 %v2373
        %2401 = vmatpush.bf16.msra.mxu0 %v2371
        %2402 = vmatpush.bf16.msra.mxu0 %v2369
        %2403 = vmatpush.bf16.msra.mxu0 %v2367
        %2404 = vmatpush.bf16.msra.mxu0 %v2365
        %2405 = vmatmul.bf16.gmra.mxu0 %v2309
        %v2406 = vpop.f32.mrf.mxu0
        %v2407 = vadd.f32 %v2313, %v2406
        %v2408 = vpop.f32.mrf.mxu0
        %2409 = vdwg.mxu0
        %2410 = vmatpush.bf16.msra.mxu0 %v2380
        %2411 = vmatpush.bf16.msra.mxu0 %v2378
        %2412 = vmatpush.bf16.msra.mxu0 %v2376
        %2413 = vmatpush.bf16.msra.mxu0 %v2374
        %2414 = vmatpush.bf16.msra.mxu0 %v2372
        %2415 = vmatpush.bf16.msra.mxu0 %v2370
        %2416 = vmatpush.bf16.msra.mxu0 %v2368
        %2417 = vmatpush.bf16.msra.mxu0 %v2366
        %2418 = vmatmul.bf16.gmra.mxu0 %v2309
        %v2419 = vpop.f32.mrf.mxu0
        %v2420 = vadd.f32 %v2314, %v2419
        %v2421 = vpop.f32.mrf.mxu0
        %2422 = vdwg.mxu0
        %v2423 = vmul.f32 %v2407, 0.5
        %v2424 = vmul.f32 %v2420, 0.5
        %v2425 = vmul.f32 %v2407, 0.70710677
        %v2426 = vmul.f32 %v2420, 0.70710677
        %v2427 = vmul.f32 %v2425, %v2425
        %v2428 = vmin.f32 16.0, %v2427
        %v2429 = vmul.f32 %v2428, 2.1237322e-06
        %v2430 = vadd.f32 %v2429, 0.00028619796
        %v2431 = vmul.f32 %v2428, %v2430
        %v2432 = vadd.f32 %v2431, 0.0036580483
        %v2433 = vmul.f32 %v2428, %v2432
        %v2434 = vadd.f32 %v2433, 0.05243302
        %v2435 = vmul.f32 %v2428, %v2434
        %v2436 = vadd.f32 %v2435, 0.18741608
        %v2437 = vmul.f32 %v2428, %v2436
        %v2438 = vadd.f32 %v2437, 1.1283791
        %v2439 = vmul.f32 %v2425, %v2438
        %v2440 = vmul.f32 %v2428, 3.8918573e-05
        %v2441 = vadd.f32 %v2440, 0.001143296
        %v2442 = vmul.f32 %v2428, %v2441
        %v2443 = vadd.f32 %v2442, 0.014752088
        %v2444 = vmul.f32 %v2428, %v2443
        %v2445 = vadd.f32 %v2444, 0.112945676
        %v2446 = vmul.f32 %v2428, %v2445
        %v2447 = vadd.f32 %v2446, 0.4994258
        %v2448 = vmul.f32 %v2428, %v2447
        %v2449 = vadd.f32 %v2448, 1.0
        %v2450 = vrcp.pop %v2449
        %v2451 = vmul.f32 %v2449, %v2450
        %v2452 = vsub.f32 1.0, %v2451
        %v2453 = vmul.f32 %v2450, %v2452
        %v2454 = vadd.f32 %v2450, %v2453
        %vm2455 = vweird.f32 %v2449
        %vm2456 = vweird.f32 %v2450
        %vm2457 = vmor %vm2455, %vm2456
        %v2458 = vsel %vm2457, %v2450, %v2454
        %v2459 = vand.u32 2147483647, %v2449
        %vm2460 = vcmp.eq.f32.partialorder %v2459, 8.507059e+37
        %v2461 = vand.u32 %v2449, 2147483648
        %v2462 = vor.u32 1.1754944e-38, %v2461
        %v2463 = vsel %vm2460, %v2462, %v2458
        %v2464 = vmul.f32 %v2439, %v2463
        %v2465 = vmin.f32 %v2464, 1.0
        %v2466 = vmax.f32 %v2465, -1.0
        %v2467 = vmul.f32 %v2426, %v2426
        %v2468 = vmin.f32 16.0, %v2467
        %v2469 = vmul.f32 %v2468, 2.1237322e-06
        %v2470 = vadd.f32 %v2469, 0.00028619796
        %v2471 = vmul.f32 %v2468, %v2470
        %v2472 = vadd.f32 %v2471, 0.0036580483
        %v2473 = vmul.f32 %v2468, %v2472
        %v2474 = vadd.f32 %v2473, 0.05243302
        %v2475 = vmul.f32 %v2468, %v2474
        %v2476 = vadd.f32 %v2475, 0.18741608
        %v2477 = vmul.f32 %v2468, %v2476
        %v2478 = vadd.f32 %v2477, 1.1283791
        %v2479 = vmul.f32 %v2426, %v2478
        %v2480 = vmul.f32 %v2468, 3.8918573e-05
        %v2481 = vadd.f32 %v2480, 0.001143296
        %v2482 = vmul.f32 %v2468, %v2481
        %v2483 = vadd.f32 %v2482, 0.014752088
        %v2484 = vmul.f32 %v2468, %v2483
        %v2485 = vadd.f32 %v2484, 0.112945676
        %v2486 = vmul.f32 %v2468, %v2485
        %v2487 = vadd.f32 %v2486, 0.4994258
        %v2488 = vmul.f32 %v2468, %v2487
        %v2489 = vadd.f32 %v2488, 1.0
        %v2490 = vrcp.pop %v2489
        %v2491 = vmul.f32 %v2489, %v2490
        %v2492 = vsub.f32 1.0, %v2491
        %v2493 = vmul.f32 %v2490, %v2492
        %v2494 = vadd.f32 %v2490, %v2493
        %vm2495 = vweird.f32 %v2489
        %vm2496 = vweird.f32 %v2490
        %vm2497 = vmor %vm2495, %vm2496
        %v2498 = vsel %vm2497, %v2490, %v2494
        %v2499 = vand.u32 2147483647, %v2489
        %vm2500 = vcmp.eq.f32.partialorder %v2499, 8.507059e+37
        %v2501 = vand.u32 %v2489, 2147483648
        %v2502 = vor.u32 1.1754944e-38, %v2501
        %v2503 = vsel %vm2500, %v2502, %v2498
        %v2504 = vmul.f32 %v2479, %v2503
        %v2505 = vmin.f32 %v2504, 1.0
        %v2506 = vmax.f32 %v2505, -1.0
        %v2507 = vadd.f32 %v2466, 1.0
        %v2508 = vadd.f32 %v2506, 1.0
        %v2509 = vmul.f32 %v2423, %v2507
        %v2510 = vmul.f32 %v2424, %v2508
        %s2511 = scalar_lea.vmem [#allocation9], 128
        %v2512 = vld [vmem:[%s2511] sm:$0xf]
        %v2513 = vld [vmem:[%s2511 + $0x4] sm:$0xf]
        %v2514 = vld [vmem:[%s2511 + $0x8] sm:$0xf]
        %v2515 = vld [vmem:[%s2511 + $0xc] sm:$0xf]
        %v2516 = vld [vmem:[%s2511 + $0x10] sm:$0xf]
        %v2517 = vld [vmem:[%s2511 + $0x14] sm:$0xf]
        %v2518 = vld [vmem:[%s2511 + $0x18] sm:$0xf]
        %v2519 = vld [vmem:[%s2511 + $0x1c] sm:$0xf]
        %v2520 = vld [vmem:[%s2511 + $0x20] sm:$0xf]
        %v2521 = vld [vmem:[%s2511 + $0x24] sm:$0xf]
        %v2522 = vld [vmem:[%s2511 + $0x28] sm:$0xf]
        %v2523 = vld [vmem:[%s2511 + $0x2c] sm:$0xf]
        %v2524 = vld [vmem:[%s2511 + $0x30] sm:$0xf]
        %v2525 = vld [vmem:[%s2511 + $0x34] sm:$0xf]
        %v2526 = vld [vmem:[%s2511 + $0x38] sm:$0xf]
        %v2527 = vld [vmem:[%s2511 + $0x3c] sm:$0xf]
        %v2528 = vld [vmem:[%s2511 + $0x40] sm:$0xf]
        %v2529 = vld [vmem:[%s2511 + $0x44] sm:$0xf]
        %v2530 = vld [vmem:[%s2511 + $0x48] sm:$0xf]
        %v2531 = vld [vmem:[%s2511 + $0x4c] sm:$0xf]
        %v2532 = vld [vmem:[%s2511 + $0x50] sm:$0xf]
        %v2533 = vld [vmem:[%s2511 + $0x54] sm:$0xf]
        %v2534 = vld [vmem:[%s2511 + $0x58] sm:$0xf]
        %v2535 = vld [vmem:[%s2511 + $0x5c] sm:$0xf]
        %v2536 = vld [vmem:[%s2511 + $0x60] sm:$0xf]
        %v2537 = vld [vmem:[%s2511 + $0x64] sm:$0xf]
        %v2538 = vld [vmem:[%s2511 + $0x68] sm:$0xf]
        %v2539 = vld [vmem:[%s2511 + $0x6c] sm:$0xf]
        %v2540 = vld [vmem:[%s2511 + $0x70] sm:$0xf]
        %v2541 = vld [vmem:[%s2511 + $0x74] sm:$0xf]
        %v2542 = vld [vmem:[%s2511 + $0x78] sm:$0xf]
        %v2543 = vld [vmem:[%s2511 + $0x7c] sm:$0xf]
        %v2544 = vpack.c.bf16 %v2509, %v2509
        %v2545 = vpack.c.bf16 %v2510, %v2510
        %s2546 = scalar_lea.vmem %s12, 1
        %v2547 = vld [vmem:[%s2546] sm:$0x1]
        %v2549 = vperm.slane %v2547, 0
        %v2583 = vunpack.c.l.b16 %v2512
        %v2584 = vunpack.c.l.b16 %v2513
        %v2585 = vunpack.c.l.b16 %v2514
        %v2586 = vunpack.c.l.b16 %v2515
        %v2587 = vunpack.c.l.b16 %v2516
        %v2588 = vunpack.c.l.b16 %v2517
        %v2589 = vunpack.c.l.b16 %v2518
        %v2590 = vunpack.c.l.b16 %v2519
        %v2591 = vunpack.c.l.b16 %v2520
        %v2592 = vunpack.c.l.b16 %v2521
        %v2593 = vunpack.c.l.b16 %v2522
        %v2594 = vunpack.c.l.b16 %v2523
        %v2595 = vunpack.c.l.b16 %v2524
        %v2596 = vunpack.c.l.b16 %v2525
        %v2597 = vunpack.c.l.b16 %v2526
        %v2598 = vunpack.c.l.b16 %v2527
        %v2599 = vunpack.c.l.b16 %v2528
        %v2600 = vunpack.c.l.b16 %v2529
        %v2601 = vunpack.c.l.b16 %v2530
        %v2602 = vunpack.c.l.b16 %v2531
        %v2603 = vunpack.c.l.b16 %v2532
        %v2604 = vunpack.c.l.b16 %v2533
        %v2605 = vunpack.c.l.b16 %v2534
        %v2606 = vunpack.c.l.b16 %v2535
        %v2607 = vunpack.c.l.b16 %v2536
        %v2608 = vunpack.c.l.b16 %v2537
        %v2609 = vunpack.c.l.b16 %v2538
        %v2610 = vunpack.c.l.b16 %v2539
        %v2611 = vunpack.c.l.b16 %v2540
        %v2612 = vunpack.c.l.b16 %v2541
        %v2613 = vunpack.c.l.b16 %v2542
        %v2614 = vunpack.c.l.b16 %v2543
        %v2615 = vpack.c.b16 %v2584, %v2583
        %v2616 = vpack.c.b16 %v2586, %v2585
        %v2617 = vpack.c.b16 %v2588, %v2587
        %v2618 = vpack.c.b16 %v2590, %v2589
        %v2619 = vpack.c.b16 %v2592, %v2591
        %v2620 = vpack.c.b16 %v2594, %v2593
        %v2621 = vpack.c.b16 %v2596, %v2595
        %v2622 = vpack.c.b16 %v2598, %v2597
        %v2623 = vpack.c.b16 %v2600, %v2599
        %v2624 = vpack.c.b16 %v2602, %v2601
        %v2625 = vpack.c.b16 %v2604, %v2603
        %v2626 = vpack.c.b16 %v2606, %v2605
        %v2627 = vpack.c.b16 %v2608, %v2607
        %v2628 = vpack.c.b16 %v2610, %v2609
        %v2629 = vpack.c.b16 %v2612, %v2611
        %v2630 = vpack.c.b16 %v2614, %v2613
        %2647 = vmatpush.bf16.msra.mxu0 %v2622
        %2648 = vmatpush.bf16.msra.mxu0 %v2621
        %2649 = vmatpush.bf16.msra.mxu0 %v2620
        %2650 = vmatpush.bf16.msra.mxu0 %v2619
        %2651 = vmatpush.bf16.msra.mxu0 %v2618
        %2652 = vmatpush.bf16.msra.mxu0 %v2617
        %2653 = vmatpush.bf16.msra.mxu0 %v2616
        %2654 = vmatpush.bf16.msra.mxu0 %v2615
        %2655 = vmatmul.bf16.gmra.mxu0 %v2544
        %v2656 = vpop.f32.mrf.mxu0
        %v2657 = vadd.f32 %v2549, %v2656
        %v2658 = vpop.f32.mrf.mxu0
        %2659 = vdwg.mxu0
        %2660 = vmatpush.bf16.msra.mxu0 %v2630
        %2661 = vmatpush.bf16.msra.mxu0 %v2629
        %2662 = vmatpush.bf16.msra.mxu0 %v2628
        %2663 = vmatpush.bf16.msra.mxu0 %v2627
        %2664 = vmatpush.bf16.msra.mxu0 %v2626
        %2665 = vmatpush.bf16.msra.mxu0 %v2625
        %2666 = vmatpush.bf16.msra.mxu0 %v2624
        %2667 = vmatpush.bf16.msra.mxu0 %v2623
        %2668 = vmatmul.bf16.gmra.mxu0 %v2545
        %v2669 = vpop.f32.mrf.mxu0
        %v2670 = vadd.f32 %v2657, %v2669
        %v2671 = vpop.f32.mrf.mxu0
        %2672 = vdwg.mxu0
        %v2673 = vadd.f32 %v2670, %v2291
        %s2674 = scalar_lea.vmem [#allocation10], 1
        %v2675 = vld [vmem:[%s2674] sm:$0x1]
        %s2676 = scalar_lea.vmem [#allocation12], 1
        %v2677 = vld [vmem:[%s2676] sm:$0x1]
        %2678 = vadd.xlane.f32.xlu0 %v2673
        %v2679 = vpop.xlane.xlu0 %2678
        %v2680 = vmul.f32 %v2679, %v614
        %v2681 = vsub.f32 %v2673, %v2680
        %v2682 = vmul.f32 %v2681, %v2681
        %2683 = vadd.xlane.f32.xlu0 %v2682
        %v2684 = vpop.xlane.xlu0 %2683
        %v2685 = vmul.f32 %v2684, %v614
        %v2686 = vadd.f32 %v2685, 1e-12
        %v2687 = vrsqrt.pop %v2686
        %v2688 = vmul.f32 %v2687, %v2686
        %v2689 = vmul.f32 %v2688, %v2687
        %v2690 = vmul.f32 0.5, %v2689
        %v2691 = vsub.f32 1.5, %v2690
        %v2692 = vmul.f32 %v2687, %v2691
        %vm2693 = vweird.f32 %v2686
        %vm2694 = vweird.f32 %v2687
        %vm2695 = vmor %vm2693, %vm2694
        %v2696 = vsel %vm2695, %v2687, %v2692
        %v2697 = vmul.f32 %v2681, %v2696
        %v2699 = vperm.slane %v2675, 0
        %v2701 = vmul.f32 %v2697, %v2699
        %v2703 = vperm.slane %v2677, 0
        %v2705 = vadd.f32 %v2701, %v2703
        %2706 = vst [vmem:[%s601] sm:$0xff] %v2705
        %p2707 = scmp.lt.s32.totalorder %s30, 1
        %s2708 = scalar_select %p2707, %s30, 1
        %s2709 = smul.addr %s2708, 8
        %s2710 = scalar_lea.vmem %s15, %s2709
        // Predicated region
        $region109: #{distilbert_qa_forward.2} parent=79 // pred_check
          %p2711 = pneg %p368
        $region110: #{distilbert_qa_forward.2} parent=79 // pred_check_branch
          %2713 = sbr.rel (%p2711) target = $region112
        $region111: #{distilbert_qa_forward.2} parent=79 // pred_region
          _
        $region112: #{distilbert_qa_forward.2} parent=79 // pred_fallthru
          _
      $region80: #{distilbert_qa_forward.2} parent=5 // pred_fallthru
        _
      %p2714 = scmp.le.s32.totalorder 2, %s25
      // Predicated region
      $region113: #{distilbert_qa_forward.2} parent=5 // pred_check
        %p2715 = pneg %p2714
      $region114: #{distilbert_qa_forward.2} parent=5 // pred_check_branch
        %2717 = sbr.rel (%p2715) target = $region116
      $region115: #{distilbert_qa_forward.2} parent=5 // pred_region
        %s2718 = ssub.s32 %s25, 2
        // Predicated region
        $region117: #{distilbert_qa_forward.2} parent=115 // pred_check
          %p2719 = pneg %p374
        $region118: #{distilbert_qa_forward.2} parent=115 // pred_check_branch
          %2721 = sbr.rel (%p2719) target = $region120
        $region119: #{distilbert_qa_forward.2} parent=115 // pred_region
          %p2722 = scmp.lt.s32.totalorder %s31, 1
          %s2723 = scalar_select %p2722, %s31, 1
          %s2724 = smul.addr %s2723, 8
          %s2725 = scalar_lea.vmem %s15, %s2724
        $region120: #{distilbert_qa_forward.2} parent=115 // pred_fallthru
          _
      $region116: #{distilbert_qa_forward.2} parent=5 // pred_fallthru
        _
    $region6: #{distilbert_qa_forward.2} parent=1 // loop_footer
      %s29 = sadd.s32 1, %s25
    $region7: #{distilbert_qa_forward.2} parent=1 // loop_footer_branch
      %24 = sbr.rel target = $region3
    $region8: #{distilbert_qa_forward.2} parent=1 // loop_exit
      _
    %2726 = vsyncpa [#allocation3], 1
    %s2727 = scalar_lea.sflag [#allocation3], 1
    %2728 = vsyncpa %s2727, 1
    %2729 = vsyncpa [#allocation5], 1
    %2730 = vsyncpa [#allocation8], 1
    %2731 = vsyncpa [#allocation11], 1

// kernel: distilbert_qa_forward.3
$region0: #{distilbert_qa_forward.3}
  #allocation0 [shape = 'u32[]', space=smem, size = 0x4, offset = 0x4, fixed_abs, tag = 'smem constant byte address 0x4 - core index']
  #allocation1 [shape = 'u32[72,128]{1,0:T(1,128)}', space=vmem, size = 0x9000, scoped, tag = 'internal scratch']
  %s0 = inlined_call_operand.vmem [shape: f32[2,8,128], index: 0, kind: input, shape index: {}]
  %s1 = inlined_call_operand.hbm [shape: f32[1,128], index: 1, kind: input, shape index: {}]
  %s2 = inlined_call_operand.hbm [shape: f32[1,128], index: 2, kind: input, shape index: {}]
  %s3 = inlined_call_operand.hbm [shape: bf16[2,128,384], index: 3, kind: input, shape index: {}]
  %s4 = inlined_call_operand.vmem [shape: f32[2,1,384], index: 4, kind: input, shape index: {}]
  %s5 = inlined_call_operand.hbm [shape: bf16[2,128,128], index: 5, kind: input, shape index: {}]
  %s6 = inlined_call_operand.vmem [shape: f32[2,1,128], index: 6, kind: input, shape index: {}]
  %s7 = inlined_call_operand.vmem [shape: f32[2,1,128], index: 7, kind: input, shape index: {}]
  %s8 = inlined_call_operand.vmem [shape: f32[2,1,128], index: 8, kind: input, shape index: {}]
  %s9 = inlined_call_operand.vmem [shape: bf16[2,128,256], index: 9, kind: input, shape index: {}]
  %s10 = inlined_call_operand.vmem [shape: f32[2,1,256], index: 10, kind: input, shape index: {}]
  %s11 = inlined_call_operand.hbm [shape: bf16[2,256,128], index: 11, kind: input, shape index: {}]
  %s12 = inlined_call_operand.vmem [shape: f32[2,1,128], index: 12, kind: input, shape index: {}]
  %s13 = inlined_call_operand.vmem [shape: f32[2,1,128], index: 13, kind: input, shape index: {}]
  %s14 = inlined_call_operand.vmem [shape: f32[2,1,128], index: 14, kind: input, shape index: {}]
  %s15 = inlined_call_operand.vmem [shape: f32[2,8,128], index: 15, kind: output, shape index: {}]
  %s16 = sld [smem:[#allocation0]]
  $region113: #{distilbert_qa_forward.3} parent=0
    _
  %s18 = ssub.s32 1, %s16
  %s19 = scalar_select 0, %s18, %s16
  $region1: #{distilbert_qa_forward.3} parent=0
    #allocation2 [shape = 'u8[512]{0}', space=vmem, size = 0x400, scoped, tag = 'input window, operand 1, single buffered']
    #allocation3 [shape = 's32[2]{0}', space=sflag, size = 0x8, scoped, tag = 'scoped memory for distilbert_qa_forward.3']
    #allocation4 [shape = 'u8[512]{0}', space=vmem, size = 0x400, scoped, tag = 'input window, operand 2, single buffered']
    #allocation5 [shape = 's32[1]{0}', space=sflag, size = 0x4, scoped, tag = 'scoped memory for distilbert_qa_forward.3']
    #allocation6 [shape = 'u8[196608]{0}', space=vmem, size = 0x30000, scoped, tag = 'input window, operand 3, single buffered']
    #allocation7 [shape = 'u8[65536]{0}', space=vmem, size = 0x10000, scoped, tag = 'input window, operand 5, single buffered']
    #allocation8 [shape = 's32[1]{0}', space=sflag, size = 0x4, scoped, tag = 'scoped memory for distilbert_qa_forward.3']
    #allocation9 [shape = 'u8[131072]{0}', space=vmem, size = 0x20000, scoped, tag = 'input window, operand 11, single buffered']
    %20 = vsyncpa [#allocation3], 0
    %21 = vsyncpa [#allocation5], 0
    %22 = vsyncpa [#allocation8], 0
    loop: start=0, step=1, limit=4
    $region2: #{distilbert_qa_forward.3} parent=1 // loop_pre_header
      _
    $region3: #{distilbert_qa_forward.3} parent=1 // loop_header
      %s24 = sphi 0, %s28
      %p25 = scmp.ge.s32.totalorder %s24, 4
      %s34 = sphi 0, %s36
      %s37 = sphi 0, %s34
      %s38 = sphi 0, %s37
      %s54 = sphi 0, %s38
      %s58 = sphi 0, %s58
      %s60 = sphi 0, %s58
      %s61 = sphi 0, %s60
      %s75 = sphi 0, %s61
      %s79 = sphi 0, %s79
      %s81 = sphi 0, %s79
      %s82 = sphi 0, %s81
      %s96 = sphi 0, %s82
      %s100 = sphi 0, %s100
      %s102 = sphi 0, %s100
      %s103 = sphi 0, %s102
      %s117 = sphi 0, %s103
      %s121 = sphi 0, %s121
      %s123 = sphi 0, %s121
      %s124 = sphi 0, %s123
      %s138 = sphi 0, %s124
      %s142 = sphi 0, %s142
      %s144 = sphi 0, %s142
      %s145 = sphi 0, %s144
      %s159 = sphi 0, %s145
      %s163 = sphi 0, %s163
      %s165 = sphi 0, %s163
      %s166 = sphi 0, %s165
      %s180 = sphi 0, %s166
      %s184 = sphi 0, %s184
      %s186 = sphi 0, %s184
      %s187 = sphi 0, %s186
      %s201 = sphi 0, %s187
      %s205 = sphi 0, %s205
      %s207 = sphi 0, %s205
      %s208 = sphi 0, %s207
      %s222 = sphi 0, %s208
      %s226 = sphi 0, %s226
      %s228 = sphi 0, %s226
      %s229 = sphi 0, %s228
      %s243 = sphi 0, %s229
      %s247 = sphi 0, %s247
      %s249 = sphi 0, %s247
      %s250 = sphi 0, %s249
      %s264 = sphi 0, %s250
      %s268 = sphi 0, %s268
      %s270 = sphi 0, %s268
      %s271 = sphi 0, %s270
      %s285 = sphi 0, %s271
      %s289 = sphi 0, %s289
      %s291 = sphi 0, %s289
      %s292 = sphi 0, %s291
      %s306 = sphi 0, %s292
      %s310 = sphi 0, %s310
      %s312 = sphi 0, %s310
      %s313 = sphi 0, %s312
      %s327 = sphi 0, %s313
      %s331 = sphi 0, %s331
      %s333 = sphi 0, %s331
      %s334 = sphi 0, %s333
      %s348 = sphi 0, %s334
      %s354 = sphi 0, %s356
      %s357 = sphi 0, %s354
      %s358 = sphi 0, %s357
      %s374 = sphi 0, %s358
    $region4: #{distilbert_qa_forward.3} parent=1 // loop_header_branch
      %27 = sbr.rel (%p25) target = $region8
    $region5: #{distilbert_qa_forward.3} parent=1 // loop_body
      %s29 = ssub.s32 %s24, 1
      %s30 = ssub.s32 %s24, 2
      %s31 = sadd.s32 %s24, 1
      %s32 = ssub.s32 %s24, %s31
      %p33 = scmp.eq.s32.totalorder %s32, 0
      %s35 = sadd.s32 %s34, 1
      %s36 = scalar_select %p33, %s34, %s35
      %p39 = pneg %p33
      %p40 = scmp.eq.s32.totalorder %s24, 1
      %p41 = por %p39, %p40
      %p42 = scmp.ne.s32.totalorder %s34, %s37
      %p43 = scmp.eq.s32.totalorder %s24, 0
      %p44 = por %p42, %p43
      %p45 = scmp.ne.s32.totalorder %s34, %s37
      %p46 = scmp.eq.s32.totalorder %s29, 1
      %p47 = por %p45, %p46
      %p48 = scmp.ne.s32.totalorder %s37, %s38
      %p49 = scmp.eq.s32.totalorder %s29, 0
      %p50 = por %p48, %p49
      %p51 = scmp.ne.s32.totalorder %s37, %s38
      %p52 = scmp.eq.s32.totalorder %s30, 1
      %p53 = por %p51, %p52
      %p55 = scmp.ne.s32.totalorder %s38, %s54
      %p56 = scmp.eq.s32.totalorder %s30, 0
      %p57 = por %p55, %p56
      %s59 = sadd.s32 %s58, 1
      %p62 = scmp.eq.s32.totalorder %s24, 1
      %p63 = scmp.ne.s32.totalorder %s58, %s60
      %p64 = scmp.eq.s32.totalorder %s24, 0
      %p65 = por %p63, %p64
      %p66 = scmp.ne.s32.totalorder %s58, %s60
      %p67 = scmp.eq.s32.totalorder %s29, 1
      %p68 = por %p66, %p67
      %p69 = scmp.ne.s32.totalorder %s60, %s61
      %p70 = scmp.eq.s32.totalorder %s29, 0
      %p71 = por %p69, %p70
      %p72 = scmp.ne.s32.totalorder %s60, %s61
      %p73 = scmp.eq.s32.totalorder %s30, 1
      %p74 = por %p72, %p73
      %p76 = scmp.ne.s32.totalorder %s61, %s75
      %p77 = scmp.eq.s32.totalorder %s30, 0
      %p78 = por %p76, %p77
      %s80 = sadd.s32 %s79, 1
      %p83 = scmp.eq.s32.totalorder %s24, 1
      %p84 = scmp.ne.s32.totalorder %s79, %s81
      %p85 = scmp.eq.s32.totalorder %s24, 0
      %p86 = por %p84, %p85
      %p87 = scmp.ne.s32.totalorder %s79, %s81
      %p88 = scmp.eq.s32.totalorder %s29, 1
      %p89 = por %p87, %p88
      %p90 = scmp.ne.s32.totalorder %s81, %s82
      %p91 = scmp.eq.s32.totalorder %s29, 0
      %p92 = por %p90, %p91
      %p93 = scmp.ne.s32.totalorder %s81, %s82
      %p94 = scmp.eq.s32.totalorder %s30, 1
      %p95 = por %p93, %p94
      %p97 = scmp.ne.s32.totalorder %s82, %s96
      %p98 = scmp.eq.s32.totalorder %s30, 0
      %p99 = por %p97, %p98
      %s101 = sadd.s32 %s100, 1
      %p104 = scmp.eq.s32.totalorder %s24, 1
      %p105 = scmp.ne.s32.totalorder %s100, %s102
      %p106 = scmp.eq.s32.totalorder %s24, 0
      %p107 = por %p105, %p106
      %p108 = scmp.ne.s32.totalorder %s100, %s102
      %p109 = scmp.eq.s32.totalorder %s29, 1
      %p110 = por %p108, %p109
      %p111 = scmp.ne.s32.totalorder %s102, %s103
      %p112 = scmp.eq.s32.totalorder %s29, 0
      %p113 = por %p111, %p112
      %p114 = scmp.ne.s32.totalorder %s102, %s103
      %p115 = scmp.eq.s32.totalorder %s30, 1
      %p116 = por %p114, %p115
      %p118 = scmp.ne.s32.totalorder %s103, %s117
      %p119 = scmp.eq.s32.totalorder %s30, 0
      %p120 = por %p118, %p119
      %s122 = sadd.s32 %s121, 1
      %p125 = scmp.eq.s32.totalorder %s24, 1
      %p126 = scmp.ne.s32.totalorder %s121, %s123
      %p127 = scmp.eq.s32.totalorder %s24, 0
      %p128 = por %p126, %p127
      %p129 = scmp.ne.s32.totalorder %s121, %s123
      %p130 = scmp.eq.s32.totalorder %s29, 1
      %p131 = por %p129, %p130
      %p132 = scmp.ne.s32.totalorder %s123, %s124
      %p133 = scmp.eq.s32.totalorder %s29, 0
      %p134 = por %p132, %p133
      %p135 = scmp.ne.s32.totalorder %s123, %s124
      %p136 = scmp.eq.s32.totalorder %s30, 1
      %p137 = por %p135, %p136
      %p139 = scmp.ne.s32.totalorder %s124, %s138
      %p140 = scmp.eq.s32.totalorder %s30, 0
      %p141 = por %p139, %p140
      %s143 = sadd.s32 %s142, 1
      %p146 = scmp.eq.s32.totalorder %s24, 1
      %p147 = scmp.ne.s32.totalorder %s142, %s144
      %p148 = scmp.eq.s32.totalorder %s24, 0
      %p149 = por %p147, %p148
      %p150 = scmp.ne.s32.totalorder %s142, %s144
      %p151 = scmp.eq.s32.totalorder %s29, 1
      %p152 = por %p150, %p151
      %p153 = scmp.ne.s32.totalorder %s144, %s145
      %p154 = scmp.eq.s32.totalorder %s29, 0
      %p155 = por %p153, %p154
      %p156 = scmp.ne.s32.totalorder %s144, %s145
      %p157 = scmp.eq.s32.totalorder %s30, 1
      %p158 = por %p156, %p157
      %p160 = scmp.ne.s32.totalorder %s145, %s159
      %p161 = scmp.eq.s32.totalorder %s30, 0
      %p162 = por %p160, %p161
      %s164 = sadd.s32 %s163, 1
      %p167 = scmp.eq.s32.totalorder %s24, 1
      %p168 = scmp.ne.s32.totalorder %s163, %s165
      %p169 = scmp.eq.s32.totalorder %s24, 0
      %p170 = por %p168, %p169
      %p171 = scmp.ne.s32.totalorder %s163, %s165
      %p172 = scmp.eq.s32.totalorder %s29, 1
      %p173 = por %p171, %p172
      %p174 = scmp.ne.s32.totalorder %s165, %s166
      %p175 = scmp.eq.s32.totalorder %s29, 0
      %p176 = por %p174, %p175
      %p177 = scmp.ne.s32.totalorder %s165, %s166
      %p178 = scmp.eq.s32.totalorder %s30, 1
      %p179 = por %p177, %p178
      %p181 = scmp.ne.s32.totalorder %s166, %s180
      %p182 = scmp.eq.s32.totalorder %s30, 0
      %p183 = por %p181, %p182
      %s185 = sadd.s32 %s184, 1
      %p188 = scmp.eq.s32.totalorder %s24, 1
      %p189 = scmp.ne.s32.totalorder %s184, %s186
      %p190 = scmp.eq.s32.totalorder %s24, 0
      %p191 = por %p189, %p190
      %p192 = scmp.ne.s32.totalorder %s184, %s186
      %p193 = scmp.eq.s32.totalorder %s29, 1
      %p194 = por %p192, %p193
      %p195 = scmp.ne.s32.totalorder %s186, %s187
      %p196 = scmp.eq.s32.totalorder %s29, 0
      %p197 = por %p195, %p196
      %p198 = scmp.ne.s32.totalorder %s186, %s187
      %p199 = scmp.eq.s32.totalorder %s30, 1
      %p200 = por %p198, %p199
      %p202 = scmp.ne.s32.totalorder %s187, %s201
      %p203 = scmp.eq.s32.totalorder %s30, 0
      %p204 = por %p202, %p203
      %s206 = sadd.s32 %s205, 1
      %p209 = scmp.eq.s32.totalorder %s24, 1
      %p210 = scmp.ne.s32.totalorder %s205, %s207
      %p211 = scmp.eq.s32.totalorder %s24, 0
      %p212 = por %p210, %p211
      %p213 = scmp.ne.s32.totalorder %s205, %s207
      %p214 = scmp.eq.s32.totalorder %s29, 1
      %p215 = por %p213, %p214
      %p216 = scmp.ne.s32.totalorder %s207, %s208
      %p217 = scmp.eq.s32.totalorder %s29, 0
      %p218 = por %p216, %p217
      %p219 = scmp.ne.s32.totalorder %s207, %s208
      %p220 = scmp.eq.s32.totalorder %s30, 1
      %p221 = por %p219, %p220
      %p223 = scmp.ne.s32.totalorder %s208, %s222
      %p224 = scmp.eq.s32.totalorder %s30, 0
      %p225 = por %p223, %p224
      %s227 = sadd.s32 %s226, 1
      %p230 = scmp.eq.s32.totalorder %s24, 1
      %p231 = scmp.ne.s32.totalorder %s226, %s228
      %p232 = scmp.eq.s32.totalorder %s24, 0
      %p233 = por %p231, %p232
      %p234 = scmp.ne.s32.totalorder %s226, %s228
      %p235 = scmp.eq.s32.totalorder %s29, 1
      %p236 = por %p234, %p235
      %p237 = scmp.ne.s32.totalorder %s228, %s229
      %p238 = scmp.eq.s32.totalorder %s29, 0
      %p239 = por %p237, %p238
      %p240 = scmp.ne.s32.totalorder %s228, %s229
      %p241 = scmp.eq.s32.totalorder %s30, 1
      %p242 = por %p240, %p241
      %p244 = scmp.ne.s32.totalorder %s229, %s243
      %p245 = scmp.eq.s32.totalorder %s30, 0
      %p246 = por %p244, %p245
      %s248 = sadd.s32 %s247, 1
      %p251 = scmp.eq.s32.totalorder %s24, 1
      %p252 = scmp.ne.s32.totalorder %s247, %s249
      %p253 = scmp.eq.s32.totalorder %s24, 0
      %p254 = por %p252, %p253
      %p255 = scmp.ne.s32.totalorder %s247, %s249
      %p256 = scmp.eq.s32.totalorder %s29, 1
      %p257 = por %p255, %p256
      %p258 = scmp.ne.s32.totalorder %s249, %s250
      %p259 = scmp.eq.s32.totalorder %s29, 0
      %p260 = por %p258, %p259
      %p261 = scmp.ne.s32.totalorder %s249, %s250
      %p262 = scmp.eq.s32.totalorder %s30, 1
      %p263 = por %p261, %p262
      %p265 = scmp.ne.s32.totalorder %s250, %s264
      %p266 = scmp.eq.s32.totalorder %s30, 0
      %p267 = por %p265, %p266
      %s269 = sadd.s32 %s268, 1
      %p272 = scmp.eq.s32.totalorder %s24, 1
      %p273 = scmp.ne.s32.totalorder %s268, %s270
      %p274 = scmp.eq.s32.totalorder %s24, 0
      %p275 = por %p273, %p274
      %p276 = scmp.ne.s32.totalorder %s268, %s270
      %p277 = scmp.eq.s32.totalorder %s29, 1
      %p278 = por %p276, %p277
      %p279 = scmp.ne.s32.totalorder %s270, %s271
      %p280 = scmp.eq.s32.totalorder %s29, 0
      %p281 = por %p279, %p280
      %p282 = scmp.ne.s32.totalorder %s270, %s271
      %p283 = scmp.eq.s32.totalorder %s30, 1
      %p284 = por %p282, %p283
      %p286 = scmp.ne.s32.totalorder %s271, %s285
      %p287 = scmp.eq.s32.totalorder %s30, 0
      %p288 = por %p286, %p287
      %s290 = sadd.s32 %s289, 1
      %p293 = scmp.eq.s32.totalorder %s24, 1
      %p294 = scmp.ne.s32.totalorder %s289, %s291
      %p295 = scmp.eq.s32.totalorder %s24, 0
      %p296 = por %p294, %p295
      %p297 = scmp.ne.s32.totalorder %s289, %s291
      %p298 = scmp.eq.s32.totalorder %s29, 1
      %p299 = por %p297, %p298
      %p300 = scmp.ne.s32.totalorder %s291, %s292
      %p301 = scmp.eq.s32.totalorder %s29, 0
      %p302 = por %p300, %p301
      %p303 = scmp.ne.s32.totalorder %s291, %s292
      %p304 = scmp.eq.s32.totalorder %s30, 1
      %p305 = por %p303, %p304
      %p307 = scmp.ne.s32.totalorder %s292, %s306
      %p308 = scmp.eq.s32.totalorder %s30, 0
      %p309 = por %p307, %p308
      %s311 = sadd.s32 %s310, 1
      %p314 = scmp.eq.s32.totalorder %s24, 1
      %p315 = scmp.ne.s32.totalorder %s310, %s312
      %p316 = scmp.eq.s32.totalorder %s24, 0
      %p317 = por %p315, %p316
      %p318 = scmp.ne.s32.totalorder %s310, %s312
      %p319 = scmp.eq.s32.totalorder %s29, 1
      %p320 = por %p318, %p319
      %p321 = scmp.ne.s32.totalorder %s312, %s313
      %p322 = scmp.eq.s32.totalorder %s29, 0
      %p323 = por %p321, %p322
      %p324 = scmp.ne.s32.totalorder %s312, %s313
      %p325 = scmp.eq.s32.totalorder %s30, 1
      %p326 = por %p324, %p325
      %p328 = scmp.ne.s32.totalorder %s313, %s327
      %p329 = scmp.eq.s32.totalorder %s30, 0
      %p330 = por %p328, %p329
      %s332 = sadd.s32 %s331, 1
      %p335 = scmp.eq.s32.totalorder %s24, 1
      %p336 = scmp.ne.s32.totalorder %s331, %s333
      %p337 = scmp.eq.s32.totalorder %s24, 0
      %p338 = por %p336, %p337
      %p339 = scmp.ne.s32.totalorder %s331, %s333
      %p340 = scmp.eq.s32.totalorder %s29, 1
      %p341 = por %p339, %p340
      %p342 = scmp.ne.s32.totalorder %s333, %s334
      %p343 = scmp.eq.s32.totalorder %s29, 0
      %p344 = por %p342, %p343
      %p345 = scmp.ne.s32.totalorder %s333, %s334
      %p346 = scmp.eq.s32.totalorder %s30, 1
      %p347 = por %p345, %p346
      %p349 = scmp.ne.s32.totalorder %s334, %s348
      %p350 = scmp.eq.s32.totalorder %s30, 0
      %p351 = por %p349, %p350
      %s352 = ssub.s32 %s24, %s31
      %p353 = scmp.eq.s32.totalorder %s352, 0
      %s355 = sadd.s32 %s354, 1
      %s356 = scalar_select %p353, %s354, %s355
      %p359 = pneg %p353
      %p360 = scmp.eq.s32.totalorder %s24, 1
      %p361 = por %p359, %p360
      %p362 = scmp.ne.s32.totalorder %s354, %s357
      %p363 = scmp.eq.s32.totalorder %s24, 0
      %p364 = por %p362, %p363
      %p365 = scmp.ne.s32.totalorder %s354, %s357
      %p366 = scmp.eq.s32.totalorder %s29, 1
      %p367 = por %p365, %p366
      %p368 = scmp.ne.s32.totalorder %s357, %s358
      %p369 = scmp.eq.s32.totalorder %s29, 0
      %p370 = por %p368, %p369
      %p371 = scmp.ne.s32.totalorder %s357, %s358
      %p372 = scmp.eq.s32.totalorder %s30, 1
      %p373 = por %p371, %p372
      %p375 = scmp.ne.s32.totalorder %s358, %s374
      %p376 = scmp.eq.s32.totalorder %s30, 0
      %p377 = por %p375, %p376
      %p378 = scmp.le.s32.totalorder 1, %s24
      %p379 = scmp.lt.s32.totalorder %s24, 3
      %p380 = pnand %p378, %p379
      %p381 = pneg %p380
      // Predicated region
      $region9: #{distilbert_qa_forward.3} parent=5 // pred_check
        _
      $region10: #{distilbert_qa_forward.3} parent=5 // pred_check_branch
        %383 = sbr.rel (%p380) target = $region12
      $region11: #{distilbert_qa_forward.3} parent=5 // pred_region
        %s384 = ssub.s32 %s24, 1
        // Predicated region
        $region13: #{distilbert_qa_forward.3} parent=11 // pred_check
          %p385 = pneg %p71
        $region14: #{distilbert_qa_forward.3} parent=11 // pred_check_branch
          %387 = sbr.rel (%p385) target = $region16
        $region15: #{distilbert_qa_forward.3} parent=11 // pred_region
          %389 = vsyncadd [#allocation3], 0
          %s391 = sshll.u32 %s1, 4
          %s392 = int_to_ptr.hbm [resolvable:$true] %s391
          %s393 = sshll.u32 [#allocation2], 4
          %s394 = int_to_ptr.vmem [resolvable:$true] %s393
          %396 = dma.hbm_to_vmem [thread:$0]  %s392, 16, %s394, [#allocation3]
        $region16: #{distilbert_qa_forward.3} parent=11 // pred_fallthru
          _
        // Predicated region
        $region17: #{distilbert_qa_forward.3} parent=11 // pred_check
          %p397 = pneg %p92
        $region18: #{distilbert_qa_forward.3} parent=11 // pred_check_branch
          %399 = sbr.rel (%p397) target = $region20
        $region19: #{distilbert_qa_forward.3} parent=11 // pred_region
          %401 = vsyncadd [#allocation5], 0
          %s403 = sshll.u32 %s2, 4
          %s404 = int_to_ptr.hbm [resolvable:$true] %s403
          %s405 = sshll.u32 [#allocation4], 4
          %s406 = int_to_ptr.vmem [resolvable:$true] %s405
          %408 = dma.hbm_to_vmem [thread:$0]  %s404, 16, %s406, [#allocation5]
        $region20: #{distilbert_qa_forward.3} parent=11 // pred_fallthru
          _
        // Predicated region
        $region21: #{distilbert_qa_forward.3} parent=11 // pred_check
          %p409 = pneg %p113
        $region22: #{distilbert_qa_forward.3} parent=11 // pred_check_branch
          %411 = sbr.rel (%p409) target = $region24
        $region23: #{distilbert_qa_forward.3} parent=11 // pred_region
          %413 = vsyncadd [#allocation5], 0
          %s414 = sshll.u32 %s3, 4
          %s415 = int_to_ptr.hbm [resolvable:$true] %s414
          %s416 = sshll.u32 [#allocation6], 4
          %s417 = int_to_ptr.vmem [resolvable:$true] %s416
          %422 = dma.hbm_to_vmem [thread:$0]  %s415, 6144, %s417, [#allocation5], 192, 192, 12
        $region24: #{distilbert_qa_forward.3} parent=11 // pred_fallthru
          _
        // Predicated region
        $region25: #{distilbert_qa_forward.3} parent=11 // pred_check
          %p423 = pneg %p134
        $region26: #{distilbert_qa_forward.3} parent=11 // pred_check_branch
          %425 = sbr.rel (%p423) target = $region28
        $region27: #{distilbert_qa_forward.3} parent=11 // pred_region
          _
        $region28: #{distilbert_qa_forward.3} parent=11 // pred_fallthru
          _
        // Predicated region
        $region29: #{distilbert_qa_forward.3} parent=11 // pred_check
          %p426 = pneg %p155
        $region30: #{distilbert_qa_forward.3} parent=11 // pred_check_branch
          %428 = sbr.rel (%p426) target = $region32
        $region31: #{distilbert_qa_forward.3} parent=11 // pred_region
          %430 = vsyncadd [#allocation8], 0
          %s431 = sshll.u32 %s5, 4
          %s432 = int_to_ptr.hbm [resolvable:$true] %s431
          %s433 = sshll.u32 [#allocation7], 4
          %s434 = int_to_ptr.vmem [resolvable:$true] %s433
          %439 = dma.hbm_to_vmem [thread:$0]  %s432, 2048, %s434, [#allocation8], 64, 64, 4
        $region32: #{distilbert_qa_forward.3} parent=11 // pred_fallthru
          _
        // Predicated region
        $region33: #{distilbert_qa_forward.3} parent=11 // pred_check
          %p440 = pneg %p176
        $region34: #{distilbert_qa_forward.3} parent=11 // pred_check_branch
          %442 = sbr.rel (%p440) target = $region36
        $region35: #{distilbert_qa_forward.3} parent=11 // pred_region
          _
        $region36: #{distilbert_qa_forward.3} parent=11 // pred_fallthru
          _
        // Predicated region
        $region37: #{distilbert_qa_forward.3} parent=11 // pred_check
          %p443 = pneg %p197
        $region38: #{distilbert_qa_forward.3} parent=11 // pred_check_branch
          %445 = sbr.rel (%p443) target = $region40
        $region39: #{distilbert_qa_forward.3} parent=11 // pred_region
          _
        $region40: #{distilbert_qa_forward.3} parent=11 // pred_fallthru
          _
        // Predicated region
        $region41: #{distilbert_qa_forward.3} parent=11 // pred_check
          %p446 = pneg %p218
        $region42: #{distilbert_qa_forward.3} parent=11 // pred_check_branch
          %448 = sbr.rel (%p446) target = $region44
        $region43: #{distilbert_qa_forward.3} parent=11 // pred_region
          _
        $region44: #{distilbert_qa_forward.3} parent=11 // pred_fallthru
          _
        // Predicated region
        $region45: #{distilbert_qa_forward.3} parent=11 // pred_check
          %p449 = pneg %p239
        $region46: #{distilbert_qa_forward.3} parent=11 // pred_check_branch
          %451 = sbr.rel (%p449) target = $region48
        $region47: #{distilbert_qa_forward.3} parent=11 // pred_region
          _
        $region48: #{distilbert_qa_forward.3} parent=11 // pred_fallthru
          _
        // Predicated region
        $region49: #{distilbert_qa_forward.3} parent=11 // pred_check
          %p452 = pneg %p260
        $region50: #{distilbert_qa_forward.3} parent=11 // pred_check_branch
          %454 = sbr.rel (%p452) target = $region52
        $region51: #{distilbert_qa_forward.3} parent=11 // pred_region
          _
        $region52: #{distilbert_qa_forward.3} parent=11 // pred_fallthru
          _
        // Predicated region
        $region53: #{distilbert_qa_forward.3} parent=11 // pred_check
          %p455 = pneg %p281
        $region54: #{distilbert_qa_forward.3} parent=11 // pred_check_branch
          %457 = sbr.rel (%p455) target = $region56
        $region55: #{distilbert_qa_forward.3} parent=11 // pred_region
          %459 = vsyncadd [#allocation8], 0
          %s460 = sshll.u32 %s11, 4
          %s461 = int_to_ptr.hbm [resolvable:$true] %s460
          %s462 = sshll.u32 [#allocation9], 4
          %s463 = int_to_ptr.vmem [resolvable:$true] %s462
          %468 = dma.hbm_to_vmem [thread:$0]  %s461, 4096, %s463, [#allocation8], 64, 64, 4
        $region56: #{distilbert_qa_forward.3} parent=11 // pred_fallthru
          _
        // Predicated region
        $region57: #{distilbert_qa_forward.3} parent=11 // pred_check
          %p469 = pneg %p302
        $region58: #{distilbert_qa_forward.3} parent=11 // pred_check_branch
          %471 = sbr.rel (%p469) target = $region60
        $region59: #{distilbert_qa_forward.3} parent=11 // pred_region
          _
        $region60: #{distilbert_qa_forward.3} parent=11 // pred_fallthru
          _
        // Predicated region
        $region61: #{distilbert_qa_forward.3} parent=11 // pred_check
          %p472 = pneg %p323
        $region62: #{distilbert_qa_forward.3} parent=11 // pred_check_branch
          %474 = sbr.rel (%p472) target = $region64
        $region63: #{distilbert_qa_forward.3} parent=11 // pred_region
          _
        $region64: #{distilbert_qa_forward.3} parent=11 // pred_fallthru
          _
        // Predicated region
        $region65: #{distilbert_qa_forward.3} parent=11 // pred_check
          %p475 = pneg %p344
        $region66: #{distilbert_qa_forward.3} parent=11 // pred_check_branch
          %477 = sbr.rel (%p475) target = $region68
        $region67: #{distilbert_qa_forward.3} parent=11 // pred_region
          _
        $region68: #{distilbert_qa_forward.3} parent=11 // pred_fallthru
          _
      $region12: #{distilbert_qa_forward.3} parent=5 // pred_fallthru
        _
      %p478 = scmp.lt.s32.totalorder %s24, 2
      // Predicated region
      $region69: #{distilbert_qa_forward.3} parent=5 // pred_check
        %p479 = pneg %p478
      $region70: #{distilbert_qa_forward.3} parent=5 // pred_check_branch
        %481 = sbr.rel (%p479) target = $region72
      $region71: #{distilbert_qa_forward.3} parent=5 // pred_region
        // Predicated region
        $region73: #{distilbert_qa_forward.3} parent=71 // pred_check
          %p482 = pneg %p44
        $region74: #{distilbert_qa_forward.3} parent=71 // pred_check_branch
          %484 = sbr.rel (%p482) target = $region76
        $region75: #{distilbert_qa_forward.3} parent=71 // pred_region
          %p485 = scmp.lt.s32.totalorder %s24, 1
          %s486 = scalar_select %p485, %s24, 1
          %s487 = smul.addr %s486, 8
          %s488 = scalar_lea.vmem %s0, %s487
        $region76: #{distilbert_qa_forward.3} parent=71 // pred_fallthru
          _
      $region72: #{distilbert_qa_forward.3} parent=5 // pred_fallthru
        _
      %p489 = scmp.le.s32.totalorder 1, %s24
      %p490 = scmp.lt.s32.totalorder %s24, 3
      %p491 = pnand %p489, %p490
      %p492 = pneg %p491
      // Predicated region
      $region77: #{distilbert_qa_forward.3} parent=5 // pred_check
        _
      $region78: #{distilbert_qa_forward.3} parent=5 // pred_check_branch
        %494 = sbr.rel (%p491) target = $region80
      $region79: #{distilbert_qa_forward.3} parent=5 // pred_region
        %s495 = ssub.s32 %s24, 1
        // Predicated region
        $region81: #{distilbert_qa_forward.3} parent=79 // pred_check
          %p496 = pneg %p71
        $region82: #{distilbert_qa_forward.3} parent=79 // pred_check_branch
          %498 = sbr.rel (%p496) target = $region84
        $region83: #{distilbert_qa_forward.3} parent=79 // pred_region
          %500 = dma.done [#allocation3], 16
        $region84: #{distilbert_qa_forward.3} parent=79 // pred_fallthru
          _
        // Predicated region
        $region85: #{distilbert_qa_forward.3} parent=79 // pred_check
          %p501 = pneg %p92
        $region86: #{distilbert_qa_forward.3} parent=79 // pred_check_branch
          %503 = sbr.rel (%p501) target = $region88
        $region87: #{distilbert_qa_forward.3} parent=79 // pred_region
          %505 = dma.done [#allocation5], 16
        $region88: #{distilbert_qa_forward.3} parent=79 // pred_fallthru
          _
        // Predicated region
        $region89: #{distilbert_qa_forward.3} parent=79 // pred_check
          %p506 = pneg %p113
        $region90: #{distilbert_qa_forward.3} parent=79 // pred_check_branch
          %508 = sbr.rel (%p506) target = $region92
        $region91: #{distilbert_qa_forward.3} parent=79 // pred_region
          %510 = dma.done [#allocation5], 6144
        $region92: #{distilbert_qa_forward.3} parent=79 // pred_fallthru
          _
        // Predicated region
        $region93: #{distilbert_qa_forward.3} parent=79 // pred_check
          %p511 = pneg %p155
        $region94: #{distilbert_qa_forward.3} parent=79 // pred_check_branch
          %513 = sbr.rel (%p511) target = $region96
        $region95: #{distilbert_qa_forward.3} parent=79 // pred_region
          %515 = dma.done [#allocation8], 2048
        $region96: #{distilbert_qa_forward.3} parent=79 // pred_fallthru
          _
        // Predicated region
        $region97: #{distilbert_qa_forward.3} parent=79 // pred_check
          %p516 = pneg %p281
        $region98: #{distilbert_qa_forward.3} parent=79 // pred_check_branch
          %518 = sbr.rel (%p516) target = $region100
        $region99: #{distilbert_qa_forward.3} parent=79 // pred_region
          %520 = dma.done [#allocation8], 4096
        $region100: #{distilbert_qa_forward.3} parent=79 // pred_fallthru
          _
        %p521 = scmp.lt.s32.totalorder %s29, 1
        %s522 = scalar_select %p521, %s29, 1
        %s523 = smul.addr %s522, 8
        %s524 = scalar_lea.vmem %s0, %s523
        %p525 = pneg %p50
        %p526 = pneg %p47
        %p527 = pneg %p71
        %p528 = pneg %p68
        %p529 = pneg %p92
        %p530 = pneg %p89
        %p531 = pneg %p113
        %p532 = pneg %p110
        %p533 = pneg %p134
        %p534 = pneg %p131
        %p535 = pneg %p155
        %p536 = pneg %p152
        %p537 = pneg %p176
        %p538 = pneg %p173
        %p539 = pneg %p197
        %p540 = pneg %p194
        %p541 = pneg %p218
        %p542 = pneg %p215
        %p543 = pneg %p239
        %p544 = pneg %p236
        %p545 = pneg %p260
        %p546 = pneg %p257
        %p547 = pneg %p281
        %p548 = pneg %p278
        %p549 = pneg %p302
        %p550 = pneg %p299
        %p551 = pneg %p323
        %p552 = pneg %p320
        %p553 = pneg %p344
        %p554 = pneg %p341
        %p555 = pneg %p370
        %p556 = pneg %p367
        %p557 = scmp.lt.s32.totalorder %s29, 1
        %s558 = scalar_select %p557, %s29, 1
        %s559 = smul.addr %s558, 8
        %s560 = scalar_lea.vmem %s15, %s559
        %p561 = scmp.lt.s32.totalorder %s29, 1
        %s562 = scalar_select %p561, %s29, 1
        %s563 = smul.addr %s562, 8
        %s564 = scalar_lea.vmem %s0, %s563
        %p565 = scmp.lt.s32.totalorder %s29, 1
        %s566 = scalar_select %p565, %s29, 1
        %s567 = smul.addr %s566, 8
        %s568 = scalar_lea.vmem %s15, %s567
        %v570 = vld [vmem:[%s564] sm:$0xff]
        %v571 = vld [vmem:[#allocation2] sm:$0x1]
        %v572 = vld [vmem:[#allocation4] sm:$0x1]
        %573 = vadd.xlane.f32.xlu0 %v570
        %v574 = vpop.xlane.xlu0 %573
        %v575 = vrcp.pop 128.0
        %v576 = vmul.f32 128.0, %v575
        %v577 = vsub.f32 1.0, %v576
        %v578 = vmul.f32 %v575, %v577
        %v579 = vadd.f32 %v575, %v578
        %vm580 = vweird.f32 %v575
        %v581 = vsel %vm580, %v575, %v579
        %v582 = vmul.f32 %v574, %v581
        %v583 = vsub.f32 %v570, %v582
        %v584 = vmul.f32 %v583, %v583
        %585 = vadd.xlane.f32.xlu0 %v584
        %v586 = vpop.xlane.xlu0 %585
        %v587 = vmul.f32 %v586, %v581
        %v588 = vadd.f32 %v587, 1e-12
        %v589 = vrsqrt.pop %v588
        %v590 = vmul.f32 %v589, %v588
        %v591 = vmul.f32 %v590, %v589
        %v592 = vmul.f32 0.5, %v591
        %v593 = vsub.f32 1.5, %v592
        %v594 = vmul.f32 %v589, %v593
        %vm595 = vweird.f32 %v588
        %vm596 = vweird.f32 %v589
        %vm597 = vmor %vm595, %vm596
        %v598 = vsel %vm597, %v589, %v594
        %v599 = vmul.f32 %v583, %v598
        %v601 = vperm.slane %v571, 0
        %v603 = vmul.f32 %v599, %v601
        %v605 = vperm.slane %v572, 0
        %v607 = vadd.f32 %v603, %v605
        %v608 = vld [vmem:[#allocation6] sm:$0xff]
        %v609 = vld [vmem:[#allocation6 + $0x8] sm:$0xf]
        %v610 = vld [vmem:[#allocation6 + $0xc] sm:$0xff]
        %v611 = vld [vmem:[#allocation6 + $0x14] sm:$0xf]
        %v612 = vld [vmem:[#allocation6 + $0x18] sm:$0xff]
        %v613 = vld [vmem:[#allocation6 + $0x20] sm:$0xf]
        %v614 = vld [vmem:[#allocation6 + $0x24] sm:$0xff]
        %v615 = vld [vmem:[#allocation6 + $0x2c] sm:$0xf]
        %v616 = vld [vmem:[#allocation6 + $0x30] sm:$0xff]
        %v617 = vld [vmem:[#allocation6 + $0x38] sm:$0xf]
        %v618 = vld [vmem:[#allocation6 + $0x3c] sm:$0xff]
        %v619 = vld [vmem:[#allocation6 + $0x44] sm:$0xf]
        %v620 = vld [vmem:[#allocation6 + $0x48] sm:$0xff]
        %v621 = vld [vmem:[#allocation6 + $0x50] sm:$0xf]
        %v622 = vld [vmem:[#allocation6 + $0x54] sm:$0xff]
        %v623 = vld [vmem:[#allocation6 + $0x5c] sm:$0xf]
        %v624 = vld [vmem:[#allocation6 + $0x60] sm:$0xff]
        %v625 = vld [vmem:[#allocation6 + $0x68] sm:$0xf]
        %v626 = vld [vmem:[#allocation6 + $0x6c] sm:$0xff]
        %v627 = vld [vmem:[#allocation6 + $0x74] sm:$0xf]
        %v628 = vld [vmem:[#allocation6 + $0x78] sm:$0xff]
        %v629 = vld [vmem:[#allocation6 + $0x80] sm:$0xf]
        %v630 = vld [vmem:[#allocation6 + $0x84] sm:$0xff]
        %v631 = vld [vmem:[#allocation6 + $0x8c] sm:$0xf]
        %v632 = vld [vmem:[#allocation6 + $0x90] sm:$0xff]
        %v633 = vld [vmem:[#allocation6 + $0x98] sm:$0xf]
        %v634 = vld [vmem:[#allocation6 + $0x9c] sm:$0xff]
        %v635 = vld [vmem:[#allocation6 + $0xa4] sm:$0xf]
        %v636 = vld [vmem:[#allocation6 + $0xa8] sm:$0xff]
        %v637 = vld [vmem:[#allocation6 + $0xb0] sm:$0xf]
        %v638 = vld [vmem:[#allocation6 + $0xb4] sm:$0xff]
        %v639 = vld [vmem:[#allocation6 + $0xbc] sm:$0xf]
        %v640 = vpack.c.bf16 %v607, %v607
        %v641 = vld [vmem:[%s4] sm:$0x7]
        %v643 = vperm.slane %v641, 0
        %v644 = vperm.slane %v641, 1
        %v645 = vperm.slane %v641, 2
        %v681 = vunpack.c.l.b16 %v608
        %v682 = vunpack.c.h.b16 %v608
        %v683 = vunpack.c.l.b16 %v609
        %v684 = vunpack.c.l.b16 %v610
        %v685 = vunpack.c.h.b16 %v610
        %v686 = vunpack.c.l.b16 %v611
        %v687 = vunpack.c.l.b16 %v612
        %v688 = vunpack.c.h.b16 %v612
        %v689 = vunpack.c.l.b16 %v613
        %v690 = vunpack.c.l.b16 %v614
        %v691 = vunpack.c.h.b16 %v614
        %v692 = vunpack.c.l.b16 %v615
        %v693 = vunpack.c.l.b16 %v616
        %v694 = vunpack.c.h.b16 %v616
        %v695 = vunpack.c.l.b16 %v617
        %v696 = vunpack.c.l.b16 %v618
        %v697 = vunpack.c.h.b16 %v618
        %v698 = vunpack.c.l.b16 %v619
        %v699 = vunpack.c.l.b16 %v620
        %v700 = vunpack.c.h.b16 %v620
        %v701 = vunpack.c.l.b16 %v621
        %v702 = vunpack.c.l.b16 %v622
        %v703 = vunpack.c.h.b16 %v622
        %v704 = vunpack.c.l.b16 %v623
        %v705 = vunpack.c.l.b16 %v624
        %v706 = vunpack.c.h.b16 %v624
        %v707 = vunpack.c.l.b16 %v625
        %v708 = vunpack.c.l.b16 %v626
        %v709 = vunpack.c.h.b16 %v626
        %v710 = vunpack.c.l.b16 %v627
        %v711 = vunpack.c.l.b16 %v628
        %v712 = vunpack.c.h.b16 %v628
        %v713 = vunpack.c.l.b16 %v629
        %v714 = vunpack.c.l.b16 %v630
        %v715 = vunpack.c.h.b16 %v630
        %v716 = vunpack.c.l.b16 %v631
        %v717 = vunpack.c.l.b16 %v632
        %v718 = vunpack.c.h.b16 %v632
        %v719 = vunpack.c.l.b16 %v633
        %v720 = vunpack.c.l.b16 %v634
        %v721 = vunpack.c.h.b16 %v634
        %v722 = vunpack.c.l.b16 %v635
        %v723 = vunpack.c.l.b16 %v636
        %v724 = vunpack.c.h.b16 %v636
        %v725 = vunpack.c.l.b16 %v637
        %v726 = vunpack.c.l.b16 %v638
        %v727 = vunpack.c.h.b16 %v638
        %v728 = vunpack.c.l.b16 %v639
        %v729 = vpack.c.b16 %v684, %v681
        %v730 = vpack.c.b16 %v685, %v682
        %v731 = vpack.c.b16 %v686, %v683
        %v732 = vpack.c.b16 %v690, %v687
        %v733 = vpack.c.b16 %v691, %v688
        %v734 = vpack.c.b16 %v692, %v689
        %v735 = vpack.c.b16 %v696, %v693
        %v736 = vpack.c.b16 %v697, %v694
        %v737 = vpack.c.b16 %v698, %v695
        %v738 = vpack.c.b16 %v702, %v699
        %v739 = vpack.c.b16 %v703, %v700
        %v740 = vpack.c.b16 %v704, %v701
        %v741 = vpack.c.b16 %v708, %v705
        %v742 = vpack.c.b16 %v709, %v706
        %v743 = vpack.c.b16 %v710, %v707
        %v744 = vpack.c.b16 %v714, %v711
        %v745 = vpack.c.b16 %v715, %v712
        %v746 = vpack.c.b16 %v716, %v713
        %v747 = vpack.c.b16 %v720, %v717
        %v748 = vpack.c.b16 %v721, %v718
        %v749 = vpack.c.b16 %v722, %v719
        %v750 = vpack.c.b16 %v726, %v723
        %v751 = vpack.c.b16 %v727, %v724
        %v752 = vpack.c.b16 %v728, %v725
        %777 = vmatpush.bf16.msra.mxu0 %v750
        %778 = vmatpush.bf16.msra.mxu0 %v747
        %779 = vmatpush.bf16.msra.mxu0 %v744
        %780 = vmatpush.bf16.msra.mxu0 %v741
        %781 = vmatpush.bf16.msra.mxu0 %v738
        %782 = vmatpush.bf16.msra.mxu0 %v735
        %783 = vmatpush.bf16.msra.mxu0 %v732
        %784 = vmatpush.bf16.msra.mxu0 %v729
        %785 = vmatmul.bf16.gmra.mxu0 %v640
        %v786 = vpop.f32.mrf.mxu0
        %v787 = vadd.f32 %v643, %v786
        %v788 = vpop.f32.mrf.mxu0
        %789 = vdwg.mxu0
        %790 = vmatpush.bf16.msra.mxu0 %v751
        %791 = vmatpush.bf16.msra.mxu0 %v748
        %792 = vmatpush.bf16.msra.mxu0 %v745
        %793 = vmatpush.bf16.msra.mxu0 %v742
        %794 = vmatpush.bf16.msra.mxu0 %v739
        %795 = vmatpush.bf16.msra.mxu0 %v736
        %796 = vmatpush.bf16.msra.mxu0 %v733
        %797 = vmatpush.bf16.msra.mxu0 %v730
        %798 = vmatmul.bf16.gmra.mxu0 %v640
        %v799 = vpop.f32.mrf.mxu0
        %v800 = vadd.f32 %v644, %v799
        %v801 = vpop.f32.mrf.mxu0
        %802 = vdwg.mxu0
        %803 = vmatpush.bf16.msra.mxu0 %v752
        %804 = vmatpush.bf16.msra.mxu0 %v749
        %805 = vmatpush.bf16.msra.mxu0 %v746
        %806 = vmatpush.bf16.msra.mxu0 %v743
        %807 = vmatpush.bf16.msra.mxu0 %v740
        %808 = vmatpush.bf16.msra.mxu0 %v737
        %809 = vmatpush.bf16.msra.mxu0 %v734
        %810 = vmatpush.bf16.msra.mxu0 %v731
        %811 = vmatmul.bf16.gmra.mxu0 %v640
        %v812 = vpop.f32.mrf.mxu0
        %v813 = vadd.f32 %v645, %v812
        %v814 = vpop.f32.mrf.mxu0
        %815 = vdwg.mxu0
        %v816 = vpack.c.bf16 %v787, %v787
        %v817 = vpack.c.bf16 %v800, %v800
        %v818 = vpack.c.bf16 %v813, %v813
        %vm819 = vcmask 261120
        %v821 = vsel %vm819, %v816, 0
        %v824 = vsel %vm819, %v817, 0
        %826 = vmatpush.bf16.xpose.msra.mxu0 0
        %827 = vmatpush.bf16.xpose.msra.mxu0 0
        %828 = vmatpush.bf16.xpose.msra.mxu0 0
        %829 = vmatpush.bf16.xpose.msra.mxu0 0
        %830 = vmatpush.bf16.xpose.msra.mxu0 0
        %831 = vmatpush.bf16.xpose.msra.mxu0 0
        %832 = vmatpush.bf16.xpose.msra.mxu0 0
        %833 = vmatpush.bf16.xpose.msra.mxu0 %v824
        %834 = vmatmul.bf16.gmra.mxu0 %v821
        %v835 = vpop.f32.mrf.mxu0
        %v836 = vadd.f32 0.0, %v835
        %v837 = vpop.f32.mrf.mxu0
        %838 = vdwg.mxu0
        %v839 = vmul.f32 %v836, 0.17677669
        %vm840 = vcmask 64512
        %v841 = vsel %vm840, %v839, -inf
        %842 = vmax.xlane.f32.xlu0 %v841
        %v843 = vpop.xlane.xlu0 %842
        %v844 = vsub.f32 %v839, %v843
        %v845 = vmul.f32 %v844, 1.442695
        %v846 = vpow.pop %v845
        %v847 = vsel %vm840, %v846, 0.0
        %848 = vadd.xlane.f32.xlu0 %v847
        %v849 = vpop.xlane.xlu0 %848
        %v850 = vrcp.pop %v849
        %v851 = vmul.f32 %v849, %v850
        %v852 = vsub.f32 1.0, %v851
        %v853 = vmul.f32 %v850, %v852
        %v854 = vadd.f32 %v850, %v853
        %vm855 = vweird.f32 %v849
        %vm856 = vweird.f32 %v850
        %vm857 = vmor %vm855, %vm856
        %v858 = vsel %vm857, %v850, %v854
        %v859 = vand.u32 2147483647, %v849
        %vm860 = vcmp.eq.f32.partialorder %v859, 8.507059e+37
        %v861 = vand.u32 %v849, 2147483648
        %v862 = vor.u32 1.1754944e-38, %v861
        %v863 = vsel %vm860, %v862, %v858
        %v864 = vmul.f32 %v846, %v863
        %v865 = vpack.c.bf16 %v864, %v864
        %v867 = vsel %vm840, %v865, 0
        %vm869 = vcmask 1043456
        %v871 = vsel %vm869, %v818, 0
        %873 = vmatpush.bf16.msra.mxu0 0
        %874 = vmatpush.bf16.msra.mxu0 0
        %875 = vmatpush.bf16.msra.mxu0 0
        %876 = vmatpush.bf16.msra.mxu0 0
        %877 = vmatpush.bf16.msra.mxu0 0
        %878 = vmatpush.bf16.msra.mxu0 0
        %879 = vmatpush.bf16.msra.mxu0 0
        %880 = vmatpush.bf16.msra.mxu0 %v871
        %881 = vmatmul.bf16.gmra.mxu0 %v867
        %v882 = vpop.f32.mrf.mxu0
        %v883 = vadd.f32 0.0, %v882
        %v884 = vpop.f32.mrf.mxu0
        %885 = vdwg.mxu0
        %887 = vrot.lane.b32.xlu0 %v816, 96
        %v888 = vpop.permute.xlu0 %887
        %890 = vrot.lane.b32.xlu0 %v817, 96
        %v891 = vpop.permute.xlu0 %890
        %v893 = vsel %vm819, %v888, 0
        %v896 = vsel %vm819, %v891, 0
        %898 = vmatpush.bf16.xpose.msra.mxu0 0
        %899 = vmatpush.bf16.xpose.msra.mxu0 0
        %900 = vmatpush.bf16.xpose.msra.mxu0 0
        %901 = vmatpush.bf16.xpose.msra.mxu0 0
        %902 = vmatpush.bf16.xpose.msra.mxu0 0
        %903 = vmatpush.bf16.xpose.msra.mxu0 0
        %904 = vmatpush.bf16.xpose.msra.mxu0 0
        %905 = vmatpush.bf16.xpose.msra.mxu0 %v896
        %906 = vmatmul.bf16.gmra.mxu0 %v893
        %v907 = vpop.f32.mrf.mxu0
        %v908 = vadd.f32 0.0, %v907
        %v909 = vpop.f32.mrf.mxu0
        %910 = vdwg.mxu0
        %v911 = vmul.f32 %v908, 0.17677669
        %v912 = vsel %vm840, %v911, -inf
        %913 = vmax.xlane.f32.xlu0 %v912
        %v914 = vpop.xlane.xlu0 %913
        %v915 = vsub.f32 %v911, %v914
        %v916 = vmul.f32 %v915, 1.442695
        %v917 = vpow.pop %v916
        %v918 = vsel %vm840, %v917, 0.0
        %919 = vadd.xlane.f32.xlu0 %v918
        %v920 = vpop.xlane.xlu0 %919
        %v921 = vrcp.pop %v920
        %v922 = vmul.f32 %v920, %v921
        %v923 = vsub.f32 1.0, %v922
        %v924 = vmul.f32 %v921, %v923
        %v925 = vadd.f32 %v921, %v924
        %vm926 = vweird.f32 %v920
        %vm927 = vweird.f32 %v921
        %vm928 = vmor %vm926, %vm927
        %v929 = vsel %vm928, %v921, %v925
        %v930 = vand.u32 2147483647, %v920
        %vm931 = vcmp.eq.f32.partialorder %v930, 8.507059e+37
        %v932 = vand.u32 %v920, 2147483648
        %v933 = vor.u32 1.1754944e-38, %v932
        %v934 = vsel %vm931, %v933, %v929
        %v935 = vmul.f32 %v917, %v934
        %v936 = vpack.c.bf16 %v935, %v935
        %938 = vrot.lane.b32.xlu0 %v818, 96
        %v939 = vpop.permute.xlu0 %938
        %v941 = vsel %vm840, %v936, 0
        %v944 = vsel %vm869, %v939, 0
        %946 = vmatpush.bf16.msra.mxu0 0
        %947 = vmatpush.bf16.msra.mxu0 0
        %948 = vmatpush.bf16.msra.mxu0 0
        %949 = vmatpush.bf16.msra.mxu0 0
        %950 = vmatpush.bf16.msra.mxu0 0
        %951 = vmatpush.bf16.msra.mxu0 0
        %952 = vmatpush.bf16.msra.mxu0 0
        %953 = vmatpush.bf16.msra.mxu0 %v944
        %954 = vmatmul.bf16.gmra.mxu0 %v941
        %v955 = vpop.f32.mrf.mxu0
        %v956 = vadd.f32 0.0, %v955
        %v957 = vpop.f32.mrf.mxu0
        %958 = vdwg.mxu0
        %959 = vrot.lane.b32.xlu0 %v816, 64
        %v960 = vpop.permute.xlu0 %959
        %961 = vrot.lane.b32.xlu0 %v817, 64
        %v962 = vpop.permute.xlu0 %961
        %v964 = vsel %vm819, %v960, 0
        %v967 = vsel %vm819, %v962, 0
        %969 = vmatpush.bf16.xpose.msra.mxu0 0
        %970 = vmatpush.bf16.xpose.msra.mxu0 0
        %971 = vmatpush.bf16.xpose.msra.mxu0 0
        %972 = vmatpush.bf16.xpose.msra.mxu0 0
        %973 = vmatpush.bf16.xpose.msra.mxu0 0
        %974 = vmatpush.bf16.xpose.msra.mxu0 0
        %975 = vmatpush.bf16.xpose.msra.mxu0 0
        %976 = vmatpush.bf16.xpose.msra.mxu0 %v967
        %977 = vmatmul.bf16.gmra.mxu0 %v964
        %v978 = vpop.f32.mrf.mxu0
        %v979 = vadd.f32 0.0, %v978
        %v980 = vpop.f32.mrf.mxu0
        %981 = vdwg.mxu0
        %v982 = vmul.f32 %v979, 0.17677669
        %v983 = vsel %vm840, %v982, -inf
        %984 = vmax.xlane.f32.xlu0 %v983
        %v985 = vpop.xlane.xlu0 %984
        %v986 = vsub.f32 %v982, %v985
        %v987 = vmul.f32 %v986, 1.442695
        %v988 = vpow.pop %v987
        %v989 = vsel %vm840, %v988, 0.0
        %990 = vadd.xlane.f32.xlu0 %v989
        %v991 = vpop.xlane.xlu0 %990
        %v992 = vrcp.pop %v991
        %v993 = vmul.f32 %v991, %v992
        %v994 = vsub.f32 1.0, %v993
        %v995 = vmul.f32 %v992, %v994
        %v996 = vadd.f32 %v992, %v995
        %vm997 = vweird.f32 %v991
        %vm998 = vweird.f32 %v992
        %vm999 = vmor %vm997, %vm998
        %v1000 = vsel %vm999, %v992, %v996
        %v1001 = vand.u32 2147483647, %v991
        %vm1002 = vcmp.eq.f32.partialorder %v1001, 8.507059e+37
        %v1003 = vand.u32 %v991, 2147483648
        %v1004 = vor.u32 1.1754944e-38, %v1003
        %v1005 = vsel %vm1002, %v1004, %v1000
        %v1006 = vmul.f32 %v988, %v1005
        %v1007 = vpack.c.bf16 %v1006, %v1006
        %1008 = vrot.lane.b32.xlu0 %v818, 64
        %v1009 = vpop.permute.xlu0 %1008
        %v1011 = vsel %vm840, %v1007, 0
        %v1014 = vsel %vm869, %v1009, 0
        %1016 = vmatpush.bf16.msra.mxu0 0
        %1017 = vmatpush.bf16.msra.mxu0 0
        %1018 = vmatpush.bf16.msra.mxu0 0
        %1019 = vmatpush.bf16.msra.mxu0 0
        %1020 = vmatpush.bf16.msra.mxu0 0
        %1021 = vmatpush.bf16.msra.mxu0 0
        %1022 = vmatpush.bf16.msra.mxu0 0
        %1023 = vmatpush.bf16.msra.mxu0 %v1014
        %1024 = vmatmul.bf16.gmra.mxu0 %v1011
        %v1025 = vpop.f32.mrf.mxu0
        %v1026 = vadd.f32 0.0, %v1025
        %v1027 = vpop.f32.mrf.mxu0
        %1028 = vdwg.mxu0
        %1029 = vrot.lane.b32.xlu0 %v816, 32
        %v1030 = vpop.permute.xlu0 %1029
        %1031 = vrot.lane.b32.xlu0 %v817, 32
        %v1032 = vpop.permute.xlu0 %1031
        %v1034 = vsel %vm819, %v1030, 0
        %v1037 = vsel %vm819, %v1032, 0
        %1039 = vmatpush.bf16.xpose.msra.mxu0 0
        %1040 = vmatpush.bf16.xpose.msra.mxu0 0
        %1041 = vmatpush.bf16.xpose.msra.mxu0 0
        %1042 = vmatpush.bf16.xpose.msra.mxu0 0
        %1043 = vmatpush.bf16.xpose.msra.mxu0 0
        %1044 = vmatpush.bf16.xpose.msra.mxu0 0
        %1045 = vmatpush.bf16.xpose.msra.mxu0 0
        %1046 = vmatpush.bf16.xpose.msra.mxu0 %v1037
        %1047 = vmatmul.bf16.gmra.mxu0 %v1034
        %v1048 = vpop.f32.mrf.mxu0
        %v1049 = vadd.f32 0.0, %v1048
        %v1050 = vpop.f32.mrf.mxu0
        %1051 = vdwg.mxu0
        %v1052 = vmul.f32 %v1049, 0.17677669
        %v1053 = vsel %vm840, %v1052, -inf
        %1054 = vmax.xlane.f32.xlu0 %v1053
        %v1055 = vpop.xlane.xlu0 %1054
        %v1056 = vsub.f32 %v1052, %v1055
        %v1057 = vmul.f32 %v1056, 1.442695
        %v1058 = vpow.pop %v1057
        %v1059 = vsel %vm840, %v1058, 0.0
        %1060 = vadd.xlane.f32.xlu0 %v1059
        %v1061 = vpop.xlane.xlu0 %1060
        %v1062 = vrcp.pop %v1061
        %v1063 = vmul.f32 %v1061, %v1062
        %v1064 = vsub.f32 1.0, %v1063
        %v1065 = vmul.f32 %v1062, %v1064
        %v1066 = vadd.f32 %v1062, %v1065
        %vm1067 = vweird.f32 %v1061
        %vm1068 = vweird.f32 %v1062
        %vm1069 = vmor %vm1067, %vm1068
        %v1070 = vsel %vm1069, %v1062, %v1066
        %v1071 = vand.u32 2147483647, %v1061
        %vm1072 = vcmp.eq.f32.partialorder %v1071, 8.507059e+37
        %v1073 = vand.u32 %v1061, 2147483648
        %v1074 = vor.u32 1.1754944e-38, %v1073
        %v1075 = vsel %vm1072, %v1074, %v1070
        %v1076 = vmul.f32 %v1058, %v1075
        %v1077 = vpack.c.bf16 %v1076, %v1076
        %1078 = vrot.lane.b32.xlu0 %v818, 32
        %v1079 = vpop.permute.xlu0 %1078
        %v1081 = vsel %vm840, %v1077, 0
        %v1084 = vsel %vm869, %v1079, 0
        %1086 = vmatpush.bf16.msra.mxu0 0
        %1087 = vmatpush.bf16.msra.mxu0 0
        %1088 = vmatpush.bf16.msra.mxu0 0
        %1089 = vmatpush.bf16.msra.mxu0 0
        %1090 = vmatpush.bf16.msra.mxu0 0
        %1091 = vmatpush.bf16.msra.mxu0 0
        %1092 = vmatpush.bf16.msra.mxu0 0
        %1093 = vmatpush.bf16.msra.mxu0 %v1084
        %1094 = vmatmul.bf16.gmra.mxu0 %v1081
        %v1095 = vpop.f32.mrf.mxu0
        %v1096 = vadd.f32 0.0, %v1095
        %v1097 = vpop.f32.mrf.mxu0
        %1098 = vdwg.mxu0
        %1100 = vrot.lane.b32.xlu0 %v956, 32
        %v1101 = vpop.permute.xlu0 %1100
        %1104 = vrot.lane.b32.xlu0 %v1026, 64
        %v1105 = vpop.permute.xlu0 %1104
        %1108 = vrot.lane.b32.xlu0 %v1096, 96
        %v1109 = vpop.permute.xlu0 %1108
        %v1111 = vsel %vm819, %v883, %v1101
        %vm1112 = vcmask 523264
        %v1113 = vsel %vm1112, %v1111, %v1105
        %vm1114 = vcmask 785408
        %v1115 = vsel %vm1114, %v1113, %v1109
        %v1116 = vld [vmem:[#allocation7] sm:$0xf]
        %v1117 = vld [vmem:[#allocation7 + $0x4] sm:$0xf]
        %v1118 = vld [vmem:[#allocation7 + $0x8] sm:$0xf]
        %v1119 = vld [vmem:[#allocation7 + $0xc] sm:$0xf]
        %v1120 = vld [vmem:[#allocation7 + $0x10] sm:$0xf]
        %v1121 = vld [vmem:[#allocation7 + $0x14] sm:$0xf]
        %v1122 = vld [vmem:[#allocation7 + $0x18] sm:$0xf]
        %v1123 = vld [vmem:[#allocation7 + $0x1c] sm:$0xf]
        %v1124 = vld [vmem:[#allocation7 + $0x20] sm:$0xf]
        %v1125 = vld [vmem:[#allocation7 + $0x24] sm:$0xf]
        %v1126 = vld [vmem:[#allocation7 + $0x28] sm:$0xf]
        %v1127 = vld [vmem:[#allocation7 + $0x2c] sm:$0xf]
        %v1128 = vld [vmem:[#allocation7 + $0x30] sm:$0xf]
        %v1129 = vld [vmem:[#allocation7 + $0x34] sm:$0xf]
        %v1130 = vld [vmem:[#allocation7 + $0x38] sm:$0xf]
        %v1131 = vld [vmem:[#allocation7 + $0x3c] sm:$0xf]
        %v1132 = vpack.c.bf16 %v1115, %v1115
        %v1133 = vld [vmem:[%s6] sm:$0x1]
        %v1135 = vperm.slane %v1133, 0
        %v1153 = vunpack.c.l.b16 %v1116
        %v1154 = vunpack.c.l.b16 %v1117
        %v1155 = vunpack.c.l.b16 %v1118
        %v1156 = vunpack.c.l.b16 %v1119
        %v1157 = vunpack.c.l.b16 %v1120
        %v1158 = vunpack.c.l.b16 %v1121
        %v1159 = vunpack.c.l.b16 %v1122
        %v1160 = vunpack.c.l.b16 %v1123
        %v1161 = vunpack.c.l.b16 %v1124
        %v1162 = vunpack.c.l.b16 %v1125
        %v1163 = vunpack.c.l.b16 %v1126
        %v1164 = vunpack.c.l.b16 %v1127
        %v1165 = vunpack.c.l.b16 %v1128
        %v1166 = vunpack.c.l.b16 %v1129
        %v1167 = vunpack.c.l.b16 %v1130
        %v1168 = vunpack.c.l.b16 %v1131
        %v1169 = vpack.c.b16 %v1154, %v1153
        %v1170 = vpack.c.b16 %v1156, %v1155
        %v1171 = vpack.c.b16 %v1158, %v1157
        %v1172 = vpack.c.b16 %v1160, %v1159
        %v1173 = vpack.c.b16 %v1162, %v1161
        %v1174 = vpack.c.b16 %v1164, %v1163
        %v1175 = vpack.c.b16 %v1166, %v1165
        %v1176 = vpack.c.b16 %v1168, %v1167
        %1185 = vmatpush.bf16.msra.mxu0 %v1176
        %1186 = vmatpush.bf16.msra.mxu0 %v1175
        %1187 = vmatpush.bf16.msra.mxu0 %v1174
        %1188 = vmatpush.bf16.msra.mxu0 %v1173
        %1189 = vmatpush.bf16.msra.mxu0 %v1172
        %1190 = vmatpush.bf16.msra.mxu0 %v1171
        %1191 = vmatpush.bf16.msra.mxu0 %v1170
        %1192 = vmatpush.bf16.msra.mxu0 %v1169
        %1193 = vmatmul.bf16.gmra.mxu0 %v1132
        %v1194 = vpop.f32.mrf.mxu0
        %v1195 = vadd.f32 %v1135, %v1194
        %v1196 = vpop.f32.mrf.mxu0
        %1197 = vdwg.mxu0
        %v1198 = vadd.f32 %v1195, %v607
        %v1199 = vld [vmem:[%s7] sm:$0x1]
        %v1200 = vld [vmem:[%s8] sm:$0x1]
        %1201 = vadd.xlane.f32.xlu0 %v1198
        %v1202 = vpop.xlane.xlu0 %1201
        %v1203 = vmul.f32 %v1202, %v581
        %v1204 = vsub.f32 %v1198, %v1203
        %v1205 = vmul.f32 %v1204, %v1204
        %1206 = vadd.xlane.f32.xlu0 %v1205
        %v1207 = vpop.xlane.xlu0 %1206
        %v1208 = vmul.f32 %v1207, %v581
        %v1209 = vadd.f32 %v1208, 1e-12
        %v1210 = vrsqrt.pop %v1209
        %v1211 = vmul.f32 %v1210, %v1209
        %v1212 = vmul.f32 %v1211, %v1210
        %v1213 = vmul.f32 0.5, %v1212
        %v1214 = vsub.f32 1.5, %v1213
        %v1215 = vmul.f32 %v1210, %v1214
        %vm1216 = vweird.f32 %v1209
        %vm1217 = vweird.f32 %v1210
        %vm1218 = vmor %vm1216, %vm1217
        %v1219 = vsel %vm1218, %v1210, %v1215
        %v1220 = vmul.f32 %v1204, %v1219
        %v1222 = vperm.slane %v1199, 0
        %v1224 = vmul.f32 %v1220, %v1222
        %v1226 = vperm.slane %v1200, 0
        %v1228 = vadd.f32 %v1224, %v1226
        %v1229 = vld [vmem:[%s9] sm:$0xff]
        %v1230 = vld [vmem:[%s9 + $0x8] sm:$0xff]
        %v1231 = vld [vmem:[%s9 + $0x10] sm:$0xff]
        %v1232 = vld [vmem:[%s9 + $0x18] sm:$0xff]
        %v1233 = vld [vmem:[%s9 + $0x20] sm:$0xff]
        %v1234 = vld [vmem:[%s9 + $0x28] sm:$0xff]
        %v1235 = vld [vmem:[%s9 + $0x30] sm:$0xff]
        %v1236 = vld [vmem:[%s9 + $0x38] sm:$0xff]
        %v1237 = vld [vmem:[%s9 + $0x40] sm:$0xff]
        %v1238 = vld [vmem:[%s9 + $0x48] sm:$0xff]
        %v1239 = vld [vmem:[%s9 + $0x50] sm:$0xff]
        %v1240 = vld [vmem:[%s9 + $0x58] sm:$0xff]
        %v1241 = vld [vmem:[%s9 + $0x60] sm:$0xff]
        %v1242 = vld [vmem:[%s9 + $0x68] sm:$0xff]
        %v1243 = vld [vmem:[%s9 + $0x70] sm:$0xff]
        %v1244 = vld [vmem:[%s9 + $0x78] sm:$0xff]
        %v1245 = vpack.c.bf16 %v1228, %v1228
        %v1246 = vld [vmem:[%s10] sm:$0x3]
        %v1248 = vperm.slane %v1246, 0
        %v1249 = vperm.slane %v1246, 1
        %v1268 = vunpack.c.l.b16 %v1229
        %v1269 = vunpack.c.h.b16 %v1229
        %v1270 = vunpack.c.l.b16 %v1230
        %v1271 = vunpack.c.h.b16 %v1230
        %v1272 = vunpack.c.l.b16 %v1231
        %v1273 = vunpack.c.h.b16 %v1231
        %v1274 = vunpack.c.l.b16 %v1232
        %v1275 = vunpack.c.h.b16 %v1232
        %v1276 = vunpack.c.l.b16 %v1233
        %v1277 = vunpack.c.h.b16 %v1233
        %v1278 = vunpack.c.l.b16 %v1234
        %v1279 = vunpack.c.h.b16 %v1234
        %v1280 = vunpack.c.l.b16 %v1235
        %v1281 = vunpack.c.h.b16 %v1235
        %v1282 = vunpack.c.l.b16 %v1236
        %v1283 = vunpack.c.h.b16 %v1236
        %v1284 = vunpack.c.l.b16 %v1237
        %v1285 = vunpack.c.h.b16 %v1237
        %v1286 = vunpack.c.l.b16 %v1238
        %v1287 = vunpack.c.h.b16 %v1238
        %v1288 = vunpack.c.l.b16 %v1239
        %v1289 = vunpack.c.h.b16 %v1239
        %v1290 = vunpack.c.l.b16 %v1240
        %v1291 = vunpack.c.h.b16 %v1240
        %v1292 = vunpack.c.l.b16 %v1241
        %v1293 = vunpack.c.h.b16 %v1241
        %v1294 = vunpack.c.l.b16 %v1242
        %v1295 = vunpack.c.h.b16 %v1242
        %v1296 = vunpack.c.l.b16 %v1243
        %v1297 = vunpack.c.h.b16 %v1243
        %v1298 = vunpack.c.l.b16 %v1244
        %v1299 = vunpack.c.h.b16 %v1244
        %v1300 = vpack.c.b16 %v1270, %v1268
        %v1301 = vpack.c.b16 %v1271, %v1269
        %v1302 = vpack.c.b16 %v1274, %v1272
        %v1303 = vpack.c.b16 %v1275, %v1273
        %v1304 = vpack.c.b16 %v1278, %v1276
        %v1305 = vpack.c.b16 %v1279, %v1277
        %v1306 = vpack.c.b16 %v1282, %v1280
        %v1307 = vpack.c.b16 %v1283, %v1281
        %v1308 = vpack.c.b16 %v1286, %v1284
        %v1309 = vpack.c.b16 %v1287, %v1285
        %v1310 = vpack.c.b16 %v1290, %v1288
        %v1311 = vpack.c.b16 %v1291, %v1289
        %v1312 = vpack.c.b16 %v1294, %v1292
        %v1313 = vpack.c.b16 %v1295, %v1293
        %v1314 = vpack.c.b16 %v1298, %v1296
        %v1315 = vpack.c.b16 %v1299, %v1297
        %1332 = vmatpush.bf16.msra.mxu0 %v1314
        %1333 = vmatpush.bf16.msra.mxu0 %v1312
        %1334 = vmatpush.bf16.msra.mxu0 %v1310
        %1335 = vmatpush.bf16.msra.mxu0 %v1308
        %1336 = vmatpush.bf16.msra.mxu0 %v1306
        %1337 = vmatpush.bf16.msra.mxu0 %v1304
        %1338 = vmatpush.bf16.msra.mxu0 %v1302
        %1339 = vmatpush.bf16.msra.mxu0 %v1300
        %1340 = vmatmul.bf16.gmra.mxu0 %v1245
        %v1341 = vpop.f32.mrf.mxu0
        %v1342 = vadd.f32 %v1248, %v1341
        %v1343 = vpop.f32.mrf.mxu0
        %1344 = vdwg.mxu0
        %1345 = vmatpush.bf16.msra.mxu0 %v1315
        %1346 = vmatpush.bf16.msra.mxu0 %v1313
        %1347 = vmatpush.bf16.msra.mxu0 %v1311
        %1348 = vmatpush.bf16.msra.mxu0 %v1309
        %1349 = vmatpush.bf16.msra.mxu0 %v1307
        %1350 = vmatpush.bf16.msra.mxu0 %v1305
        %1351 = vmatpush.bf16.msra.mxu0 %v1303
        %1352 = vmatpush.bf16.msra.mxu0 %v1301
        %1353 = vmatmul.bf16.gmra.mxu0 %v1245
        %v1354 = vpop.f32.mrf.mxu0
        %v1355 = vadd.f32 %v1249, %v1354
        %v1356 = vpop.f32.mrf.mxu0
        %1357 = vdwg.mxu0
        %v1358 = vmul.f32 %v1342, 0.5
        %v1359 = vmul.f32 %v1355, 0.5
        %v1360 = vmul.f32 %v1342, 0.70710677
        %v1361 = vmul.f32 %v1355, 0.70710677
        %v1362 = vmul.f32 %v1360, %v1360
        %v1363 = vmin.f32 16.0, %v1362
        %v1364 = vmul.f32 %v1363, 2.1237322e-06
        %v1365 = vadd.f32 %v1364, 0.00028619796
        %v1366 = vmul.f32 %v1363, %v1365
        %v1367 = vadd.f32 %v1366, 0.0036580483
        %v1368 = vmul.f32 %v1363, %v1367
        %v1369 = vadd.f32 %v1368, 0.05243302
        %v1370 = vmul.f32 %v1363, %v1369
        %v1371 = vadd.f32 %v1370, 0.18741608
        %v1372 = vmul.f32 %v1363, %v1371
        %v1373 = vadd.f32 %v1372, 1.1283791
        %v1374 = vmul.f32 %v1360, %v1373
        %v1375 = vmul.f32 %v1363, 3.8918573e-05
        %v1376 = vadd.f32 %v1375, 0.001143296
        %v1377 = vmul.f32 %v1363, %v1376
        %v1378 = vadd.f32 %v1377, 0.014752088
        %v1379 = vmul.f32 %v1363, %v1378
        %v1380 = vadd.f32 %v1379, 0.112945676
        %v1381 = vmul.f32 %v1363, %v1380
        %v1382 = vadd.f32 %v1381, 0.4994258
        %v1383 = vmul.f32 %v1363, %v1382
        %v1384 = vadd.f32 %v1383, 1.0
        %v1385 = vrcp.pop %v1384
        %v1386 = vmul.f32 %v1384, %v1385
        %v1387 = vsub.f32 1.0, %v1386
        %v1388 = vmul.f32 %v1385, %v1387
        %v1389 = vadd.f32 %v1385, %v1388
        %vm1390 = vweird.f32 %v1384
        %vm1391 = vweird.f32 %v1385
        %vm1392 = vmor %vm1390, %vm1391
        %v1393 = vsel %vm1392, %v1385, %v1389
        %v1394 = vand.u32 2147483647, %v1384
        %vm1395 = vcmp.eq.f32.partialorder %v1394, 8.507059e+37
        %v1396 = vand.u32 %v1384, 2147483648
        %v1397 = vor.u32 1.1754944e-38, %v1396
        %v1398 = vsel %vm1395, %v1397, %v1393
        %v1399 = vmul.f32 %v1374, %v1398
        %v1400 = vmin.f32 %v1399, 1.0
        %v1401 = vmax.f32 %v1400, -1.0
        %v1402 = vmul.f32 %v1361, %v1361
        %v1403 = vmin.f32 16.0, %v1402
        %v1404 = vmul.f32 %v1403, 2.1237322e-06
        %v1405 = vadd.f32 %v1404, 0.00028619796
        %v1406 = vmul.f32 %v1403, %v1405
        %v1407 = vadd.f32 %v1406, 0.0036580483
        %v1408 = vmul.f32 %v1403, %v1407
        %v1409 = vadd.f32 %v1408, 0.05243302
        %v1410 = vmul.f32 %v1403, %v1409
        %v1411 = vadd.f32 %v1410, 0.18741608
        %v1412 = vmul.f32 %v1403, %v1411
        %v1413 = vadd.f32 %v1412, 1.1283791
        %v1414 = vmul.f32 %v1361, %v1413
        %v1415 = vmul.f32 %v1403, 3.8918573e-05
        %v1416 = vadd.f32 %v1415, 0.001143296
        %v1417 = vmul.f32 %v1403, %v1416
        %v1418 = vadd.f32 %v1417, 0.014752088
        %v1419 = vmul.f32 %v1403, %v1418
        %v1420 = vadd.f32 %v1419, 0.112945676
        %v1421 = vmul.f32 %v1403, %v1420
        %v1422 = vadd.f32 %v1421, 0.4994258
        %v1423 = vmul.f32 %v1403, %v1422
        %v1424 = vadd.f32 %v1423, 1.0
        %v1425 = vrcp.pop %v1424
        %v1426 = vmul.f32 %v1424, %v1425
        %v1427 = vsub.f32 1.0, %v1426
        %v1428 = vmul.f32 %v1425, %v1427
        %v1429 = vadd.f32 %v1425, %v1428
        %vm1430 = vweird.f32 %v1424
        %vm1431 = vweird.f32 %v1425
        %vm1432 = vmor %vm1430, %vm1431
        %v1433 = vsel %vm1432, %v1425, %v1429
        %v1434 = vand.u32 2147483647, %v1424
        %vm1435 = vcmp.eq.f32.partialorder %v1434, 8.507059e+37
        %v1436 = vand.u32 %v1424, 2147483648
        %v1437 = vor.u32 1.1754944e-38, %v1436
        %v1438 = vsel %vm1435, %v1437, %v1433
        %v1439 = vmul.f32 %v1414, %v1438
        %v1440 = vmin.f32 %v1439, 1.0
        %v1441 = vmax.f32 %v1440, -1.0
        %v1442 = vadd.f32 %v1401, 1.0
        %v1443 = vadd.f32 %v1441, 1.0
        %v1444 = vmul.f32 %v1358, %v1442
        %v1445 = vmul.f32 %v1359, %v1443
        %v1446 = vld [vmem:[#allocation9] sm:$0xf]
        %v1447 = vld [vmem:[#allocation9 + $0x4] sm:$0xf]
        %v1448 = vld [vmem:[#allocation9 + $0x8] sm:$0xf]
        %v1449 = vld [vmem:[#allocation9 + $0xc] sm:$0xf]
        %v1450 = vld [vmem:[#allocation9 + $0x10] sm:$0xf]
        %v1451 = vld [vmem:[#allocation9 + $0x14] sm:$0xf]
        %v1452 = vld [vmem:[#allocation9 + $0x18] sm:$0xf]
        %v1453 = vld [vmem:[#allocation9 + $0x1c] sm:$0xf]
        %v1454 = vld [vmem:[#allocation9 + $0x20] sm:$0xf]
        %v1455 = vld [vmem:[#allocation9 + $0x24] sm:$0xf]
        %v1456 = vld [vmem:[#allocation9 + $0x28] sm:$0xf]
        %v1457 = vld [vmem:[#allocation9 + $0x2c] sm:$0xf]
        %v1458 = vld [vmem:[#allocation9 + $0x30] sm:$0xf]
        %v1459 = vld [vmem:[#allocation9 + $0x34] sm:$0xf]
        %v1460 = vld [vmem:[#allocation9 + $0x38] sm:$0xf]
        %v1461 = vld [vmem:[#allocation9 + $0x3c] sm:$0xf]
        %v1462 = vld [vmem:[#allocation9 + $0x40] sm:$0xf]
        %v1463 = vld [vmem:[#allocation9 + $0x44] sm:$0xf]
        %v1464 = vld [vmem:[#allocation9 + $0x48] sm:$0xf]
        %v1465 = vld [vmem:[#allocation9 + $0x4c] sm:$0xf]
        %v1466 = vld [vmem:[#allocation9 + $0x50] sm:$0xf]
        %v1467 = vld [vmem:[#allocation9 + $0x54] sm:$0xf]
        %v1468 = vld [vmem:[#allocation9 + $0x58] sm:$0xf]
        %v1469 = vld [vmem:[#allocation9 + $0x5c] sm:$0xf]
        %v1470 = vld [vmem:[#allocation9 + $0x60] sm:$0xf]
        %v1471 = vld [vmem:[#allocation9 + $0x64] sm:$0xf]
        %v1472 = vld [vmem:[#allocation9 + $0x68] sm:$0xf]
        %v1473 = vld [vmem:[#allocation9 + $0x6c] sm:$0xf]
        %v1474 = vld [vmem:[#allocation9 + $0x70] sm:$0xf]
        %v1475 = vld [vmem:[#allocation9 + $0x74] sm:$0xf]
        %v1476 = vld [vmem:[#allocation9 + $0x78] sm:$0xf]
        %v1477 = vld [vmem:[#allocation9 + $0x7c] sm:$0xf]
        %v1478 = vpack.c.bf16 %v1444, %v1444
        %v1479 = vpack.c.bf16 %v1445, %v1445
        %v1480 = vld [vmem:[%s12] sm:$0x1]
        %v1482 = vperm.slane %v1480, 0
        %v1516 = vunpack.c.l.b16 %v1446
        %v1517 = vunpack.c.l.b16 %v1447
        %v1518 = vunpack.c.l.b16 %v1448
        %v1519 = vunpack.c.l.b16 %v1449
        %v1520 = vunpack.c.l.b16 %v1450
        %v1521 = vunpack.c.l.b16 %v1451
        %v1522 = vunpack.c.l.b16 %v1452
        %v1523 = vunpack.c.l.b16 %v1453
        %v1524 = vunpack.c.l.b16 %v1454
        %v1525 = vunpack.c.l.b16 %v1455
        %v1526 = vunpack.c.l.b16 %v1456
        %v1527 = vunpack.c.l.b16 %v1457
        %v1528 = vunpack.c.l.b16 %v1458
        %v1529 = vunpack.c.l.b16 %v1459
        %v1530 = vunpack.c.l.b16 %v1460
        %v1531 = vunpack.c.l.b16 %v1461
        %v1532 = vunpack.c.l.b16 %v1462
        %v1533 = vunpack.c.l.b16 %v1463
        %v1534 = vunpack.c.l.b16 %v1464
        %v1535 = vunpack.c.l.b16 %v1465
        %v1536 = vunpack.c.l.b16 %v1466
        %v1537 = vunpack.c.l.b16 %v1467
        %v1538 = vunpack.c.l.b16 %v1468
        %v1539 = vunpack.c.l.b16 %v1469
        %v1540 = vunpack.c.l.b16 %v1470
        %v1541 = vunpack.c.l.b16 %v1471
        %v1542 = vunpack.c.l.b16 %v1472
        %v1543 = vunpack.c.l.b16 %v1473
        %v1544 = vunpack.c.l.b16 %v1474
        %v1545 = vunpack.c.l.b16 %v1475
        %v1546 = vunpack.c.l.b16 %v1476
        %v1547 = vunpack.c.l.b16 %v1477
        %v1548 = vpack.c.b16 %v1517, %v1516
        %v1549 = vpack.c.b16 %v1519, %v1518
        %v1550 = vpack.c.b16 %v1521, %v1520
        %v1551 = vpack.c.b16 %v1523, %v1522
        %v1552 = vpack.c.b16 %v1525, %v1524
        %v1553 = vpack.c.b16 %v1527, %v1526
        %v1554 = vpack.c.b16 %v1529, %v1528
        %v1555 = vpack.c.b16 %v1531, %v1530
        %v1556 = vpack.c.b16 %v1533, %v1532
        %v1557 = vpack.c.b16 %v1535, %v1534
        %v1558 = vpack.c.b16 %v1537, %v1536
        %v1559 = vpack.c.b16 %v1539, %v1538
        %v1560 = vpack.c.b16 %v1541, %v1540
        %v1561 = vpack.c.b16 %v1543, %v1542
        %v1562 = vpack.c.b16 %v1545, %v1544
        %v1563 = vpack.c.b16 %v1547, %v1546
        %1580 = vmatpush.bf16.msra.mxu0 %v1555
        %1581 = vmatpush.bf16.msra.mxu0 %v1554
        %1582 = vmatpush.bf16.msra.mxu0 %v1553
        %1583 = vmatpush.bf16.msra.mxu0 %v1552
        %1584 = vmatpush.bf16.msra.mxu0 %v1551
        %1585 = vmatpush.bf16.msra.mxu0 %v1550
        %1586 = vmatpush.bf16.msra.mxu0 %v1549
        %1587 = vmatpush.bf16.msra.mxu0 %v1548
        %1588 = vmatmul.bf16.gmra.mxu0 %v1478
        %v1589 = vpop.f32.mrf.mxu0
        %v1590 = vadd.f32 %v1482, %v1589
        %v1591 = vpop.f32.mrf.mxu0
        %1592 = vdwg.mxu0
        %1593 = vmatpush.bf16.msra.mxu0 %v1563
        %1594 = vmatpush.bf16.msra.mxu0 %v1562
        %1595 = vmatpush.bf16.msra.mxu0 %v1561
        %1596 = vmatpush.bf16.msra.mxu0 %v1560
        %1597 = vmatpush.bf16.msra.mxu0 %v1559
        %1598 = vmatpush.bf16.msra.mxu0 %v1558
        %1599 = vmatpush.bf16.msra.mxu0 %v1557
        %1600 = vmatpush.bf16.msra.mxu0 %v1556
        %1601 = vmatmul.bf16.gmra.mxu0 %v1479
        %v1602 = vpop.f32.mrf.mxu0
        %v1603 = vadd.f32 %v1590, %v1602
        %v1604 = vpop.f32.mrf.mxu0
        %1605 = vdwg.mxu0
        %v1606 = vadd.f32 %v1603, %v1228
        %v1607 = vld [vmem:[%s13] sm:$0x1]
        %v1608 = vld [vmem:[%s14] sm:$0x1]
        %1609 = vadd.xlane.f32.xlu0 %v1606
        %v1610 = vpop.xlane.xlu0 %1609
        %v1611 = vmul.f32 %v1610, %v581
        %v1612 = vsub.f32 %v1606, %v1611
        %v1613 = vmul.f32 %v1612, %v1612
        %1614 = vadd.xlane.f32.xlu0 %v1613
        %v1615 = vpop.xlane.xlu0 %1614
        %v1616 = vmul.f32 %v1615, %v581
        %v1617 = vadd.f32 %v1616, 1e-12
        %v1618 = vrsqrt.pop %v1617
        %v1619 = vmul.f32 %v1618, %v1617
        %v1620 = vmul.f32 %v1619, %v1618
        %v1621 = vmul.f32 0.5, %v1620
        %v1622 = vsub.f32 1.5, %v1621
        %v1623 = vmul.f32 %v1618, %v1622
        %vm1624 = vweird.f32 %v1617
        %vm1625 = vweird.f32 %v1618
        %vm1626 = vmor %vm1624, %vm1625
        %v1627 = vsel %vm1626, %v1618, %v1623
        %v1628 = vmul.f32 %v1612, %v1627
        %v1630 = vperm.slane %v1607, 0
        %v1632 = vmul.f32 %v1628, %v1630
        %v1634 = vperm.slane %v1608, 0
        %v1636 = vadd.f32 %v1632, %v1634
        %s1637 = scalar_lea.vmem [#allocation6], 192
        %v1638 = vld [vmem:[%s1637] sm:$0xff]
        %v1639 = vld [vmem:[%s1637 + $0x8] sm:$0xf]
        %v1640 = vld [vmem:[%s1637 + $0xc] sm:$0xff]
        %v1641 = vld [vmem:[%s1637 + $0x14] sm:$0xf]
        %v1642 = vld [vmem:[%s1637 + $0x18] sm:$0xff]
        %v1643 = vld [vmem:[%s1637 + $0x20] sm:$0xf]
        %v1644 = vld [vmem:[%s1637 + $0x24] sm:$0xff]
        %v1645 = vld [vmem:[%s1637 + $0x2c] sm:$0xf]
        %v1646 = vld [vmem:[%s1637 + $0x30] sm:$0xff]
        %v1647 = vld [vmem:[%s1637 + $0x38] sm:$0xf]
        %v1648 = vld [vmem:[%s1637 + $0x3c] sm:$0xff]
        %v1649 = vld [vmem:[%s1637 + $0x44] sm:$0xf]
        %v1650 = vld [vmem:[%s1637 + $0x48] sm:$0xff]
        %v1651 = vld [vmem:[%s1637 + $0x50] sm:$0xf]
        %v1652 = vld [vmem:[%s1637 + $0x54] sm:$0xff]
        %v1653 = vld [vmem:[%s1637 + $0x5c] sm:$0xf]
        %v1654 = vld [vmem:[%s1637 + $0x60] sm:$0xff]
        %v1655 = vld [vmem:[%s1637 + $0x68] sm:$0xf]
        %v1656 = vld [vmem:[%s1637 + $0x6c] sm:$0xff]
        %v1657 = vld [vmem:[%s1637 + $0x74] sm:$0xf]
        %v1658 = vld [vmem:[%s1637 + $0x78] sm:$0xff]
        %v1659 = vld [vmem:[%s1637 + $0x80] sm:$0xf]
        %v1660 = vld [vmem:[%s1637 + $0x84] sm:$0xff]
        %v1661 = vld [vmem:[%s1637 + $0x8c] sm:$0xf]
        %v1662 = vld [vmem:[%s1637 + $0x90] sm:$0xff]
        %v1663 = vld [vmem:[%s1637 + $0x98] sm:$0xf]
        %v1664 = vld [vmem:[%s1637 + $0x9c] sm:$0xff]
        %v1665 = vld [vmem:[%s1637 + $0xa4] sm:$0xf]
        %v1666 = vld [vmem:[%s1637 + $0xa8] sm:$0xff]
        %v1667 = vld [vmem:[%s1637 + $0xb0] sm:$0xf]
        %v1668 = vld [vmem:[%s1637 + $0xb4] sm:$0xff]
        %v1669 = vld [vmem:[%s1637 + $0xbc] sm:$0xf]
        %v1670 = vpack.c.bf16 %v1636, %v1636
        %s1671 = scalar_lea.vmem %s4, 3
        %v1672 = vld [vmem:[%s1671] sm:$0x7]
        %v1674 = vperm.slane %v1672, 0
        %v1675 = vperm.slane %v1672, 1
        %v1676 = vperm.slane %v1672, 2
        %v1712 = vunpack.c.l.b16 %v1638
        %v1713 = vunpack.c.h.b16 %v1638
        %v1714 = vunpack.c.l.b16 %v1639
        %v1715 = vunpack.c.l.b16 %v1640
        %v1716 = vunpack.c.h.b16 %v1640
        %v1717 = vunpack.c.l.b16 %v1641
        %v1718 = vunpack.c.l.b16 %v1642
        %v1719 = vunpack.c.h.b16 %v1642
        %v1720 = vunpack.c.l.b16 %v1643
        %v1721 = vunpack.c.l.b16 %v1644
        %v1722 = vunpack.c.h.b16 %v1644
        %v1723 = vunpack.c.l.b16 %v1645
        %v1724 = vunpack.c.l.b16 %v1646
        %v1725 = vunpack.c.h.b16 %v1646
        %v1726 = vunpack.c.l.b16 %v1647
        %v1727 = vunpack.c.l.b16 %v1648
        %v1728 = vunpack.c.h.b16 %v1648
        %v1729 = vunpack.c.l.b16 %v1649
        %v1730 = vunpack.c.l.b16 %v1650
        %v1731 = vunpack.c.h.b16 %v1650
        %v1732 = vunpack.c.l.b16 %v1651
        %v1733 = vunpack.c.l.b16 %v1652
        %v1734 = vunpack.c.h.b16 %v1652
        %v1735 = vunpack.c.l.b16 %v1653
        %v1736 = vunpack.c.l.b16 %v1654
        %v1737 = vunpack.c.h.b16 %v1654
        %v1738 = vunpack.c.l.b16 %v1655
        %v1739 = vunpack.c.l.b16 %v1656
        %v1740 = vunpack.c.h.b16 %v1656
        %v1741 = vunpack.c.l.b16 %v1657
        %v1742 = vunpack.c.l.b16 %v1658
        %v1743 = vunpack.c.h.b16 %v1658
        %v1744 = vunpack.c.l.b16 %v1659
        %v1745 = vunpack.c.l.b16 %v1660
        %v1746 = vunpack.c.h.b16 %v1660
        %v1747 = vunpack.c.l.b16 %v1661
        %v1748 = vunpack.c.l.b16 %v1662
        %v1749 = vunpack.c.h.b16 %v1662
        %v1750 = vunpack.c.l.b16 %v1663
        %v1751 = vunpack.c.l.b16 %v1664
        %v1752 = vunpack.c.h.b16 %v1664
        %v1753 = vunpack.c.l.b16 %v1665
        %v1754 = vunpack.c.l.b16 %v1666
        %v1755 = vunpack.c.h.b16 %v1666
        %v1756 = vunpack.c.l.b16 %v1667
        %v1757 = vunpack.c.l.b16 %v1668
        %v1758 = vunpack.c.h.b16 %v1668
        %v1759 = vunpack.c.l.b16 %v1669
        %v1760 = vpack.c.b16 %v1715, %v1712
        %v1761 = vpack.c.b16 %v1716, %v1713
        %v1762 = vpack.c.b16 %v1717, %v1714
        %v1763 = vpack.c.b16 %v1721, %v1718
        %v1764 = vpack.c.b16 %v1722, %v1719
        %v1765 = vpack.c.b16 %v1723, %v1720
        %v1766 = vpack.c.b16 %v1727, %v1724
        %v1767 = vpack.c.b16 %v1728, %v1725
        %v1768 = vpack.c.b16 %v1729, %v1726
        %v1769 = vpack.c.b16 %v1733, %v1730
        %v1770 = vpack.c.b16 %v1734, %v1731
        %v1771 = vpack.c.b16 %v1735, %v1732
        %v1772 = vpack.c.b16 %v1739, %v1736
        %v1773 = vpack.c.b16 %v1740, %v1737
        %v1774 = vpack.c.b16 %v1741, %v1738
        %v1775 = vpack.c.b16 %v1745, %v1742
        %v1776 = vpack.c.b16 %v1746, %v1743
        %v1777 = vpack.c.b16 %v1747, %v1744
        %v1778 = vpack.c.b16 %v1751, %v1748
        %v1779 = vpack.c.b16 %v1752, %v1749
        %v1780 = vpack.c.b16 %v1753, %v1750
        %v1781 = vpack.c.b16 %v1757, %v1754
        %v1782 = vpack.c.b16 %v1758, %v1755
        %v1783 = vpack.c.b16 %v1759, %v1756
        %1808 = vmatpush.bf16.msra.mxu0 %v1781
        %1809 = vmatpush.bf16.msra.mxu0 %v1778
        %1810 = vmatpush.bf16.msra.mxu0 %v1775
        %1811 = vmatpush.bf16.msra.mxu0 %v1772
        %1812 = vmatpush.bf16.msra.mxu0 %v1769
        %1813 = vmatpush.bf16.msra.mxu0 %v1766
        %1814 = vmatpush.bf16.msra.mxu0 %v1763
        %1815 = vmatpush.bf16.msra.mxu0 %v1760
        %1816 = vmatmul.bf16.gmra.mxu0 %v1670
        %v1817 = vpop.f32.mrf.mxu0
        %v1818 = vadd.f32 %v1674, %v1817
        %v1819 = vpop.f32.mrf.mxu0
        %1820 = vdwg.mxu0
        %1821 = vmatpush.bf16.msra.mxu0 %v1782
        %1822 = vmatpush.bf16.msra.mxu0 %v1779
        %1823 = vmatpush.bf16.msra.mxu0 %v1776
        %1824 = vmatpush.bf16.msra.mxu0 %v1773
        %1825 = vmatpush.bf16.msra.mxu0 %v1770
        %1826 = vmatpush.bf16.msra.mxu0 %v1767
        %1827 = vmatpush.bf16.msra.mxu0 %v1764
        %1828 = vmatpush.bf16.msra.mxu0 %v1761
        %1829 = vmatmul.bf16.gmra.mxu0 %v1670
        %v1830 = vpop.f32.mrf.mxu0
        %v1831 = vadd.f32 %v1675, %v1830
        %v1832 = vpop.f32.mrf.mxu0
        %1833 = vdwg.mxu0
        %1834 = vmatpush.bf16.msra.mxu0 %v1783
        %1835 = vmatpush.bf16.msra.mxu0 %v1780
        %1836 = vmatpush.bf16.msra.mxu0 %v1777
        %1837 = vmatpush.bf16.msra.mxu0 %v1774
        %1838 = vmatpush.bf16.msra.mxu0 %v1771
        %1839 = vmatpush.bf16.msra.mxu0 %v1768
        %1840 = vmatpush.bf16.msra.mxu0 %v1765
        %1841 = vmatpush.bf16.msra.mxu0 %v1762
        %1842 = vmatmul.bf16.gmra.mxu0 %v1670
        %v1843 = vpop.f32.mrf.mxu0
        %v1844 = vadd.f32 %v1676, %v1843
        %v1845 = vpop.f32.mrf.mxu0
        %1846 = vdwg.mxu0
        %v1847 = vpack.c.bf16 %v1818, %v1818
        %v1848 = vpack.c.bf16 %v1831, %v1831
        %v1849 = vpack.c.bf16 %v1844, %v1844
        %v1851 = vsel %vm819, %v1847, 0
        %v1854 = vsel %vm819, %v1848, 0
        %1856 = vmatpush.bf16.xpose.msra.mxu0 0
        %1857 = vmatpush.bf16.xpose.msra.mxu0 0
        %1858 = vmatpush.bf16.xpose.msra.mxu0 0
        %1859 = vmatpush.bf16.xpose.msra.mxu0 0
        %1860 = vmatpush.bf16.xpose.msra.mxu0 0
        %1861 = vmatpush.bf16.xpose.msra.mxu0 0
        %1862 = vmatpush.bf16.xpose.msra.mxu0 0
        %1863 = vmatpush.bf16.xpose.msra.mxu0 %v1854
        %1864 = vmatmul.bf16.gmra.mxu0 %v1851
        %v1865 = vpop.f32.mrf.mxu0
        %v1866 = vadd.f32 0.0, %v1865
        %v1867 = vpop.f32.mrf.mxu0
        %1868 = vdwg.mxu0
        %v1869 = vmul.f32 %v1866, 0.17677669
        %v1870 = vsel %vm840, %v1869, -inf
        %1871 = vmax.xlane.f32.xlu0 %v1870
        %v1872 = vpop.xlane.xlu0 %1871
        %v1873 = vsub.f32 %v1869, %v1872
        %v1874 = vmul.f32 %v1873, 1.442695
        %v1875 = vpow.pop %v1874
        %v1876 = vsel %vm840, %v1875, 0.0
        %1877 = vadd.xlane.f32.xlu0 %v1876
        %v1878 = vpop.xlane.xlu0 %1877
        %v1879 = vrcp.pop %v1878
        %v1880 = vmul.f32 %v1878, %v1879
        %v1881 = vsub.f32 1.0, %v1880
        %v1882 = vmul.f32 %v1879, %v1881
        %v1883 = vadd.f32 %v1879, %v1882
        %vm1884 = vweird.f32 %v1878
        %vm1885 = vweird.f32 %v1879
        %vm1886 = vmor %vm1884, %vm1885
        %v1887 = vsel %vm1886, %v1879, %v1883
        %v1888 = vand.u32 2147483647, %v1878
        %vm1889 = vcmp.eq.f32.partialorder %v1888, 8.507059e+37
        %v1890 = vand.u32 %v1878, 2147483648
        %v1891 = vor.u32 1.1754944e-38, %v1890
        %v1892 = vsel %vm1889, %v1891, %v1887
        %v1893 = vmul.f32 %v1875, %v1892
        %v1894 = vpack.c.bf16 %v1893, %v1893
        %v1896 = vsel %vm840, %v1894, 0
        %v1899 = vsel %vm869, %v1849, 0
        %1901 = vmatpush.bf16.msra.mxu0 0
        %1902 = vmatpush.bf16.msra.mxu0 0
        %1903 = vmatpush.bf16.msra.mxu0 0
        %1904 = vmatpush.bf16.msra.mxu0 0
        %1905 = vmatpush.bf16.msra.mxu0 0
        %1906 = vmatpush.bf16.msra.mxu0 0
        %1907 = vmatpush.bf16.msra.mxu0 0
        %1908 = vmatpush.bf16.msra.mxu0 %v1899
        %1909 = vmatmul.bf16.gmra.mxu0 %v1896
        %v1910 = vpop.f32.mrf.mxu0
        %v1911 = vadd.f32 0.0, %v1910
        %v1912 = vpop.f32.mrf.mxu0
        %1913 = vdwg.mxu0
        %1915 = vrot.lane.b32.xlu0 %v1847, 96
        %v1916 = vpop.permute.xlu0 %1915
        %1918 = vrot.lane.b32.xlu0 %v1848, 96
        %v1919 = vpop.permute.xlu0 %1918
        %v1921 = vsel %vm819, %v1916, 0
        %v1924 = vsel %vm819, %v1919, 0
        %1926 = vmatpush.bf16.xpose.msra.mxu0 0
        %1927 = vmatpush.bf16.xpose.msra.mxu0 0
        %1928 = vmatpush.bf16.xpose.msra.mxu0 0
        %1929 = vmatpush.bf16.xpose.msra.mxu0 0
        %1930 = vmatpush.bf16.xpose.msra.mxu0 0
        %1931 = vmatpush.bf16.xpose.msra.mxu0 0
        %1932 = vmatpush.bf16.xpose.msra.mxu0 0
        %1933 = vmatpush.bf16.xpose.msra.mxu0 %v1924
        %1934 = vmatmul.bf16.gmra.mxu0 %v1921
        %v1935 = vpop.f32.mrf.mxu0
        %v1936 = vadd.f32 0.0, %v1935
        %v1937 = vpop.f32.mrf.mxu0
        %1938 = vdwg.mxu0
        %v1939 = vmul.f32 %v1936, 0.17677669
        %v1940 = vsel %vm840, %v1939, -inf
        %1941 = vmax.xlane.f32.xlu0 %v1940
        %v1942 = vpop.xlane.xlu0 %1941
        %v1943 = vsub.f32 %v1939, %v1942
        %v1944 = vmul.f32 %v1943, 1.442695
        %v1945 = vpow.pop %v1944
        %v1946 = vsel %vm840, %v1945, 0.0
        %1947 = vadd.xlane.f32.xlu0 %v1946
        %v1948 = vpop.xlane.xlu0 %1947
        %v1949 = vrcp.pop %v1948
        %v1950 = vmul.f32 %v1948, %v1949
        %v1951 = vsub.f32 1.0, %v1950
        %v1952 = vmul.f32 %v1949, %v1951
        %v1953 = vadd.f32 %v1949, %v1952
        %vm1954 = vweird.f32 %v1948
        %vm1955 = vweird.f32 %v1949
        %vm1956 = vmor %vm1954, %vm1955
        %v1957 = vsel %vm1956, %v1949, %v1953
        %v1958 = vand.u32 2147483647, %v1948
        %vm1959 = vcmp.eq.f32.partialorder %v1958, 8.507059e+37
        %v1960 = vand.u32 %v1948, 2147483648
        %v1961 = vor.u32 1.1754944e-38, %v1960
        %v1962 = vsel %vm1959, %v1961, %v1957
        %v1963 = vmul.f32 %v1945, %v1962
        %v1964 = vpack.c.bf16 %v1963, %v1963
        %1966 = vrot.lane.b32.xlu0 %v1849, 96
        %v1967 = vpop.permute.xlu0 %1966
        %v1969 = vsel %vm840, %v1964, 0
        %v1972 = vsel %vm869, %v1967, 0
        %1974 = vmatpush.bf16.msra.mxu0 0
        %1975 = vmatpush.bf16.msra.mxu0 0
        %1976 = vmatpush.bf16.msra.mxu0 0
        %1977 = vmatpush.bf16.msra.mxu0 0
        %1978 = vmatpush.bf16.msra.mxu0 0
        %1979 = vmatpush.bf16.msra.mxu0 0
        %1980 = vmatpush.bf16.msra.mxu0 0
        %1981 = vmatpush.bf16.msra.mxu0 %v1972
        %1982 = vmatmul.bf16.gmra.mxu0 %v1969
        %v1983 = vpop.f32.mrf.mxu0
        %v1984 = vadd.f32 0.0, %v1983
        %v1985 = vpop.f32.mrf.mxu0
        %1986 = vdwg.mxu0
        %1987 = vrot.lane.b32.xlu0 %v1847, 64
        %v1988 = vpop.permute.xlu0 %1987
        %1989 = vrot.lane.b32.xlu0 %v1848, 64
        %v1990 = vpop.permute.xlu0 %1989
        %v1992 = vsel %vm819, %v1988, 0
        %v1995 = vsel %vm819, %v1990, 0
        %1997 = vmatpush.bf16.xpose.msra.mxu0 0
        %1998 = vmatpush.bf16.xpose.msra.mxu0 0
        %1999 = vmatpush.bf16.xpose.msra.mxu0 0
        %2000 = vmatpush.bf16.xpose.msra.mxu0 0
        %2001 = vmatpush.bf16.xpose.msra.mxu0 0
        %2002 = vmatpush.bf16.xpose.msra.mxu0 0
        %2003 = vmatpush.bf16.xpose.msra.mxu0 0
        %2004 = vmatpush.bf16.xpose.msra.mxu0 %v1995
        %2005 = vmatmul.bf16.gmra.mxu0 %v1992
        %v2006 = vpop.f32.mrf.mxu0
        %v2007 = vadd.f32 0.0, %v2006
        %v2008 = vpop.f32.mrf.mxu0
        %2009 = vdwg.mxu0
        %v2010 = vmul.f32 %v2007, 0.17677669
        %v2011 = vsel %vm840, %v2010, -inf
        %2012 = vmax.xlane.f32.xlu0 %v2011
        %v2013 = vpop.xlane.xlu0 %2012
        %v2014 = vsub.f32 %v2010, %v2013
        %v2015 = vmul.f32 %v2014, 1.442695
        %v2016 = vpow.pop %v2015
        %v2017 = vsel %vm840, %v2016, 0.0
        %2018 = vadd.xlane.f32.xlu0 %v2017
        %v2019 = vpop.xlane.xlu0 %2018
        %v2020 = vrcp.pop %v2019
        %v2021 = vmul.f32 %v2019, %v2020
        %v2022 = vsub.f32 1.0, %v2021
        %v2023 = vmul.f32 %v2020, %v2022
        %v2024 = vadd.f32 %v2020, %v2023
        %vm2025 = vweird.f32 %v2019
        %vm2026 = vweird.f32 %v2020
        %vm2027 = vmor %vm2025, %vm2026
        %v2028 = vsel %vm2027, %v2020, %v2024
        %v2029 = vand.u32 2147483647, %v2019
        %vm2030 = vcmp.eq.f32.partialorder %v2029, 8.507059e+37
        %v2031 = vand.u32 %v2019, 2147483648
        %v2032 = vor.u32 1.1754944e-38, %v2031
        %v2033 = vsel %vm2030, %v2032, %v2028
        %v2034 = vmul.f32 %v2016, %v2033
        %v2035 = vpack.c.bf16 %v2034, %v2034
        %2036 = vrot.lane.b32.xlu0 %v1849, 64
        %v2037 = vpop.permute.xlu0 %2036
        %v2039 = vsel %vm840, %v2035, 0
        %v2042 = vsel %vm869, %v2037, 0
        %2044 = vmatpush.bf16.msra.mxu0 0
        %2045 = vmatpush.bf16.msra.mxu0 0
        %2046 = vmatpush.bf16.msra.mxu0 0
        %2047 = vmatpush.bf16.msra.mxu0 0
        %2048 = vmatpush.bf16.msra.mxu0 0
        %2049 = vmatpush.bf16.msra.mxu0 0
        %2050 = vmatpush.bf16.msra.mxu0 0
        %2051 = vmatpush.bf16.msra.mxu0 %v2042
        %2052 = vmatmul.bf16.gmra.mxu0 %v2039
        %v2053 = vpop.f32.mrf.mxu0
        %v2054 = vadd.f32 0.0, %v2053
        %v2055 = vpop.f32.mrf.mxu0
        %2056 = vdwg.mxu0
        %2057 = vrot.lane.b32.xlu0 %v1847, 32
        %v2058 = vpop.permute.xlu0 %2057
        %2059 = vrot.lane.b32.xlu0 %v1848, 32
        %v2060 = vpop.permute.xlu0 %2059
        %v2062 = vsel %vm819, %v2058, 0
        %v2065 = vsel %vm819, %v2060, 0
        %2067 = vmatpush.bf16.xpose.msra.mxu0 0
        %2068 = vmatpush.bf16.xpose.msra.mxu0 0
        %2069 = vmatpush.bf16.xpose.msra.mxu0 0
        %2070 = vmatpush.bf16.xpose.msra.mxu0 0
        %2071 = vmatpush.bf16.xpose.msra.mxu0 0
        %2072 = vmatpush.bf16.xpose.msra.mxu0 0
        %2073 = vmatpush.bf16.xpose.msra.mxu0 0
        %2074 = vmatpush.bf16.xpose.msra.mxu0 %v2065
        %2075 = vmatmul.bf16.gmra.mxu0 %v2062
        %v2076 = vpop.f32.mrf.mxu0
        %v2077 = vadd.f32 0.0, %v2076
        %v2078 = vpop.f32.mrf.mxu0
        %2079 = vdwg.mxu0
        %v2080 = vmul.f32 %v2077, 0.17677669
        %v2081 = vsel %vm840, %v2080, -inf
        %2082 = vmax.xlane.f32.xlu0 %v2081
        %v2083 = vpop.xlane.xlu0 %2082
        %v2084 = vsub.f32 %v2080, %v2083
        %v2085 = vmul.f32 %v2084, 1.442695
        %v2086 = vpow.pop %v2085
        %v2087 = vsel %vm840, %v2086, 0.0
        %2088 = vadd.xlane.f32.xlu0 %v2087
        %v2089 = vpop.xlane.xlu0 %2088
        %v2090 = vrcp.pop %v2089
        %v2091 = vmul.f32 %v2089, %v2090
        %v2092 = vsub.f32 1.0, %v2091
        %v2093 = vmul.f32 %v2090, %v2092
        %v2094 = vadd.f32 %v2090, %v2093
        %vm2095 = vweird.f32 %v2089
        %vm2096 = vweird.f32 %v2090
        %vm2097 = vmor %vm2095, %vm2096
        %v2098 = vsel %vm2097, %v2090, %v2094
        %v2099 = vand.u32 2147483647, %v2089
        %vm2100 = vcmp.eq.f32.partialorder %v2099, 8.507059e+37
        %v2101 = vand.u32 %v2089, 2147483648
        %v2102 = vor.u32 1.1754944e-38, %v2101
        %v2103 = vsel %vm2100, %v2102, %v2098
        %v2104 = vmul.f32 %v2086, %v2103
        %v2105 = vpack.c.bf16 %v2104, %v2104
        %2106 = vrot.lane.b32.xlu0 %v1849, 32
        %v2107 = vpop.permute.xlu0 %2106
        %v2109 = vsel %vm840, %v2105, 0
        %v2112 = vsel %vm869, %v2107, 0
        %2114 = vmatpush.bf16.msra.mxu0 0
        %2115 = vmatpush.bf16.msra.mxu0 0
        %2116 = vmatpush.bf16.msra.mxu0 0
        %2117 = vmatpush.bf16.msra.mxu0 0
        %2118 = vmatpush.bf16.msra.mxu0 0
        %2119 = vmatpush.bf16.msra.mxu0 0
        %2120 = vmatpush.bf16.msra.mxu0 0
        %2121 = vmatpush.bf16.msra.mxu0 %v2112
        %2122 = vmatmul.bf16.gmra.mxu0 %v2109
        %v2123 = vpop.f32.mrf.mxu0
        %v2124 = vadd.f32 0.0, %v2123
        %v2125 = vpop.f32.mrf.mxu0
        %2126 = vdwg.mxu0
        %2128 = vrot.lane.b32.xlu0 %v1984, 32
        %v2129 = vpop.permute.xlu0 %2128
        %2132 = vrot.lane.b32.xlu0 %v2054, 64
        %v2133 = vpop.permute.xlu0 %2132
        %2136 = vrot.lane.b32.xlu0 %v2124, 96
        %v2137 = vpop.permute.xlu0 %2136
        %v2139 = vsel %vm819, %v1911, %v2129
        %v2140 = vsel %vm1112, %v2139, %v2133
        %v2141 = vsel %vm1114, %v2140, %v2137
        %s2142 = scalar_lea.vmem [#allocation7], 64
        %v2143 = vld [vmem:[%s2142] sm:$0xf]
        %v2144 = vld [vmem:[%s2142 + $0x4] sm:$0xf]
        %v2145 = vld [vmem:[%s2142 + $0x8] sm:$0xf]
        %v2146 = vld [vmem:[%s2142 + $0xc] sm:$0xf]
        %v2147 = vld [vmem:[%s2142 + $0x10] sm:$0xf]
        %v2148 = vld [vmem:[%s2142 + $0x14] sm:$0xf]
        %v2149 = vld [vmem:[%s2142 + $0x18] sm:$0xf]
        %v2150 = vld [vmem:[%s2142 + $0x1c] sm:$0xf]
        %v2151 = vld [vmem:[%s2142 + $0x20] sm:$0xf]
        %v2152 = vld [vmem:[%s2142 + $0x24] sm:$0xf]
        %v2153 = vld [vmem:[%s2142 + $0x28] sm:$0xf]
        %v2154 = vld [vmem:[%s2142 + $0x2c] sm:$0xf]
        %v2155 = vld [vmem:[%s2142 + $0x30] sm:$0xf]
        %v2156 = vld [vmem:[%s2142 + $0x34] sm:$0xf]
        %v2157 = vld [vmem:[%s2142 + $0x38] sm:$0xf]
        %v2158 = vld [vmem:[%s2142 + $0x3c] sm:$0xf]
        %v2159 = vpack.c.bf16 %v2141, %v2141
        %s2160 = scalar_lea.vmem %s6, 1
        %v2161 = vld [vmem:[%s2160] sm:$0x1]
        %v2163 = vperm.slane %v2161, 0
        %v2181 = vunpack.c.l.b16 %v2143
        %v2182 = vunpack.c.l.b16 %v2144
        %v2183 = vunpack.c.l.b16 %v2145
        %v2184 = vunpack.c.l.b16 %v2146
        %v2185 = vunpack.c.l.b16 %v2147
        %v2186 = vunpack.c.l.b16 %v2148
        %v2187 = vunpack.c.l.b16 %v2149
        %v2188 = vunpack.c.l.b16 %v2150
        %v2189 = vunpack.c.l.b16 %v2151
        %v2190 = vunpack.c.l.b16 %v2152
        %v2191 = vunpack.c.l.b16 %v2153
        %v2192 = vunpack.c.l.b16 %v2154
        %v2193 = vunpack.c.l.b16 %v2155
        %v2194 = vunpack.c.l.b16 %v2156
        %v2195 = vunpack.c.l.b16 %v2157
        %v2196 = vunpack.c.l.b16 %v2158
        %v2197 = vpack.c.b16 %v2182, %v2181
        %v2198 = vpack.c.b16 %v2184, %v2183
        %v2199 = vpack.c.b16 %v2186, %v2185
        %v2200 = vpack.c.b16 %v2188, %v2187
        %v2201 = vpack.c.b16 %v2190, %v2189
        %v2202 = vpack.c.b16 %v2192, %v2191
        %v2203 = vpack.c.b16 %v2194, %v2193
        %v2204 = vpack.c.b16 %v2196, %v2195
        %2213 = vmatpush.bf16.msra.mxu0 %v2204
        %2214 = vmatpush.bf16.msra.mxu0 %v2203
        %2215 = vmatpush.bf16.msra.mxu0 %v2202
        %2216 = vmatpush.bf16.msra.mxu0 %v2201
        %2217 = vmatpush.bf16.msra.mxu0 %v2200
        %2218 = vmatpush.bf16.msra.mxu0 %v2199
        %2219 = vmatpush.bf16.msra.mxu0 %v2198
        %2220 = vmatpush.bf16.msra.mxu0 %v2197
        %2221 = vmatmul.bf16.gmra.mxu0 %v2159
        %v2222 = vpop.f32.mrf.mxu0
        %v2223 = vadd.f32 %v2163, %v2222
        %v2224 = vpop.f32.mrf.mxu0
        %2225 = vdwg.mxu0
        %v2226 = vadd.f32 %v2223, %v1636
        %s2227 = scalar_lea.vmem %s7, 1
        %v2228 = vld [vmem:[%s2227] sm:$0x1]
        %s2229 = scalar_lea.vmem %s8, 1
        %v2230 = vld [vmem:[%s2229] sm:$0x1]
        %2231 = vadd.xlane.f32.xlu0 %v2226
        %v2232 = vpop.xlane.xlu0 %2231
        %v2233 = vmul.f32 %v2232, %v581
        %v2234 = vsub.f32 %v2226, %v2233
        %v2235 = vmul.f32 %v2234, %v2234
        %2236 = vadd.xlane.f32.xlu0 %v2235
        %v2237 = vpop.xlane.xlu0 %2236
        %v2238 = vmul.f32 %v2237, %v581
        %v2239 = vadd.f32 %v2238, 1e-12
        %v2240 = vrsqrt.pop %v2239
        %v2241 = vmul.f32 %v2240, %v2239
        %v2242 = vmul.f32 %v2241, %v2240
        %v2243 = vmul.f32 0.5, %v2242
        %v2244 = vsub.f32 1.5, %v2243
        %v2245 = vmul.f32 %v2240, %v2244
        %vm2246 = vweird.f32 %v2239
        %vm2247 = vweird.f32 %v2240
        %vm2248 = vmor %vm2246, %vm2247
        %v2249 = vsel %vm2248, %v2240, %v2245
        %v2250 = vmul.f32 %v2234, %v2249
        %v2252 = vperm.slane %v2228, 0
        %v2254 = vmul.f32 %v2250, %v2252
        %v2256 = vperm.slane %v2230, 0
        %v2258 = vadd.f32 %v2254, %v2256
        %s2259 = scalar_lea.vmem %s9, 128
        %v2260 = vld [vmem:[%s2259] sm:$0xff]
        %v2261 = vld [vmem:[%s2259 + $0x8] sm:$0xff]
        %v2262 = vld [vmem:[%s2259 + $0x10] sm:$0xff]
        %v2263 = vld [vmem:[%s2259 + $0x18] sm:$0xff]
        %v2264 = vld [vmem:[%s2259 + $0x20] sm:$0xff]
        %v2265 = vld [vmem:[%s2259 + $0x28] sm:$0xff]
        %v2266 = vld [vmem:[%s2259 + $0x30] sm:$0xff]
        %v2267 = vld [vmem:[%s2259 + $0x38] sm:$0xff]
        %v2268 = vld [vmem:[%s2259 + $0x40] sm:$0xff]
        %v2269 = vld [vmem:[%s2259 + $0x48] sm:$0xff]
        %v2270 = vld [vmem:[%s2259 + $0x50] sm:$0xff]
        %v2271 = vld [vmem:[%s2259 + $0x58] sm:$0xff]
        %v2272 = vld [vmem:[%s2259 + $0x60] sm:$0xff]
        %v2273 = vld [vmem:[%s2259 + $0x68] sm:$0xff]
        %v2274 = vld [vmem:[%s2259 + $0x70] sm:$0xff]
        %v2275 = vld [vmem:[%s2259 + $0x78] sm:$0xff]
        %v2276 = vpack.c.bf16 %v2258, %v2258
        %s2277 = scalar_lea.vmem %s10, 2
        %v2278 = vld [vmem:[%s2277] sm:$0x3]
        %v2280 = vperm.slane %v2278, 0
        %v2281 = vperm.slane %v2278, 1
        %v2300 = vunpack.c.l.b16 %v2260
        %v2301 = vunpack.c.h.b16 %v2260
        %v2302 = vunpack.c.l.b16 %v2261
        %v2303 = vunpack.c.h.b16 %v2261
        %v2304 = vunpack.c.l.b16 %v2262
        %v2305 = vunpack.c.h.b16 %v2262
        %v2306 = vunpack.c.l.b16 %v2263
        %v2307 = vunpack.c.h.b16 %v2263
        %v2308 = vunpack.c.l.b16 %v2264
        %v2309 = vunpack.c.h.b16 %v2264
        %v2310 = vunpack.c.l.b16 %v2265
        %v2311 = vunpack.c.h.b16 %v2265
        %v2312 = vunpack.c.l.b16 %v2266
        %v2313 = vunpack.c.h.b16 %v2266
        %v2314 = vunpack.c.l.b16 %v2267
        %v2315 = vunpack.c.h.b16 %v2267
        %v2316 = vunpack.c.l.b16 %v2268
        %v2317 = vunpack.c.h.b16 %v2268
        %v2318 = vunpack.c.l.b16 %v2269
        %v2319 = vunpack.c.h.b16 %v2269
        %v2320 = vunpack.c.l.b16 %v2270
        %v2321 = vunpack.c.h.b16 %v2270
        %v2322 = vunpack.c.l.b16 %v2271
        %v2323 = vunpack.c.h.b16 %v2271
        %v2324 = vunpack.c.l.b16 %v2272
        %v2325 = vunpack.c.h.b16 %v2272
        %v2326 = vunpack.c.l.b16 %v2273
        %v2327 = vunpack.c.h.b16 %v2273
        %v2328 = vunpack.c.l.b16 %v2274
        %v2329 = vunpack.c.h.b16 %v2274
        %v2330 = vunpack.c.l.b16 %v2275
        %v2331 = vunpack.c.h.b16 %v2275
        %v2332 = vpack.c.b16 %v2302, %v2300
        %v2333 = vpack.c.b16 %v2303, %v2301
        %v2334 = vpack.c.b16 %v2306, %v2304
        %v2335 = vpack.c.b16 %v2307, %v2305
        %v2336 = vpack.c.b16 %v2310, %v2308
        %v2337 = vpack.c.b16 %v2311, %v2309
        %v2338 = vpack.c.b16 %v2314, %v2312
        %v2339 = vpack.c.b16 %v2315, %v2313
        %v2340 = vpack.c.b16 %v2318, %v2316
        %v2341 = vpack.c.b16 %v2319, %v2317
        %v2342 = vpack.c.b16 %v2322, %v2320
        %v2343 = vpack.c.b16 %v2323, %v2321
        %v2344 = vpack.c.b16 %v2326, %v2324
        %v2345 = vpack.c.b16 %v2327, %v2325
        %v2346 = vpack.c.b16 %v2330, %v2328
        %v2347 = vpack.c.b16 %v2331, %v2329
        %2364 = vmatpush.bf16.msra.mxu0 %v2346
        %2365 = vmatpush.bf16.msra.mxu0 %v2344
        %2366 = vmatpush.bf16.msra.mxu0 %v2342
        %2367 = vmatpush.bf16.msra.mxu0 %v2340
        %2368 = vmatpush.bf16.msra.mxu0 %v2338
        %2369 = vmatpush.bf16.msra.mxu0 %v2336
        %2370 = vmatpush.bf16.msra.mxu0 %v2334
        %2371 = vmatpush.bf16.msra.mxu0 %v2332
        %2372 = vmatmul.bf16.gmra.mxu0 %v2276
        %v2373 = vpop.f32.mrf.mxu0
        %v2374 = vadd.f32 %v2280, %v2373
        %v2375 = vpop.f32.mrf.mxu0
        %2376 = vdwg.mxu0
        %2377 = vmatpush.bf16.msra.mxu0 %v2347
        %2378 = vmatpush.bf16.msra.mxu0 %v2345
        %2379 = vmatpush.bf16.msra.mxu0 %v2343
        %2380 = vmatpush.bf16.msra.mxu0 %v2341
        %2381 = vmatpush.bf16.msra.mxu0 %v2339
        %2382 = vmatpush.bf16.msra.mxu0 %v2337
        %2383 = vmatpush.bf16.msra.mxu0 %v2335
        %2384 = vmatpush.bf16.msra.mxu0 %v2333
        %2385 = vmatmul.bf16.gmra.mxu0 %v2276
        %v2386 = vpop.f32.mrf.mxu0
        %v2387 = vadd.f32 %v2281, %v2386
        %v2388 = vpop.f32.mrf.mxu0
        %2389 = vdwg.mxu0
        %v2390 = vmul.f32 %v2374, 0.5
        %v2391 = vmul.f32 %v2387, 0.5
        %v2392 = vmul.f32 %v2374, 0.70710677
        %v2393 = vmul.f32 %v2387, 0.70710677
        %v2394 = vmul.f32 %v2392, %v2392
        %v2395 = vmin.f32 16.0, %v2394
        %v2396 = vmul.f32 %v2395, 2.1237322e-06
        %v2397 = vadd.f32 %v2396, 0.00028619796
        %v2398 = vmul.f32 %v2395, %v2397
        %v2399 = vadd.f32 %v2398, 0.0036580483
        %v2400 = vmul.f32 %v2395, %v2399
        %v2401 = vadd.f32 %v2400, 0.05243302
        %v2402 = vmul.f32 %v2395, %v2401
        %v2403 = vadd.f32 %v2402, 0.18741608
        %v2404 = vmul.f32 %v2395, %v2403
        %v2405 = vadd.f32 %v2404, 1.1283791
        %v2406 = vmul.f32 %v2392, %v2405
        %v2407 = vmul.f32 %v2395, 3.8918573e-05
        %v2408 = vadd.f32 %v2407, 0.001143296
        %v2409 = vmul.f32 %v2395, %v2408
        %v2410 = vadd.f32 %v2409, 0.014752088
        %v2411 = vmul.f32 %v2395, %v2410
        %v2412 = vadd.f32 %v2411, 0.112945676
        %v2413 = vmul.f32 %v2395, %v2412
        %v2414 = vadd.f32 %v2413, 0.4994258
        %v2415 = vmul.f32 %v2395, %v2414
        %v2416 = vadd.f32 %v2415, 1.0
        %v2417 = vrcp.pop %v2416
        %v2418 = vmul.f32 %v2416, %v2417
        %v2419 = vsub.f32 1.0, %v2418
        %v2420 = vmul.f32 %v2417, %v2419
        %v2421 = vadd.f32 %v2417, %v2420
        %vm2422 = vweird.f32 %v2416
        %vm2423 = vweird.f32 %v2417
        %vm2424 = vmor %vm2422, %vm2423
        %v2425 = vsel %vm2424, %v2417, %v2421
        %v2426 = vand.u32 2147483647, %v2416
        %vm2427 = vcmp.eq.f32.partialorder %v2426, 8.507059e+37
        %v2428 = vand.u32 %v2416, 2147483648
        %v2429 = vor.u32 1.1754944e-38, %v2428
        %v2430 = vsel %vm2427, %v2429, %v2425
        %v2431 = vmul.f32 %v2406, %v2430
        %v2432 = vmin.f32 %v2431, 1.0
        %v2433 = vmax.f32 %v2432, -1.0
        %v2434 = vmul.f32 %v2393, %v2393
        %v2435 = vmin.f32 16.0, %v2434
        %v2436 = vmul.f32 %v2435, 2.1237322e-06
        %v2437 = vadd.f32 %v2436, 0.00028619796
        %v2438 = vmul.f32 %v2435, %v2437
        %v2439 = vadd.f32 %v2438, 0.0036580483
        %v2440 = vmul.f32 %v2435, %v2439
        %v2441 = vadd.f32 %v2440, 0.05243302
        %v2442 = vmul.f32 %v2435, %v2441
        %v2443 = vadd.f32 %v2442, 0.18741608
        %v2444 = vmul.f32 %v2435, %v2443
        %v2445 = vadd.f32 %v2444, 1.1283791
        %v2446 = vmul.f32 %v2393, %v2445
        %v2447 = vmul.f32 %v2435, 3.8918573e-05
        %v2448 = vadd.f32 %v2447, 0.001143296
        %v2449 = vmul.f32 %v2435, %v2448
        %v2450 = vadd.f32 %v2449, 0.014752088
        %v2451 = vmul.f32 %v2435, %v2450
        %v2452 = vadd.f32 %v2451, 0.112945676
        %v2453 = vmul.f32 %v2435, %v2452
        %v2454 = vadd.f32 %v2453, 0.4994258
        %v2455 = vmul.f32 %v2435, %v2454
        %v2456 = vadd.f32 %v2455, 1.0
        %v2457 = vrcp.pop %v2456
        %v2458 = vmul.f32 %v2456, %v2457
        %v2459 = vsub.f32 1.0, %v2458
        %v2460 = vmul.f32 %v2457, %v2459
        %v2461 = vadd.f32 %v2457, %v2460
        %vm2462 = vweird.f32 %v2456
        %vm2463 = vweird.f32 %v2457
        %vm2464 = vmor %vm2462, %vm2463
        %v2465 = vsel %vm2464, %v2457, %v2461
        %v2466 = vand.u32 2147483647, %v2456
        %vm2467 = vcmp.eq.f32.partialorder %v2466, 8.507059e+37
        %v2468 = vand.u32 %v2456, 2147483648
        %v2469 = vor.u32 1.1754944e-38, %v2468
        %v2470 = vsel %vm2467, %v2469, %v2465
        %v2471 = vmul.f32 %v2446, %v2470
        %v2472 = vmin.f32 %v2471, 1.0
        %v2473 = vmax.f32 %v2472, -1.0
        %v2474 = vadd.f32 %v2433, 1.0
        %v2475 = vadd.f32 %v2473, 1.0
        %v2476 = vmul.f32 %v2390, %v2474
        %v2477 = vmul.f32 %v2391, %v2475
        %s2478 = scalar_lea.vmem [#allocation9], 128
        %v2479 = vld [vmem:[%s2478] sm:$0xf]
        %v2480 = vld [vmem:[%s2478 + $0x4] sm:$0xf]
        %v2481 = vld [vmem:[%s2478 + $0x8] sm:$0xf]
        %v2482 = vld [vmem:[%s2478 + $0xc] sm:$0xf]
        %v2483 = vld [vmem:[%s2478 + $0x10] sm:$0xf]
        %v2484 = vld [vmem:[%s2478 + $0x14] sm:$0xf]
        %v2485 = vld [vmem:[%s2478 + $0x18] sm:$0xf]
        %v2486 = vld [vmem:[%s2478 + $0x1c] sm:$0xf]
        %v2487 = vld [vmem:[%s2478 + $0x20] sm:$0xf]
        %v2488 = vld [vmem:[%s2478 + $0x24] sm:$0xf]
        %v2489 = vld [vmem:[%s2478 + $0x28] sm:$0xf]
        %v2490 = vld [vmem:[%s2478 + $0x2c] sm:$0xf]
        %v2491 = vld [vmem:[%s2478 + $0x30] sm:$0xf]
        %v2492 = vld [vmem:[%s2478 + $0x34] sm:$0xf]
        %v2493 = vld [vmem:[%s2478 + $0x38] sm:$0xf]
        %v2494 = vld [vmem:[%s2478 + $0x3c] sm:$0xf]
        %v2495 = vld [vmem:[%s2478 + $0x40] sm:$0xf]
        %v2496 = vld [vmem:[%s2478 + $0x44] sm:$0xf]
        %v2497 = vld [vmem:[%s2478 + $0x48] sm:$0xf]
        %v2498 = vld [vmem:[%s2478 + $0x4c] sm:$0xf]
        %v2499 = vld [vmem:[%s2478 + $0x50] sm:$0xf]
        %v2500 = vld [vmem:[%s2478 + $0x54] sm:$0xf]
        %v2501 = vld [vmem:[%s2478 + $0x58] sm:$0xf]
        %v2502 = vld [vmem:[%s2478 + $0x5c] sm:$0xf]
        %v2503 = vld [vmem:[%s2478 + $0x60] sm:$0xf]
        %v2504 = vld [vmem:[%s2478 + $0x64] sm:$0xf]
        %v2505 = vld [vmem:[%s2478 + $0x68] sm:$0xf]
        %v2506 = vld [vmem:[%s2478 + $0x6c] sm:$0xf]
        %v2507 = vld [vmem:[%s2478 + $0x70] sm:$0xf]
        %v2508 = vld [vmem:[%s2478 + $0x74] sm:$0xf]
        %v2509 = vld [vmem:[%s2478 + $0x78] sm:$0xf]
        %v2510 = vld [vmem:[%s2478 + $0x7c] sm:$0xf]
        %v2511 = vpack.c.bf16 %v2476, %v2476
        %v2512 = vpack.c.bf16 %v2477, %v2477
        %s2513 = scalar_lea.vmem %s12, 1
        %v2514 = vld [vmem:[%s2513] sm:$0x1]
        %v2516 = vperm.slane %v2514, 0
        %v2550 = vunpack.c.l.b16 %v2479
        %v2551 = vunpack.c.l.b16 %v2480
        %v2552 = vunpack.c.l.b16 %v2481
        %v2553 = vunpack.c.l.b16 %v2482
        %v2554 = vunpack.c.l.b16 %v2483
        %v2555 = vunpack.c.l.b16 %v2484
        %v2556 = vunpack.c.l.b16 %v2485
        %v2557 = vunpack.c.l.b16 %v2486
        %v2558 = vunpack.c.l.b16 %v2487
        %v2559 = vunpack.c.l.b16 %v2488
        %v2560 = vunpack.c.l.b16 %v2489
        %v2561 = vunpack.c.l.b16 %v2490
        %v2562 = vunpack.c.l.b16 %v2491
        %v2563 = vunpack.c.l.b16 %v2492
        %v2564 = vunpack.c.l.b16 %v2493
        %v2565 = vunpack.c.l.b16 %v2494
        %v2566 = vunpack.c.l.b16 %v2495
        %v2567 = vunpack.c.l.b16 %v2496
        %v2568 = vunpack.c.l.b16 %v2497
        %v2569 = vunpack.c.l.b16 %v2498
        %v2570 = vunpack.c.l.b16 %v2499
        %v2571 = vunpack.c.l.b16 %v2500
        %v2572 = vunpack.c.l.b16 %v2501
        %v2573 = vunpack.c.l.b16 %v2502
        %v2574 = vunpack.c.l.b16 %v2503
        %v2575 = vunpack.c.l.b16 %v2504
        %v2576 = vunpack.c.l.b16 %v2505
        %v2577 = vunpack.c.l.b16 %v2506
        %v2578 = vunpack.c.l.b16 %v2507
        %v2579 = vunpack.c.l.b16 %v2508
        %v2580 = vunpack.c.l.b16 %v2509
        %v2581 = vunpack.c.l.b16 %v2510
        %v2582 = vpack.c.b16 %v2551, %v2550
        %v2583 = vpack.c.b16 %v2553, %v2552
        %v2584 = vpack.c.b16 %v2555, %v2554
        %v2585 = vpack.c.b16 %v2557, %v2556
        %v2586 = vpack.c.b16 %v2559, %v2558
        %v2587 = vpack.c.b16 %v2561, %v2560
        %v2588 = vpack.c.b16 %v2563, %v2562
        %v2589 = vpack.c.b16 %v2565, %v2564
        %v2590 = vpack.c.b16 %v2567, %v2566
        %v2591 = vpack.c.b16 %v2569, %v2568
        %v2592 = vpack.c.b16 %v2571, %v2570
        %v2593 = vpack.c.b16 %v2573, %v2572
        %v2594 = vpack.c.b16 %v2575, %v2574
        %v2595 = vpack.c.b16 %v2577, %v2576
        %v2596 = vpack.c.b16 %v2579, %v2578
        %v2597 = vpack.c.b16 %v2581, %v2580
        %2614 = vmatpush.bf16.msra.mxu0 %v2589
        %2615 = vmatpush.bf16.msra.mxu0 %v2588
        %2616 = vmatpush.bf16.msra.mxu0 %v2587
        %2617 = vmatpush.bf16.msra.mxu0 %v2586
        %2618 = vmatpush.bf16.msra.mxu0 %v2585
        %2619 = vmatpush.bf16.msra.mxu0 %v2584
        %2620 = vmatpush.bf16.msra.mxu0 %v2583
        %2621 = vmatpush.bf16.msra.mxu0 %v2582
        %2622 = vmatmul.bf16.gmra.mxu0 %v2511
        %v2623 = vpop.f32.mrf.mxu0
        %v2624 = vadd.f32 %v2516, %v2623
        %v2625 = vpop.f32.mrf.mxu0
        %2626 = vdwg.mxu0
        %2627 = vmatpush.bf16.msra.mxu0 %v2597
        %2628 = vmatpush.bf16.msra.mxu0 %v2596
        %2629 = vmatpush.bf16.msra.mxu0 %v2595
        %2630 = vmatpush.bf16.msra.mxu0 %v2594
        %2631 = vmatpush.bf16.msra.mxu0 %v2593
        %2632 = vmatpush.bf16.msra.mxu0 %v2592
        %2633 = vmatpush.bf16.msra.mxu0 %v2591
        %2634 = vmatpush.bf16.msra.mxu0 %v2590
        %2635 = vmatmul.bf16.gmra.mxu0 %v2512
        %v2636 = vpop.f32.mrf.mxu0
        %v2637 = vadd.f32 %v2624, %v2636
        %v2638 = vpop.f32.mrf.mxu0
        %2639 = vdwg.mxu0
        %v2640 = vadd.f32 %v2637, %v2258
        %s2641 = scalar_lea.vmem %s13, 1
        %v2642 = vld [vmem:[%s2641] sm:$0x1]
        %s2643 = scalar_lea.vmem %s14, 1
        %v2644 = vld [vmem:[%s2643] sm:$0x1]
        %2645 = vadd.xlane.f32.xlu0 %v2640
        %v2646 = vpop.xlane.xlu0 %2645
        %v2647 = vmul.f32 %v2646, %v581
        %v2648 = vsub.f32 %v2640, %v2647
        %v2649 = vmul.f32 %v2648, %v2648
        %2650 = vadd.xlane.f32.xlu0 %v2649
        %v2651 = vpop.xlane.xlu0 %2650
        %v2652 = vmul.f32 %v2651, %v581
        %v2653 = vadd.f32 %v2652, 1e-12
        %v2654 = vrsqrt.pop %v2653
        %v2655 = vmul.f32 %v2654, %v2653
        %v2656 = vmul.f32 %v2655, %v2654
        %v2657 = vmul.f32 0.5, %v2656
        %v2658 = vsub.f32 1.5, %v2657
        %v2659 = vmul.f32 %v2654, %v2658
        %vm2660 = vweird.f32 %v2653
        %vm2661 = vweird.f32 %v2654
        %vm2662 = vmor %vm2660, %vm2661
        %v2663 = vsel %vm2662, %v2654, %v2659
        %v2664 = vmul.f32 %v2648, %v2663
        %v2666 = vperm.slane %v2642, 0
        %v2668 = vmul.f32 %v2664, %v2666
        %v2670 = vperm.slane %v2644, 0
        %v2672 = vadd.f32 %v2668, %v2670
        %2673 = vst [vmem:[%s568] sm:$0xff] %v2672
        %p2674 = scmp.lt.s32.totalorder %s29, 1
        %s2675 = scalar_select %p2674, %s29, 1
        %s2676 = smul.addr %s2675, 8
        %s2677 = scalar_lea.vmem %s15, %s2676
        // Predicated region
        $region101: #{distilbert_qa_forward.3} parent=79 // pred_check
          %p2678 = pneg %p367
        $region102: #{distilbert_qa_forward.3} parent=79 // pred_check_branch
          %2680 = sbr.rel (%p2678) target = $region104
        $region103: #{distilbert_qa_forward.3} parent=79 // pred_region
          _
        $region104: #{distilbert_qa_forward.3} parent=79 // pred_fallthru
          _
      $region80: #{distilbert_qa_forward.3} parent=5 // pred_fallthru
        _
      %p2681 = scmp.le.s32.totalorder 2, %s24
      // Predicated region
      $region105: #{distilbert_qa_forward.3} parent=5 // pred_check
        %p2682 = pneg %p2681
      $region106: #{distilbert_qa_forward.3} parent=5 // pred_check_branch
        %2684 = sbr.rel (%p2682) target = $region108
      $region107: #{distilbert_qa_forward.3} parent=5 // pred_region
        %s2685 = ssub.s32 %s24, 2
        // Predicated region
        $region109: #{distilbert_qa_forward.3} parent=107 // pred_check
          %p2686 = pneg %p373
        $region110: #{distilbert_qa_forward.3} parent=107 // pred_check_branch
          %2688 = sbr.rel (%p2686) target = $region112
        $region111: #{distilbert_qa_forward.3} parent=107 // pred_region
          %p2689 = scmp.lt.s32.totalorder %s30, 1
          %s2690 = scalar_select %p2689, %s30, 1
          %s2691 = smul.addr %s2690, 8
          %s2692 = scalar_lea.vmem %s15, %s2691
        $region112: #{distilbert_qa_forward.3} parent=107 // pred_fallthru
          _
      $region108: #{distilbert_qa_forward.3} parent=5 // pred_fallthru
        _
    $region6: #{distilbert_qa_forward.3} parent=1 // loop_footer
      %s28 = sadd.s32 1, %s24
    $region7: #{distilbert_qa_forward.3} parent=1 // loop_footer_branch
      %23 = sbr.rel target = $region3
    $region8: #{distilbert_qa_forward.3} parent=1 // loop_exit
      _
    %2693 = vsyncpa [#allocation3], 1
    %s2694 = scalar_lea.sflag [#allocation3], 1
    %2695 = vsyncpa %s2694, 1
    %2696 = vsyncpa [#allocation5], 1
    %2697 = vsyncpa [#allocation8], 1

</llo_original>
